<compile_context>
chip_gen: v7x
topology: tpu7x:2x2x1
jax: 0.10.0
libtpu: 0.0.40
codegen_flags: <defaults>
</compile_context>

<pallas_src>
import functools
import math

import jax
import jax.numpy as jnp
from jax import lax
from jax.experimental import pallas as pl
from jax.experimental.pallas import tpu as pltpu

# ---------------- config (small shapes consistent with the module) ----------------
B = 2
C_IN = 3
IMG = 16
PATCH = 8
N_PATCH_SIDE = IMG // PATCH
NUM_PATCHES = N_PATCH_SIDE ** 2             # 4
V_TOKENS = NUM_PATCHES + 1                  # 5 (CLS + patches)
D_V = 32
HEADS_V = 2
LAYERS_V = 2
VOCAB = 64
SEQ = 8
D_T = 32
HEADS_T = 2
LAYERS_T = 2
PROJ_DIM = 16
LORA_R = 8
LORA_ALPHA = 8
LORA_SCALING = LORA_ALPHA / LORA_R          # 1.0
NEG_INF = -1e9

_TOWER_WEIGHT_KEYS = ("pre_g", "pre_b", "ln1_g", "ln1_b", "qkv_w", "qkv_b",
                      "o_w", "o_b", "ln2_g", "ln2_b", "fc1_w", "fc1_b",
                      "fc2_w", "fc2_b", "fln_g", "fln_b")


# ---------------- fused transformer-tower kernel ----------------
def _tower_kernel(*args, num_layers, num_heads, has_mask):
    i = 0
    x_ref = args[i]; i += 1
    mask_ref = None
    if has_mask:
        mask_ref = args[i]; i += 1
    (pre_g_ref, pre_b_ref,
     ln1_g_ref, ln1_b_ref, qkv_w_ref, qkv_b_ref, o_w_ref, o_b_ref,
     ln2_g_ref, ln2_b_ref, fc1_w_ref, fc1_b_ref, fc2_w_ref, fc2_b_ref,
     fln_g_ref, fln_b_ref, out_ref) = args[i:]

    x = x_ref[0].astype(jnp.float32)                       # (S, D)
    d = x.shape[-1]
    dh = d // num_heads
    scale = 1.0 / math.sqrt(dh)

    if has_mask:
        # additive padding mask built from attention_mask: (1, S) broadcast over rows
        bias = (1.0 - mask_ref[0].astype(jnp.float32)) * NEG_INF

    def ln(z, g, b, eps=1e-5):
        mu = jnp.mean(z, axis=-1, keepdims=True)
        var = jnp.mean((z - mu) ** 2, axis=-1, keepdims=True)
        return (z - mu) * lax.rsqrt(var + eps) * g + b

    # pre / embedding LayerNorm
    x = ln(x, pre_g_ref[...], pre_b_ref[...])

    for l in range(num_layers):
        # ---- attention block (LN1 fused, LoRA pre-merged, QKV fused) ----
        h = ln(x, ln1_g_ref[l], ln1_b_ref[l])
        qkv = jnp.dot(h, qkv_w_ref[l],
                      preferred_element_type=jnp.float32) + qkv_b_ref[l]   # (S, 3D)
        w_o = o_w_ref[l]                                    # (D, D)
        attn = o_b_ref[l]                                   # (1, D), broadcast below
        for hd in range(num_heads):
            q = qkv[:, hd * dh:(hd + 1) * dh]
            k = qkv[:, d + hd * dh:d + (hd + 1) * dh]
            v = qkv[:, 2 * d + hd * dh:2 * d + (hd + 1) * dh]
            s = lax.dot_general(q, k, (((1,), (1,)), ((), ())),
                                preferred_element_type=jnp.float32) * scale
            if has_mask:
                s = s + bias
            s = s - jnp.max(s, axis=-1, keepdims=True)
            p = jnp.exp(s)
            p = p * pl.reciprocal(jnp.sum(p, axis=-1, keepdims=True), approx=True)
            o_h = jnp.dot(p, v, preferred_element_type=jnp.float32)       # (S, dh)
            # head-concat folded into the output projection (row-slice of W_o)
            attn = attn + jnp.dot(o_h, w_o[hd * dh:(hd + 1) * dh, :],
                                  preferred_element_type=jnp.float32)
        x = x + attn

        # ---- MLP block (LN2 fused) ----
        h2 = ln(x, ln2_g_ref[l], ln2_b_ref[l])
        m = jnp.dot(h2, fc1_w_ref[l],
                    preferred_element_type=jnp.float32) + fc1_b_ref[l]
        m = jax.nn.gelu(m, approximate=True)
        m = jnp.dot(m, fc2_w_ref[l],
                    preferred_element_type=jnp.float32) + fc2_b_ref[l]
        x = x + m

    # CLS-token pool + final LayerNorm
    pooled = ln(x[0:1, :], fln_g_ref[...], fln_b_ref[...])  # (1, D)
    out_ref[0] = pooled.astype(out_ref.dtype)


def _weight_spec(shape):
    if len(shape) == 2:
        return pl.BlockSpec(shape, lambda b: (0, 0))
    return pl.BlockSpec(shape, lambda b: (0, 0, 0))


def tower_forward(x_emb, tower_p, num_heads, attn_mask=None):
    """Run a full transformer tower (all layers) in one pallas_call; grid over batch."""
    Bn, S, D = x_emb.shape
    L = tower_p["qkv_w"].shape[0]
    has_mask = attn_mask is not None

    inputs = [x_emb.astype(jnp.float32)]
    in_specs = [pl.BlockSpec((1, S, D), lambda b: (b, 0, 0))]
    if has_mask:
        inputs.append(attn_mask.reshape(Bn, 1, S).astype(jnp.float32))
        in_specs.append(pl.BlockSpec((1, 1, S), lambda b: (b, 0, 0)))
    for name in _TOWER_WEIGHT_KEYS:
        w = tower_p[name]
        inputs.append(w)
        in_specs.append(_weight_spec(w.shape))

    out = pl.pallas_call(
        functools.partial(_tower_kernel, num_layers=L, num_heads=num_heads,
                          has_mask=has_mask),
        out_shape=jax.ShapeDtypeStruct((Bn, 1, D), jnp.float32),
        grid=(Bn,),
        in_specs=in_specs,
        out_specs=pl.BlockSpec((1, 1, D), lambda b: (b, 0, 0)),
        compiler_params=pltpu.CompilerParams(dimension_semantics=("parallel",)),
    )(*inputs)
    return out.reshape(Bn, D)


# ---------------- fused contrastive head kernel ----------------
def _head_kernel(img_ref, txt_ref, ctr_ref, vproj_ref, tproj_ref, ls_ref,
                 loss_ref, img_o_ref, txt_o_ref, ctr_o_ref):
    img = jnp.dot(img_ref[...], vproj_ref[...], preferred_element_type=jnp.float32)
    txt = jnp.dot(txt_ref[...], tproj_ref[...], preferred_element_type=jnp.float32)
    ctr = jnp.dot(ctr_ref[...], tproj_ref[...], preferred_element_type=jnp.float32)

    def l2n(z):
        return z * lax.rsqrt(jnp.sum(z * z, axis=-1, keepdims=True) + 1e-12)

    img_n, txt_n, ctr_n = l2n(img), l2n(txt), l2n(ctr)
    scale = jnp.exp(ls_ref[...])                            # (1, 1)
    logits_t = lax.dot_general(txt_n, img_n, (((1,), (1,)), ((), ())),
                               preferred_element_type=jnp.float32) * scale  # (B, B)

    nb = logits_t.shape[0]
    rows = lax.broadcasted_iota(jnp.int32, (nb, nb), 0)
    cols = lax.broadcasted_iota(jnp.int32, (nb, nb), 1)
    eye = (rows == cols).astype(jnp.float32)
    diag = logits_t * eye

    # text->image CE (rows, labels = arange)
    m_r = jnp.max(logits_t, axis=1, keepdims=True)
    lse_r = m_r + jnp.log(jnp.sum(jnp.exp(logits_t - m_r), axis=1, keepdims=True))
    ce_t = jnp.sum(lse_r - jnp.sum(diag, axis=1, keepdims=True),
                   axis=0, keepdims=True) / nb              # (1, 1)
    # image->text CE == CE(logits_t^T), computed column-wise (no transpose)
    m_c = jnp.max(logits_t, axis=0, keepdims=True)
    lse_c = m_c + jnp.log(jnp.sum(jnp.exp(logits_t - m_c), axis=0, keepdims=True))
    ce_i = jnp.sum(lse_c - jnp.sum(diag, axis=0, keepdims=True),
                   axis=1, keepdims=True) / nb              # (1, 1)

    loss_ref[...] = 0.5 * (ce_t + ce_i)
    img_o_ref[...] = img_n.astype(img_o_ref.dtype)
    txt_o_ref[...] = txt_n.astype(txt_o_ref.dtype)
    ctr_o_ref[...] = ctr_n.astype(ctr_o_ref.dtype)


def clip_head(img_pooled, txt_pooled, ctr_pooled, vproj_w, tproj_w, logit_scale):
    Bn = img_pooled.shape[0]
    P = vproj_w.shape[1]
    inputs = (img_pooled, txt_pooled, ctr_pooled, vproj_w, tproj_w,
              jnp.reshape(logit_scale, (1, 1)).astype(jnp.float32))
    loss, img_n, txt_n, ctr_n = pl.pallas_call(
        _head_kernel,
        out_shape=(jax.ShapeDtypeStruct((1, 1), jnp.float32),
                   jax.ShapeDtypeStruct((Bn, P), jnp.float32),
                   jax.ShapeDtypeStruct((Bn, P), jnp.float32),
                   jax.ShapeDtypeStruct((Bn, P), jnp.float32)),
        grid=(1,),
        in_specs=[pl.BlockSpec(a.shape, lambda i: (0, 0)) for a in inputs],
        out_specs=(pl.BlockSpec((1, 1), lambda i: (0, 0)),
                   pl.BlockSpec((Bn, P), lambda i: (0, 0)),
                   pl.BlockSpec((Bn, P), lambda i: (0, 0)),
                   pl.BlockSpec((Bn, P), lambda i: (0, 0))),
    )(*inputs)
    return loss[0, 0], img_n, txt_n, ctr_n


# ---------------- forward (4 pallas_calls total) ----------------
@jax.jit
def xray_clip_forward(params, imgs, input_ids, attention_mask, token_type_ids,
                      center_input_ids, center_attention_mask, center_token_type_ids):
    vp, tp = params["vision"], params["text"]
    Bn = imgs.shape[0]

    # Vision embeddings (patchify + conv-as-matmul + CLS + pos) are pure data
    # movement / one tiny matmul — left to XLA; all transformer compute is Pallas.
    patches = (imgs.reshape(Bn, C_IN, N_PATCH_SIDE, PATCH, N_PATCH_SIDE, PATCH)
               .transpose(0, 2, 4, 1, 3, 5)
               .reshape(Bn, NUM_PATCHES, C_IN * PATCH * PATCH))
    patch_embeds = jnp.einsum("bpk,kd->bpd", patches, vp["patch_w2d"])
    cls = jnp.broadcast_to(vp["class_emb"][None, None, :], (Bn, 1, D_V))
    v_x = jnp.concatenate([cls, patch_embeds], axis=1) + vp["pos_emb"][None]
    img_pooled = tower_forward(v_x, vp["tower"], HEADS_V, attn_mask=None)

    # Text embeddings (token + position + token-type gathers) in XLA.
    def embed_text(ids, type_ids):
        return (jnp.take(tp["tok_emb"], ids, axis=0)
                + tp["pos_emb"][None, :ids.shape[1], :]
                + jnp.take(tp["type_emb"], type_ids, axis=0))

    txt_pooled = tower_forward(embed_text(input_ids, token_type_ids),
                               tp["tower"], HEADS_T, attn_mask=attention_mask)
    ctr_pooled = tower_forward(embed_text(center_input_ids, center_token_type_ids),
                               tp["tower"], HEADS_T, attn_mask=center_attention_mask)

    loss, img_e, txt_e, ctr_e = clip_head(img_pooled, txt_pooled, ctr_pooled,
                                          vp["proj_w"], tp["proj_w"],
                                          params["logit_scale"])
    return loss, img_e, txt_e, ctr_e


# ---------------- deterministic synthetic parameters ----------------
def init_raw_params(key):
    keys = iter(jax.random.split(key, 128))
    nk = lambda: next(keys)

    def nrm(shape, std=0.02):
        return (std * jax.random.normal(nk(), shape)).astype(jnp.float32)

    def init_layer(d):
        return dict(
            ln1_g=jnp.ones((d,), jnp.float32), ln1_b=jnp.zeros((d,), jnp.float32),
            q_w=nrm((d, d)), q_b=jnp.zeros((d,), jnp.float32),
            q_A=nrm((d, LORA_R)), q_B=nrm((LORA_R, d)),
            k_w=nrm((d, d)), k_b=jnp.zeros((d,), jnp.float32),
            v_w=nrm((d, d)), v_b=jnp.zeros((d,), jnp.float32),
            v_A=nrm((d, LORA_R)), v_B=nrm((LORA_R, d)),
            o_w=nrm((d, d)), o_b=jnp.zeros((d,), jnp.float32),
            ln2_g=jnp.ones((d,), jnp.float32), ln2_b=jnp.zeros((d,), jnp.float32),
            fc1_w=nrm((d, 4 * d)), fc1_b=jnp.zeros((4 * d,), jnp.float32),
            fc2_w=nrm((4 * d, d)), fc2_b=jnp.zeros((d,), jnp.float32),
        )

    return dict(
        vision=dict(
            class_emb=nrm((D_V,)),
            patch_w=nrm((D_V, C_IN, PATCH, PATCH)),          # conv weight, OIHW
            pos_emb=nrm((V_TOKENS, D_V)),
            pre_ln_g=jnp.ones((D_V,), jnp.float32), pre_ln_b=jnp.zeros((D_V,), jnp.float32),
            layers=[init_layer(D_V) for _ in range(LAYERS_V)],
            post_ln_g=jnp.ones((D_V,), jnp.float32), post_ln_b=jnp.zeros((D_V,), jnp.float32),
            proj_w=nrm((D_V, PROJ_DIM)),
        ),
        text=dict(
            tok_emb=nrm((VOCAB, D_T)),
            pos_emb=nrm((SEQ, D_T)),
            type_emb=nrm((2, D_T)),
            emb_ln_g=jnp.ones((D_T,), jnp.float32), emb_ln_b=jnp.zeros((D_T,), jnp.float32),
            layers=[init_layer(D_T) for _ in range(LAYERS_T)],
            final_ln_g=jnp.ones((D_T,), jnp.float32), final_ln_b=jnp.zeros((D_T,), jnp.float32),
            proj_w=nrm((D_T, PROJ_DIM)),
        ),
        logit_scale=jnp.float32(math.log(1.0 / 0.07)),
    )


def prepare_params(raw):
    """One-time setup: merge LoRA into q/v, fuse q/k/v weights, stack layers."""
    def prep_tower(layers, pre_g, pre_b, fin_g, fin_b):
        def stack(fn):
            return jnp.stack([fn(lp) for lp in layers], axis=0)
        return dict(
            pre_g=pre_g[None, :], pre_b=pre_b[None, :],
            ln1_g=stack(lambda lp: lp["ln1_g"][None, :]),
            ln1_b=stack(lambda lp: lp["ln1_b"][None, :]),
            qkv_w=stack(lambda lp: jnp.concatenate(
                [lp["q_w"] + LORA_SCALING * (lp["q_A"] @ lp["q_B"]),
                 lp["k_w"],
                 lp["v_w"] + LORA_SCALING * (lp["v_A"] @ lp["v_B"])], axis=1)),
            qkv_b=stack(lambda lp: jnp.concatenate(
                [lp["q_b"], lp["k_b"], lp["v_b"]])[None, :]),
            o_w=stack(lambda lp: lp["o_w"]),
            o_b=stack(lambda lp: lp["o_b"][None, :]),
            ln2_g=stack(lambda lp: lp["ln2_g"][None, :]),
            ln2_b=stack(lambda lp: lp["ln2_b"][None, :]),
            fc1_w=stack(lambda lp: lp["fc1_w"]),
            fc1_b=stack(lambda lp: lp["fc1_b"][None, :]),
            fc2_w=stack(lambda lp: lp["fc2_w"]),
            fc2_b=stack(lambda lp: lp["fc2_b"][None, :]),
            fln_g=fin_g[None, :], fln_b=fin_b[None, :],
        )

    v, t = raw["vision"], raw["text"]
    return dict(
        vision=dict(
            patch_w2d=v["patch_w"].reshape(D_V, C_IN * PATCH * PATCH).T,
            class_emb=v["class_emb"], pos_emb=v["pos_emb"],
            tower=prep_tower(v["layers"], v["pre_ln_g"], v["pre_ln_b"],
                             v["post_ln_g"], v["post_ln_b"]),
            proj_w=v["proj_w"],
        ),
        text=dict(
            tok_emb=t["tok_emb"], pos_emb=t["pos_emb"], type_emb=t["type_emb"],
            tower=prep_tower(t["layers"], t["emb_ln_g"], t["emb_ln_b"],
                             t["final_ln_g"], t["final_ln_b"]),
            proj_w=t["proj_w"],
        ),
        logit_scale=raw["logit_scale"],
    )


if __name__ == "__main__":
    key = jax.random.PRNGKey(0)
    k_params, k_pix, k_ids, k_cids = jax.random.split(key, 4)
    params = prepare_params(init_raw_params(k_params))

    imgs = jax.random.normal(k_pix, (B, C_IN, IMG, IMG), jnp.float32)
    input_ids = jax.random.randint(k_ids, (B, SEQ), 1, VOCAB, jnp.int32)
    attention_mask = jnp.array([[1] * SEQ, [1] * (SEQ - 2) + [0, 0]], jnp.int32)
    token_type_ids = jnp.zeros((B, SEQ), jnp.int32)
    center_input_ids = jax.random.randint(k_cids, (B, SEQ), 1, VOCAB, jnp.int32)
    center_attention_mask = jnp.ones((B, SEQ), jnp.int32)
    center_token_type_ids = jnp.zeros((B, SEQ), jnp.int32)

    loss, img_e, txt_e, ctr_e = xray_clip_forward(
        params, imgs, input_ids, attention_mask, token_type_ids,
        center_input_ids, center_attention_mask, center_token_type_ids)
    jax.block_until_ready((loss, img_e, txt_e, ctr_e))

    assert loss.shape == ()
    assert img_e.shape == (B, PROJ_DIM)
    assert txt_e.shape == (B, PROJ_DIM)
    assert ctr_e.shape == (B, PROJ_DIM)
    assert bool(jnp.isfinite(loss))
    print("KERNEL_OK")
</pallas_src>

<mosaic_0001>
module attributes {stable_mosaic.version = 11 : i64} {
  func.func @_tower_kernel(%arg0: i32, %arg1: memref<1x5x32xf32, #tpu.memory_space<vmem>>, %arg2: memref<1x32xf32, #tpu.memory_space<vmem>>, %arg3: memref<1x32xf32, #tpu.memory_space<vmem>>, %arg4: memref<2x1x32xf32, #tpu.memory_space<vmem>>, %arg5: memref<2x1x32xf32, #tpu.memory_space<vmem>>, %arg6: memref<2x32x96xf32, #tpu.memory_space<vmem>>, %arg7: memref<2x1x96xf32, #tpu.memory_space<vmem>>, %arg8: memref<2x32x32xf32, #tpu.memory_space<vmem>>, %arg9: memref<2x1x32xf32, #tpu.memory_space<vmem>>, %arg10: memref<2x1x32xf32, #tpu.memory_space<vmem>>, %arg11: memref<2x1x32xf32, #tpu.memory_space<vmem>>, %arg12: memref<2x32x128xf32, #tpu.memory_space<vmem>>, %arg13: memref<2x1x128xf32, #tpu.memory_space<vmem>>, %arg14: memref<2x128x32xf32, #tpu.memory_space<vmem>>, %arg15: memref<2x1x32xf32, #tpu.memory_space<vmem>>, %arg16: memref<1x32xf32, #tpu.memory_space<vmem>>, %arg17: memref<1x32xf32, #tpu.memory_space<vmem>>, %arg18: memref<1x1x32xf32, #tpu.memory_space<vmem>>) attributes {dimension_semantics = [#tpu.dimension_semantics<parallel>], iteration_bounds = array<i64: 2>, scalar_prefetch = 0 : i64, scratch_operands = 0 : i64, tpu.core_type = #tpu.core_type<tc>, window_params = [{transform_indices = @transform_0, window_bounds = array<i64: 1, 5, 32>}, {pipeline_mode = #tpu.pipeline_mode<synchronous>, transform_indices = @transform_1, window_bounds = array<i64: 1, 32>}, {pipeline_mode = #tpu.pipeline_mode<synchronous>, transform_indices = @transform_2, window_bounds = array<i64: 1, 32>}, {pipeline_mode = #tpu.pipeline_mode<synchronous>, transform_indices = @transform_3, window_bounds = array<i64: 2, 1, 32>}, {pipeline_mode = #tpu.pipeline_mode<synchronous>, transform_indices = @transform_4, window_bounds = array<i64: 2, 1, 32>}, {pipeline_mode = #tpu.pipeline_mode<synchronous>, transform_indices = @transform_5, window_bounds = array<i64: 2, 32, 96>}, {pipeline_mode = #tpu.pipeline_mode<synchronous>, transform_indices = @transform_6, window_bounds = array<i64: 2, 1, 96>}, {pipeline_mode = #tpu.pipeline_mode<synchronous>, transform_indices = @transform_7, window_bounds = array<i64: 2, 32, 32>}, {pipeline_mode = #tpu.pipeline_mode<synchronous>, transform_indices = @transform_8, window_bounds = array<i64: 2, 1, 32>}, {pipeline_mode = #tpu.pipeline_mode<synchronous>, transform_indices = @transform_9, window_bounds = array<i64: 2, 1, 32>}, {pipeline_mode = #tpu.pipeline_mode<synchronous>, transform_indices = @transform_10, window_bounds = array<i64: 2, 1, 32>}, {pipeline_mode = #tpu.pipeline_mode<synchronous>, transform_indices = @transform_11, window_bounds = array<i64: 2, 32, 128>}, {pipeline_mode = #tpu.pipeline_mode<synchronous>, transform_indices = @transform_12, window_bounds = array<i64: 2, 1, 128>}, {pipeline_mode = #tpu.pipeline_mode<synchronous>, transform_indices = @transform_13, window_bounds = array<i64: 2, 128, 32>}, {pipeline_mode = #tpu.pipeline_mode<synchronous>, transform_indices = @transform_14, window_bounds = array<i64: 2, 1, 32>}, {pipeline_mode = #tpu.pipeline_mode<synchronous>, transform_indices = @transform_15, window_bounds = array<i64: 1, 32>}, {pipeline_mode = #tpu.pipeline_mode<synchronous>, transform_indices = @transform_16, window_bounds = array<i64: 1, 32>}, {transform_indices = @transform_17, window_bounds = array<i64: 1, 1, 32>}]} {
    %c0 = arith.constant 0 : index
    %c0_0 = arith.constant 0 : index
    %c0_1 = arith.constant 0 : index
    %0 = vector.load %arg1[%c0, %c0_0, %c0_1] : memref<1x5x32xf32, #tpu.memory_space<vmem>>, vector<1x5x32xf32>
    %1 = vector.shape_cast %0 : vector<1x5x32xf32> to vector<5x32xf32>
    %c0_2 = arith.constant 0 : index
    %c0_3 = arith.constant 0 : index
    %2 = vector.load %arg2[%c0_2, %c0_3] : memref<1x32xf32, #tpu.memory_space<vmem>>, vector<1x32xf32>
    %c0_4 = arith.constant 0 : index
    %c0_5 = arith.constant 0 : index
    %3 = vector.load %arg3[%c0_4, %c0_5] : memref<1x32xf32, #tpu.memory_space<vmem>>, vector<1x32xf32>
    %cst = arith.constant dense<0.000000e+00> : vector<5xf32>
    %4 = vector.multi_reduction <add>, %1, %cst [1] : vector<5x32xf32> to vector<5xf32>
    %5 = vector.shape_cast %4 : vector<5xf32> to vector<5x1xf32>
    %cst_6 = arith.constant 3.200000e+01 : f32
    %6 = vector.broadcast %cst_6 : f32 to vector<5x1xf32>
    %7 = arith.divf %5, %6 : vector<5x1xf32>
    %8 = vector.broadcast %7 : vector<5x1xf32> to vector<5x32xf32>
    %9 = arith.subf %1, %8 : vector<5x32xf32>
    %10 = arith.mulf %9, %9 : vector<5x32xf32>
    %cst_7 = arith.constant dense<0.000000e+00> : vector<5xf32>
    %11 = vector.multi_reduction <add>, %10, %cst_7 [1] : vector<5x32xf32> to vector<5xf32>
    %12 = vector.shape_cast %11 : vector<5xf32> to vector<5x1xf32>
    %cst_8 = arith.constant 3.200000e+01 : f32
    %13 = vector.broadcast %cst_8 : f32 to vector<5x1xf32>
    %14 = arith.divf %12, %13 : vector<5x1xf32>
    %15 = vector.broadcast %7 : vector<5x1xf32> to vector<5x32xf32>
    %16 = arith.subf %1, %15 : vector<5x32xf32>
    %cst_9 = arith.constant 9.99999974E-6 : f32
    %17 = vector.broadcast %cst_9 : f32 to vector<5x1xf32>
    %18 = arith.addf %14, %17 : vector<5x1xf32>
    %19 = math.rsqrt %18 : vector<5x1xf32>
    %20 = vector.broadcast %19 : vector<5x1xf32> to vector<5x32xf32>
    %21 = arith.mulf %16, %20 : vector<5x32xf32>
    %22 = vector.broadcast %2 : vector<1x32xf32> to vector<5x32xf32>
    %23 = arith.mulf %21, %22 : vector<5x32xf32>
    %24 = vector.broadcast %3 : vector<1x32xf32> to vector<5x32xf32>
    %25 = arith.addf %23, %24 : vector<5x32xf32>
    %c0_10 = arith.constant 0 : index
    %c0_11 = arith.constant 0 : index
    %c0_12 = arith.constant 0 : index
    %26 = vector.load %arg4[%c0_10, %c0_11, %c0_12] : memref<2x1x32xf32, #tpu.memory_space<vmem>>, vector<1x1x32xf32>
    %27 = vector.shape_cast %26 : vector<1x1x32xf32> to vector<1x32xf32>
    %c0_13 = arith.constant 0 : index
    %c0_14 = arith.constant 0 : index
    %c0_15 = arith.constant 0 : index
    %28 = vector.load %arg5[%c0_13, %c0_14, %c0_15] : memref<2x1x32xf32, #tpu.memory_space<vmem>>, vector<1x1x32xf32>
    %29 = vector.shape_cast %28 : vector<1x1x32xf32> to vector<1x32xf32>
    %cst_16 = arith.constant dense<0.000000e+00> : vector<5xf32>
    %30 = vector.multi_reduction <add>, %25, %cst_16 [1] : vector<5x32xf32> to vector<5xf32>
    %31 = vector.shape_cast %30 : vector<5xf32> to vector<5x1xf32>
    %cst_17 = arith.constant 3.200000e+01 : f32
    %32 = vector.broadcast %cst_17 : f32 to vector<5x1xf32>
    %33 = arith.divf %31, %32 : vector<5x1xf32>
    %34 = vector.broadcast %33 : vector<5x1xf32> to vector<5x32xf32>
    %35 = arith.subf %25, %34 : vector<5x32xf32>
    %36 = arith.mulf %35, %35 : vector<5x32xf32>
    %cst_18 = arith.constant dense<0.000000e+00> : vector<5xf32>
    %37 = vector.multi_reduction <add>, %36, %cst_18 [1] : vector<5x32xf32> to vector<5xf32>
    %38 = vector.shape_cast %37 : vector<5xf32> to vector<5x1xf32>
    %cst_19 = arith.constant 3.200000e+01 : f32
    %39 = vector.broadcast %cst_19 : f32 to vector<5x1xf32>
    %40 = arith.divf %38, %39 : vector<5x1xf32>
    %41 = vector.broadcast %33 : vector<5x1xf32> to vector<5x32xf32>
    %42 = arith.subf %25, %41 : vector<5x32xf32>
    %cst_20 = arith.constant 9.99999974E-6 : f32
    %43 = vector.broadcast %cst_20 : f32 to vector<5x1xf32>
    %44 = arith.addf %40, %43 : vector<5x1xf32>
    %45 = math.rsqrt %44 : vector<5x1xf32>
    %46 = vector.broadcast %45 : vector<5x1xf32> to vector<5x32xf32>
    %47 = arith.mulf %42, %46 : vector<5x32xf32>
    %48 = vector.broadcast %27 : vector<1x32xf32> to vector<5x32xf32>
    %49 = arith.mulf %47, %48 : vector<5x32xf32>
    %50 = vector.broadcast %29 : vector<1x32xf32> to vector<5x32xf32>
    %51 = arith.addf %49, %50 : vector<5x32xf32>
    %c0_21 = arith.constant 0 : index
    %c0_22 = arith.constant 0 : index
    %c0_23 = arith.constant 0 : index
    %52 = vector.load %arg6[%c0_21, %c0_22, %c0_23] : memref<2x32x96xf32, #tpu.memory_space<vmem>>, vector<1x32x96xf32>
    %53 = vector.shape_cast %52 : vector<1x32x96xf32> to vector<32x96xf32>
    %cst_24 = arith.constant dense<0.000000e+00> : vector<5x96xf32>
    %54 = tpu.matmul %51, %53, %cst_24 {dimension_numbers = #tpu.dot_dimension_numbers<[1], [0], [0], [1], [0, 0, 1, 1], [], []>} : vector<5x32xf32>, vector<32x96xf32>, vector<5x96xf32> -> vector<5x96xf32>
    %c0_25 = arith.constant 0 : index
    %c0_26 = arith.constant 0 : index
    %c0_27 = arith.constant 0 : index
    %55 = vector.load %arg7[%c0_25, %c0_26, %c0_27] : memref<2x1x96xf32, #tpu.memory_space<vmem>>, vector<1x1x96xf32>
    %56 = vector.shape_cast %55 : vector<1x1x96xf32> to vector<1x96xf32>
    %57 = vector.broadcast %56 : vector<1x96xf32> to vector<5x96xf32>
    %58 = arith.addf %54, %57 : vector<5x96xf32>
    %c0_28 = arith.constant 0 : index
    %c0_29 = arith.constant 0 : index
    %c0_30 = arith.constant 0 : index
    %59 = vector.load %arg8[%c0_28, %c0_29, %c0_30] : memref<2x32x32xf32, #tpu.memory_space<vmem>>, vector<1x32x32xf32>
    %60 = vector.shape_cast %59 : vector<1x32x32xf32> to vector<32x32xf32>
    %c0_31 = arith.constant 0 : index
    %c0_32 = arith.constant 0 : index
    %c0_33 = arith.constant 0 : index
    %61 = vector.load %arg9[%c0_31, %c0_32, %c0_33] : memref<2x1x32xf32, #tpu.memory_space<vmem>>, vector<1x1x32xf32>
    %62 = vector.shape_cast %61 : vector<1x1x32xf32> to vector<1x32xf32>
    %63 = vector.extract_strided_slice %58 {offsets = [0, 0], sizes = [5, 16], strides = [1, 1]} : vector<5x96xf32> to vector<5x16xf32>
    %64 = vector.extract_strided_slice %58 {offsets = [0, 32], sizes = [5, 16], strides = [1, 1]} : vector<5x96xf32> to vector<5x16xf32>
    %65 = vector.extract_strided_slice %58 {offsets = [0, 64], sizes = [5, 16], strides = [1, 1]} : vector<5x96xf32> to vector<5x16xf32>
    %cst_34 = arith.constant dense<0.000000e+00> : vector<5x5xf32>
    %66 = tpu.matmul %63, %64, %cst_34 {dimension_numbers = #tpu.dot_dimension_numbers<[1], [1], [0], [0], [0, 0, 1, 0], [], []>} : vector<5x16xf32>, vector<5x16xf32>, vector<5x5xf32> -> vector<5x5xf32>
    %cst_35 = arith.constant 2.500000e-01 : f32
    %67 = vector.broadcast %cst_35 : f32 to vector<5x5xf32>
    %68 = arith.mulf %66, %67 : vector<5x5xf32>
    %cst_36 = arith.constant dense<0xFF800000> : vector<5xf32>
    %69 = vector.multi_reduction <maximumf>, %68, %cst_36 [1] : vector<5x5xf32> to vector<5xf32>
    %70 = vector.shape_cast %69 : vector<5xf32> to vector<5x1xf32>
    %71 = vector.broadcast %70 : vector<5x1xf32> to vector<5x5xf32>
    %72 = arith.subf %68, %71 : vector<5x5xf32>
    %73 = math.exp %72 : vector<5x5xf32>
    %cst_37 = arith.constant dense<0.000000e+00> : vector<5xf32>
    %74 = vector.multi_reduction <add>, %73, %cst_37 [1] : vector<5x5xf32> to vector<5xf32>
    %75 = vector.shape_cast %74 : vector<5xf32> to vector<5x1xf32>
    %76 = tpu.reciprocal %75 {approx = true} : vector<5x1xf32> -> vector<5x1xf32>
    %77 = vector.broadcast %76 : vector<5x1xf32> to vector<5x5xf32>
    %78 = arith.mulf %73, %77 : vector<5x5xf32>
    %cst_38 = arith.constant dense<0.000000e+00> : vector<5x16xf32>
    %79 = tpu.matmul %78, %65, %cst_38 {dimension_numbers = #tpu.dot_dimension_numbers<[1], [0], [0], [1], [0, 0, 1, 1], [], []>} : vector<5x5xf32>, vector<5x16xf32>, vector<5x16xf32> -> vector<5x16xf32>
    %80 = vector.extract_strided_slice %60 {offsets = [0, 0], sizes = [16, 32], strides = [1, 1]} : vector<32x32xf32> to vector<16x32xf32>
    %cst_39 = arith.constant dense<0.000000e+00> : vector<5x32xf32>
    %81 = tpu.matmul %79, %80, %cst_39 {dimension_numbers = #tpu.dot_dimension_numbers<[1], [0], [0], [1], [0, 0, 1, 1], [], []>} : vector<5x16xf32>, vector<16x32xf32>, vector<5x32xf32> -> vector<5x32xf32>
    %82 = vector.broadcast %62 : vector<1x32xf32> to vector<5x32xf32>
    %83 = arith.addf %82, %81 : vector<5x32xf32>
    %84 = vector.extract_strided_slice %58 {offsets = [0, 16], sizes = [5, 16], strides = [1, 1]} : vector<5x96xf32> to vector<5x16xf32>
    %85 = vector.extract_strided_slice %58 {offsets = [0, 48], sizes = [5, 16], strides = [1, 1]} : vector<5x96xf32> to vector<5x16xf32>
    %86 = vector.extract_strided_slice %58 {offsets = [0, 80], sizes = [5, 16], strides = [1, 1]} : vector<5x96xf32> to vector<5x16xf32>
    %cst_40 = arith.constant dense<0.000000e+00> : vector<5x5xf32>
    %87 = tpu.matmul %84, %85, %cst_40 {dimension_numbers = #tpu.dot_dimension_numbers<[1], [1], [0], [0], [0, 0, 1, 0], [], []>} : vector<5x16xf32>, vector<5x16xf32>, vector<5x5xf32> -> vector<5x5xf32>
    %cst_41 = arith.constant 2.500000e-01 : f32
    %88 = vector.broadcast %cst_41 : f32 to vector<5x5xf32>
    %89 = arith.mulf %87, %88 : vector<5x5xf32>
    %cst_42 = arith.constant dense<0xFF800000> : vector<5xf32>
    %90 = vector.multi_reduction <maximumf>, %89, %cst_42 [1] : vector<5x5xf32> to vector<5xf32>
    %91 = vector.shape_cast %90 : vector<5xf32> to vector<5x1xf32>
    %92 = vector.broadcast %91 : vector<5x1xf32> to vector<5x5xf32>
    %93 = arith.subf %89, %92 : vector<5x5xf32>
    %94 = math.exp %93 : vector<5x5xf32>
    %cst_43 = arith.constant dense<0.000000e+00> : vector<5xf32>
    %95 = vector.multi_reduction <add>, %94, %cst_43 [1] : vector<5x5xf32> to vector<5xf32>
    %96 = vector.shape_cast %95 : vector<5xf32> to vector<5x1xf32>
    %97 = tpu.reciprocal %96 {approx = true} : vector<5x1xf32> -> vector<5x1xf32>
    %98 = vector.broadcast %97 : vector<5x1xf32> to vector<5x5xf32>
    %99 = arith.mulf %94, %98 : vector<5x5xf32>
    %cst_44 = arith.constant dense<0.000000e+00> : vector<5x16xf32>
    %100 = tpu.matmul %99, %86, %cst_44 {dimension_numbers = #tpu.dot_dimension_numbers<[1], [0], [0], [1], [0, 0, 1, 1], [], []>} : vector<5x5xf32>, vector<5x16xf32>, vector<5x16xf32> -> vector<5x16xf32>
    %101 = vector.extract_strided_slice %60 {offsets = [16, 0], sizes = [16, 32], strides = [1, 1]} : vector<32x32xf32> to vector<16x32xf32>
    %cst_45 = arith.constant dense<0.000000e+00> : vector<5x32xf32>
    %102 = tpu.matmul %100, %101, %cst_45 {dimension_numbers = #tpu.dot_dimension_numbers<[1], [0], [0], [1], [0, 0, 1, 1], [], []>} : vector<5x16xf32>, vector<16x32xf32>, vector<5x32xf32> -> vector<5x32xf32>
    %103 = arith.addf %83, %102 : vector<5x32xf32>
    %104 = arith.addf %25, %103 : vector<5x32xf32>
    %c0_46 = arith.constant 0 : index
    %c0_47 = arith.constant 0 : index
    %c0_48 = arith.constant 0 : index
    %105 = vector.load %arg10[%c0_46, %c0_47, %c0_48] : memref<2x1x32xf32, #tpu.memory_space<vmem>>, vector<1x1x32xf32>
    %106 = vector.shape_cast %105 : vector<1x1x32xf32> to vector<1x32xf32>
    %c0_49 = arith.constant 0 : index
    %c0_50 = arith.constant 0 : index
    %c0_51 = arith.constant 0 : index
    %107 = vector.load %arg11[%c0_49, %c0_50, %c0_51] : memref<2x1x32xf32, #tpu.memory_space<vmem>>, vector<1x1x32xf32>
    %108 = vector.shape_cast %107 : vector<1x1x32xf32> to vector<1x32xf32>
    %cst_52 = arith.constant dense<0.000000e+00> : vector<5xf32>
    %109 = vector.multi_reduction <add>, %104, %cst_52 [1] : vector<5x32xf32> to vector<5xf32>
    %110 = vector.shape_cast %109 : vector<5xf32> to vector<5x1xf32>
    %cst_53 = arith.constant 3.200000e+01 : f32
    %111 = vector.broadcast %cst_53 : f32 to vector<5x1xf32>
    %112 = arith.divf %110, %111 : vector<5x1xf32>
    %113 = vector.broadcast %112 : vector<5x1xf32> to vector<5x32xf32>
    %114 = arith.subf %104, %113 : vector<5x32xf32>
    %115 = arith.mulf %114, %114 : vector<5x32xf32>
    %cst_54 = arith.constant dense<0.000000e+00> : vector<5xf32>
    %116 = vector.multi_reduction <add>, %115, %cst_54 [1] : vector<5x32xf32> to vector<5xf32>
    %117 = vector.shape_cast %116 : vector<5xf32> to vector<5x1xf32>
    %cst_55 = arith.constant 3.200000e+01 : f32
    %118 = vector.broadcast %cst_55 : f32 to vector<5x1xf32>
    %119 = arith.divf %117, %118 : vector<5x1xf32>
    %120 = vector.broadcast %112 : vector<5x1xf32> to vector<5x32xf32>
    %121 = arith.subf %104, %120 : vector<5x32xf32>
    %cst_56 = arith.constant 9.99999974E-6 : f32
    %122 = vector.broadcast %cst_56 : f32 to vector<5x1xf32>
    %123 = arith.addf %119, %122 : vector<5x1xf32>
    %124 = math.rsqrt %123 : vector<5x1xf32>
    %125 = vector.broadcast %124 : vector<5x1xf32> to vector<5x32xf32>
    %126 = arith.mulf %121, %125 : vector<5x32xf32>
    %127 = vector.broadcast %106 : vector<1x32xf32> to vector<5x32xf32>
    %128 = arith.mulf %126, %127 : vector<5x32xf32>
    %129 = vector.broadcast %108 : vector<1x32xf32> to vector<5x32xf32>
    %130 = arith.addf %128, %129 : vector<5x32xf32>
    %c0_57 = arith.constant 0 : index
    %c0_58 = arith.constant 0 : index
    %c0_59 = arith.constant 0 : index
    %131 = vector.load %arg12[%c0_57, %c0_58, %c0_59] : memref<2x32x128xf32, #tpu.memory_space<vmem>>, vector<1x32x128xf32>
    %132 = vector.shape_cast %131 : vector<1x32x128xf32> to vector<32x128xf32>
    %cst_60 = arith.constant dense<0.000000e+00> : vector<5x128xf32>
    %133 = tpu.matmul %130, %132, %cst_60 {dimension_numbers = #tpu.dot_dimension_numbers<[1], [0], [0], [1], [0, 0, 1, 1], [], []>} : vector<5x32xf32>, vector<32x128xf32>, vector<5x128xf32> -> vector<5x128xf32>
    %c0_61 = arith.constant 0 : index
    %c0_62 = arith.constant 0 : index
    %c0_63 = arith.constant 0 : index
    %134 = vector.load %arg13[%c0_61, %c0_62, %c0_63] : memref<2x1x128xf32, #tpu.memory_space<vmem>>, vector<1x1x128xf32>
    %135 = vector.shape_cast %134 : vector<1x1x128xf32> to vector<1x128xf32>
    %136 = vector.broadcast %135 : vector<1x128xf32> to vector<5x128xf32>
    %137 = arith.addf %133, %136 : vector<5x128xf32>
    %138 = arith.mulf %137, %137 : vector<5x128xf32>
    %139 = arith.mulf %137, %138 : vector<5x128xf32>
    %cst_64 = arith.constant 4.471500e-02 : f32
    %140 = vector.broadcast %cst_64 : f32 to vector<5x128xf32>
    %141 = arith.mulf %140, %139 : vector<5x128xf32>
    %142 = arith.addf %137, %141 : vector<5x128xf32>
    %cst_65 = arith.constant 0.797884583 : f32
    %143 = vector.broadcast %cst_65 : f32 to vector<5x128xf32>
    %144 = arith.mulf %143, %142 : vector<5x128xf32>
    %145 = math.tanh %144 : vector<5x128xf32>
    %cst_66 = arith.constant 1.000000e+00 : f32
    %146 = vector.broadcast %cst_66 : f32 to vector<5x128xf32>
    %147 = arith.addf %146, %145 : vector<5x128xf32>
    %cst_67 = arith.constant 5.000000e-01 : f32
    %148 = vector.broadcast %cst_67 : f32 to vector<5x128xf32>
    %149 = arith.mulf %148, %147 : vector<5x128xf32>
    %150 = arith.mulf %137, %149 : vector<5x128xf32>
    %c0_68 = arith.constant 0 : index
    %c0_69 = arith.constant 0 : index
    %c0_70 = arith.constant 0 : index
    %151 = vector.load %arg14[%c0_68, %c0_69, %c0_70] : memref<2x128x32xf32, #tpu.memory_space<vmem>>, vector<1x128x32xf32>
    %152 = vector.shape_cast %151 : vector<1x128x32xf32> to vector<128x32xf32>
    %cst_71 = arith.constant dense<0.000000e+00> : vector<5x32xf32>
    %153 = tpu.matmul %150, %152, %cst_71 {dimension_numbers = #tpu.dot_dimension_numbers<[1], [0], [0], [1], [0, 0, 1, 1], [], []>} : vector<5x128xf32>, vector<128x32xf32>, vector<5x32xf32> -> vector<5x32xf32>
    %c0_72 = arith.constant 0 : index
    %c0_73 = arith.constant 0 : index
    %c0_74 = arith.constant 0 : index
    %154 = vector.load %arg15[%c0_72, %c0_73, %c0_74] : memref<2x1x32xf32, #tpu.memory_space<vmem>>, vector<1x1x32xf32>
    %155 = vector.shape_cast %154 : vector<1x1x32xf32> to vector<1x32xf32>
    %156 = vector.broadcast %155 : vector<1x32xf32> to vector<5x32xf32>
    %157 = arith.addf %153, %156 : vector<5x32xf32>
    %158 = arith.addf %104, %157 : vector<5x32xf32>
    %c1 = arith.constant 1 : index
    %c0_75 = arith.constant 0 : index
    %c0_76 = arith.constant 0 : index
    %159 = vector.load %arg4[%c1, %c0_75, %c0_76] : memref<2x1x32xf32, #tpu.memory_space<vmem>>, vector<1x1x32xf32>
    %160 = vector.shape_cast %159 : vector<1x1x32xf32> to vector<1x32xf32>
    %c1_77 = arith.constant 1 : index
    %c0_78 = arith.constant 0 : index
    %c0_79 = arith.constant 0 : index
    %161 = vector.load %arg5[%c1_77, %c0_78, %c0_79] : memref<2x1x32xf32, #tpu.memory_space<vmem>>, vector<1x1x32xf32>
    %162 = vector.shape_cast %161 : vector<1x1x32xf32> to vector<1x32xf32>
    %cst_80 = arith.constant dense<0.000000e+00> : vector<5xf32>
    %163 = vector.multi_reduction <add>, %158, %cst_80 [1] : vector<5x32xf32> to vector<5xf32>
    %164 = vector.shape_cast %163 : vector<5xf32> to vector<5x1xf32>
    %cst_81 = arith.constant 3.200000e+01 : f32
    %165 = vector.broadcast %cst_81 : f32 to vector<5x1xf32>
    %166 = arith.divf %164, %165 : vector<5x1xf32>
    %167 = vector.broadcast %166 : vector<5x1xf32> to vector<5x32xf32>
    %168 = arith.subf %158, %167 : vector<5x32xf32>
    %169 = arith.mulf %168, %168 : vector<5x32xf32>
    %cst_82 = arith.constant dense<0.000000e+00> : vector<5xf32>
    %170 = vector.multi_reduction <add>, %169, %cst_82 [1] : vector<5x32xf32> to vector<5xf32>
    %171 = vector.shape_cast %170 : vector<5xf32> to vector<5x1xf32>
    %cst_83 = arith.constant 3.200000e+01 : f32
    %172 = vector.broadcast %cst_83 : f32 to vector<5x1xf32>
    %173 = arith.divf %171, %172 : vector<5x1xf32>
    %174 = vector.broadcast %166 : vector<5x1xf32> to vector<5x32xf32>
    %175 = arith.subf %158, %174 : vector<5x32xf32>
    %cst_84 = arith.constant 9.99999974E-6 : f32
    %176 = vector.broadcast %cst_84 : f32 to vector<5x1xf32>
    %177 = arith.addf %173, %176 : vector<5x1xf32>
    %178 = math.rsqrt %177 : vector<5x1xf32>
    %179 = vector.broadcast %178 : vector<5x1xf32> to vector<5x32xf32>
    %180 = arith.mulf %175, %179 : vector<5x32xf32>
    %181 = vector.broadcast %160 : vector<1x32xf32> to vector<5x32xf32>
    %182 = arith.mulf %180, %181 : vector<5x32xf32>
    %183 = vector.broadcast %162 : vector<1x32xf32> to vector<5x32xf32>
    %184 = arith.addf %182, %183 : vector<5x32xf32>
    %c1_85 = arith.constant 1 : index
    %c0_86 = arith.constant 0 : index
    %c0_87 = arith.constant 0 : index
    %185 = vector.load %arg6[%c1_85, %c0_86, %c0_87] : memref<2x32x96xf32, #tpu.memory_space<vmem>>, vector<1x32x96xf32>
    %186 = vector.shape_cast %185 : vector<1x32x96xf32> to vector<32x96xf32>
    %cst_88 = arith.constant dense<0.000000e+00> : vector<5x96xf32>
    %187 = tpu.matmul %184, %186, %cst_88 {dimension_numbers = #tpu.dot_dimension_numbers<[1], [0], [0], [1], [0, 0, 1, 1], [], []>} : vector<5x32xf32>, vector<32x96xf32>, vector<5x96xf32> -> vector<5x96xf32>
    %c1_89 = arith.constant 1 : index
    %c0_90 = arith.constant 0 : index
    %c0_91 = arith.constant 0 : index
    %188 = vector.load %arg7[%c1_89, %c0_90, %c0_91] : memref<2x1x96xf32, #tpu.memory_space<vmem>>, vector<1x1x96xf32>
    %189 = vector.shape_cast %188 : vector<1x1x96xf32> to vector<1x96xf32>
    %190 = vector.broadcast %189 : vector<1x96xf32> to vector<5x96xf32>
    %191 = arith.addf %187, %190 : vector<5x96xf32>
    %c1_92 = arith.constant 1 : index
    %c0_93 = arith.constant 0 : index
    %c0_94 = arith.constant 0 : index
    %192 = vector.load %arg8[%c1_92, %c0_93, %c0_94] : memref<2x32x32xf32, #tpu.memory_space<vmem>>, vector<1x32x32xf32>
    %193 = vector.shape_cast %192 : vector<1x32x32xf32> to vector<32x32xf32>
    %c1_95 = arith.constant 1 : index
    %c0_96 = arith.constant 0 : index
    %c0_97 = arith.constant 0 : index
    %194 = vector.load %arg9[%c1_95, %c0_96, %c0_97] : memref<2x1x32xf32, #tpu.memory_space<vmem>>, vector<1x1x32xf32>
    %195 = vector.shape_cast %194 : vector<1x1x32xf32> to vector<1x32xf32>
    %196 = vector.extract_strided_slice %191 {offsets = [0, 0], sizes = [5, 16], strides = [1, 1]} : vector<5x96xf32> to vector<5x16xf32>
    %197 = vector.extract_strided_slice %191 {offsets = [0, 32], sizes = [5, 16], strides = [1, 1]} : vector<5x96xf32> to vector<5x16xf32>
    %198 = vector.extract_strided_slice %191 {offsets = [0, 64], sizes = [5, 16], strides = [1, 1]} : vector<5x96xf32> to vector<5x16xf32>
    %cst_98 = arith.constant dense<0.000000e+00> : vector<5x5xf32>
    %199 = tpu.matmul %196, %197, %cst_98 {dimension_numbers = #tpu.dot_dimension_numbers<[1], [1], [0], [0], [0, 0, 1, 0], [], []>} : vector<5x16xf32>, vector<5x16xf32>, vector<5x5xf32> -> vector<5x5xf32>
    %cst_99 = arith.constant 2.500000e-01 : f32
    %200 = vector.broadcast %cst_99 : f32 to vector<5x5xf32>
    %201 = arith.mulf %199, %200 : vector<5x5xf32>
    %cst_100 = arith.constant dense<0xFF800000> : vector<5xf32>
    %202 = vector.multi_reduction <maximumf>, %201, %cst_100 [1] : vector<5x5xf32> to vector<5xf32>
    %203 = vector.shape_cast %202 : vector<5xf32> to vector<5x1xf32>
    %204 = vector.broadcast %203 : vector<5x1xf32> to vector<5x5xf32>
    %205 = arith.subf %201, %204 : vector<5x5xf32>
    %206 = math.exp %205 : vector<5x5xf32>
    %cst_101 = arith.constant dense<0.000000e+00> : vector<5xf32>
    %207 = vector.multi_reduction <add>, %206, %cst_101 [1] : vector<5x5xf32> to vector<5xf32>
    %208 = vector.shape_cast %207 : vector<5xf32> to vector<5x1xf32>
    %209 = tpu.reciprocal %208 {approx = true} : vector<5x1xf32> -> vector<5x1xf32>
    %210 = vector.broadcast %209 : vector<5x1xf32> to vector<5x5xf32>
    %211 = arith.mulf %206, %210 : vector<5x5xf32>
    %cst_102 = arith.constant dense<0.000000e+00> : vector<5x16xf32>
    %212 = tpu.matmul %211, %198, %cst_102 {dimension_numbers = #tpu.dot_dimension_numbers<[1], [0], [0], [1], [0, 0, 1, 1], [], []>} : vector<5x5xf32>, vector<5x16xf32>, vector<5x16xf32> -> vector<5x16xf32>
    %213 = vector.extract_strided_slice %193 {offsets = [0, 0], sizes = [16, 32], strides = [1, 1]} : vector<32x32xf32> to vector<16x32xf32>
    %cst_103 = arith.constant dense<0.000000e+00> : vector<5x32xf32>
    %214 = tpu.matmul %212, %213, %cst_103 {dimension_numbers = #tpu.dot_dimension_numbers<[1], [0], [0], [1], [0, 0, 1, 1], [], []>} : vector<5x16xf32>, vector<16x32xf32>, vector<5x32xf32> -> vector<5x32xf32>
    %215 = vector.broadcast %195 : vector<1x32xf32> to vector<5x32xf32>
    %216 = arith.addf %215, %214 : vector<5x32xf32>
    %217 = vector.extract_strided_slice %191 {offsets = [0, 16], sizes = [5, 16], strides = [1, 1]} : vector<5x96xf32> to vector<5x16xf32>
    %218 = vector.extract_strided_slice %191 {offsets = [0, 48], sizes = [5, 16], strides = [1, 1]} : vector<5x96xf32> to vector<5x16xf32>
    %219 = vector.extract_strided_slice %191 {offsets = [0, 80], sizes = [5, 16], strides = [1, 1]} : vector<5x96xf32> to vector<5x16xf32>
    %cst_104 = arith.constant dense<0.000000e+00> : vector<5x5xf32>
    %220 = tpu.matmul %217, %218, %cst_104 {dimension_numbers = #tpu.dot_dimension_numbers<[1], [1], [0], [0], [0, 0, 1, 0], [], []>} : vector<5x16xf32>, vector<5x16xf32>, vector<5x5xf32> -> vector<5x5xf32>
    %cst_105 = arith.constant 2.500000e-01 : f32
    %221 = vector.broadcast %cst_105 : f32 to vector<5x5xf32>
    %222 = arith.mulf %220, %221 : vector<5x5xf32>
    %cst_106 = arith.constant dense<0xFF800000> : vector<5xf32>
    %223 = vector.multi_reduction <maximumf>, %222, %cst_106 [1] : vector<5x5xf32> to vector<5xf32>
    %224 = vector.shape_cast %223 : vector<5xf32> to vector<5x1xf32>
    %225 = vector.broadcast %224 : vector<5x1xf32> to vector<5x5xf32>
    %226 = arith.subf %222, %225 : vector<5x5xf32>
    %227 = math.exp %226 : vector<5x5xf32>
    %cst_107 = arith.constant dense<0.000000e+00> : vector<5xf32>
    %228 = vector.multi_reduction <add>, %227, %cst_107 [1] : vector<5x5xf32> to vector<5xf32>
    %229 = vector.shape_cast %228 : vector<5xf32> to vector<5x1xf32>
    %230 = tpu.reciprocal %229 {approx = true} : vector<5x1xf32> -> vector<5x1xf32>
    %231 = vector.broadcast %230 : vector<5x1xf32> to vector<5x5xf32>
    %232 = arith.mulf %227, %231 : vector<5x5xf32>
    %cst_108 = arith.constant dense<0.000000e+00> : vector<5x16xf32>
    %233 = tpu.matmul %232, %219, %cst_108 {dimension_numbers = #tpu.dot_dimension_numbers<[1], [0], [0], [1], [0, 0, 1, 1], [], []>} : vector<5x5xf32>, vector<5x16xf32>, vector<5x16xf32> -> vector<5x16xf32>
    %234 = vector.extract_strided_slice %193 {offsets = [16, 0], sizes = [16, 32], strides = [1, 1]} : vector<32x32xf32> to vector<16x32xf32>
    %cst_109 = arith.constant dense<0.000000e+00> : vector<5x32xf32>
    %235 = tpu.matmul %233, %234, %cst_109 {dimension_numbers = #tpu.dot_dimension_numbers<[1], [0], [0], [1], [0, 0, 1, 1], [], []>} : vector<5x16xf32>, vector<16x32xf32>, vector<5x32xf32> -> vector<5x32xf32>
    %236 = arith.addf %216, %235 : vector<5x32xf32>
    %237 = arith.addf %158, %236 : vector<5x32xf32>
    %c1_110 = arith.constant 1 : index
    %c0_111 = arith.constant 0 : index
    %c0_112 = arith.constant 0 : index
    %238 = vector.load %arg10[%c1_110, %c0_111, %c0_112] : memref<2x1x32xf32, #tpu.memory_space<vmem>>, vector<1x1x32xf32>
    %239 = vector.shape_cast %238 : vector<1x1x32xf32> to vector<1x32xf32>
    %c1_113 = arith.constant 1 : index
    %c0_114 = arith.constant 0 : index
    %c0_115 = arith.constant 0 : index
    %240 = vector.load %arg11[%c1_113, %c0_114, %c0_115] : memref<2x1x32xf32, #tpu.memory_space<vmem>>, vector<1x1x32xf32>
    %241 = vector.shape_cast %240 : vector<1x1x32xf32> to vector<1x32xf32>
    %cst_116 = arith.constant dense<0.000000e+00> : vector<5xf32>
    %242 = vector.multi_reduction <add>, %237, %cst_116 [1] : vector<5x32xf32> to vector<5xf32>
    %243 = vector.shape_cast %242 : vector<5xf32> to vector<5x1xf32>
    %cst_117 = arith.constant 3.200000e+01 : f32
    %244 = vector.broadcast %cst_117 : f32 to vector<5x1xf32>
    %245 = arith.divf %243, %244 : vector<5x1xf32>
    %246 = vector.broadcast %245 : vector<5x1xf32> to vector<5x32xf32>
    %247 = arith.subf %237, %246 : vector<5x32xf32>
    %248 = arith.mulf %247, %247 : vector<5x32xf32>
    %cst_118 = arith.constant dense<0.000000e+00> : vector<5xf32>
    %249 = vector.multi_reduction <add>, %248, %cst_118 [1] : vector<5x32xf32> to vector<5xf32>
    %250 = vector.shape_cast %249 : vector<5xf32> to vector<5x1xf32>
    %cst_119 = arith.constant 3.200000e+01 : f32
    %251 = vector.broadcast %cst_119 : f32 to vector<5x1xf32>
    %252 = arith.divf %250, %251 : vector<5x1xf32>
    %253 = vector.broadcast %245 : vector<5x1xf32> to vector<5x32xf32>
    %254 = arith.subf %237, %253 : vector<5x32xf32>
    %cst_120 = arith.constant 9.99999974E-6 : f32
    %255 = vector.broadcast %cst_120 : f32 to vector<5x1xf32>
    %256 = arith.addf %252, %255 : vector<5x1xf32>
    %257 = math.rsqrt %256 : vector<5x1xf32>
    %258 = vector.broadcast %257 : vector<5x1xf32> to vector<5x32xf32>
    %259 = arith.mulf %254, %258 : vector<5x32xf32>
    %260 = vector.broadcast %239 : vector<1x32xf32> to vector<5x32xf32>
    %261 = arith.mulf %259, %260 : vector<5x32xf32>
    %262 = vector.broadcast %241 : vector<1x32xf32> to vector<5x32xf32>
    %263 = arith.addf %261, %262 : vector<5x32xf32>
    %c1_121 = arith.constant 1 : index
    %c0_122 = arith.constant 0 : index
    %c0_123 = arith.constant 0 : index
    %264 = vector.load %arg12[%c1_121, %c0_122, %c0_123] : memref<2x32x128xf32, #tpu.memory_space<vmem>>, vector<1x32x128xf32>
    %265 = vector.shape_cast %264 : vector<1x32x128xf32> to vector<32x128xf32>
    %cst_124 = arith.constant dense<0.000000e+00> : vector<5x128xf32>
    %266 = tpu.matmul %263, %265, %cst_124 {dimension_numbers = #tpu.dot_dimension_numbers<[1], [0], [0], [1], [0, 0, 1, 1], [], []>} : vector<5x32xf32>, vector<32x128xf32>, vector<5x128xf32> -> vector<5x128xf32>
    %c1_125 = arith.constant 1 : index
    %c0_126 = arith.constant 0 : index
    %c0_127 = arith.constant 0 : index
    %267 = vector.load %arg13[%c1_125, %c0_126, %c0_127] : memref<2x1x128xf32, #tpu.memory_space<vmem>>, vector<1x1x128xf32>
    %268 = vector.shape_cast %267 : vector<1x1x128xf32> to vector<1x128xf32>
    %269 = vector.broadcast %268 : vector<1x128xf32> to vector<5x128xf32>
    %270 = arith.addf %266, %269 : vector<5x128xf32>
    %271 = arith.mulf %270, %270 : vector<5x128xf32>
    %272 = arith.mulf %270, %271 : vector<5x128xf32>
    %cst_128 = arith.constant 4.471500e-02 : f32
    %273 = vector.broadcast %cst_128 : f32 to vector<5x128xf32>
    %274 = arith.mulf %273, %272 : vector<5x128xf32>
    %275 = arith.addf %270, %274 : vector<5x128xf32>
    %cst_129 = arith.constant 0.797884583 : f32
    %276 = vector.broadcast %cst_129 : f32 to vector<5x128xf32>
    %277 = arith.mulf %276, %275 : vector<5x128xf32>
    %278 = math.tanh %277 : vector<5x128xf32>
    %cst_130 = arith.constant 1.000000e+00 : f32
    %279 = vector.broadcast %cst_130 : f32 to vector<5x128xf32>
    %280 = arith.addf %279, %278 : vector<5x128xf32>
    %cst_131 = arith.constant 5.000000e-01 : f32
    %281 = vector.broadcast %cst_131 : f32 to vector<5x128xf32>
    %282 = arith.mulf %281, %280 : vector<5x128xf32>
    %283 = arith.mulf %270, %282 : vector<5x128xf32>
    %c1_132 = arith.constant 1 : index
    %c0_133 = arith.constant 0 : index
    %c0_134 = arith.constant 0 : index
    %284 = vector.load %arg14[%c1_132, %c0_133, %c0_134] : memref<2x128x32xf32, #tpu.memory_space<vmem>>, vector<1x128x32xf32>
    %285 = vector.shape_cast %284 : vector<1x128x32xf32> to vector<128x32xf32>
    %cst_135 = arith.constant dense<0.000000e+00> : vector<5x32xf32>
    %286 = tpu.matmul %283, %285, %cst_135 {dimension_numbers = #tpu.dot_dimension_numbers<[1], [0], [0], [1], [0, 0, 1, 1], [], []>} : vector<5x128xf32>, vector<128x32xf32>, vector<5x32xf32> -> vector<5x32xf32>
    %c1_136 = arith.constant 1 : index
    %c0_137 = arith.constant 0 : index
    %c0_138 = arith.constant 0 : index
    %287 = vector.load %arg15[%c1_136, %c0_137, %c0_138] : memref<2x1x32xf32, #tpu.memory_space<vmem>>, vector<1x1x32xf32>
    %288 = vector.shape_cast %287 : vector<1x1x32xf32> to vector<1x32xf32>
    %289 = vector.broadcast %288 : vector<1x32xf32> to vector<5x32xf32>
    %290 = arith.addf %286, %289 : vector<5x32xf32>
    %291 = arith.addf %237, %290 : vector<5x32xf32>
    %292 = vector.extract_strided_slice %291 {offsets = [0, 0], sizes = [1, 32], strides = [1, 1]} : vector<5x32xf32> to vector<1x32xf32>
    %c0_139 = arith.constant 0 : index
    %c0_140 = arith.constant 0 : index
    %293 = vector.load %arg16[%c0_139, %c0_140] : memref<1x32xf32, #tpu.memory_space<vmem>>, vector<1x32xf32>
    %c0_141 = arith.constant 0 : index
    %c0_142 = arith.constant 0 : index
    %294 = vector.load %arg17[%c0_141, %c0_142] : memref<1x32xf32, #tpu.memory_space<vmem>>, vector<1x32xf32>
    %cst_143 = arith.constant dense<0.000000e+00> : vector<1xf32>
    %295 = vector.multi_reduction <add>, %292, %cst_143 [1] : vector<1x32xf32> to vector<1xf32>
    %296 = vector.shape_cast %295 : vector<1xf32> to vector<1x1xf32>
    %cst_144 = arith.constant 3.200000e+01 : f32
    %297 = vector.broadcast %cst_144 : f32 to vector<1x1xf32>
    %298 = arith.divf %296, %297 : vector<1x1xf32>
    %299 = vector.broadcast %298 : vector<1x1xf32> to vector<1x32xf32>
    %300 = arith.subf %292, %299 : vector<1x32xf32>
    %301 = arith.mulf %300, %300 : vector<1x32xf32>
    %cst_145 = arith.constant dense<0.000000e+00> : vector<1xf32>
    %302 = vector.multi_reduction <add>, %301, %cst_145 [1] : vector<1x32xf32> to vector<1xf32>
    %303 = vector.shape_cast %302 : vector<1xf32> to vector<1x1xf32>
    %cst_146 = arith.constant 3.200000e+01 : f32
    %304 = vector.broadcast %cst_146 : f32 to vector<1x1xf32>
    %305 = arith.divf %303, %304 : vector<1x1xf32>
    %306 = vector.broadcast %298 : vector<1x1xf32> to vector<1x32xf32>
    %307 = arith.subf %292, %306 : vector<1x32xf32>
    %cst_147 = arith.constant 9.99999974E-6 : f32
    %308 = vector.broadcast %cst_147 : f32 to vector<1x1xf32>
    %309 = arith.addf %305, %308 : vector<1x1xf32>
    %310 = math.rsqrt %309 : vector<1x1xf32>
    %311 = vector.broadcast %310 : vector<1x1xf32> to vector<1x32xf32>
    %312 = arith.mulf %307, %311 : vector<1x32xf32>
    %313 = arith.mulf %312, %293 : vector<1x32xf32>
    %314 = arith.addf %313, %294 : vector<1x32xf32>
    %c0_148 = arith.constant 0 : index
    %c0_149 = arith.constant 0 : index
    %c0_150 = arith.constant 0 : index
    %315 = vector.load %arg18[%c0_148, %c0_149, %c0_150] : memref<1x1x32xf32, #tpu.memory_space<vmem>>, vector<1x1x32xf32>
    %316 = vector.shape_cast %315 : vector<1x1x32xf32> to vector<1x32xf32>
    %317 = vector.shape_cast %314 : vector<1x32xf32> to vector<1x1x32xf32>
    tpu.vector_store %arg18[%c0_148, %c0_149, %c0_150], %317 {strides = array<i32>} : memref<1x1x32xf32, #tpu.memory_space<vmem>>, vector<1x1x32xf32>,
    return
  }
  func.func @transform_0(%arg0: i32) -> (i32, i32, i32) {
    %c0_i32 = arith.constant 0 : i32
    %c0_i32_0 = arith.constant 0 : i32
    %c0_i32_1 = arith.constant 0 : i32
    return %arg0, %c0_i32, %c0_i32_0 : i32, i32, i32
  }
  func.func @transform_1(%arg0: i32) -> (i32, i32) {
    %c0_i32 = arith.constant 0 : i32
    %c0_i32_0 = arith.constant 0 : i32
    %c0_i32_1 = arith.constant 0 : i32
    return %c0_i32, %c0_i32_0 : i32, i32
  }
  func.func @transform_2(%arg0: i32) -> (i32, i32) {
    %c0_i32 = arith.constant 0 : i32
    %c0_i32_0 = arith.constant 0 : i32
    %c0_i32_1 = arith.constant 0 : i32
    return %c0_i32, %c0_i32_0 : i32, i32
  }
  func.func @transform_3(%arg0: i32) -> (i32, i32, i32) {
    %c0_i32 = arith.constant 0 : i32
    %c0_i32_0 = arith.constant 0 : i32
    %c0_i32_1 = arith.constant 0 : i32
    %c0_i32_2 = arith.constant 0 : i32
    return %c0_i32, %c0_i32_0, %c0_i32_1 : i32, i32, i32
  }
  func.func @transform_4(%arg0: i32) -> (i32, i32, i32) {
    %c0_i32 = arith.constant 0 : i32
    %c0_i32_0 = arith.constant 0 : i32
    %c0_i32_1 = arith.constant 0 : i32
    %c0_i32_2 = arith.constant 0 : i32
    return %c0_i32, %c0_i32_0, %c0_i32_1 : i32, i32, i32
  }
  func.func @transform_5(%arg0: i32) -> (i32, i32, i32) {
    %c0_i32 = arith.constant 0 : i32
    %c0_i32_0 = arith.constant 0 : i32
    %c0_i32_1 = arith.constant 0 : i32
    %c0_i32_2 = arith.constant 0 : i32
    return %c0_i32, %c0_i32_0, %c0_i32_1 : i32, i32, i32
  }
  func.func @transform_6(%arg0: i32) -> (i32, i32, i32) {
    %c0_i32 = arith.constant 0 : i32
    %c0_i32_0 = arith.constant 0 : i32
    %c0_i32_1 = arith.constant 0 : i32
    %c0_i32_2 = arith.constant 0 : i32
    return %c0_i32, %c0_i32_0, %c0_i32_1 : i32, i32, i32
  }
  func.func @transform_7(%arg0: i32) -> (i32, i32, i32) {
    %c0_i32 = arith.constant 0 : i32
    %c0_i32_0 = arith.constant 0 : i32
    %c0_i32_1 = arith.constant 0 : i32
    %c0_i32_2 = arith.constant 0 : i32
    return %c0_i32, %c0_i32_0, %c0_i32_1 : i32, i32, i32
  }
  func.func @transform_8(%arg0: i32) -> (i32, i32, i32) {
    %c0_i32 = arith.constant 0 : i32
    %c0_i32_0 = arith.constant 0 : i32
    %c0_i32_1 = arith.constant 0 : i32
    %c0_i32_2 = arith.constant 0 : i32
    return %c0_i32, %c0_i32_0, %c0_i32_1 : i32, i32, i32
  }
  func.func @transform_9(%arg0: i32) -> (i32, i32, i32) {
    %c0_i32 = arith.constant 0 : i32
    %c0_i32_0 = arith.constant 0 : i32
    %c0_i32_1 = arith.constant 0 : i32
    %c0_i32_2 = arith.constant 0 : i32
    return %c0_i32, %c0_i32_0, %c0_i32_1 : i32, i32, i32
  }
  func.func @transform_10(%arg0: i32) -> (i32, i32, i32) {
    %c0_i32 = arith.constant 0 : i32
    %c0_i32_0 = arith.constant 0 : i32
    %c0_i32_1 = arith.constant 0 : i32
    %c0_i32_2 = arith.constant 0 : i32
    return %c0_i32, %c0_i32_0, %c0_i32_1 : i32, i32, i32
  }
  func.func @transform_11(%arg0: i32) -> (i32, i32, i32) {
    %c0_i32 = arith.constant 0 : i32
    %c0_i32_0 = arith.constant 0 : i32
    %c0_i32_1 = arith.constant 0 : i32
    %c0_i32_2 = arith.constant 0 : i32
    return %c0_i32, %c0_i32_0, %c0_i32_1 : i32, i32, i32
  }
  func.func @transform_12(%arg0: i32) -> (i32, i32, i32) {
    %c0_i32 = arith.constant 0 : i32
    %c0_i32_0 = arith.constant 0 : i32
    %c0_i32_1 = arith.constant 0 : i32
    %c0_i32_2 = arith.constant 0 : i32
    return %c0_i32, %c0_i32_0, %c0_i32_1 : i32, i32, i32
  }
  func.func @transform_13(%arg0: i32) -> (i32, i32, i32) {
    %c0_i32 = arith.constant 0 : i32
    %c0_i32_0 = arith.constant 0 : i32
    %c0_i32_1 = arith.constant 0 : i32
    %c0_i32_2 = arith.constant 0 : i32
    return %c0_i32, %c0_i32_0, %c0_i32_1 : i32, i32, i32
  }
  func.func @transform_14(%arg0: i32) -> (i32, i32, i32) {
    %c0_i32 = arith.constant 0 : i32
    %c0_i32_0 = arith.constant 0 : i32
    %c0_i32_1 = arith.constant 0 : i32
    %c0_i32_2 = arith.constant 0 : i32
    return %c0_i32, %c0_i32_0, %c0_i32_1 : i32, i32, i32
  }
  func.func @transform_15(%arg0: i32) -> (i32, i32) {
    %c0_i32 = arith.constant 0 : i32
    %c0_i32_0 = arith.constant 0 : i32
    %c0_i32_1 = arith.constant 0 : i32
    return %c0_i32, %c0_i32_0 : i32, i32
  }
  func.func @transform_16(%arg0: i32) -> (i32, i32) {
    %c0_i32 = arith.constant 0 : i32
    %c0_i32_0 = arith.constant 0 : i32
    %c0_i32_1 = arith.constant 0 : i32
    return %c0_i32, %c0_i32_0 : i32, i32
  }
  func.func @transform_17(%arg0: i32) -> (i32, i32, i32) {
    %c0_i32 = arith.constant 0 : i32
    %c0_i32_0 = arith.constant 0 : i32
    %c0_i32_1 = arith.constant 0 : i32
    return %arg0, %c0_i32, %c0_i32_0 : i32, i32, i32
  }
}

module attributes {stable_mosaic.version = 11 : i64} {
  func.func @_head_kernel(%arg0: i32, %arg1: memref<2x32xf32, #tpu.memory_space<vmem>>, %arg2: memref<2x32xf32, #tpu.memory_space<vmem>>, %arg3: memref<2x32xf32, #tpu.memory_space<vmem>>, %arg4: memref<32x16xf32, #tpu.memory_space<vmem>>, %arg5: memref<32x16xf32, #tpu.memory_space<vmem>>, %arg6: memref<1x1xf32, #tpu.memory_space<vmem>>, %arg7: memref<1x1xf32, #tpu.memory_space<vmem>>, %arg8: memref<2x16xf32, #tpu.memory_space<vmem>>, %arg9: memref<2x16xf32, #tpu.memory_space<vmem>>, %arg10: memref<2x16xf32, #tpu.memory_space<vmem>>) attributes {dimension_semantics = [#tpu.dimension_semantics<arbitrary>], iteration_bounds = array<i64: 1>, scalar_prefetch = 0 : i64, scratch_operands = 0 : i64, tpu.core_type = #tpu.core_type<tc>, window_params = [{pipeline_mode = #tpu.pipeline_mode<synchronous>, transform_indices = @transform_0, window_bounds = array<i64: 2, 32>}, {pipeline_mode = #tpu.pipeline_mode<synchronous>, transform_indices = @transform_1, window_bounds = array<i64: 2, 32>}, {pipeline_mode = #tpu.pipeline_mode<synchronous>, transform_indices = @transform_2, window_bounds = array<i64: 2, 32>}, {pipeline_mode = #tpu.pipeline_mode<synchronous>, transform_indices = @transform_3, window_bounds = array<i64: 32, 16>}, {pipeline_mode = #tpu.pipeline_mode<synchronous>, transform_indices = @transform_4, window_bounds = array<i64: 32, 16>}, {pipeline_mode = #tpu.pipeline_mode<synchronous>, transform_indices = @transform_5, window_bounds = array<i64: 1, 1>}, {pipeline_mode = #tpu.pipeline_mode<synchronous>, transform_indices = @transform_6, window_bounds = array<i64: 1, 1>}, {pipeline_mode = #tpu.pipeline_mode<synchronous>, transform_indices = @transform_7, window_bounds = array<i64: 2, 16>}, {pipeline_mode = #tpu.pipeline_mode<synchronous>, transform_indices = @transform_8, window_bounds = array<i64: 2, 16>}, {pipeline_mode = #tpu.pipeline_mode<synchronous>, transform_indices = @transform_9, window_bounds = array<i64: 2, 16>}]} {
    %c0 = arith.constant 0 : index
    %c0_0 = arith.constant 0 : index
    %0 = vector.load %arg1[%c0, %c0_0] : memref<2x32xf32, #tpu.memory_space<vmem>>, vector<2x32xf32>
    %c0_1 = arith.constant 0 : index
    %c0_2 = arith.constant 0 : index
    %1 = vector.load %arg4[%c0_1, %c0_2] : memref<32x16xf32, #tpu.memory_space<vmem>>, vector<32x16xf32>
    %cst = arith.constant dense<0.000000e+00> : vector<2x16xf32>
    %2 = tpu.matmul %0, %1, %cst {dimension_numbers = #tpu.dot_dimension_numbers<[1], [0], [0], [1], [0, 0, 1, 1], [], []>} : vector<2x32xf32>, vector<32x16xf32>, vector<2x16xf32> -> vector<2x16xf32>
    %c0_3 = arith.constant 0 : index
    %c0_4 = arith.constant 0 : index
    %3 = vector.load %arg2[%c0_3, %c0_4] : memref<2x32xf32, #tpu.memory_space<vmem>>, vector<2x32xf32>
    %c0_5 = arith.constant 0 : index
    %c0_6 = arith.constant 0 : index
    %4 = vector.load %arg5[%c0_5, %c0_6] : memref<32x16xf32, #tpu.memory_space<vmem>>, vector<32x16xf32>
    %cst_7 = arith.constant dense<0.000000e+00> : vector<2x16xf32>
    %5 = tpu.matmul %3, %4, %cst_7 {dimension_numbers = #tpu.dot_dimension_numbers<[1], [0], [0], [1], [0, 0, 1, 1], [], []>} : vector<2x32xf32>, vector<32x16xf32>, vector<2x16xf32> -> vector<2x16xf32>
    %c0_8 = arith.constant 0 : index
    %c0_9 = arith.constant 0 : index
    %6 = vector.load %arg3[%c0_8, %c0_9] : memref<2x32xf32, #tpu.memory_space<vmem>>, vector<2x32xf32>
    %c0_10 = arith.constant 0 : index
    %c0_11 = arith.constant 0 : index
    %7 = vector.load %arg5[%c0_10, %c0_11] : memref<32x16xf32, #tpu.memory_space<vmem>>, vector<32x16xf32>
    %cst_12 = arith.constant dense<0.000000e+00> : vector<2x16xf32>
    %8 = tpu.matmul %6, %7, %cst_12 {dimension_numbers = #tpu.dot_dimension_numbers<[1], [0], [0], [1], [0, 0, 1, 1], [], []>} : vector<2x32xf32>, vector<32x16xf32>, vector<2x16xf32> -> vector<2x16xf32>
    %9 = arith.mulf %2, %2 : vector<2x16xf32>
    %cst_13 = arith.constant dense<0.000000e+00> : vector<2xf32>
    %10 = vector.multi_reduction <add>, %9, %cst_13 [1] : vector<2x16xf32> to vector<2xf32>
    %11 = vector.shape_cast %10 : vector<2xf32> to vector<2x1xf32>
    %cst_14 = arith.constant 9.99999996E-13 : f32
    %12 = vector.broadcast %cst_14 : f32 to vector<2x1xf32>
    %13 = arith.addf %11, %12 : vector<2x1xf32>
    %14 = math.rsqrt %13 : vector<2x1xf32>
    %15 = vector.broadcast %14 : vector<2x1xf32> to vector<2x16xf32>
    %16 = arith.mulf %2, %15 : vector<2x16xf32>
    %17 = arith.mulf %5, %5 : vector<2x16xf32>
    %cst_15 = arith.constant dense<0.000000e+00> : vector<2xf32>
    %18 = vector.multi_reduction <add>, %17, %cst_15 [1] : vector<2x16xf32> to vector<2xf32>
    %19 = vector.shape_cast %18 : vector<2xf32> to vector<2x1xf32>
    %cst_16 = arith.constant 9.99999996E-13 : f32
    %20 = vector.broadcast %cst_16 : f32 to vector<2x1xf32>
    %21 = arith.addf %19, %20 : vector<2x1xf32>
    %22 = math.rsqrt %21 : vector<2x1xf32>
    %23 = vector.broadcast %22 : vector<2x1xf32> to vector<2x16xf32>
    %24 = arith.mulf %5, %23 : vector<2x16xf32>
    %25 = arith.mulf %8, %8 : vector<2x16xf32>
    %cst_17 = arith.constant dense<0.000000e+00> : vector<2xf32>
    %26 = vector.multi_reduction <add>, %25, %cst_17 [1] : vector<2x16xf32> to vector<2xf32>
    %27 = vector.shape_cast %26 : vector<2xf32> to vector<2x1xf32>
    %cst_18 = arith.constant 9.99999996E-13 : f32
    %28 = vector.broadcast %cst_18 : f32 to vector<2x1xf32>
    %29 = arith.addf %27, %28 : vector<2x1xf32>
    %30 = math.rsqrt %29 : vector<2x1xf32>
    %31 = vector.broadcast %30 : vector<2x1xf32> to vector<2x16xf32>
    %32 = arith.mulf %8, %31 : vector<2x16xf32>
    %c0_19 = arith.constant 0 : index
    %c0_20 = arith.constant 0 : index
    %33 = vector.load %arg6[%c0_19, %c0_20] : memref<1x1xf32, #tpu.memory_space<vmem>>, vector<1x1xf32>
    %34 = math.exp %33 : vector<1x1xf32>
    %cst_21 = arith.constant dense<0.000000e+00> : vector<2x2xf32>
    %35 = tpu.matmul %24, %16, %cst_21 {dimension_numbers = #tpu.dot_dimension_numbers<[1], [1], [0], [0], [0, 0, 1, 0], [], []>} : vector<2x16xf32>, vector<2x16xf32>, vector<2x2xf32> -> vector<2x2xf32>
    %36 = vector.broadcast %34 : vector<1x1xf32> to vector<2x2xf32>
    %37 = arith.mulf %35, %36 : vector<2x2xf32>
    %38 = tpu.iota {dimensions = array<i32: 0>} : vector<2x2xi32>
    %39 = tpu.iota {dimensions = array<i32: 1>} : vector<2x2xi32>
    %40 = arith.cmpi eq, %38, %39 : vector<2x2xi32>
    %41 = arith.extui %40 : vector<2x2xi1> to vector<2x2xi32>
    %42 = arith.sitofp %41 : vector<2x2xi32> to vector<2x2xf32>
    %43 = arith.mulf %37, %42 : vector<2x2xf32>
    %cst_22 = arith.constant dense<0xFF800000> : vector<2xf32>
    %44 = vector.multi_reduction <maximumf>, %37, %cst_22 [1] : vector<2x2xf32> to vector<2xf32>
    %45 = vector.shape_cast %44 : vector<2xf32> to vector<2x1xf32>
    %46 = vector.broadcast %45 : vector<2x1xf32> to vector<2x2xf32>
    %47 = arith.subf %37, %46 : vector<2x2xf32>
    %48 = math.exp %47 : vector<2x2xf32>
    %cst_23 = arith.constant dense<0.000000e+00> : vector<2xf32>
    %49 = vector.multi_reduction <add>, %48, %cst_23 [1] : vector<2x2xf32> to vector<2xf32>
    %50 = vector.shape_cast %49 : vector<2xf32> to vector<2x1xf32>
    %51 = math.log %50 : vector<2x1xf32>
    %52 = arith.addf %45, %51 : vector<2x1xf32>
    %cst_24 = arith.constant dense<0.000000e+00> : vector<2xf32>
    %53 = vector.multi_reduction <add>, %43, %cst_24 [1] : vector<2x2xf32> to vector<2xf32>
    %54 = vector.shape_cast %53 : vector<2xf32> to vector<2x1xf32>
    %55 = arith.subf %52, %54 : vector<2x1xf32>
    %cst_25 = arith.constant dense<0.000000e+00> : vector<1xf32>
    %56 = vector.multi_reduction <add>, %55, %cst_25 [0] : vector<2x1xf32> to vector<1xf32>
    %57 = vector.shape_cast %56 : vector<1xf32> to vector<1x1xf32>
    %cst_26 = arith.constant 2.000000e+00 : f32
    %58 = vector.broadcast %cst_26 : f32 to vector<1x1xf32>
    %59 = arith.divf %57, %58 : vector<1x1xf32>
    %cst_27 = arith.constant dense<0xFF800000> : vector<2xf32>
    %60 = vector.multi_reduction <maximumf>, %37, %cst_27 [0] : vector<2x2xf32> to vector<2xf32>
    %61 = vector.shape_cast %60 : vector<2xf32> to vector<1x2xf32>
    %62 = vector.broadcast %61 : vector<1x2xf32> to vector<2x2xf32>
    %63 = arith.subf %37, %62 : vector<2x2xf32>
    %64 = math.exp %63 : vector<2x2xf32>
    %cst_28 = arith.constant dense<0.000000e+00> : vector<2xf32>
    %65 = vector.multi_reduction <add>, %64, %cst_28 [0] : vector<2x2xf32> to vector<2xf32>
    %66 = vector.shape_cast %65 : vector<2xf32> to vector<1x2xf32>
    %67 = math.log %66 : vector<1x2xf32>
    %68 = arith.addf %61, %67 : vector<1x2xf32>
    %cst_29 = arith.constant dense<0.000000e+00> : vector<2xf32>
    %69 = vector.multi_reduction <add>, %43, %cst_29 [0] : vector<2x2xf32> to vector<2xf32>
    %70 = vector.shape_cast %69 : vector<2xf32> to vector<1x2xf32>
    %71 = arith.subf %68, %70 : vector<1x2xf32>
    %cst_30 = arith.constant dense<0.000000e+00> : vector<1xf32>
    %72 = vector.multi_reduction <add>, %71, %cst_30 [1] : vector<1x2xf32> to vector<1xf32>
    %73 = vector.shape_cast %72 : vector<1xf32> to vector<1x1xf32>
    %cst_31 = arith.constant 2.000000e+00 : f32
    %74 = vector.broadcast %cst_31 : f32 to vector<1x1xf32>
    %75 = arith.divf %73, %74 : vector<1x1xf32>
    %76 = arith.addf %59, %75 : vector<1x1xf32>
    %cst_32 = arith.constant 5.000000e-01 : f32
    %77 = vector.broadcast %cst_32 : f32 to vector<1x1xf32>
    %78 = arith.mulf %77, %76 : vector<1x1xf32>
    %c0_33 = arith.constant 0 : index
    %c0_34 = arith.constant 0 : index
    %79 = vector.load %arg7[%c0_33, %c0_34] : memref<1x1xf32, #tpu.memory_space<vmem>>, vector<1x1xf32>
    tpu.vector_store %arg7[%c0_33, %c0_34], %78 {strides = array<i32>} : memref<1x1xf32, #tpu.memory_space<vmem>>, vector<1x1xf32>,
    %c0_35 = arith.constant 0 : index
    %c0_36 = arith.constant 0 : index
    %80 = vector.load %arg8[%c0_35, %c0_36] : memref<2x16xf32, #tpu.memory_space<vmem>>, vector<2x16xf32>
    tpu.vector_store %arg8[%c0_35, %c0_36], %16 {strides = array<i32>} : memref<2x16xf32, #tpu.memory_space<vmem>>, vector<2x16xf32>,
    %c0_37 = arith.constant 0 : index
    %c0_38 = arith.constant 0 : index
    %81 = vector.load %arg9[%c0_37, %c0_38] : memref<2x16xf32, #tpu.memory_space<vmem>>, vector<2x16xf32>
    tpu.vector_store %arg9[%c0_37, %c0_38], %24 {strides = array<i32>} : memref<2x16xf32, #tpu.memory_space<vmem>>, vector<2x16xf32>,
    %c0_39 = arith.constant 0 : index
    %c0_40 = arith.constant 0 : index
    %82 = vector.load %arg10[%c0_39, %c0_40] : memref<2x16xf32, #tpu.memory_space<vmem>>, vector<2x16xf32>
    tpu.vector_store %arg10[%c0_39, %c0_40], %32 {strides = array<i32>} : memref<2x16xf32, #tpu.memory_space<vmem>>, vector<2x16xf32>,
    return
  }
  func.func @transform_0(%arg0: i32) -> (i32, i32) {
    %c0_i32 = arith.constant 0 : i32
    %c0_i32_0 = arith.constant 0 : i32
    %c0_i32_1 = arith.constant 0 : i32
    return %c0_i32, %c0_i32_0 : i32, i32
  }
  func.func @transform_1(%arg0: i32) -> (i32, i32) {
    %c0_i32 = arith.constant 0 : i32
    %c0_i32_0 = arith.constant 0 : i32
    %c0_i32_1 = arith.constant 0 : i32
    return %c0_i32, %c0_i32_0 : i32, i32
  }
  func.func @transform_2(%arg0: i32) -> (i32, i32) {
    %c0_i32 = arith.constant 0 : i32
    %c0_i32_0 = arith.constant 0 : i32
    %c0_i32_1 = arith.constant 0 : i32
    return %c0_i32, %c0_i32_0 : i32, i32
  }
  func.func @transform_3(%arg0: i32) -> (i32, i32) {
    %c0_i32 = arith.constant 0 : i32
    %c0_i32_0 = arith.constant 0 : i32
    %c0_i32_1 = arith.constant 0 : i32
    return %c0_i32, %c0_i32_0 : i32, i32
  }
  func.func @transform_4(%arg0: i32) -> (i32, i32) {
    %c0_i32 = arith.constant 0 : i32
    %c0_i32_0 = arith.constant 0 : i32
    %c0_i32_1 = arith.constant 0 : i32
    return %c0_i32, %c0_i32_0 : i32, i32
  }
  func.func @transform_5(%arg0: i32) -> (i32, i32) {
    %c0_i32 = arith.constant 0 : i32
    %c0_i32_0 = arith.constant 0 : i32
    %c0_i32_1 = arith.constant 0 : i32
    return %c0_i32, %c0_i32_0 : i32, i32
  }
  func.func @transform_6(%arg0: i32) -> (i32, i32) {
    %c0_i32 = arith.constant 0 : i32
    %c0_i32_0 = arith.constant 0 : i32
    %c0_i32_1 = arith.constant 0 : i32
    return %c0_i32, %c0_i32_0 : i32, i32
  }
  func.func @transform_7(%arg0: i32) -> (i32, i32) {
    %c0_i32 = arith.constant 0 : i32
    %c0_i32_0 = arith.constant 0 : i32
    %c0_i32_1 = arith.constant 0 : i32
    return %c0_i32, %c0_i32_0 : i32, i32
  }
  func.func @transform_8(%arg0: i32) -> (i32, i32) {
    %c0_i32 = arith.constant 0 : i32
    %c0_i32_0 = arith.constant 0 : i32
    %c0_i32_1 = arith.constant 0 : i32
    return %c0_i32, %c0_i32_0 : i32, i32
  }
  func.func @transform_9(%arg0: i32) -> (i32, i32) {
    %c0_i32 = arith.constant 0 : i32
    %c0_i32_0 = arith.constant 0 : i32
    %c0_i32_1 = arith.constant 0 : i32
    return %c0_i32, %c0_i32_0 : i32, i32
  }
}

module attributes {stable_mosaic.version = 11 : i64} {
  func.func @_tower_kernel(%arg0: i32, %arg1: memref<1x8x32xf32, #tpu.memory_space<vmem>>, %arg2: memref<1x1x8xf32, #tpu.memory_space<vmem>>, %arg3: memref<1x32xf32, #tpu.memory_space<vmem>>, %arg4: memref<1x32xf32, #tpu.memory_space<vmem>>, %arg5: memref<2x1x32xf32, #tpu.memory_space<vmem>>, %arg6: memref<2x1x32xf32, #tpu.memory_space<vmem>>, %arg7: memref<2x32x96xf32, #tpu.memory_space<vmem>>, %arg8: memref<2x1x96xf32, #tpu.memory_space<vmem>>, %arg9: memref<2x32x32xf32, #tpu.memory_space<vmem>>, %arg10: memref<2x1x32xf32, #tpu.memory_space<vmem>>, %arg11: memref<2x1x32xf32, #tpu.memory_space<vmem>>, %arg12: memref<2x1x32xf32, #tpu.memory_space<vmem>>, %arg13: memref<2x32x128xf32, #tpu.memory_space<vmem>>, %arg14: memref<2x1x128xf32, #tpu.memory_space<vmem>>, %arg15: memref<2x128x32xf32, #tpu.memory_space<vmem>>, %arg16: memref<2x1x32xf32, #tpu.memory_space<vmem>>, %arg17: memref<1x32xf32, #tpu.memory_space<vmem>>, %arg18: memref<1x32xf32, #tpu.memory_space<vmem>>, %arg19: memref<1x1x32xf32, #tpu.memory_space<vmem>>) attributes {dimension_semantics = [#tpu.dimension_semantics<parallel>], iteration_bounds = array<i64: 2>, scalar_prefetch = 0 : i64, scratch_operands = 0 : i64, tpu.core_type = #tpu.core_type<tc>, window_params = [{transform_indices = @transform_0, window_bounds = array<i64: 1, 8, 32>}, {transform_indices = @transform_1, window_bounds = array<i64: 1, 1, 8>}, {pipeline_mode = #tpu.pipeline_mode<synchronous>, transform_indices = @transform_2, window_bounds = array<i64: 1, 32>}, {pipeline_mode = #tpu.pipeline_mode<synchronous>, transform_indices = @transform_3, window_bounds = array<i64: 1, 32>}, {pipeline_mode = #tpu.pipeline_mode<synchronous>, transform_indices = @transform_4, window_bounds = array<i64: 2, 1, 32>}, {pipeline_mode = #tpu.pipeline_mode<synchronous>, transform_indices = @transform_5, window_bounds = array<i64: 2, 1, 32>}, {pipeline_mode = #tpu.pipeline_mode<synchronous>, transform_indices = @transform_6, window_bounds = array<i64: 2, 32, 96>}, {pipeline_mode = #tpu.pipeline_mode<synchronous>, transform_indices = @transform_7, window_bounds = array<i64: 2, 1, 96>}, {pipeline_mode = #tpu.pipeline_mode<synchronous>, transform_indices = @transform_8, window_bounds = array<i64: 2, 32, 32>}, {pipeline_mode = #tpu.pipeline_mode<synchronous>, transform_indices = @transform_9, window_bounds = array<i64: 2, 1, 32>}, {pipeline_mode = #tpu.pipeline_mode<synchronous>, transform_indices = @transform_10, window_bounds = array<i64: 2, 1, 32>}, {pipeline_mode = #tpu.pipeline_mode<synchronous>, transform_indices = @transform_11, window_bounds = array<i64: 2, 1, 32>}, {pipeline_mode = #tpu.pipeline_mode<synchronous>, transform_indices = @transform_12, window_bounds = array<i64: 2, 32, 128>}, {pipeline_mode = #tpu.pipeline_mode<synchronous>, transform_indices = @transform_13, window_bounds = array<i64: 2, 1, 128>}, {pipeline_mode = #tpu.pipeline_mode<synchronous>, transform_indices = @transform_14, window_bounds = array<i64: 2, 128, 32>}, {pipeline_mode = #tpu.pipeline_mode<synchronous>, transform_indices = @transform_15, window_bounds = array<i64: 2, 1, 32>}, {pipeline_mode = #tpu.pipeline_mode<synchronous>, transform_indices = @transform_16, window_bounds = array<i64: 1, 32>}, {pipeline_mode = #tpu.pipeline_mode<synchronous>, transform_indices = @transform_17, window_bounds = array<i64: 1, 32>}, {transform_indices = @transform_18, window_bounds = array<i64: 1, 1, 32>}]} {
    %c0 = arith.constant 0 : index
    %c0_0 = arith.constant 0 : index
    %c0_1 = arith.constant 0 : index
    %0 = vector.load %arg1[%c0, %c0_0, %c0_1] : memref<1x8x32xf32, #tpu.memory_space<vmem>>, vector<1x8x32xf32>
    %1 = vector.shape_cast %0 : vector<1x8x32xf32> to vector<8x32xf32>
    %c0_2 = arith.constant 0 : index
    %c0_3 = arith.constant 0 : index
    %c0_4 = arith.constant 0 : index
    %2 = vector.load %arg2[%c0_2, %c0_3, %c0_4] : memref<1x1x8xf32, #tpu.memory_space<vmem>>, vector<1x1x8xf32>
    %3 = vector.shape_cast %2 : vector<1x1x8xf32> to vector<1x8xf32>
    %cst = arith.constant 1.000000e+00 : f32
    %4 = vector.broadcast %cst : f32 to vector<1x8xf32>
    %5 = arith.subf %4, %3 : vector<1x8xf32>
    %cst_5 = arith.constant -1.000000e+09 : f32
    %6 = vector.broadcast %cst_5 : f32 to vector<1x8xf32>
    %7 = arith.mulf %5, %6 : vector<1x8xf32>
    %c0_6 = arith.constant 0 : index
    %c0_7 = arith.constant 0 : index
    %8 = vector.load %arg3[%c0_6, %c0_7] : memref<1x32xf32, #tpu.memory_space<vmem>>, vector<1x32xf32>
    %c0_8 = arith.constant 0 : index
    %c0_9 = arith.constant 0 : index
    %9 = vector.load %arg4[%c0_8, %c0_9] : memref<1x32xf32, #tpu.memory_space<vmem>>, vector<1x32xf32>
    %cst_10 = arith.constant dense<0.000000e+00> : vector<8xf32>
    %10 = vector.multi_reduction <add>, %1, %cst_10 [1] : vector<8x32xf32> to vector<8xf32>
    %11 = vector.shape_cast %10 : vector<8xf32> to vector<8x1xf32>
    %cst_11 = arith.constant 3.200000e+01 : f32
    %12 = vector.broadcast %cst_11 : f32 to vector<8x1xf32>
    %13 = arith.divf %11, %12 : vector<8x1xf32>
    %14 = vector.broadcast %13 : vector<8x1xf32> to vector<8x32xf32>
    %15 = arith.subf %1, %14 : vector<8x32xf32>
    %16 = arith.mulf %15, %15 : vector<8x32xf32>
    %cst_12 = arith.constant dense<0.000000e+00> : vector<8xf32>
    %17 = vector.multi_reduction <add>, %16, %cst_12 [1] : vector<8x32xf32> to vector<8xf32>
    %18 = vector.shape_cast %17 : vector<8xf32> to vector<8x1xf32>
    %cst_13 = arith.constant 3.200000e+01 : f32
    %19 = vector.broadcast %cst_13 : f32 to vector<8x1xf32>
    %20 = arith.divf %18, %19 : vector<8x1xf32>
    %21 = vector.broadcast %13 : vector<8x1xf32> to vector<8x32xf32>
    %22 = arith.subf %1, %21 : vector<8x32xf32>
    %cst_14 = arith.constant 9.99999974E-6 : f32
    %23 = vector.broadcast %cst_14 : f32 to vector<8x1xf32>
    %24 = arith.addf %20, %23 : vector<8x1xf32>
    %25 = math.rsqrt %24 : vector<8x1xf32>
    %26 = vector.broadcast %25 : vector<8x1xf32> to vector<8x32xf32>
    %27 = arith.mulf %22, %26 : vector<8x32xf32>
    %28 = vector.broadcast %8 : vector<1x32xf32> to vector<8x32xf32>
    %29 = arith.mulf %27, %28 : vector<8x32xf32>
    %30 = vector.broadcast %9 : vector<1x32xf32> to vector<8x32xf32>
    %31 = arith.addf %29, %30 : vector<8x32xf32>
    %c0_15 = arith.constant 0 : index
    %c0_16 = arith.constant 0 : index
    %c0_17 = arith.constant 0 : index
    %32 = vector.load %arg5[%c0_15, %c0_16, %c0_17] : memref<2x1x32xf32, #tpu.memory_space<vmem>>, vector<1x1x32xf32>
    %33 = vector.shape_cast %32 : vector<1x1x32xf32> to vector<1x32xf32>
    %c0_18 = arith.constant 0 : index
    %c0_19 = arith.constant 0 : index
    %c0_20 = arith.constant 0 : index
    %34 = vector.load %arg6[%c0_18, %c0_19, %c0_20] : memref<2x1x32xf32, #tpu.memory_space<vmem>>, vector<1x1x32xf32>
    %35 = vector.shape_cast %34 : vector<1x1x32xf32> to vector<1x32xf32>
    %cst_21 = arith.constant dense<0.000000e+00> : vector<8xf32>
    %36 = vector.multi_reduction <add>, %31, %cst_21 [1] : vector<8x32xf32> to vector<8xf32>
    %37 = vector.shape_cast %36 : vector<8xf32> to vector<8x1xf32>
    %cst_22 = arith.constant 3.200000e+01 : f32
    %38 = vector.broadcast %cst_22 : f32 to vector<8x1xf32>
    %39 = arith.divf %37, %38 : vector<8x1xf32>
    %40 = vector.broadcast %39 : vector<8x1xf32> to vector<8x32xf32>
    %41 = arith.subf %31, %40 : vector<8x32xf32>
    %42 = arith.mulf %41, %41 : vector<8x32xf32>
    %cst_23 = arith.constant dense<0.000000e+00> : vector<8xf32>
    %43 = vector.multi_reduction <add>, %42, %cst_23 [1] : vector<8x32xf32> to vector<8xf32>
    %44 = vector.shape_cast %43 : vector<8xf32> to vector<8x1xf32>
    %cst_24 = arith.constant 3.200000e+01 : f32
    %45 = vector.broadcast %cst_24 : f32 to vector<8x1xf32>
    %46 = arith.divf %44, %45 : vector<8x1xf32>
    %47 = vector.broadcast %39 : vector<8x1xf32> to vector<8x32xf32>
    %48 = arith.subf %31, %47 : vector<8x32xf32>
    %cst_25 = arith.constant 9.99999974E-6 : f32
    %49 = vector.broadcast %cst_25 : f32 to vector<8x1xf32>
    %50 = arith.addf %46, %49 : vector<8x1xf32>
    %51 = math.rsqrt %50 : vector<8x1xf32>
    %52 = vector.broadcast %51 : vector<8x1xf32> to vector<8x32xf32>
    %53 = arith.mulf %48, %52 : vector<8x32xf32>
    %54 = vector.broadcast %33 : vector<1x32xf32> to vector<8x32xf32>
    %55 = arith.mulf %53, %54 : vector<8x32xf32>
    %56 = vector.broadcast %35 : vector<1x32xf32> to vector<8x32xf32>
    %57 = arith.addf %55, %56 : vector<8x32xf32>
    %c0_26 = arith.constant 0 : index
    %c0_27 = arith.constant 0 : index
    %c0_28 = arith.constant 0 : index
    %58 = vector.load %arg7[%c0_26, %c0_27, %c0_28] : memref<2x32x96xf32, #tpu.memory_space<vmem>>, vector<1x32x96xf32>
    %59 = vector.shape_cast %58 : vector<1x32x96xf32> to vector<32x96xf32>
    %cst_29 = arith.constant dense<0.000000e+00> : vector<8x96xf32>
    %60 = tpu.matmul %57, %59, %cst_29 {dimension_numbers = #tpu.dot_dimension_numbers<[1], [0], [0], [1], [0, 0, 1, 1], [], []>} : vector<8x32xf32>, vector<32x96xf32>, vector<8x96xf32> -> vector<8x96xf32>
    %c0_30 = arith.constant 0 : index
    %c0_31 = arith.constant 0 : index
    %c0_32 = arith.constant 0 : index
    %61 = vector.load %arg8[%c0_30, %c0_31, %c0_32] : memref<2x1x96xf32, #tpu.memory_space<vmem>>, vector<1x1x96xf32>
    %62 = vector.shape_cast %61 : vector<1x1x96xf32> to vector<1x96xf32>
    %63 = vector.broadcast %62 : vector<1x96xf32> to vector<8x96xf32>
    %64 = arith.addf %60, %63 : vector<8x96xf32>
    %c0_33 = arith.constant 0 : index
    %c0_34 = arith.constant 0 : index
    %c0_35 = arith.constant 0 : index
    %65 = vector.load %arg9[%c0_33, %c0_34, %c0_35] : memref<2x32x32xf32, #tpu.memory_space<vmem>>, vector<1x32x32xf32>
    %66 = vector.shape_cast %65 : vector<1x32x32xf32> to vector<32x32xf32>
    %c0_36 = arith.constant 0 : index
    %c0_37 = arith.constant 0 : index
    %c0_38 = arith.constant 0 : index
    %67 = vector.load %arg10[%c0_36, %c0_37, %c0_38] : memref<2x1x32xf32, #tpu.memory_space<vmem>>, vector<1x1x32xf32>
    %68 = vector.shape_cast %67 : vector<1x1x32xf32> to vector<1x32xf32>
    %69 = vector.extract_strided_slice %64 {offsets = [0, 0], sizes = [8, 16], strides = [1, 1]} : vector<8x96xf32> to vector<8x16xf32>
    %70 = vector.extract_strided_slice %64 {offsets = [0, 32], sizes = [8, 16], strides = [1, 1]} : vector<8x96xf32> to vector<8x16xf32>
    %71 = vector.extract_strided_slice %64 {offsets = [0, 64], sizes = [8, 16], strides = [1, 1]} : vector<8x96xf32> to vector<8x16xf32>
    %cst_39 = arith.constant dense<0.000000e+00> : vector<8x8xf32>
    %72 = tpu.matmul %69, %70, %cst_39 {dimension_numbers = #tpu.dot_dimension_numbers<[1], [1], [0], [0], [0, 0, 1, 0], [], []>} : vector<8x16xf32>, vector<8x16xf32>, vector<8x8xf32> -> vector<8x8xf32>
    %cst_40 = arith.constant 2.500000e-01 : f32
    %73 = vector.broadcast %cst_40 : f32 to vector<8x8xf32>
    %74 = arith.mulf %72, %73 : vector<8x8xf32>
    %75 = vector.broadcast %7 : vector<1x8xf32> to vector<8x8xf32>
    %76 = arith.addf %74, %75 : vector<8x8xf32>
    %cst_41 = arith.constant dense<0xFF800000> : vector<8xf32>
    %77 = vector.multi_reduction <maximumf>, %76, %cst_41 [1] : vector<8x8xf32> to vector<8xf32>
    %78 = vector.shape_cast %77 : vector<8xf32> to vector<8x1xf32>
    %79 = vector.broadcast %78 : vector<8x1xf32> to vector<8x8xf32>
    %80 = arith.subf %76, %79 : vector<8x8xf32>
    %81 = math.exp %80 : vector<8x8xf32>
    %cst_42 = arith.constant dense<0.000000e+00> : vector<8xf32>
    %82 = vector.multi_reduction <add>, %81, %cst_42 [1] : vector<8x8xf32> to vector<8xf32>
    %83 = vector.shape_cast %82 : vector<8xf32> to vector<8x1xf32>
    %84 = tpu.reciprocal %83 {approx = true} : vector<8x1xf32> -> vector<8x1xf32>
    %85 = vector.broadcast %84 : vector<8x1xf32> to vector<8x8xf32>
    %86 = arith.mulf %81, %85 : vector<8x8xf32>
    %cst_43 = arith.constant dense<0.000000e+00> : vector<8x16xf32>
    %87 = tpu.matmul %86, %71, %cst_43 {dimension_numbers = #tpu.dot_dimension_numbers<[1], [0], [0], [1], [0, 0, 1, 1], [], []>} : vector<8x8xf32>, vector<8x16xf32>, vector<8x16xf32> -> vector<8x16xf32>
    %88 = vector.extract_strided_slice %66 {offsets = [0, 0], sizes = [16, 32], strides = [1, 1]} : vector<32x32xf32> to vector<16x32xf32>
    %cst_44 = arith.constant dense<0.000000e+00> : vector<8x32xf32>
    %89 = tpu.matmul %87, %88, %cst_44 {dimension_numbers = #tpu.dot_dimension_numbers<[1], [0], [0], [1], [0, 0, 1, 1], [], []>} : vector<8x16xf32>, vector<16x32xf32>, vector<8x32xf32> -> vector<8x32xf32>
    %90 = vector.broadcast %68 : vector<1x32xf32> to vector<8x32xf32>
    %91 = arith.addf %90, %89 : vector<8x32xf32>
    %92 = vector.extract_strided_slice %64 {offsets = [0, 16], sizes = [8, 16], strides = [1, 1]} : vector<8x96xf32> to vector<8x16xf32>
    %93 = vector.extract_strided_slice %64 {offsets = [0, 48], sizes = [8, 16], strides = [1, 1]} : vector<8x96xf32> to vector<8x16xf32>
    %94 = vector.extract_strided_slice %64 {offsets = [0, 80], sizes = [8, 16], strides = [1, 1]} : vector<8x96xf32> to vector<8x16xf32>
    %cst_45 = arith.constant dense<0.000000e+00> : vector<8x8xf32>
    %95 = tpu.matmul %92, %93, %cst_45 {dimension_numbers = #tpu.dot_dimension_numbers<[1], [1], [0], [0], [0, 0, 1, 0], [], []>} : vector<8x16xf32>, vector<8x16xf32>, vector<8x8xf32> -> vector<8x8xf32>
    %cst_46 = arith.constant 2.500000e-01 : f32
    %96 = vector.broadcast %cst_46 : f32 to vector<8x8xf32>
    %97 = arith.mulf %95, %96 : vector<8x8xf32>
    %98 = vector.broadcast %7 : vector<1x8xf32> to vector<8x8xf32>
    %99 = arith.addf %97, %98 : vector<8x8xf32>
    %cst_47 = arith.constant dense<0xFF800000> : vector<8xf32>
    %100 = vector.multi_reduction <maximumf>, %99, %cst_47 [1] : vector<8x8xf32> to vector<8xf32>
    %101 = vector.shape_cast %100 : vector<8xf32> to vector<8x1xf32>
    %102 = vector.broadcast %101 : vector<8x1xf32> to vector<8x8xf32>
    %103 = arith.subf %99, %102 : vector<8x8xf32>
    %104 = math.exp %103 : vector<8x8xf32>
    %cst_48 = arith.constant dense<0.000000e+00> : vector<8xf32>
    %105 = vector.multi_reduction <add>, %104, %cst_48 [1] : vector<8x8xf32> to vector<8xf32>
    %106 = vector.shape_cast %105 : vector<8xf32> to vector<8x1xf32>
    %107 = tpu.reciprocal %106 {approx = true} : vector<8x1xf32> -> vector<8x1xf32>
    %108 = vector.broadcast %107 : vector<8x1xf32> to vector<8x8xf32>
    %109 = arith.mulf %104, %108 : vector<8x8xf32>
    %cst_49 = arith.constant dense<0.000000e+00> : vector<8x16xf32>
    %110 = tpu.matmul %109, %94, %cst_49 {dimension_numbers = #tpu.dot_dimension_numbers<[1], [0], [0], [1], [0, 0, 1, 1], [], []>} : vector<8x8xf32>, vector<8x16xf32>, vector<8x16xf32> -> vector<8x16xf32>
    %111 = vector.extract_strided_slice %66 {offsets = [16, 0], sizes = [16, 32], strides = [1, 1]} : vector<32x32xf32> to vector<16x32xf32>
    %cst_50 = arith.constant dense<0.000000e+00> : vector<8x32xf32>
    %112 = tpu.matmul %110, %111, %cst_50 {dimension_numbers = #tpu.dot_dimension_numbers<[1], [0], [0], [1], [0, 0, 1, 1], [], []>} : vector<8x16xf32>, vector<16x32xf32>, vector<8x32xf32> -> vector<8x32xf32>
    %113 = arith.addf %91, %112 : vector<8x32xf32>
    %114 = arith.addf %31, %113 : vector<8x32xf32>
    %c0_51 = arith.constant 0 : index
    %c0_52 = arith.constant 0 : index
    %c0_53 = arith.constant 0 : index
    %115 = vector.load %arg11[%c0_51, %c0_52, %c0_53] : memref<2x1x32xf32, #tpu.memory_space<vmem>>, vector<1x1x32xf32>
    %116 = vector.shape_cast %115 : vector<1x1x32xf32> to vector<1x32xf32>
    %c0_54 = arith.constant 0 : index
    %c0_55 = arith.constant 0 : index
    %c0_56 = arith.constant 0 : index
    %117 = vector.load %arg12[%c0_54, %c0_55, %c0_56] : memref<2x1x32xf32, #tpu.memory_space<vmem>>, vector<1x1x32xf32>
    %118 = vector.shape_cast %117 : vector<1x1x32xf32> to vector<1x32xf32>
    %cst_57 = arith.constant dense<0.000000e+00> : vector<8xf32>
    %119 = vector.multi_reduction <add>, %114, %cst_57 [1] : vector<8x32xf32> to vector<8xf32>
    %120 = vector.shape_cast %119 : vector<8xf32> to vector<8x1xf32>
    %cst_58 = arith.constant 3.200000e+01 : f32
    %121 = vector.broadcast %cst_58 : f32 to vector<8x1xf32>
    %122 = arith.divf %120, %121 : vector<8x1xf32>
    %123 = vector.broadcast %122 : vector<8x1xf32> to vector<8x32xf32>
    %124 = arith.subf %114, %123 : vector<8x32xf32>
    %125 = arith.mulf %124, %124 : vector<8x32xf32>
    %cst_59 = arith.constant dense<0.000000e+00> : vector<8xf32>
    %126 = vector.multi_reduction <add>, %125, %cst_59 [1] : vector<8x32xf32> to vector<8xf32>
    %127 = vector.shape_cast %126 : vector<8xf32> to vector<8x1xf32>
    %cst_60 = arith.constant 3.200000e+01 : f32
    %128 = vector.broadcast %cst_60 : f32 to vector<8x1xf32>
    %129 = arith.divf %127, %128 : vector<8x1xf32>
    %130 = vector.broadcast %122 : vector<8x1xf32> to vector<8x32xf32>
    %131 = arith.subf %114, %130 : vector<8x32xf32>
    %cst_61 = arith.constant 9.99999974E-6 : f32
    %132 = vector.broadcast %cst_61 : f32 to vector<8x1xf32>
    %133 = arith.addf %129, %132 : vector<8x1xf32>
    %134 = math.rsqrt %133 : vector<8x1xf32>
    %135 = vector.broadcast %134 : vector<8x1xf32> to vector<8x32xf32>
    %136 = arith.mulf %131, %135 : vector<8x32xf32>
    %137 = vector.broadcast %116 : vector<1x32xf32> to vector<8x32xf32>
    %138 = arith.mulf %136, %137 : vector<8x32xf32>
    %139 = vector.broadcast %118 : vector<1x32xf32> to vector<8x32xf32>
    %140 = arith.addf %138, %139 : vector<8x32xf32>
    %c0_62 = arith.constant 0 : index
    %c0_63 = arith.constant 0 : index
    %c0_64 = arith.constant 0 : index
    %141 = vector.load %arg13[%c0_62, %c0_63, %c0_64] : memref<2x32x128xf32, #tpu.memory_space<vmem>>, vector<1x32x128xf32>
    %142 = vector.shape_cast %141 : vector<1x32x128xf32> to vector<32x128xf32>
    %cst_65 = arith.constant dense<0.000000e+00> : vector<8x128xf32>
    %143 = tpu.matmul %140, %142, %cst_65 {dimension_numbers = #tpu.dot_dimension_numbers<[1], [0], [0], [1], [0, 0, 1, 1], [], []>} : vector<8x32xf32>, vector<32x128xf32>, vector<8x128xf32> -> vector<8x128xf32>
    %c0_66 = arith.constant 0 : index
    %c0_67 = arith.constant 0 : index
    %c0_68 = arith.constant 0 : index
    %144 = vector.load %arg14[%c0_66, %c0_67, %c0_68] : memref<2x1x128xf32, #tpu.memory_space<vmem>>, vector<1x1x128xf32>
    %145 = vector.shape_cast %144 : vector<1x1x128xf32> to vector<1x128xf32>
    %146 = vector.broadcast %145 : vector<1x128xf32> to vector<8x128xf32>
    %147 = arith.addf %143, %146 : vector<8x128xf32>
    %148 = arith.mulf %147, %147 : vector<8x128xf32>
    %149 = arith.mulf %147, %148 : vector<8x128xf32>
    %cst_69 = arith.constant 4.471500e-02 : f32
    %150 = vector.broadcast %cst_69 : f32 to vector<8x128xf32>
    %151 = arith.mulf %150, %149 : vector<8x128xf32>
    %152 = arith.addf %147, %151 : vector<8x128xf32>
    %cst_70 = arith.constant 0.797884583 : f32
    %153 = vector.broadcast %cst_70 : f32 to vector<8x128xf32>
    %154 = arith.mulf %153, %152 : vector<8x128xf32>
    %155 = math.tanh %154 : vector<8x128xf32>
    %cst_71 = arith.constant 1.000000e+00 : f32
    %156 = vector.broadcast %cst_71 : f32 to vector<8x128xf32>
    %157 = arith.addf %156, %155 : vector<8x128xf32>
    %cst_72 = arith.constant 5.000000e-01 : f32
    %158 = vector.broadcast %cst_72 : f32 to vector<8x128xf32>
    %159 = arith.mulf %158, %157 : vector<8x128xf32>
    %160 = arith.mulf %147, %159 : vector<8x128xf32>
    %c0_73 = arith.constant 0 : index
    %c0_74 = arith.constant 0 : index
    %c0_75 = arith.constant 0 : index
    %161 = vector.load %arg15[%c0_73, %c0_74, %c0_75] : memref<2x128x32xf32, #tpu.memory_space<vmem>>, vector<1x128x32xf32>
    %162 = vector.shape_cast %161 : vector<1x128x32xf32> to vector<128x32xf32>
    %cst_76 = arith.constant dense<0.000000e+00> : vector<8x32xf32>
    %163 = tpu.matmul %160, %162, %cst_76 {dimension_numbers = #tpu.dot_dimension_numbers<[1], [0], [0], [1], [0, 0, 1, 1], [], []>} : vector<8x128xf32>, vector<128x32xf32>, vector<8x32xf32> -> vector<8x32xf32>
    %c0_77 = arith.constant 0 : index
    %c0_78 = arith.constant 0 : index
    %c0_79 = arith.constant 0 : index
    %164 = vector.load %arg16[%c0_77, %c0_78, %c0_79] : memref<2x1x32xf32, #tpu.memory_space<vmem>>, vector<1x1x32xf32>
    %165 = vector.shape_cast %164 : vector<1x1x32xf32> to vector<1x32xf32>
    %166 = vector.broadcast %165 : vector<1x32xf32> to vector<8x32xf32>
    %167 = arith.addf %163, %166 : vector<8x32xf32>
    %168 = arith.addf %114, %167 : vector<8x32xf32>
    %c1 = arith.constant 1 : index
    %c0_80 = arith.constant 0 : index
    %c0_81 = arith.constant 0 : index
    %169 = vector.load %arg5[%c1, %c0_80, %c0_81] : memref<2x1x32xf32, #tpu.memory_space<vmem>>, vector<1x1x32xf32>
    %170 = vector.shape_cast %169 : vector<1x1x32xf32> to vector<1x32xf32>
    %c1_82 = arith.constant 1 : index
    %c0_83 = arith.constant 0 : index
    %c0_84 = arith.constant 0 : index
    %171 = vector.load %arg6[%c1_82, %c0_83, %c0_84] : memref<2x1x32xf32, #tpu.memory_space<vmem>>, vector<1x1x32xf32>
    %172 = vector.shape_cast %171 : vector<1x1x32xf32> to vector<1x32xf32>
    %cst_85 = arith.constant dense<0.000000e+00> : vector<8xf32>
    %173 = vector.multi_reduction <add>, %168, %cst_85 [1] : vector<8x32xf32> to vector<8xf32>
    %174 = vector.shape_cast %173 : vector<8xf32> to vector<8x1xf32>
    %cst_86 = arith.constant 3.200000e+01 : f32
    %175 = vector.broadcast %cst_86 : f32 to vector<8x1xf32>
    %176 = arith.divf %174, %175 : vector<8x1xf32>
    %177 = vector.broadcast %176 : vector<8x1xf32> to vector<8x32xf32>
    %178 = arith.subf %168, %177 : vector<8x32xf32>
    %179 = arith.mulf %178, %178 : vector<8x32xf32>
    %cst_87 = arith.constant dense<0.000000e+00> : vector<8xf32>
    %180 = vector.multi_reduction <add>, %179, %cst_87 [1] : vector<8x32xf32> to vector<8xf32>
    %181 = vector.shape_cast %180 : vector<8xf32> to vector<8x1xf32>
    %cst_88 = arith.constant 3.200000e+01 : f32
    %182 = vector.broadcast %cst_88 : f32 to vector<8x1xf32>
    %183 = arith.divf %181, %182 : vector<8x1xf32>
    %184 = vector.broadcast %176 : vector<8x1xf32> to vector<8x32xf32>
    %185 = arith.subf %168, %184 : vector<8x32xf32>
    %cst_89 = arith.constant 9.99999974E-6 : f32
    %186 = vector.broadcast %cst_89 : f32 to vector<8x1xf32>
    %187 = arith.addf %183, %186 : vector<8x1xf32>
    %188 = math.rsqrt %187 : vector<8x1xf32>
    %189 = vector.broadcast %188 : vector<8x1xf32> to vector<8x32xf32>
    %190 = arith.mulf %185, %189 : vector<8x32xf32>
    %191 = vector.broadcast %170 : vector<1x32xf32> to vector<8x32xf32>
    %192 = arith.mulf %190, %191 : vector<8x32xf32>
    %193 = vector.broadcast %172 : vector<1x32xf32> to vector<8x32xf32>
    %194 = arith.addf %192, %193 : vector<8x32xf32>
    %c1_90 = arith.constant 1 : index
    %c0_91 = arith.constant 0 : index
    %c0_92 = arith.constant 0 : index
    %195 = vector.load %arg7[%c1_90, %c0_91, %c0_92] : memref<2x32x96xf32, #tpu.memory_space<vmem>>, vector<1x32x96xf32>
    %196 = vector.shape_cast %195 : vector<1x32x96xf32> to vector<32x96xf32>
    %cst_93 = arith.constant dense<0.000000e+00> : vector<8x96xf32>
    %197 = tpu.matmul %194, %196, %cst_93 {dimension_numbers = #tpu.dot_dimension_numbers<[1], [0], [0], [1], [0, 0, 1, 1], [], []>} : vector<8x32xf32>, vector<32x96xf32>, vector<8x96xf32> -> vector<8x96xf32>
    %c1_94 = arith.constant 1 : index
    %c0_95 = arith.constant 0 : index
    %c0_96 = arith.constant 0 : index
    %198 = vector.load %arg8[%c1_94, %c0_95, %c0_96] : memref<2x1x96xf32, #tpu.memory_space<vmem>>, vector<1x1x96xf32>
    %199 = vector.shape_cast %198 : vector<1x1x96xf32> to vector<1x96xf32>
    %200 = vector.broadcast %199 : vector<1x96xf32> to vector<8x96xf32>
    %201 = arith.addf %197, %200 : vector<8x96xf32>
    %c1_97 = arith.constant 1 : index
    %c0_98 = arith.constant 0 : index
    %c0_99 = arith.constant 0 : index
    %202 = vector.load %arg9[%c1_97, %c0_98, %c0_99] : memref<2x32x32xf32, #tpu.memory_space<vmem>>, vector<1x32x32xf32>
    %203 = vector.shape_cast %202 : vector<1x32x32xf32> to vector<32x32xf32>
    %c1_100 = arith.constant 1 : index
    %c0_101 = arith.constant 0 : index
    %c0_102 = arith.constant 0 : index
    %204 = vector.load %arg10[%c1_100, %c0_101, %c0_102] : memref<2x1x32xf32, #tpu.memory_space<vmem>>, vector<1x1x32xf32>
    %205 = vector.shape_cast %204 : vector<1x1x32xf32> to vector<1x32xf32>
    %206 = vector.extract_strided_slice %201 {offsets = [0, 0], sizes = [8, 16], strides = [1, 1]} : vector<8x96xf32> to vector<8x16xf32>
    %207 = vector.extract_strided_slice %201 {offsets = [0, 32], sizes = [8, 16], strides = [1, 1]} : vector<8x96xf32> to vector<8x16xf32>
    %208 = vector.extract_strided_slice %201 {offsets = [0, 64], sizes = [8, 16], strides = [1, 1]} : vector<8x96xf32> to vector<8x16xf32>
    %cst_103 = arith.constant dense<0.000000e+00> : vector<8x8xf32>
    %209 = tpu.matmul %206, %207, %cst_103 {dimension_numbers = #tpu.dot_dimension_numbers<[1], [1], [0], [0], [0, 0, 1, 0], [], []>} : vector<8x16xf32>, vector<8x16xf32>, vector<8x8xf32> -> vector<8x8xf32>
    %cst_104 = arith.constant 2.500000e-01 : f32
    %210 = vector.broadcast %cst_104 : f32 to vector<8x8xf32>
    %211 = arith.mulf %209, %210 : vector<8x8xf32>
    %212 = vector.broadcast %7 : vector<1x8xf32> to vector<8x8xf32>
    %213 = arith.addf %211, %212 : vector<8x8xf32>
    %cst_105 = arith.constant dense<0xFF800000> : vector<8xf32>
    %214 = vector.multi_reduction <maximumf>, %213, %cst_105 [1] : vector<8x8xf32> to vector<8xf32>
    %215 = vector.shape_cast %214 : vector<8xf32> to vector<8x1xf32>
    %216 = vector.broadcast %215 : vector<8x1xf32> to vector<8x8xf32>
    %217 = arith.subf %213, %216 : vector<8x8xf32>
    %218 = math.exp %217 : vector<8x8xf32>
    %cst_106 = arith.constant dense<0.000000e+00> : vector<8xf32>
    %219 = vector.multi_reduction <add>, %218, %cst_106 [1] : vector<8x8xf32> to vector<8xf32>
    %220 = vector.shape_cast %219 : vector<8xf32> to vector<8x1xf32>
    %221 = tpu.reciprocal %220 {approx = true} : vector<8x1xf32> -> vector<8x1xf32>
    %222 = vector.broadcast %221 : vector<8x1xf32> to vector<8x8xf32>
    %223 = arith.mulf %218, %222 : vector<8x8xf32>
    %cst_107 = arith.constant dense<0.000000e+00> : vector<8x16xf32>
    %224 = tpu.matmul %223, %208, %cst_107 {dimension_numbers = #tpu.dot_dimension_numbers<[1], [0], [0], [1], [0, 0, 1, 1], [], []>} : vector<8x8xf32>, vector<8x16xf32>, vector<8x16xf32> -> vector<8x16xf32>
    %225 = vector.extract_strided_slice %203 {offsets = [0, 0], sizes = [16, 32], strides = [1, 1]} : vector<32x32xf32> to vector<16x32xf32>
    %cst_108 = arith.constant dense<0.000000e+00> : vector<8x32xf32>
    %226 = tpu.matmul %224, %225, %cst_108 {dimension_numbers = #tpu.dot_dimension_numbers<[1], [0], [0], [1], [0, 0, 1, 1], [], []>} : vector<8x16xf32>, vector<16x32xf32>, vector<8x32xf32> -> vector<8x32xf32>
    %227 = vector.broadcast %205 : vector<1x32xf32> to vector<8x32xf32>
    %228 = arith.addf %227, %226 : vector<8x32xf32>
    %229 = vector.extract_strided_slice %201 {offsets = [0, 16], sizes = [8, 16], strides = [1, 1]} : vector<8x96xf32> to vector<8x16xf32>
    %230 = vector.extract_strided_slice %201 {offsets = [0, 48], sizes = [8, 16], strides = [1, 1]} : vector<8x96xf32> to vector<8x16xf32>
    %231 = vector.extract_strided_slice %201 {offsets = [0, 80], sizes = [8, 16], strides = [1, 1]} : vector<8x96xf32> to vector<8x16xf32>
    %cst_109 = arith.constant dense<0.000000e+00> : vector<8x8xf32>
    %232 = tpu.matmul %229, %230, %cst_109 {dimension_numbers = #tpu.dot_dimension_numbers<[1], [1], [0], [0], [0, 0, 1, 0], [], []>} : vector<8x16xf32>, vector<8x16xf32>, vector<8x8xf32> -> vector<8x8xf32>
    %cst_110 = arith.constant 2.500000e-01 : f32
    %233 = vector.broadcast %cst_110 : f32 to vector<8x8xf32>
    %234 = arith.mulf %232, %233 : vector<8x8xf32>
    %235 = vector.broadcast %7 : vector<1x8xf32> to vector<8x8xf32>
    %236 = arith.addf %234, %235 : vector<8x8xf32>
    %cst_111 = arith.constant dense<0xFF800000> : vector<8xf32>
    %237 = vector.multi_reduction <maximumf>, %236, %cst_111 [1] : vector<8x8xf32> to vector<8xf32>
    %238 = vector.shape_cast %237 : vector<8xf32> to vector<8x1xf32>
    %239 = vector.broadcast %238 : vector<8x1xf32> to vector<8x8xf32>
    %240 = arith.subf %236, %239 : vector<8x8xf32>
    %241 = math.exp %240 : vector<8x8xf32>
    %cst_112 = arith.constant dense<0.000000e+00> : vector<8xf32>
    %242 = vector.multi_reduction <add>, %241, %cst_112 [1] : vector<8x8xf32> to vector<8xf32>
    %243 = vector.shape_cast %242 : vector<8xf32> to vector<8x1xf32>
    %244 = tpu.reciprocal %243 {approx = true} : vector<8x1xf32> -> vector<8x1xf32>
    %245 = vector.broadcast %244 : vector<8x1xf32> to vector<8x8xf32>
    %246 = arith.mulf %241, %245 : vector<8x8xf32>
    %cst_113 = arith.constant dense<0.000000e+00> : vector<8x16xf32>
    %247 = tpu.matmul %246, %231, %cst_113 {dimension_numbers = #tpu.dot_dimension_numbers<[1], [0], [0], [1], [0, 0, 1, 1], [], []>} : vector<8x8xf32>, vector<8x16xf32>, vector<8x16xf32> -> vector<8x16xf32>
    %248 = vector.extract_strided_slice %203 {offsets = [16, 0], sizes = [16, 32], strides = [1, 1]} : vector<32x32xf32> to vector<16x32xf32>
    %cst_114 = arith.constant dense<0.000000e+00> : vector<8x32xf32>
    %249 = tpu.matmul %247, %248, %cst_114 {dimension_numbers = #tpu.dot_dimension_numbers<[1], [0], [0], [1], [0, 0, 1, 1], [], []>} : vector<8x16xf32>, vector<16x32xf32>, vector<8x32xf32> -> vector<8x32xf32>
    %250 = arith.addf %228, %249 : vector<8x32xf32>
    %251 = arith.addf %168, %250 : vector<8x32xf32>
    %c1_115 = arith.constant 1 : index
    %c0_116 = arith.constant 0 : index
    %c0_117 = arith.constant 0 : index
    %252 = vector.load %arg11[%c1_115, %c0_116, %c0_117] : memref<2x1x32xf32, #tpu.memory_space<vmem>>, vector<1x1x32xf32>
    %253 = vector.shape_cast %252 : vector<1x1x32xf32> to vector<1x32xf32>
    %c1_118 = arith.constant 1 : index
    %c0_119 = arith.constant 0 : index
    %c0_120 = arith.constant 0 : index
    %254 = vector.load %arg12[%c1_118, %c0_119, %c0_120] : memref<2x1x32xf32, #tpu.memory_space<vmem>>, vector<1x1x32xf32>
    %255 = vector.shape_cast %254 : vector<1x1x32xf32> to vector<1x32xf32>
    %cst_121 = arith.constant dense<0.000000e+00> : vector<8xf32>
    %256 = vector.multi_reduction <add>, %251, %cst_121 [1] : vector<8x32xf32> to vector<8xf32>
    %257 = vector.shape_cast %256 : vector<8xf32> to vector<8x1xf32>
    %cst_122 = arith.constant 3.200000e+01 : f32
    %258 = vector.broadcast %cst_122 : f32 to vector<8x1xf32>
    %259 = arith.divf %257, %258 : vector<8x1xf32>
    %260 = vector.broadcast %259 : vector<8x1xf32> to vector<8x32xf32>
    %261 = arith.subf %251, %260 : vector<8x32xf32>
    %262 = arith.mulf %261, %261 : vector<8x32xf32>
    %cst_123 = arith.constant dense<0.000000e+00> : vector<8xf32>
    %263 = vector.multi_reduction <add>, %262, %cst_123 [1] : vector<8x32xf32> to vector<8xf32>
    %264 = vector.shape_cast %263 : vector<8xf32> to vector<8x1xf32>
    %cst_124 = arith.constant 3.200000e+01 : f32
    %265 = vector.broadcast %cst_124 : f32 to vector<8x1xf32>
    %266 = arith.divf %264, %265 : vector<8x1xf32>
    %267 = vector.broadcast %259 : vector<8x1xf32> to vector<8x32xf32>
    %268 = arith.subf %251, %267 : vector<8x32xf32>
    %cst_125 = arith.constant 9.99999974E-6 : f32
    %269 = vector.broadcast %cst_125 : f32 to vector<8x1xf32>
    %270 = arith.addf %266, %269 : vector<8x1xf32>
    %271 = math.rsqrt %270 : vector<8x1xf32>
    %272 = vector.broadcast %271 : vector<8x1xf32> to vector<8x32xf32>
    %273 = arith.mulf %268, %272 : vector<8x32xf32>
    %274 = vector.broadcast %253 : vector<1x32xf32> to vector<8x32xf32>
    %275 = arith.mulf %273, %274 : vector<8x32xf32>
    %276 = vector.broadcast %255 : vector<1x32xf32> to vector<8x32xf32>
    %277 = arith.addf %275, %276 : vector<8x32xf32>
    %c1_126 = arith.constant 1 : index
    %c0_127 = arith.constant 0 : index
    %c0_128 = arith.constant 0 : index
    %278 = vector.load %arg13[%c1_126, %c0_127, %c0_128] : memref<2x32x128xf32, #tpu.memory_space<vmem>>, vector<1x32x128xf32>
    %279 = vector.shape_cast %278 : vector<1x32x128xf32> to vector<32x128xf32>
    %cst_129 = arith.constant dense<0.000000e+00> : vector<8x128xf32>
    %280 = tpu.matmul %277, %279, %cst_129 {dimension_numbers = #tpu.dot_dimension_numbers<[1], [0], [0], [1], [0, 0, 1, 1], [], []>} : vector<8x32xf32>, vector<32x128xf32>, vector<8x128xf32> -> vector<8x128xf32>
    %c1_130 = arith.constant 1 : index
    %c0_131 = arith.constant 0 : index
    %c0_132 = arith.constant 0 : index
    %281 = vector.load %arg14[%c1_130, %c0_131, %c0_132] : memref<2x1x128xf32, #tpu.memory_space<vmem>>, vector<1x1x128xf32>
    %282 = vector.shape_cast %281 : vector<1x1x128xf32> to vector<1x128xf32>
    %283 = vector.broadcast %282 : vector<1x128xf32> to vector<8x128xf32>
    %284 = arith.addf %280, %283 : vector<8x128xf32>
    %285 = arith.mulf %284, %284 : vector<8x128xf32>
    %286 = arith.mulf %284, %285 : vector<8x128xf32>
    %cst_133 = arith.constant 4.471500e-02 : f32
    %287 = vector.broadcast %cst_133 : f32 to vector<8x128xf32>
    %288 = arith.mulf %287, %286 : vector<8x128xf32>
    %289 = arith.addf %284, %288 : vector<8x128xf32>
    %cst_134 = arith.constant 0.797884583 : f32
    %290 = vector.broadcast %cst_134 : f32 to vector<8x128xf32>
    %291 = arith.mulf %290, %289 : vector<8x128xf32>
    %292 = math.tanh %291 : vector<8x128xf32>
    %cst_135 = arith.constant 1.000000e+00 : f32
    %293 = vector.broadcast %cst_135 : f32 to vector<8x128xf32>
    %294 = arith.addf %293, %292 : vector<8x128xf32>
    %cst_136 = arith.constant 5.000000e-01 : f32
    %295 = vector.broadcast %cst_136 : f32 to vector<8x128xf32>
    %296 = arith.mulf %295, %294 : vector<8x128xf32>
    %297 = arith.mulf %284, %296 : vector<8x128xf32>
    %c1_137 = arith.constant 1 : index
    %c0_138 = arith.constant 0 : index
    %c0_139 = arith.constant 0 : index
    %298 = vector.load %arg15[%c1_137, %c0_138, %c0_139] : memref<2x128x32xf32, #tpu.memory_space<vmem>>, vector<1x128x32xf32>
    %299 = vector.shape_cast %298 : vector<1x128x32xf32> to vector<128x32xf32>
    %cst_140 = arith.constant dense<0.000000e+00> : vector<8x32xf32>
    %300 = tpu.matmul %297, %299, %cst_140 {dimension_numbers = #tpu.dot_dimension_numbers<[1], [0], [0], [1], [0, 0, 1, 1], [], []>} : vector<8x128xf32>, vector<128x32xf32>, vector<8x32xf32> -> vector<8x32xf32>
    %c1_141 = arith.constant 1 : index
    %c0_142 = arith.constant 0 : index
    %c0_143 = arith.constant 0 : index
    %301 = vector.load %arg16[%c1_141, %c0_142, %c0_143] : memref<2x1x32xf32, #tpu.memory_space<vmem>>, vector<1x1x32xf32>
    %302 = vector.shape_cast %301 : vector<1x1x32xf32> to vector<1x32xf32>
    %303 = vector.broadcast %302 : vector<1x32xf32> to vector<8x32xf32>
    %304 = arith.addf %300, %303 : vector<8x32xf32>
    %305 = arith.addf %251, %304 : vector<8x32xf32>
    %306 = vector.extract_strided_slice %305 {offsets = [0, 0], sizes = [1, 32], strides = [1, 1]} : vector<8x32xf32> to vector<1x32xf32>
    %c0_144 = arith.constant 0 : index
    %c0_145 = arith.constant 0 : index
    %307 = vector.load %arg17[%c0_144, %c0_145] : memref<1x32xf32, #tpu.memory_space<vmem>>, vector<1x32xf32>
    %c0_146 = arith.constant 0 : index
    %c0_147 = arith.constant 0 : index
    %308 = vector.load %arg18[%c0_146, %c0_147] : memref<1x32xf32, #tpu.memory_space<vmem>>, vector<1x32xf32>
    %cst_148 = arith.constant dense<0.000000e+00> : vector<1xf32>
    %309 = vector.multi_reduction <add>, %306, %cst_148 [1] : vector<1x32xf32> to vector<1xf32>
    %310 = vector.shape_cast %309 : vector<1xf32> to vector<1x1xf32>
    %cst_149 = arith.constant 3.200000e+01 : f32
    %311 = vector.broadcast %cst_149 : f32 to vector<1x1xf32>
    %312 = arith.divf %310, %311 : vector<1x1xf32>
    %313 = vector.broadcast %312 : vector<1x1xf32> to vector<1x32xf32>
    %314 = arith.subf %306, %313 : vector<1x32xf32>
    %315 = arith.mulf %314, %314 : vector<1x32xf32>
    %cst_150 = arith.constant dense<0.000000e+00> : vector<1xf32>
    %316 = vector.multi_reduction <add>, %315, %cst_150 [1] : vector<1x32xf32> to vector<1xf32>
    %317 = vector.shape_cast %316 : vector<1xf32> to vector<1x1xf32>
    %cst_151 = arith.constant 3.200000e+01 : f32
    %318 = vector.broadcast %cst_151 : f32 to vector<1x1xf32>
    %319 = arith.divf %317, %318 : vector<1x1xf32>
    %320 = vector.broadcast %312 : vector<1x1xf32> to vector<1x32xf32>
    %321 = arith.subf %306, %320 : vector<1x32xf32>
    %cst_152 = arith.constant 9.99999974E-6 : f32
    %322 = vector.broadcast %cst_152 : f32 to vector<1x1xf32>
    %323 = arith.addf %319, %322 : vector<1x1xf32>
    %324 = math.rsqrt %323 : vector<1x1xf32>
    %325 = vector.broadcast %324 : vector<1x1xf32> to vector<1x32xf32>
    %326 = arith.mulf %321, %325 : vector<1x32xf32>
    %327 = arith.mulf %326, %307 : vector<1x32xf32>
    %328 = arith.addf %327, %308 : vector<1x32xf32>
    %c0_153 = arith.constant 0 : index
    %c0_154 = arith.constant 0 : index
    %c0_155 = arith.constant 0 : index
    %329 = vector.load %arg19[%c0_153, %c0_154, %c0_155] : memref<1x1x32xf32, #tpu.memory_space<vmem>>, vector<1x1x32xf32>
    %330 = vector.shape_cast %329 : vector<1x1x32xf32> to vector<1x32xf32>
    %331 = vector.shape_cast %328 : vector<1x32xf32> to vector<1x1x32xf32>
    tpu.vector_store %arg19[%c0_153, %c0_154, %c0_155], %331 {strides = array<i32>} : memref<1x1x32xf32, #tpu.memory_space<vmem>>, vector<1x1x32xf32>,
    return
  }
  func.func @transform_0(%arg0: i32) -> (i32, i32, i32) {
    %c0_i32 = arith.constant 0 : i32
    %c0_i32_0 = arith.constant 0 : i32
    %c0_i32_1 = arith.constant 0 : i32
    return %arg0, %c0_i32, %c0_i32_0 : i32, i32, i32
  }
  func.func @transform_1(%arg0: i32) -> (i32, i32, i32) {
    %c0_i32 = arith.constant 0 : i32
    %c0_i32_0 = arith.constant 0 : i32
    %c0_i32_1 = arith.constant 0 : i32
    return %arg0, %c0_i32, %c0_i32_0 : i32, i32, i32
  }
  func.func @transform_2(%arg0: i32) -> (i32, i32) {
    %c0_i32 = arith.constant 0 : i32
    %c0_i32_0 = arith.constant 0 : i32
    %c0_i32_1 = arith.constant 0 : i32
    return %c0_i32, %c0_i32_0 : i32, i32
  }
  func.func @transform_3(%arg0: i32) -> (i32, i32) {
    %c0_i32 = arith.constant 0 : i32
    %c0_i32_0 = arith.constant 0 : i32
    %c0_i32_1 = arith.constant 0 : i32
    return %c0_i32, %c0_i32_0 : i32, i32
  }
  func.func @transform_4(%arg0: i32) -> (i32, i32, i32) {
    %c0_i32 = arith.constant 0 : i32
    %c0_i32_0 = arith.constant 0 : i32
    %c0_i32_1 = arith.constant 0 : i32
    %c0_i32_2 = arith.constant 0 : i32
    return %c0_i32, %c0_i32_0, %c0_i32_1 : i32, i32, i32
  }
  func.func @transform_5(%arg0: i32) -> (i32, i32, i32) {
    %c0_i32 = arith.constant 0 : i32
    %c0_i32_0 = arith.constant 0 : i32
    %c0_i32_1 = arith.constant 0 : i32
    %c0_i32_2 = arith.constant 0 : i32
    return %c0_i32, %c0_i32_0, %c0_i32_1 : i32, i32, i32
  }
  func.func @transform_6(%arg0: i32) -> (i32, i32, i32) {
    %c0_i32 = arith.constant 0 : i32
    %c0_i32_0 = arith.constant 0 : i32
    %c0_i32_1 = arith.constant 0 : i32
    %c0_i32_2 = arith.constant 0 : i32
    return %c0_i32, %c0_i32_0, %c0_i32_1 : i32, i32, i32
  }
  func.func @transform_7(%arg0: i32) -> (i32, i32, i32) {
    %c0_i32 = arith.constant 0 : i32
    %c0_i32_0 = arith.constant 0 : i32
    %c0_i32_1 = arith.constant 0 : i32
    %c0_i32_2 = arith.constant 0 : i32
    return %c0_i32, %c0_i32_0, %c0_i32_1 : i32, i32, i32
  }
  func.func @transform_8(%arg0: i32) -> (i32, i32, i32) {
    %c0_i32 = arith.constant 0 : i32
    %c0_i32_0 = arith.constant 0 : i32
    %c0_i32_1 = arith.constant 0 : i32
    %c0_i32_2 = arith.constant 0 : i32
    return %c0_i32, %c0_i32_0, %c0_i32_1 : i32, i32, i32
  }
  func.func @transform_9(%arg0: i32) -> (i32, i32, i32) {
    %c0_i32 = arith.constant 0 : i32
    %c0_i32_0 = arith.constant 0 : i32
    %c0_i32_1 = arith.constant 0 : i32
    %c0_i32_2 = arith.constant 0 : i32
    return %c0_i32, %c0_i32_0, %c0_i32_1 : i32, i32, i32
  }
  func.func @transform_10(%arg0: i32) -> (i32, i32, i32) {
    %c0_i32 = arith.constant 0 : i32
    %c0_i32_0 = arith.constant 0 : i32
    %c0_i32_1 = arith.constant 0 : i32
    %c0_i32_2 = arith.constant 0 : i32
    return %c0_i32, %c0_i32_0, %c0_i32_1 : i32, i32, i32
  }
  func.func @transform_11(%arg0: i32) -> (i32, i32, i32) {
    %c0_i32 = arith.constant 0 : i32
    %c0_i32_0 = arith.constant 0 : i32
    %c0_i32_1 = arith.constant 0 : i32
    %c0_i32_2 = arith.constant 0 : i32
    return %c0_i32, %c0_i32_0, %c0_i32_1 : i32, i32, i32
  }
  func.func @transform_12(%arg0: i32) -> (i32, i32, i32) {
    %c0_i32 = arith.constant 0 : i32
    %c0_i32_0 = arith.constant 0 : i32
    %c0_i32_1 = arith.constant 0 : i32
    %c0_i32_2 = arith.constant 0 : i32
    return %c0_i32, %c0_i32_0, %c0_i32_1 : i32, i32, i32
  }
  func.func @transform_13(%arg0: i32) -> (i32, i32, i32) {
    %c0_i32 = arith.constant 0 : i32
    %c0_i32_0 = arith.constant 0 : i32
    %c0_i32_1 = arith.constant 0 : i32
    %c0_i32_2 = arith.constant 0 : i32
    return %c0_i32, %c0_i32_0, %c0_i32_1 : i32, i32, i32
  }
  func.func @transform_14(%arg0: i32) -> (i32, i32, i32) {
    %c0_i32 = arith.constant 0 : i32
    %c0_i32_0 = arith.constant 0 : i32
    %c0_i32_1 = arith.constant 0 : i32
    %c0_i32_2 = arith.constant 0 : i32
    return %c0_i32, %c0_i32_0, %c0_i32_1 : i32, i32, i32
  }
  func.func @transform_15(%arg0: i32) -> (i32, i32, i32) {
    %c0_i32 = arith.constant 0 : i32
    %c0_i32_0 = arith.constant 0 : i32
    %c0_i32_1 = arith.constant 0 : i32
    %c0_i32_2 = arith.constant 0 : i32
    return %c0_i32, %c0_i32_0, %c0_i32_1 : i32, i32, i32
  }
  func.func @transform_16(%arg0: i32) -> (i32, i32) {
    %c0_i32 = arith.constant 0 : i32
    %c0_i32_0 = arith.constant 0 : i32
    %c0_i32_1 = arith.constant 0 : i32
    return %c0_i32, %c0_i32_0 : i32, i32
  }
  func.func @transform_17(%arg0: i32) -> (i32, i32) {
    %c0_i32 = arith.constant 0 : i32
    %c0_i32_0 = arith.constant 0 : i32
    %c0_i32_1 = arith.constant 0 : i32
    return %c0_i32, %c0_i32_0 : i32, i32
  }
  func.func @transform_18(%arg0: i32) -> (i32, i32, i32) {
    %c0_i32 = arith.constant 0 : i32
    %c0_i32_0 = arith.constant 0 : i32
    %c0_i32_1 = arith.constant 0 : i32
    return %arg0, %c0_i32, %c0_i32_0 : i32, i32, i32
  }
}

</mosaic_0001>

<llo_original>
// kernel: xray_clip_forward.7
$region0: #{xray_clip_forward.7}
  #allocation0 [shape = 'u32[]', space=smem, size = 0x4, offset = 0x4, fixed_abs, tag = 'smem constant byte address 0x4 - core index']
  #allocation1 [shape = 'u32[144,128]{1,0:T(1,128)}', space=vmem, size = 0x12000, scoped, tag = 'internal scratch']
  #allocation2 [shape = 'f32[1,1]{1,0:T(1,128)S(1)}', space=vmem, size = 0x200, scoped, tag = 'scoped memory for xray_clip_forward.7']
  %s0 = inlined_call_operand.vmem [shape: f32[2,32], index: 0, kind: input, shape index: {}]
  %s1 = inlined_call_operand.vmem [shape: f32[2,32], index: 1, kind: input, shape index: {}]
  %s2 = inlined_call_operand.vmem [shape: f32[2,32], index: 2, kind: input, shape index: {}]
  %s3 = inlined_call_operand.vmem [shape: f32[32,16], index: 3, kind: input, shape index: {}]
  %s4 = inlined_call_operand.vmem [shape: f32[32,16], index: 4, kind: input, shape index: {}]
  %s5 = inlined_call_operand.<no memory space> [shape: f32[1,1], index: 5, kind: input, shape index: {}]
  %s6 = inlined_call_operand.hbm [shape: f32[1,1], index: 6, kind: output, shape index: {0}]
  %s7 = inlined_call_operand.hbm [shape: f32[2,16], index: 7, kind: output, shape index: {1}]
  %s8 = inlined_call_operand.hbm [shape: f32[2,16], index: 8, kind: output, shape index: {2}]
  %s9 = inlined_call_operand.hbm [shape: f32[2,16], index: 9, kind: output, shape index: {3}]
  %10 = xla_tuple %s6, %s7, %s8, %s9
  %s11 = sld [smem:[#allocation0]]
  $region58: #{xray_clip_forward.7} parent=0
    _
  %s13 = ssub.s32 1, %s11
  %s14 = scalar_select 0, %s13, %s11
  %v15 = vstv %s5
  %16 = vst [vmem:[#allocation2] sm:$0x1] %v15
  $region1: #{xray_clip_forward.7} parent=0
    #allocation3 [shape = 'u8[512]{0}', space=vmem, size = 0x400, scoped, tag = 'output window, operand 0, single buffered']
    #allocation4 [shape = 's32[1]{0}', space=sflag, size = 0x4, scoped, tag = 'scoped memory for xray_clip_forward.7']
    #allocation5 [shape = 'u8[1024]{0}', space=vmem, size = 0x400, scoped, tag = 'output window, operand 1, single buffered']
    #allocation6 [shape = 's32[1]{0}', space=sflag, size = 0x4, scoped, tag = 'scoped memory for xray_clip_forward.7']
    #allocation7 [shape = 'u8[1024]{0}', space=vmem, size = 0x400, scoped, tag = 'output window, operand 2, single buffered']
    #allocation8 [shape = 'u8[1024]{0}', space=vmem, size = 0x400, scoped, tag = 'output window, operand 3, single buffered']
    #allocation9 [shape = 's32[1]{0}', space=sflag, size = 0x4, scoped, tag = 'scoped memory for xray_clip_forward.7']
    %17 = vsyncpa [#allocation4], 0
    %18 = vsyncpa [#allocation6], 0
    %19 = vsyncpa [#allocation9], 0
    // Predicated region
    $region2: #{xray_clip_forward.7} parent=1 // pred_check
      _
    $region3: #{xray_clip_forward.7} parent=1 // pred_check_branch
      %21 = sbr.rel (0) target = $region5
    $region4: #{xray_clip_forward.7} parent=1 // pred_region
      _
    $region5: #{xray_clip_forward.7} parent=1 // pred_fallthru
      _
    // Predicated region
    $region6: #{xray_clip_forward.7} parent=1 // pred_check
      _
    $region7: #{xray_clip_forward.7} parent=1 // pred_check_branch
      %23 = sbr.rel (0) target = $region9
    $region8: #{xray_clip_forward.7} parent=1 // pred_region
      _
    $region9: #{xray_clip_forward.7} parent=1 // pred_fallthru
      _
    // Predicated region
    $region10: #{xray_clip_forward.7} parent=1 // pred_check
      _
    $region11: #{xray_clip_forward.7} parent=1 // pred_check_branch
      %25 = sbr.rel (0) target = $region13
    $region12: #{xray_clip_forward.7} parent=1 // pred_region
      _
    $region13: #{xray_clip_forward.7} parent=1 // pred_fallthru
      _
    // Predicated region
    $region14: #{xray_clip_forward.7} parent=1 // pred_check
      _
    $region15: #{xray_clip_forward.7} parent=1 // pred_check_branch
      %27 = sbr.rel (0) target = $region17
    $region16: #{xray_clip_forward.7} parent=1 // pred_region
      _
    $region17: #{xray_clip_forward.7} parent=1 // pred_fallthru
      _
    // Predicated region
    $region18: #{xray_clip_forward.7} parent=1 // pred_check
      _
    $region19: #{xray_clip_forward.7} parent=1 // pred_check_branch
      %29 = sbr.rel (0) target = $region21
    $region20: #{xray_clip_forward.7} parent=1 // pred_region
      _
    $region21: #{xray_clip_forward.7} parent=1 // pred_fallthru
      _
    // Predicated region
    $region22: #{xray_clip_forward.7} parent=1 // pred_check
      _
    $region23: #{xray_clip_forward.7} parent=1 // pred_check_branch
      %31 = sbr.rel (0) target = $region25
    $region24: #{xray_clip_forward.7} parent=1 // pred_region
      _
    $region25: #{xray_clip_forward.7} parent=1 // pred_fallthru
      _
    %v32 = vld [vmem:[%s0] sm:$0x3]
    %v33 = vld [vmem:[%s3] sm:$0xff]
    %v34 = vld [vmem:[%s3 + $0x8] sm:$0xff]
    %v35 = vld [vmem:[%s3 + $0x10] sm:$0xff]
    %v36 = vld [vmem:[%s3 + $0x18] sm:$0xff]
    %vm37 = vcmask 261120
    %v39 = vsel %vm37, %v32, 0
    %41 = vmatprep.subr.mxu0 0.0
    %42 = vmatpush1.msra.mxu0 %v33
    %43 = vmatprep.subr.mxu0 0.0
    %44 = vmatpush1.msra.mxu0 %v34
    %45 = vmatprep.subr.mxu0 0.0
    %46 = vmatpush1.msra.mxu0 %v35
    %47 = vmatprep.subr.mxu0 0.0
    %48 = vmatpush1.msra.mxu0 %v36
    %49 = vmatprep.subr.mxu0 0.0
    %50 = vmatpush1.msra.mxu0 0.0
    %51 = vmatprep.subr.mxu0 0.0
    %52 = vmatpush1.msra.mxu0 0.0
    %53 = vmatprep.subr.mxu0 0.0
    %54 = vmatpush1.msra.mxu0 0.0
    %55 = vmatprep.subr.mxu0 0.0
    %56 = vmatpush1.msra.mxu0 0.0
    %57 = vmatprep.subr.mxu0 0.0
    %58 = vmatpush1.msra.mxu0 0.0
    %59 = vmatprep.subr.mxu0 0.0
    %60 = vmatpush1.msra.mxu0 0.0
    %61 = vmatprep.subr.mxu0 0.0
    %62 = vmatpush1.msra.mxu0 0.0
    %63 = vmatprep.subr.mxu0 0.0
    %64 = vmatpush1.msra.mxu0 0.0
    %65 = vmatprep.subr.mxu0 0.0
    %66 = vmatpush1.msra.mxu0 0.0
    %67 = vmatprep.subr.mxu0 0.0
    %68 = vmatpush1.msra.mxu0 0.0
    %69 = vmatprep.subr.mxu0 0.0
    %70 = vmatpush1.msra.mxu0 0.0
    %71 = vmatprep.subr.mxu0 0.0
    %72 = vmatpush1.msra.mxu0 0.0
    %73 = vmatprep.subr.mxu0 0.0
    %74 = vmatpush1.msra.mxu0 0.0
    %75 = vmatprep.subr.mxu0 0.0
    %76 = vmatpush1.msra.mxu0 0.0
    %77 = vmatprep.subr.mxu0 0.0
    %78 = vmatpush1.msra.mxu0 0.0
    %79 = vmatprep.subr.mxu0 0.0
    %80 = vmatpush1.msra.mxu0 0.0
    %81 = vmatprep.subr.mxu0 0.0
    %82 = vmatpush1.msra.mxu0 0.0
    %83 = vmatprep.subr.mxu0 0.0
    %84 = vmatpush1.msra.mxu0 0.0
    %85 = vmatprep.subr.mxu0 0.0
    %86 = vmatpush1.msra.mxu0 0.0
    %87 = vmatprep.subr.mxu0 0.0
    %88 = vmatpush1.msra.mxu0 0.0
    %89 = vmatprep.subr.mxu0 0.0
    %90 = vmatpush1.msra.mxu0 0.0
    %91 = vmatprep.subr.mxu0 0.0
    %92 = vmatpush1.msra.mxu0 0.0
    %93 = vmatprep.subr.mxu0 0.0
    %94 = vmatpush1.msra.mxu0 0.0
    %95 = vmatprep.subr.mxu0 0.0
    %96 = vmatpush1.msra.mxu0 0.0
    %97 = vmatprep.subr.mxu0 0.0
    %98 = vmatpush1.msra.mxu0 0.0
    %99 = vmatprep.subr.mxu0 0.0
    %100 = vmatpush1.msra.mxu0 0.0
    %101 = vmatprep.subr.mxu0 0.0
    %102 = vmatpush1.msra.mxu0 0.0
    %103 = vmatprep.subr.mxu0 0.0
    %104 = vmatpush1.msra.mxu0 0.0
    %105 = vmatprep.mubr.f32.mxu0 0.0
    %106 = vmatmul.mubr.f32.gmra.mrb[0].mxu0 %v39
    %v107 = vpop.f32.mrb[0].mxu0
    %v108 = vadd.f32 0.0, %v107
    %v109 = vpop.f32.mrb[0].mxu0
    %110 = vdwg.mxu0
    %v111 = vld [vmem:[%s1] sm:$0x3]
    %v112 = vld [vmem:[%s4] sm:$0xff]
    %v113 = vld [vmem:[%s4 + $0x8] sm:$0xff]
    %v114 = vld [vmem:[%s4 + $0x10] sm:$0xff]
    %v115 = vld [vmem:[%s4 + $0x18] sm:$0xff]
    %v117 = vsel %vm37, %v111, 0
    %119 = vmatprep.subr.mxu0 0.0
    %120 = vmatpush1.msra.mxu0 %v112
    %121 = vmatprep.subr.mxu0 0.0
    %122 = vmatpush1.msra.mxu0 %v113
    %123 = vmatprep.subr.mxu0 0.0
    %124 = vmatpush1.msra.mxu0 %v114
    %125 = vmatprep.subr.mxu0 0.0
    %126 = vmatpush1.msra.mxu0 %v115
    %127 = vmatprep.subr.mxu0 0.0
    %128 = vmatpush1.msra.mxu0 0.0
    %129 = vmatprep.subr.mxu0 0.0
    %130 = vmatpush1.msra.mxu0 0.0
    %131 = vmatprep.subr.mxu0 0.0
    %132 = vmatpush1.msra.mxu0 0.0
    %133 = vmatprep.subr.mxu0 0.0
    %134 = vmatpush1.msra.mxu0 0.0
    %135 = vmatprep.subr.mxu0 0.0
    %136 = vmatpush1.msra.mxu0 0.0
    %137 = vmatprep.subr.mxu0 0.0
    %138 = vmatpush1.msra.mxu0 0.0
    %139 = vmatprep.subr.mxu0 0.0
    %140 = vmatpush1.msra.mxu0 0.0
    %141 = vmatprep.subr.mxu0 0.0
    %142 = vmatpush1.msra.mxu0 0.0
    %143 = vmatprep.subr.mxu0 0.0
    %144 = vmatpush1.msra.mxu0 0.0
    %145 = vmatprep.subr.mxu0 0.0
    %146 = vmatpush1.msra.mxu0 0.0
    %147 = vmatprep.subr.mxu0 0.0
    %148 = vmatpush1.msra.mxu0 0.0
    %149 = vmatprep.subr.mxu0 0.0
    %150 = vmatpush1.msra.mxu0 0.0
    %151 = vmatprep.subr.mxu0 0.0
    %152 = vmatpush1.msra.mxu0 0.0
    %153 = vmatprep.subr.mxu0 0.0
    %154 = vmatpush1.msra.mxu0 0.0
    %155 = vmatprep.subr.mxu0 0.0
    %156 = vmatpush1.msra.mxu0 0.0
    %157 = vmatprep.subr.mxu0 0.0
    %158 = vmatpush1.msra.mxu0 0.0
    %159 = vmatprep.subr.mxu0 0.0
    %160 = vmatpush1.msra.mxu0 0.0
    %161 = vmatprep.subr.mxu0 0.0
    %162 = vmatpush1.msra.mxu0 0.0
    %163 = vmatprep.subr.mxu0 0.0
    %164 = vmatpush1.msra.mxu0 0.0
    %165 = vmatprep.subr.mxu0 0.0
    %166 = vmatpush1.msra.mxu0 0.0
    %167 = vmatprep.subr.mxu0 0.0
    %168 = vmatpush1.msra.mxu0 0.0
    %169 = vmatprep.subr.mxu0 0.0
    %170 = vmatpush1.msra.mxu0 0.0
    %171 = vmatprep.subr.mxu0 0.0
    %172 = vmatpush1.msra.mxu0 0.0
    %173 = vmatprep.subr.mxu0 0.0
    %174 = vmatpush1.msra.mxu0 0.0
    %175 = vmatprep.subr.mxu0 0.0
    %176 = vmatpush1.msra.mxu0 0.0
    %177 = vmatprep.subr.mxu0 0.0
    %178 = vmatpush1.msra.mxu0 0.0
    %179 = vmatprep.subr.mxu0 0.0
    %180 = vmatpush1.msra.mxu0 0.0
    %181 = vmatprep.subr.mxu0 0.0
    %182 = vmatpush1.msra.mxu0 0.0
    %183 = vmatprep.mubr.f32.mxu0 0.0
    %184 = vmatmul.mubr.f32.gmra.mrb[0].mxu0 %v117
    %v185 = vpop.f32.mrb[0].mxu0
    %v186 = vadd.f32 0.0, %v185
    %v187 = vpop.f32.mrb[0].mxu0
    %188 = vdwg.mxu0
    %v189 = vld [vmem:[%s2] sm:$0x3]
    %v191 = vsel %vm37, %v189, 0
    %193 = vmatprep.subr.mxu0 0.0
    %194 = vmatpush1.msra.mxu0 %v112
    %195 = vmatprep.subr.mxu0 0.0
    %196 = vmatpush1.msra.mxu0 %v113
    %197 = vmatprep.subr.mxu0 0.0
    %198 = vmatpush1.msra.mxu0 %v114
    %199 = vmatprep.subr.mxu0 0.0
    %200 = vmatpush1.msra.mxu0 %v115
    %201 = vmatprep.subr.mxu0 0.0
    %202 = vmatpush1.msra.mxu0 0.0
    %203 = vmatprep.subr.mxu0 0.0
    %204 = vmatpush1.msra.mxu0 0.0
    %205 = vmatprep.subr.mxu0 0.0
    %206 = vmatpush1.msra.mxu0 0.0
    %207 = vmatprep.subr.mxu0 0.0
    %208 = vmatpush1.msra.mxu0 0.0
    %209 = vmatprep.subr.mxu0 0.0
    %210 = vmatpush1.msra.mxu0 0.0
    %211 = vmatprep.subr.mxu0 0.0
    %212 = vmatpush1.msra.mxu0 0.0
    %213 = vmatprep.subr.mxu0 0.0
    %214 = vmatpush1.msra.mxu0 0.0
    %215 = vmatprep.subr.mxu0 0.0
    %216 = vmatpush1.msra.mxu0 0.0
    %217 = vmatprep.subr.mxu0 0.0
    %218 = vmatpush1.msra.mxu0 0.0
    %219 = vmatprep.subr.mxu0 0.0
    %220 = vmatpush1.msra.mxu0 0.0
    %221 = vmatprep.subr.mxu0 0.0
    %222 = vmatpush1.msra.mxu0 0.0
    %223 = vmatprep.subr.mxu0 0.0
    %224 = vmatpush1.msra.mxu0 0.0
    %225 = vmatprep.subr.mxu0 0.0
    %226 = vmatpush1.msra.mxu0 0.0
    %227 = vmatprep.subr.mxu0 0.0
    %228 = vmatpush1.msra.mxu0 0.0
    %229 = vmatprep.subr.mxu0 0.0
    %230 = vmatpush1.msra.mxu0 0.0
    %231 = vmatprep.subr.mxu0 0.0
    %232 = vmatpush1.msra.mxu0 0.0
    %233 = vmatprep.subr.mxu0 0.0
    %234 = vmatpush1.msra.mxu0 0.0
    %235 = vmatprep.subr.mxu0 0.0
    %236 = vmatpush1.msra.mxu0 0.0
    %237 = vmatprep.subr.mxu0 0.0
    %238 = vmatpush1.msra.mxu0 0.0
    %239 = vmatprep.subr.mxu0 0.0
    %240 = vmatpush1.msra.mxu0 0.0
    %241 = vmatprep.subr.mxu0 0.0
    %242 = vmatpush1.msra.mxu0 0.0
    %243 = vmatprep.subr.mxu0 0.0
    %244 = vmatpush1.msra.mxu0 0.0
    %245 = vmatprep.subr.mxu0 0.0
    %246 = vmatpush1.msra.mxu0 0.0
    %247 = vmatprep.subr.mxu0 0.0
    %248 = vmatpush1.msra.mxu0 0.0
    %249 = vmatprep.subr.mxu0 0.0
    %250 = vmatpush1.msra.mxu0 0.0
    %251 = vmatprep.subr.mxu0 0.0
    %252 = vmatpush1.msra.mxu0 0.0
    %253 = vmatprep.subr.mxu0 0.0
    %254 = vmatpush1.msra.mxu0 0.0
    %255 = vmatprep.subr.mxu0 0.0
    %256 = vmatpush1.msra.mxu0 0.0
    %257 = vmatprep.mubr.f32.mxu0 0.0
    %258 = vmatmul.mubr.f32.gmra.mrb[0].mxu0 %v191
    %v259 = vpop.f32.mrb[0].mxu0
    %v260 = vadd.f32 0.0, %v259
    %v261 = vpop.f32.mrb[0].mxu0
    %262 = vdwg.mxu0
    %v263 = vmul.f32 %v108, %v108
    %vm264 = vcmask 123904
    %v265 = vsel %vm264, %v263, 0.0
    %266 = vadd.xlane.f32.xlu0 %v265
    %v267 = vpop.xlane.xlu0 %266
    %v268 = vadd.f32 %v267, 1e-12
    %v269 = vrsqrt.pop %v268
    %v270 = vmul.f32 %v108, %v269
    %v271 = vmul.f32 %v186, %v186
    %v272 = vsel %vm264, %v271, 0.0
    %273 = vadd.xlane.f32.xlu0 %v272
    %v274 = vpop.xlane.xlu0 %273
    %v275 = vadd.f32 %v274, 1e-12
    %v276 = vrsqrt.pop %v275
    %v277 = vmul.f32 %v186, %v276
    %v278 = vmul.f32 %v260, %v260
    %v279 = vsel %vm264, %v278, 0.0
    %280 = vadd.xlane.f32.xlu0 %v279
    %v281 = vpop.xlane.xlu0 %280
    %v282 = vadd.f32 %v281, 1e-12
    %v283 = vrsqrt.pop %v282
    %v284 = vmul.f32 %v260, %v283
    %v285 = vld [vmem:[#allocation2] sm:$0x1]
    %v286 = vmul.f32 %v285, 1.442695
    %v287 = vpow.pop %v286
    %vm288 = vcmask 130048
    %v290 = vsel %vm288, %v277, 0
    %v293 = vsel %vm288, %v270, 0
    %295 = vmatprep.subr.mxu0 0.0
    %296 = vmatpush1.xpose.msra.mxu0 %v293
    %297 = vmatprep.subr.mxu0 0.0
    %298 = vmatpush1.xpose.msra.mxu0 0.0
    %299 = vmatprep.subr.mxu0 0.0
    %300 = vmatpush1.xpose.msra.mxu0 0.0
    %301 = vmatprep.subr.mxu0 0.0
    %302 = vmatpush1.xpose.msra.mxu0 0.0
    %303 = vmatprep.subr.mxu0 0.0
    %304 = vmatpush1.xpose.msra.mxu0 0.0
    %305 = vmatprep.subr.mxu0 0.0
    %306 = vmatpush1.xpose.msra.mxu0 0.0
    %307 = vmatprep.subr.mxu0 0.0
    %308 = vmatpush1.xpose.msra.mxu0 0.0
    %309 = vmatprep.subr.mxu0 0.0
    %310 = vmatpush1.xpose.msra.mxu0 0.0
    %311 = vmatprep.subr.mxu0 0.0
    %312 = vmatpush1.xpose.msra.mxu0 0.0
    %313 = vmatprep.subr.mxu0 0.0
    %314 = vmatpush1.xpose.msra.mxu0 0.0
    %315 = vmatprep.subr.mxu0 0.0
    %316 = vmatpush1.xpose.msra.mxu0 0.0
    %317 = vmatprep.subr.mxu0 0.0
    %318 = vmatpush1.xpose.msra.mxu0 0.0
    %319 = vmatprep.subr.mxu0 0.0
    %320 = vmatpush1.xpose.msra.mxu0 0.0
    %321 = vmatprep.subr.mxu0 0.0
    %322 = vmatpush1.xpose.msra.mxu0 0.0
    %323 = vmatprep.subr.mxu0 0.0
    %324 = vmatpush1.xpose.msra.mxu0 0.0
    %325 = vmatprep.subr.mxu0 0.0
    %326 = vmatpush1.xpose.msra.mxu0 0.0
    %327 = vmatprep.subr.mxu0 0.0
    %328 = vmatpush1.xpose.msra.mxu0 0.0
    %329 = vmatprep.subr.mxu0 0.0
    %330 = vmatpush1.xpose.msra.mxu0 0.0
    %331 = vmatprep.subr.mxu0 0.0
    %332 = vmatpush1.xpose.msra.mxu0 0.0
    %333 = vmatprep.subr.mxu0 0.0
    %334 = vmatpush1.xpose.msra.mxu0 0.0
    %335 = vmatprep.subr.mxu0 0.0
    %336 = vmatpush1.xpose.msra.mxu0 0.0
    %337 = vmatprep.subr.mxu0 0.0
    %338 = vmatpush1.xpose.msra.mxu0 0.0
    %339 = vmatprep.subr.mxu0 0.0
    %340 = vmatpush1.xpose.msra.mxu0 0.0
    %341 = vmatprep.subr.mxu0 0.0
    %342 = vmatpush1.xpose.msra.mxu0 0.0
    %343 = vmatprep.subr.mxu0 0.0
    %344 = vmatpush1.xpose.msra.mxu0 0.0
    %345 = vmatprep.subr.mxu0 0.0
    %346 = vmatpush1.xpose.msra.mxu0 0.0
    %347 = vmatprep.subr.mxu0 0.0
    %348 = vmatpush1.xpose.msra.mxu0 0.0
    %349 = vmatprep.subr.mxu0 0.0
    %350 = vmatpush1.xpose.msra.mxu0 0.0
    %351 = vmatprep.subr.mxu0 0.0
    %352 = vmatpush1.xpose.msra.mxu0 0.0
    %353 = vmatprep.subr.mxu0 0.0
    %354 = vmatpush1.xpose.msra.mxu0 0.0
    %355 = vmatprep.subr.mxu0 0.0
    %356 = vmatpush1.xpose.msra.mxu0 0.0
    %357 = vmatprep.subr.mxu0 0.0
    %358 = vmatpush1.xpose.msra.mxu0 0.0
    %359 = vmatprep.mubr.f32.mxu0 0.0
    %360 = vmatmul.mubr.f32.gmra.mrb[0].mxu0 %v290
    %v361 = vpop.f32.mrb[0].mxu0
    %v362 = vadd.f32 0.0, %v361
    %v363 = vpop.f32.mrb[0].mxu0
    %364 = vdwg.mxu0
    %v366 = vlaneseq
    %v367 = vshrl.u32 %v366, 7
    %v368 = vsub.s32 0, %v367
    %v369 = vrot.slane %v287, %v368
    %370 = vset.pattern.permute.xlu0 0
    %371 = vperm.xlu0 %370, %v369
    %v372 = vpop.permute.xlu0 %371
    %v374 = vmul.f32 %v362, %v372
    %v375 = vlaneseq
    %v376 = vshrl.u32 %v375, 7
    %v377 = vlaneseq
    %v378 = vand.u32 %v377, 127
    %vm379 = vcmp.eq.s32.totalorder %v376, %v378
    %v380 = vsel %vm379, 1, 0
    %v381 = vcvt.s32.f32 %v380
    %v382 = vmul.f32 %v374, %v381
    %vm383 = vcmask 9216
    %v384 = vsel %vm383, %v374, -inf
    %385 = vmax.xlane.f32.xlu0 %v384
    %v386 = vpop.xlane.xlu0 %385
    %v387 = vsub.f32 %v374, %v386
    %v388 = vmul.f32 %v387, 1.442695
    %v389 = vpow.pop %v388
    %v390 = vsel %vm383, %v389, 0.0
    %391 = vadd.xlane.f32.xlu0 %v390
    %v392 = vpop.xlane.xlu0 %391
    %v393 = vlog2.pop %v392
    %v394 = vmul.f32 %v393, 0.6931472
    %v395 = vadd.f32 %v386, %v394
    %v396 = vsel %vm383, %v382, 0.0
    %397 = vadd.xlane.f32.xlu0 %v396
    %v398 = vpop.xlane.xlu0 %397
    %v399 = vsub.f32 %v395, %v398
    %vm400 = vcmask 1041408
    %v401 = vsel %vm400, %v399, 0.0
    %v402 = vrot.slane %v401, 4
    %v403 = vadd.f32 %v401, %v402
    %v404 = vrot.slane %v403, 2
    %v405 = vadd.f32 %v403, %v404
    %v406 = vrot.slane %v405, 1
    %v407 = vadd.f32 %v405, %v406
    %v408 = vrcp.pop 2.0
    %v409 = vmul.f32 %v407, %v408
    %v410 = vrot.slane %v384, 4
    %v411 = vmax.f32 %v384, %v410
    %v412 = vrot.slane %v411, 2
    %v413 = vmax.f32 %v411, %v412
    %v414 = vrot.slane %v413, 1
    %v415 = vmax.f32 %v413, %v414
    %v416 = vsub.f32 %v374, %v415
    %v417 = vmul.f32 %v416, 1.442695
    %v418 = vpow.pop %v417
    %v419 = vsel %vm383, %v418, 0.0
    %v420 = vrot.slane %v419, 4
    %v421 = vadd.f32 %v419, %v420
    %v422 = vrot.slane %v421, 2
    %v423 = vadd.f32 %v421, %v422
    %v424 = vrot.slane %v423, 1
    %v425 = vadd.f32 %v423, %v424
    %v426 = vlog2.pop %v425
    %v427 = vmul.f32 %v426, 0.6931472
    %v428 = vadd.f32 %v415, %v427
    %v429 = vrot.slane %v396, 4
    %v430 = vadd.f32 %v396, %v429
    %v431 = vrot.slane %v430, 2
    %v432 = vadd.f32 %v430, %v431
    %v433 = vrot.slane %v432, 1
    %v434 = vadd.f32 %v432, %v433
    %v435 = vsub.f32 %v428, %v434
    %vm436 = vcmask 15360
    %v437 = vsel %vm436, %v435, 0.0
    %438 = vadd.xlane.f32.xlu0 %v437
    %v439 = vpop.xlane.xlu0 %438
    %v440 = vmul.f32 %v439, %v408
    %v441 = vadd.f32 %v409, %v440
    %v442 = vmul.f32 %v441, 0.5
    %vm443 = vcmask 0
    %444 = vst.msk [vmem:[#allocation3] sm:$0x1] %vm443, %v442
    %445 = vst.msk [vmem:[#allocation5] sm:$0x3] %vm264, %v270
    %446 = vst.msk [vmem:[#allocation7] sm:$0x3] %vm264, %v277
    %447 = vst.msk [vmem:[#allocation8] sm:$0x3] %vm264, %v284
    // Predicated region
    $region26: #{xray_clip_forward.7} parent=1 // pred_check
      _
    $region27: #{xray_clip_forward.7} parent=1 // pred_check_branch
      %449 = sbr.rel (0) target = $region29
    $region28: #{xray_clip_forward.7} parent=1 // pred_region
      %s451 = ssub.s32 16, 16
      %452 = vsyncadd [#allocation4], %s451
      %s454 = sshll.u32 [#allocation3], 4
      %s455 = int_to_ptr.vmem [resolvable:$true] %s454
      %457 = dma.vmem_to_hbm [thread:$0]  %s455, 16, %s6, [#allocation4]
    $region29: #{xray_clip_forward.7} parent=1 // pred_fallthru
      _
    // Predicated region
    $region30: #{xray_clip_forward.7} parent=1 // pred_check
      _
    $region31: #{xray_clip_forward.7} parent=1 // pred_check_branch
      %459 = sbr.rel (0) target = $region33
    $region32: #{xray_clip_forward.7} parent=1 // pred_region
      %s461 = ssub.s32 32, 32
      %462 = vsyncadd [#allocation6], %s461
      %s464 = sshll.u32 [#allocation5], 4
      %s465 = int_to_ptr.vmem [resolvable:$true] %s464
      %467 = dma.vmem_to_hbm [thread:$0]  %s465, 32, %s7, [#allocation6]
    $region33: #{xray_clip_forward.7} parent=1 // pred_fallthru
      _
    // Predicated region
    $region34: #{xray_clip_forward.7} parent=1 // pred_check
      _
    $region35: #{xray_clip_forward.7} parent=1 // pred_check_branch
      %469 = sbr.rel (0) target = $region37
    $region36: #{xray_clip_forward.7} parent=1 // pred_region
      %s471 = ssub.s32 32, 32
      %472 = vsyncadd [#allocation6], %s471
      %s474 = sshll.u32 [#allocation7], 4
      %s475 = int_to_ptr.vmem [resolvable:$true] %s474
      %477 = dma.vmem_to_hbm [thread:$0]  %s475, 32, %s8, [#allocation6]
    $region37: #{xray_clip_forward.7} parent=1 // pred_fallthru
      _
    // Predicated region
    $region38: #{xray_clip_forward.7} parent=1 // pred_check
      _
    $region39: #{xray_clip_forward.7} parent=1 // pred_check_branch
      %479 = sbr.rel (0) target = $region41
    $region40: #{xray_clip_forward.7} parent=1 // pred_region
      %s481 = ssub.s32 32, 32
      %482 = vsyncadd [#allocation9], %s481
      %s484 = sshll.u32 [#allocation8], 4
      %s485 = int_to_ptr.vmem [resolvable:$true] %s484
      %487 = dma.vmem_to_hbm [thread:$0]  %s485, 32, %s9, [#allocation9]
    $region41: #{xray_clip_forward.7} parent=1 // pred_fallthru
      _
    // Predicated region
    $region42: #{xray_clip_forward.7} parent=1 // pred_check
      _
    $region43: #{xray_clip_forward.7} parent=1 // pred_check_branch
      %489 = sbr.rel (0) target = $region45
    $region44: #{xray_clip_forward.7} parent=1 // pred_region
      %490 = dma.done [#allocation4], 16
    $region45: #{xray_clip_forward.7} parent=1 // pred_fallthru
      _
    // Predicated region
    $region46: #{xray_clip_forward.7} parent=1 // pred_check
      _
    $region47: #{xray_clip_forward.7} parent=1 // pred_check_branch
      %492 = sbr.rel (0) target = $region49
    $region48: #{xray_clip_forward.7} parent=1 // pred_region
      %493 = dma.done [#allocation6], 32
    $region49: #{xray_clip_forward.7} parent=1 // pred_fallthru
      _
    // Predicated region
    $region50: #{xray_clip_forward.7} parent=1 // pred_check
      _
    $region51: #{xray_clip_forward.7} parent=1 // pred_check_branch
      %495 = sbr.rel (0) target = $region53
    $region52: #{xray_clip_forward.7} parent=1 // pred_region
      %496 = dma.done [#allocation6], 32
    $region53: #{xray_clip_forward.7} parent=1 // pred_fallthru
      _
    // Predicated region
    $region54: #{xray_clip_forward.7} parent=1 // pred_check
      _
    $region55: #{xray_clip_forward.7} parent=1 // pred_check_branch
      %498 = sbr.rel (0) target = $region57
    $region56: #{xray_clip_forward.7} parent=1 // pred_region
      %499 = dma.done [#allocation9], 32
    $region57: #{xray_clip_forward.7} parent=1 // pred_fallthru
      _
    %500 = vsyncpa [#allocation4], 1
    %501 = vsyncpa [#allocation6], 1
    %502 = vsyncpa [#allocation9], 1

// kernel: xray_clip_forward.5
$region0: #{xray_clip_forward.5}
  #allocation0 [shape = 'u32[]', space=smem, size = 0x4, offset = 0x4, fixed_abs, tag = 'smem constant byte address 0x4 - core index']
  #allocation1 [shape = 'u32[144,128]{1,0:T(1,128)}', space=vmem, size = 0x12000, scoped, tag = 'internal scratch']
  %s0 = inlined_call_operand.vmem [shape: f32[2,8,32], index: 0, kind: input, shape index: {}]
  %s1 = inlined_call_operand.vmem [shape: f32[2,1,8], index: 1, kind: input, shape index: {}]
  %s2 = inlined_call_operand.vmem [shape: f32[1,32], index: 2, kind: input, shape index: {}]
  %s3 = inlined_call_operand.vmem [shape: f32[1,32], index: 3, kind: input, shape index: {}]
  %s4 = inlined_call_operand.vmem [shape: f32[2,1,32], index: 4, kind: input, shape index: {}]
  %s5 = inlined_call_operand.vmem [shape: f32[2,1,32], index: 5, kind: input, shape index: {}]
  %s6 = inlined_call_operand.vmem [shape: f32[2,32,96], index: 6, kind: input, shape index: {}]
  %s7 = inlined_call_operand.vmem [shape: f32[2,1,96], index: 7, kind: input, shape index: {}]
  %s8 = inlined_call_operand.vmem [shape: f32[2,32,32], index: 8, kind: input, shape index: {}]
  %s9 = inlined_call_operand.vmem [shape: f32[2,1,32], index: 9, kind: input, shape index: {}]
  %s10 = inlined_call_operand.vmem [shape: f32[2,1,32], index: 10, kind: input, shape index: {}]
  %s11 = inlined_call_operand.vmem [shape: f32[2,1,32], index: 11, kind: input, shape index: {}]
  %s12 = inlined_call_operand.vmem [shape: f32[2,32,128], index: 12, kind: input, shape index: {}]
  %s13 = inlined_call_operand.vmem [shape: f32[2,1,128], index: 13, kind: input, shape index: {}]
  %s14 = inlined_call_operand.vmem [shape: f32[2,128,32], index: 14, kind: input, shape index: {}]
  %s15 = inlined_call_operand.vmem [shape: f32[2,1,32], index: 15, kind: input, shape index: {}]
  %s16 = inlined_call_operand.vmem [shape: f32[1,32], index: 16, kind: input, shape index: {}]
  %s17 = inlined_call_operand.vmem [shape: f32[1,32], index: 17, kind: input, shape index: {}]
  %s18 = inlined_call_operand.vmem [shape: f32[2,1,32], index: 18, kind: output, shape index: {}]
  %s19 = sld [smem:[#allocation0]]
  $region105: #{xray_clip_forward.5} parent=0
    _
  %s21 = ssub.s32 1, %s19
  %s22 = scalar_select 0, %s21, %s19
  loop: start=0, step=1, limit=4
  $region2: #{xray_clip_forward.5} parent=0 // loop_pre_header
    _
  $region3: #{xray_clip_forward.5} parent=0 // loop_header
    %s24 = sphi 0, %s28
    %p25 = scmp.ge.s32.totalorder %s24, 4
    %s34 = sphi 0, %s36
    %s37 = sphi 0, %s34
    %s38 = sphi 0, %s37
    %s54 = sphi 0, %s38
    %s60 = sphi 0, %s62
    %s63 = sphi 0, %s60
    %s64 = sphi 0, %s63
    %s80 = sphi 0, %s64
    %s84 = sphi 0, %s84
    %s86 = sphi 0, %s84
    %s87 = sphi 0, %s86
    %s101 = sphi 0, %s87
    %s105 = sphi 0, %s105
    %s107 = sphi 0, %s105
    %s108 = sphi 0, %s107
    %s122 = sphi 0, %s108
    %s126 = sphi 0, %s126
    %s128 = sphi 0, %s126
    %s129 = sphi 0, %s128
    %s143 = sphi 0, %s129
    %s147 = sphi 0, %s147
    %s149 = sphi 0, %s147
    %s150 = sphi 0, %s149
    %s164 = sphi 0, %s150
    %s168 = sphi 0, %s168
    %s170 = sphi 0, %s168
    %s171 = sphi 0, %s170
    %s185 = sphi 0, %s171
    %s189 = sphi 0, %s189
    %s191 = sphi 0, %s189
    %s192 = sphi 0, %s191
    %s206 = sphi 0, %s192
    %s210 = sphi 0, %s210
    %s212 = sphi 0, %s210
    %s213 = sphi 0, %s212
    %s227 = sphi 0, %s213
    %s231 = sphi 0, %s231
    %s233 = sphi 0, %s231
    %s234 = sphi 0, %s233
    %s248 = sphi 0, %s234
    %s252 = sphi 0, %s252
    %s254 = sphi 0, %s252
    %s255 = sphi 0, %s254
    %s269 = sphi 0, %s255
    %s273 = sphi 0, %s273
    %s275 = sphi 0, %s273
    %s276 = sphi 0, %s275
    %s290 = sphi 0, %s276
    %s294 = sphi 0, %s294
    %s296 = sphi 0, %s294
    %s297 = sphi 0, %s296
    %s311 = sphi 0, %s297
    %s315 = sphi 0, %s315
    %s317 = sphi 0, %s315
    %s318 = sphi 0, %s317
    %s332 = sphi 0, %s318
    %s336 = sphi 0, %s336
    %s338 = sphi 0, %s336
    %s339 = sphi 0, %s338
    %s353 = sphi 0, %s339
    %s357 = sphi 0, %s357
    %s359 = sphi 0, %s357
    %s360 = sphi 0, %s359
    %s374 = sphi 0, %s360
    %s378 = sphi 0, %s378
    %s380 = sphi 0, %s378
    %s381 = sphi 0, %s380
    %s395 = sphi 0, %s381
    %s399 = sphi 0, %s399
    %s401 = sphi 0, %s399
    %s402 = sphi 0, %s401
    %s416 = sphi 0, %s402
    %s422 = sphi 0, %s424
    %s425 = sphi 0, %s422
    %s426 = sphi 0, %s425
    %s442 = sphi 0, %s426
  $region4: #{xray_clip_forward.5} parent=0 // loop_header_branch
    %27 = sbr.rel (%p25) target = $region8
  $region5: #{xray_clip_forward.5} parent=0 // loop_body
    %s29 = ssub.s32 %s24, 1
    %s30 = ssub.s32 %s24, 2
    %s31 = sadd.s32 %s24, 1
    %s32 = ssub.s32 %s24, %s31
    %p33 = scmp.eq.s32.totalorder %s32, 0
    %s35 = sadd.s32 %s34, 1
    %s36 = scalar_select %p33, %s34, %s35
    %p39 = pneg %p33
    %p40 = scmp.eq.s32.totalorder %s24, 1
    %p41 = por %p39, %p40
    %p42 = scmp.ne.s32.totalorder %s34, %s37
    %p43 = scmp.eq.s32.totalorder %s24, 0
    %p44 = por %p42, %p43
    %p45 = scmp.ne.s32.totalorder %s34, %s37
    %p46 = scmp.eq.s32.totalorder %s29, 1
    %p47 = por %p45, %p46
    %p48 = scmp.ne.s32.totalorder %s37, %s38
    %p49 = scmp.eq.s32.totalorder %s29, 0
    %p50 = por %p48, %p49
    %p51 = scmp.ne.s32.totalorder %s37, %s38
    %p52 = scmp.eq.s32.totalorder %s30, 1
    %p53 = por %p51, %p52
    %p55 = scmp.ne.s32.totalorder %s38, %s54
    %p56 = scmp.eq.s32.totalorder %s30, 0
    %p57 = por %p55, %p56
    %s58 = ssub.s32 %s24, %s31
    %p59 = scmp.eq.s32.totalorder %s58, 0
    %s61 = sadd.s32 %s60, 1
    %s62 = scalar_select %p59, %s60, %s61
    %p65 = pneg %p59
    %p66 = scmp.eq.s32.totalorder %s24, 1
    %p67 = por %p65, %p66
    %p68 = scmp.ne.s32.totalorder %s60, %s63
    %p69 = scmp.eq.s32.totalorder %s24, 0
    %p70 = por %p68, %p69
    %p71 = scmp.ne.s32.totalorder %s60, %s63
    %p72 = scmp.eq.s32.totalorder %s29, 1
    %p73 = por %p71, %p72
    %p74 = scmp.ne.s32.totalorder %s63, %s64
    %p75 = scmp.eq.s32.totalorder %s29, 0
    %p76 = por %p74, %p75
    %p77 = scmp.ne.s32.totalorder %s63, %s64
    %p78 = scmp.eq.s32.totalorder %s30, 1
    %p79 = por %p77, %p78
    %p81 = scmp.ne.s32.totalorder %s64, %s80
    %p82 = scmp.eq.s32.totalorder %s30, 0
    %p83 = por %p81, %p82
    %s85 = sadd.s32 %s84, 1
    %p88 = scmp.eq.s32.totalorder %s24, 1
    %p89 = scmp.ne.s32.totalorder %s84, %s86
    %p90 = scmp.eq.s32.totalorder %s24, 0
    %p91 = por %p89, %p90
    %p92 = scmp.ne.s32.totalorder %s84, %s86
    %p93 = scmp.eq.s32.totalorder %s29, 1
    %p94 = por %p92, %p93
    %p95 = scmp.ne.s32.totalorder %s86, %s87
    %p96 = scmp.eq.s32.totalorder %s29, 0
    %p97 = por %p95, %p96
    %p98 = scmp.ne.s32.totalorder %s86, %s87
    %p99 = scmp.eq.s32.totalorder %s30, 1
    %p100 = por %p98, %p99
    %p102 = scmp.ne.s32.totalorder %s87, %s101
    %p103 = scmp.eq.s32.totalorder %s30, 0
    %p104 = por %p102, %p103
    %s106 = sadd.s32 %s105, 1
    %p109 = scmp.eq.s32.totalorder %s24, 1
    %p110 = scmp.ne.s32.totalorder %s105, %s107
    %p111 = scmp.eq.s32.totalorder %s24, 0
    %p112 = por %p110, %p111
    %p113 = scmp.ne.s32.totalorder %s105, %s107
    %p114 = scmp.eq.s32.totalorder %s29, 1
    %p115 = por %p113, %p114
    %p116 = scmp.ne.s32.totalorder %s107, %s108
    %p117 = scmp.eq.s32.totalorder %s29, 0
    %p118 = por %p116, %p117
    %p119 = scmp.ne.s32.totalorder %s107, %s108
    %p120 = scmp.eq.s32.totalorder %s30, 1
    %p121 = por %p119, %p120
    %p123 = scmp.ne.s32.totalorder %s108, %s122
    %p124 = scmp.eq.s32.totalorder %s30, 0
    %p125 = por %p123, %p124
    %s127 = sadd.s32 %s126, 1
    %p130 = scmp.eq.s32.totalorder %s24, 1
    %p131 = scmp.ne.s32.totalorder %s126, %s128
    %p132 = scmp.eq.s32.totalorder %s24, 0
    %p133 = por %p131, %p132
    %p134 = scmp.ne.s32.totalorder %s126, %s128
    %p135 = scmp.eq.s32.totalorder %s29, 1
    %p136 = por %p134, %p135
    %p137 = scmp.ne.s32.totalorder %s128, %s129
    %p138 = scmp.eq.s32.totalorder %s29, 0
    %p139 = por %p137, %p138
    %p140 = scmp.ne.s32.totalorder %s128, %s129
    %p141 = scmp.eq.s32.totalorder %s30, 1
    %p142 = por %p140, %p141
    %p144 = scmp.ne.s32.totalorder %s129, %s143
    %p145 = scmp.eq.s32.totalorder %s30, 0
    %p146 = por %p144, %p145
    %s148 = sadd.s32 %s147, 1
    %p151 = scmp.eq.s32.totalorder %s24, 1
    %p152 = scmp.ne.s32.totalorder %s147, %s149
    %p153 = scmp.eq.s32.totalorder %s24, 0
    %p154 = por %p152, %p153
    %p155 = scmp.ne.s32.totalorder %s147, %s149
    %p156 = scmp.eq.s32.totalorder %s29, 1
    %p157 = por %p155, %p156
    %p158 = scmp.ne.s32.totalorder %s149, %s150
    %p159 = scmp.eq.s32.totalorder %s29, 0
    %p160 = por %p158, %p159
    %p161 = scmp.ne.s32.totalorder %s149, %s150
    %p162 = scmp.eq.s32.totalorder %s30, 1
    %p163 = por %p161, %p162
    %p165 = scmp.ne.s32.totalorder %s150, %s164
    %p166 = scmp.eq.s32.totalorder %s30, 0
    %p167 = por %p165, %p166
    %s169 = sadd.s32 %s168, 1
    %p172 = scmp.eq.s32.totalorder %s24, 1
    %p173 = scmp.ne.s32.totalorder %s168, %s170
    %p174 = scmp.eq.s32.totalorder %s24, 0
    %p175 = por %p173, %p174
    %p176 = scmp.ne.s32.totalorder %s168, %s170
    %p177 = scmp.eq.s32.totalorder %s29, 1
    %p178 = por %p176, %p177
    %p179 = scmp.ne.s32.totalorder %s170, %s171
    %p180 = scmp.eq.s32.totalorder %s29, 0
    %p181 = por %p179, %p180
    %p182 = scmp.ne.s32.totalorder %s170, %s171
    %p183 = scmp.eq.s32.totalorder %s30, 1
    %p184 = por %p182, %p183
    %p186 = scmp.ne.s32.totalorder %s171, %s185
    %p187 = scmp.eq.s32.totalorder %s30, 0
    %p188 = por %p186, %p187
    %s190 = sadd.s32 %s189, 1
    %p193 = scmp.eq.s32.totalorder %s24, 1
    %p194 = scmp.ne.s32.totalorder %s189, %s191
    %p195 = scmp.eq.s32.totalorder %s24, 0
    %p196 = por %p194, %p195
    %p197 = scmp.ne.s32.totalorder %s189, %s191
    %p198 = scmp.eq.s32.totalorder %s29, 1
    %p199 = por %p197, %p198
    %p200 = scmp.ne.s32.totalorder %s191, %s192
    %p201 = scmp.eq.s32.totalorder %s29, 0
    %p202 = por %p200, %p201
    %p203 = scmp.ne.s32.totalorder %s191, %s192
    %p204 = scmp.eq.s32.totalorder %s30, 1
    %p205 = por %p203, %p204
    %p207 = scmp.ne.s32.totalorder %s192, %s206
    %p208 = scmp.eq.s32.totalorder %s30, 0
    %p209 = por %p207, %p208
    %s211 = sadd.s32 %s210, 1
    %p214 = scmp.eq.s32.totalorder %s24, 1
    %p215 = scmp.ne.s32.totalorder %s210, %s212
    %p216 = scmp.eq.s32.totalorder %s24, 0
    %p217 = por %p215, %p216
    %p218 = scmp.ne.s32.totalorder %s210, %s212
    %p219 = scmp.eq.s32.totalorder %s29, 1
    %p220 = por %p218, %p219
    %p221 = scmp.ne.s32.totalorder %s212, %s213
    %p222 = scmp.eq.s32.totalorder %s29, 0
    %p223 = por %p221, %p222
    %p224 = scmp.ne.s32.totalorder %s212, %s213
    %p225 = scmp.eq.s32.totalorder %s30, 1
    %p226 = por %p224, %p225
    %p228 = scmp.ne.s32.totalorder %s213, %s227
    %p229 = scmp.eq.s32.totalorder %s30, 0
    %p230 = por %p228, %p229
    %s232 = sadd.s32 %s231, 1
    %p235 = scmp.eq.s32.totalorder %s24, 1
    %p236 = scmp.ne.s32.totalorder %s231, %s233
    %p237 = scmp.eq.s32.totalorder %s24, 0
    %p238 = por %p236, %p237
    %p239 = scmp.ne.s32.totalorder %s231, %s233
    %p240 = scmp.eq.s32.totalorder %s29, 1
    %p241 = por %p239, %p240
    %p242 = scmp.ne.s32.totalorder %s233, %s234
    %p243 = scmp.eq.s32.totalorder %s29, 0
    %p244 = por %p242, %p243
    %p245 = scmp.ne.s32.totalorder %s233, %s234
    %p246 = scmp.eq.s32.totalorder %s30, 1
    %p247 = por %p245, %p246
    %p249 = scmp.ne.s32.totalorder %s234, %s248
    %p250 = scmp.eq.s32.totalorder %s30, 0
    %p251 = por %p249, %p250
    %s253 = sadd.s32 %s252, 1
    %p256 = scmp.eq.s32.totalorder %s24, 1
    %p257 = scmp.ne.s32.totalorder %s252, %s254
    %p258 = scmp.eq.s32.totalorder %s24, 0
    %p259 = por %p257, %p258
    %p260 = scmp.ne.s32.totalorder %s252, %s254
    %p261 = scmp.eq.s32.totalorder %s29, 1
    %p262 = por %p260, %p261
    %p263 = scmp.ne.s32.totalorder %s254, %s255
    %p264 = scmp.eq.s32.totalorder %s29, 0
    %p265 = por %p263, %p264
    %p266 = scmp.ne.s32.totalorder %s254, %s255
    %p267 = scmp.eq.s32.totalorder %s30, 1
    %p268 = por %p266, %p267
    %p270 = scmp.ne.s32.totalorder %s255, %s269
    %p271 = scmp.eq.s32.totalorder %s30, 0
    %p272 = por %p270, %p271
    %s274 = sadd.s32 %s273, 1
    %p277 = scmp.eq.s32.totalorder %s24, 1
    %p278 = scmp.ne.s32.totalorder %s273, %s275
    %p279 = scmp.eq.s32.totalorder %s24, 0
    %p280 = por %p278, %p279
    %p281 = scmp.ne.s32.totalorder %s273, %s275
    %p282 = scmp.eq.s32.totalorder %s29, 1
    %p283 = por %p281, %p282
    %p284 = scmp.ne.s32.totalorder %s275, %s276
    %p285 = scmp.eq.s32.totalorder %s29, 0
    %p286 = por %p284, %p285
    %p287 = scmp.ne.s32.totalorder %s275, %s276
    %p288 = scmp.eq.s32.totalorder %s30, 1
    %p289 = por %p287, %p288
    %p291 = scmp.ne.s32.totalorder %s276, %s290
    %p292 = scmp.eq.s32.totalorder %s30, 0
    %p293 = por %p291, %p292
    %s295 = sadd.s32 %s294, 1
    %p298 = scmp.eq.s32.totalorder %s24, 1
    %p299 = scmp.ne.s32.totalorder %s294, %s296
    %p300 = scmp.eq.s32.totalorder %s24, 0
    %p301 = por %p299, %p300
    %p302 = scmp.ne.s32.totalorder %s294, %s296
    %p303 = scmp.eq.s32.totalorder %s29, 1
    %p304 = por %p302, %p303
    %p305 = scmp.ne.s32.totalorder %s296, %s297
    %p306 = scmp.eq.s32.totalorder %s29, 0
    %p307 = por %p305, %p306
    %p308 = scmp.ne.s32.totalorder %s296, %s297
    %p309 = scmp.eq.s32.totalorder %s30, 1
    %p310 = por %p308, %p309
    %p312 = scmp.ne.s32.totalorder %s297, %s311
    %p313 = scmp.eq.s32.totalorder %s30, 0
    %p314 = por %p312, %p313
    %s316 = sadd.s32 %s315, 1
    %p319 = scmp.eq.s32.totalorder %s24, 1
    %p320 = scmp.ne.s32.totalorder %s315, %s317
    %p321 = scmp.eq.s32.totalorder %s24, 0
    %p322 = por %p320, %p321
    %p323 = scmp.ne.s32.totalorder %s315, %s317
    %p324 = scmp.eq.s32.totalorder %s29, 1
    %p325 = por %p323, %p324
    %p326 = scmp.ne.s32.totalorder %s317, %s318
    %p327 = scmp.eq.s32.totalorder %s29, 0
    %p328 = por %p326, %p327
    %p329 = scmp.ne.s32.totalorder %s317, %s318
    %p330 = scmp.eq.s32.totalorder %s30, 1
    %p331 = por %p329, %p330
    %p333 = scmp.ne.s32.totalorder %s318, %s332
    %p334 = scmp.eq.s32.totalorder %s30, 0
    %p335 = por %p333, %p334
    %s337 = sadd.s32 %s336, 1
    %p340 = scmp.eq.s32.totalorder %s24, 1
    %p341 = scmp.ne.s32.totalorder %s336, %s338
    %p342 = scmp.eq.s32.totalorder %s24, 0
    %p343 = por %p341, %p342
    %p344 = scmp.ne.s32.totalorder %s336, %s338
    %p345 = scmp.eq.s32.totalorder %s29, 1
    %p346 = por %p344, %p345
    %p347 = scmp.ne.s32.totalorder %s338, %s339
    %p348 = scmp.eq.s32.totalorder %s29, 0
    %p349 = por %p347, %p348
    %p350 = scmp.ne.s32.totalorder %s338, %s339
    %p351 = scmp.eq.s32.totalorder %s30, 1
    %p352 = por %p350, %p351
    %p354 = scmp.ne.s32.totalorder %s339, %s353
    %p355 = scmp.eq.s32.totalorder %s30, 0
    %p356 = por %p354, %p355
    %s358 = sadd.s32 %s357, 1
    %p361 = scmp.eq.s32.totalorder %s24, 1
    %p362 = scmp.ne.s32.totalorder %s357, %s359
    %p363 = scmp.eq.s32.totalorder %s24, 0
    %p364 = por %p362, %p363
    %p365 = scmp.ne.s32.totalorder %s357, %s359
    %p366 = scmp.eq.s32.totalorder %s29, 1
    %p367 = por %p365, %p366
    %p368 = scmp.ne.s32.totalorder %s359, %s360
    %p369 = scmp.eq.s32.totalorder %s29, 0
    %p370 = por %p368, %p369
    %p371 = scmp.ne.s32.totalorder %s359, %s360
    %p372 = scmp.eq.s32.totalorder %s30, 1
    %p373 = por %p371, %p372
    %p375 = scmp.ne.s32.totalorder %s360, %s374
    %p376 = scmp.eq.s32.totalorder %s30, 0
    %p377 = por %p375, %p376
    %s379 = sadd.s32 %s378, 1
    %p382 = scmp.eq.s32.totalorder %s24, 1
    %p383 = scmp.ne.s32.totalorder %s378, %s380
    %p384 = scmp.eq.s32.totalorder %s24, 0
    %p385 = por %p383, %p384
    %p386 = scmp.ne.s32.totalorder %s378, %s380
    %p387 = scmp.eq.s32.totalorder %s29, 1
    %p388 = por %p386, %p387
    %p389 = scmp.ne.s32.totalorder %s380, %s381
    %p390 = scmp.eq.s32.totalorder %s29, 0
    %p391 = por %p389, %p390
    %p392 = scmp.ne.s32.totalorder %s380, %s381
    %p393 = scmp.eq.s32.totalorder %s30, 1
    %p394 = por %p392, %p393
    %p396 = scmp.ne.s32.totalorder %s381, %s395
    %p397 = scmp.eq.s32.totalorder %s30, 0
    %p398 = por %p396, %p397
    %s400 = sadd.s32 %s399, 1
    %p403 = scmp.eq.s32.totalorder %s24, 1
    %p404 = scmp.ne.s32.totalorder %s399, %s401
    %p405 = scmp.eq.s32.totalorder %s24, 0
    %p406 = por %p404, %p405
    %p407 = scmp.ne.s32.totalorder %s399, %s401
    %p408 = scmp.eq.s32.totalorder %s29, 1
    %p409 = por %p407, %p408
    %p410 = scmp.ne.s32.totalorder %s401, %s402
    %p411 = scmp.eq.s32.totalorder %s29, 0
    %p412 = por %p410, %p411
    %p413 = scmp.ne.s32.totalorder %s401, %s402
    %p414 = scmp.eq.s32.totalorder %s30, 1
    %p415 = por %p413, %p414
    %p417 = scmp.ne.s32.totalorder %s402, %s416
    %p418 = scmp.eq.s32.totalorder %s30, 0
    %p419 = por %p417, %p418
    %s420 = ssub.s32 %s24, %s31
    %p421 = scmp.eq.s32.totalorder %s420, 0
    %s423 = sadd.s32 %s422, 1
    %s424 = scalar_select %p421, %s422, %s423
    %p427 = pneg %p421
    %p428 = scmp.eq.s32.totalorder %s24, 1
    %p429 = por %p427, %p428
    %p430 = scmp.ne.s32.totalorder %s422, %s425
    %p431 = scmp.eq.s32.totalorder %s24, 0
    %p432 = por %p430, %p431
    %p433 = scmp.ne.s32.totalorder %s422, %s425
    %p434 = scmp.eq.s32.totalorder %s29, 1
    %p435 = por %p433, %p434
    %p436 = scmp.ne.s32.totalorder %s425, %s426
    %p437 = scmp.eq.s32.totalorder %s29, 0
    %p438 = por %p436, %p437
    %p439 = scmp.ne.s32.totalorder %s425, %s426
    %p440 = scmp.eq.s32.totalorder %s30, 1
    %p441 = por %p439, %p440
    %p443 = scmp.ne.s32.totalorder %s426, %s442
    %p444 = scmp.eq.s32.totalorder %s30, 0
    %p445 = por %p443, %p444
    %p446 = scmp.le.s32.totalorder 1, %s24
    %p447 = scmp.lt.s32.totalorder %s24, 3
    %p448 = pnand %p446, %p447
    %p449 = pneg %p448
    // Predicated region
    $region9: #{xray_clip_forward.5} parent=5 // pred_check
      _
    $region10: #{xray_clip_forward.5} parent=5 // pred_check_branch
      %451 = sbr.rel (%p448) target = $region12
    $region11: #{xray_clip_forward.5} parent=5 // pred_region
      %s452 = ssub.s32 %s24, 1
      // Predicated region
      $region13: #{xray_clip_forward.5} parent=11 // pred_check
        %p453 = pneg %p97
      $region14: #{xray_clip_forward.5} parent=11 // pred_check_branch
        %455 = sbr.rel (%p453) target = $region16
      $region15: #{xray_clip_forward.5} parent=11 // pred_region
        _
      $region16: #{xray_clip_forward.5} parent=11 // pred_fallthru
        _
      // Predicated region
      $region17: #{xray_clip_forward.5} parent=11 // pred_check
        %p456 = pneg %p118
      $region18: #{xray_clip_forward.5} parent=11 // pred_check_branch
        %458 = sbr.rel (%p456) target = $region20
      $region19: #{xray_clip_forward.5} parent=11 // pred_region
        _
      $region20: #{xray_clip_forward.5} parent=11 // pred_fallthru
        _
      // Predicated region
      $region21: #{xray_clip_forward.5} parent=11 // pred_check
        %p459 = pneg %p139
      $region22: #{xray_clip_forward.5} parent=11 // pred_check_branch
        %461 = sbr.rel (%p459) target = $region24
      $region23: #{xray_clip_forward.5} parent=11 // pred_region
        _
      $region24: #{xray_clip_forward.5} parent=11 // pred_fallthru
        _
      // Predicated region
      $region25: #{xray_clip_forward.5} parent=11 // pred_check
        %p462 = pneg %p160
      $region26: #{xray_clip_forward.5} parent=11 // pred_check_branch
        %464 = sbr.rel (%p462) target = $region28
      $region27: #{xray_clip_forward.5} parent=11 // pred_region
        _
      $region28: #{xray_clip_forward.5} parent=11 // pred_fallthru
        _
      // Predicated region
      $region29: #{xray_clip_forward.5} parent=11 // pred_check
        %p465 = pneg %p181
      $region30: #{xray_clip_forward.5} parent=11 // pred_check_branch
        %467 = sbr.rel (%p465) target = $region32
      $region31: #{xray_clip_forward.5} parent=11 // pred_region
        _
      $region32: #{xray_clip_forward.5} parent=11 // pred_fallthru
        _
      // Predicated region
      $region33: #{xray_clip_forward.5} parent=11 // pred_check
        %p468 = pneg %p202
      $region34: #{xray_clip_forward.5} parent=11 // pred_check_branch
        %470 = sbr.rel (%p468) target = $region36
      $region35: #{xray_clip_forward.5} parent=11 // pred_region
        _
      $region36: #{xray_clip_forward.5} parent=11 // pred_fallthru
        _
      // Predicated region
      $region37: #{xray_clip_forward.5} parent=11 // pred_check
        %p471 = pneg %p223
      $region38: #{xray_clip_forward.5} parent=11 // pred_check_branch
        %473 = sbr.rel (%p471) target = $region40
      $region39: #{xray_clip_forward.5} parent=11 // pred_region
        _
      $region40: #{xray_clip_forward.5} parent=11 // pred_fallthru
        _
      // Predicated region
      $region41: #{xray_clip_forward.5} parent=11 // pred_check
        %p474 = pneg %p244
      $region42: #{xray_clip_forward.5} parent=11 // pred_check_branch
        %476 = sbr.rel (%p474) target = $region44
      $region43: #{xray_clip_forward.5} parent=11 // pred_region
        _
      $region44: #{xray_clip_forward.5} parent=11 // pred_fallthru
        _
      // Predicated region
      $region45: #{xray_clip_forward.5} parent=11 // pred_check
        %p477 = pneg %p265
      $region46: #{xray_clip_forward.5} parent=11 // pred_check_branch
        %479 = sbr.rel (%p477) target = $region48
      $region47: #{xray_clip_forward.5} parent=11 // pred_region
        _
      $region48: #{xray_clip_forward.5} parent=11 // pred_fallthru
        _
      // Predicated region
      $region49: #{xray_clip_forward.5} parent=11 // pred_check
        %p480 = pneg %p286
      $region50: #{xray_clip_forward.5} parent=11 // pred_check_branch
        %482 = sbr.rel (%p480) target = $region52
      $region51: #{xray_clip_forward.5} parent=11 // pred_region
        _
      $region52: #{xray_clip_forward.5} parent=11 // pred_fallthru
        _
      // Predicated region
      $region53: #{xray_clip_forward.5} parent=11 // pred_check
        %p483 = pneg %p307
      $region54: #{xray_clip_forward.5} parent=11 // pred_check_branch
        %485 = sbr.rel (%p483) target = $region56
      $region55: #{xray_clip_forward.5} parent=11 // pred_region
        _
      $region56: #{xray_clip_forward.5} parent=11 // pred_fallthru
        _
      // Predicated region
      $region57: #{xray_clip_forward.5} parent=11 // pred_check
        %p486 = pneg %p328
      $region58: #{xray_clip_forward.5} parent=11 // pred_check_branch
        %488 = sbr.rel (%p486) target = $region60
      $region59: #{xray_clip_forward.5} parent=11 // pred_region
        _
      $region60: #{xray_clip_forward.5} parent=11 // pred_fallthru
        _
      // Predicated region
      $region61: #{xray_clip_forward.5} parent=11 // pred_check
        %p489 = pneg %p349
      $region62: #{xray_clip_forward.5} parent=11 // pred_check_branch
        %491 = sbr.rel (%p489) target = $region64
      $region63: #{xray_clip_forward.5} parent=11 // pred_region
        _
      $region64: #{xray_clip_forward.5} parent=11 // pred_fallthru
        _
      // Predicated region
      $region65: #{xray_clip_forward.5} parent=11 // pred_check
        %p492 = pneg %p370
      $region66: #{xray_clip_forward.5} parent=11 // pred_check_branch
        %494 = sbr.rel (%p492) target = $region68
      $region67: #{xray_clip_forward.5} parent=11 // pred_region
        _
      $region68: #{xray_clip_forward.5} parent=11 // pred_fallthru
        _
      // Predicated region
      $region69: #{xray_clip_forward.5} parent=11 // pred_check
        %p495 = pneg %p391
      $region70: #{xray_clip_forward.5} parent=11 // pred_check_branch
        %497 = sbr.rel (%p495) target = $region72
      $region71: #{xray_clip_forward.5} parent=11 // pred_region
        _
      $region72: #{xray_clip_forward.5} parent=11 // pred_fallthru
        _
      // Predicated region
      $region73: #{xray_clip_forward.5} parent=11 // pred_check
        %p498 = pneg %p412
      $region74: #{xray_clip_forward.5} parent=11 // pred_check_branch
        %500 = sbr.rel (%p498) target = $region76
      $region75: #{xray_clip_forward.5} parent=11 // pred_region
        _
      $region76: #{xray_clip_forward.5} parent=11 // pred_fallthru
        _
    $region12: #{xray_clip_forward.5} parent=5 // pred_fallthru
      _
    %p501 = scmp.lt.s32.totalorder %s24, 2
    // Predicated region
    $region77: #{xray_clip_forward.5} parent=5 // pred_check
      %p502 = pneg %p501
    $region78: #{xray_clip_forward.5} parent=5 // pred_check_branch
      %504 = sbr.rel (%p502) target = $region80
    $region79: #{xray_clip_forward.5} parent=5 // pred_region
      // Predicated region
      $region81: #{xray_clip_forward.5} parent=79 // pred_check
        %p505 = pneg %p44
      $region82: #{xray_clip_forward.5} parent=79 // pred_check_branch
        %507 = sbr.rel (%p505) target = $region84
      $region83: #{xray_clip_forward.5} parent=79 // pred_region
        %p508 = scmp.lt.s32.totalorder %s24, 1
        %s509 = scalar_select %p508, %s24, 1
        %s510 = smul.addr %s509, 8
        %s511 = scalar_lea.vmem %s0, %s510
      $region84: #{xray_clip_forward.5} parent=79 // pred_fallthru
        _
      // Predicated region
      $region85: #{xray_clip_forward.5} parent=79 // pred_check
        %p512 = pneg %p70
      $region86: #{xray_clip_forward.5} parent=79 // pred_check_branch
        %514 = sbr.rel (%p512) target = $region88
      $region87: #{xray_clip_forward.5} parent=79 // pred_region
        %p515 = scmp.lt.s32.totalorder %s24, 1
        %s516 = scalar_select %p515, %s24, 1
        %s517 = scalar_lea.vmem %s1, %s516
      $region88: #{xray_clip_forward.5} parent=79 // pred_fallthru
        _
    $region80: #{xray_clip_forward.5} parent=5 // pred_fallthru
      _
    %p518 = scmp.le.s32.totalorder 1, %s24
    %p519 = scmp.lt.s32.totalorder %s24, 3
    %p520 = pnand %p518, %p519
    %p521 = pneg %p520
    // Predicated region
    $region89: #{xray_clip_forward.5} parent=5 // pred_check
      _
    $region90: #{xray_clip_forward.5} parent=5 // pred_check_branch
      %523 = sbr.rel (%p520) target = $region92
    $region91: #{xray_clip_forward.5} parent=5 // pred_region
      %s524 = ssub.s32 %s24, 1
      %p525 = scmp.lt.s32.totalorder %s29, 1
      %s526 = scalar_select %p525, %s29, 1
      %s527 = smul.addr %s526, 8
      %s528 = scalar_lea.vmem %s0, %s527
      %p529 = pneg %p50
      %p530 = pneg %p47
      %p531 = scmp.lt.s32.totalorder %s29, 1
      %s532 = scalar_select %p531, %s29, 1
      %s533 = scalar_lea.vmem %s1, %s532
      %p534 = pneg %p76
      %p535 = pneg %p73
      %p536 = pneg %p97
      %p537 = pneg %p94
      %p538 = pneg %p118
      %p539 = pneg %p115
      %p540 = pneg %p139
      %p541 = pneg %p136
      %p542 = pneg %p160
      %p543 = pneg %p157
      %p544 = pneg %p181
      %p545 = pneg %p178
      %p546 = pneg %p202
      %p547 = pneg %p199
      %p548 = pneg %p223
      %p549 = pneg %p220
      %p550 = pneg %p244
      %p551 = pneg %p241
      %p552 = pneg %p265
      %p553 = pneg %p262
      %p554 = pneg %p286
      %p555 = pneg %p283
      %p556 = pneg %p307
      %p557 = pneg %p304
      %p558 = pneg %p328
      %p559 = pneg %p325
      %p560 = pneg %p349
      %p561 = pneg %p346
      %p562 = pneg %p370
      %p563 = pneg %p367
      %p564 = pneg %p391
      %p565 = pneg %p388
      %p566 = pneg %p412
      %p567 = pneg %p409
      %p568 = pneg %p438
      %p569 = pneg %p435
      %p570 = scmp.lt.s32.totalorder %s29, 1
      %s571 = scalar_select %p570, %s29, 1
      %s572 = scalar_lea.vmem %s18, %s571
      %p573 = scmp.lt.s32.totalorder %s29, 1
      %s574 = scalar_select %p573, %s29, 1
      %s575 = smul.addr %s574, 8
      %s576 = scalar_lea.vmem %s0, %s575
      %p577 = scmp.lt.s32.totalorder %s29, 1
      %s578 = scalar_select %p577, %s29, 1
      %s579 = scalar_lea.vmem %s1, %s578
      %p580 = scmp.lt.s32.totalorder %s29, 1
      %s581 = scalar_select %p580, %s29, 1
      %s582 = scalar_lea.vmem %s18, %s581
      %v583 = vld [vmem:[%s576] sm:$0xff]
      %v584 = vld [vmem:[%s579] sm:$0x1]
      %v585 = vsub.f32 1.0, %v584
      %v586 = vmul.f32 %v585, -1e+09
      %v587 = vld [vmem:[%s2] sm:$0x1]
      %v588 = vld [vmem:[%s3] sm:$0x1]
      %vm589 = vcmask 261120
      %v590 = vsel %vm589, %v583, 0.0
      %591 = vadd.xlane.f32.xlu0 %v590
      %v592 = vpop.xlane.xlu0 %591
      %v593 = vrcp.pop 32.0
      %v594 = vmul.f32 %v592, %v593
      %v595 = vsub.f32 %v583, %v594
      %v596 = vmul.f32 %v595, %v595
      %v597 = vsel %vm589, %v596, 0.0
      %598 = vadd.xlane.f32.xlu0 %v597
      %v599 = vpop.xlane.xlu0 %598
      %v600 = vmul.f32 %v599, %v593
      %v601 = vadd.f32 %v600, 1e-05
      %v602 = vrsqrt.pop %v601
      %v603 = vmul.f32 %v595, %v602
      %v605 = vlaneseq
      %v606 = vshrl.u32 %v605, 7
      %v607 = vsub.s32 0, %v606
      %v608 = vrot.slane %v587, %v607
      %v610 = vmul.f32 %v603, %v608
      %v612 = vlaneseq
      %v613 = vshrl.u32 %v612, 7
      %v614 = vsub.s32 0, %v613
      %v615 = vrot.slane %v588, %v614
      %v617 = vadd.f32 %v610, %v615
      %v618 = vld [vmem:[%s4] sm:$0x1]
      %v619 = vld [vmem:[%s5] sm:$0x1]
      %v620 = vsel %vm589, %v617, 0.0
      %621 = vadd.xlane.f32.xlu0 %v620
      %v622 = vpop.xlane.xlu0 %621
      %v623 = vmul.f32 %v622, %v593
      %v624 = vsub.f32 %v617, %v623
      %v625 = vmul.f32 %v624, %v624
      %v626 = vsel %vm589, %v625, 0.0
      %627 = vadd.xlane.f32.xlu0 %v626
      %v628 = vpop.xlane.xlu0 %627
      %v629 = vmul.f32 %v628, %v593
      %v630 = vadd.f32 %v629, 1e-05
      %v631 = vrsqrt.pop %v630
      %v632 = vmul.f32 %v624, %v631
      %v634 = vlaneseq
      %v635 = vshrl.u32 %v634, 7
      %v636 = vsub.s32 0, %v635
      %v637 = vrot.slane %v618, %v636
      %v639 = vmul.f32 %v632, %v637
      %v641 = vlaneseq
      %v642 = vshrl.u32 %v641, 7
      %v643 = vsub.s32 0, %v642
      %v644 = vrot.slane %v619, %v643
      %v646 = vadd.f32 %v639, %v644
      %v647 = vld [vmem:[%s6] sm:$0xff]
      %v648 = vld [vmem:[%s6 + $0x8] sm:$0xff]
      %v649 = vld [vmem:[%s6 + $0x10] sm:$0xff]
      %v650 = vld [vmem:[%s6 + $0x18] sm:$0xff]
      %v651 = vld [vmem:[%s7] sm:$0x1]
      %v653 = vlaneseq
      %v654 = vshrl.u32 %v653, 7
      %v655 = vsub.s32 0, %v654
      %v656 = vrot.slane %v651, %v655
      %v659 = vsel %vm589, %v646, 0
      %661 = vmatprep.subr.mxu0 0.0
      %662 = vmatpush1.msra.mxu0 %v647
      %663 = vmatprep.subr.mxu0 0.0
      %664 = vmatpush1.msra.mxu0 %v648
      %665 = vmatprep.subr.mxu0 0.0
      %666 = vmatpush1.msra.mxu0 %v649
      %667 = vmatprep.subr.mxu0 0.0
      %668 = vmatpush1.msra.mxu0 %v650
      %669 = vmatprep.subr.mxu0 0.0
      %670 = vmatpush1.msra.mxu0 0.0
      %671 = vmatprep.subr.mxu0 0.0
      %672 = vmatpush1.msra.mxu0 0.0
      %673 = vmatprep.subr.mxu0 0.0
      %674 = vmatpush1.msra.mxu0 0.0
      %675 = vmatprep.subr.mxu0 0.0
      %676 = vmatpush1.msra.mxu0 0.0
      %677 = vmatprep.subr.mxu0 0.0
      %678 = vmatpush1.msra.mxu0 0.0
      %679 = vmatprep.subr.mxu0 0.0
      %680 = vmatpush1.msra.mxu0 0.0
      %681 = vmatprep.subr.mxu0 0.0
      %682 = vmatpush1.msra.mxu0 0.0
      %683 = vmatprep.subr.mxu0 0.0
      %684 = vmatpush1.msra.mxu0 0.0
      %685 = vmatprep.subr.mxu0 0.0
      %686 = vmatpush1.msra.mxu0 0.0
      %687 = vmatprep.subr.mxu0 0.0
      %688 = vmatpush1.msra.mxu0 0.0
      %689 = vmatprep.subr.mxu0 0.0
      %690 = vmatpush1.msra.mxu0 0.0
      %691 = vmatprep.subr.mxu0 0.0
      %692 = vmatpush1.msra.mxu0 0.0
      %693 = vmatprep.subr.mxu0 0.0
      %694 = vmatpush1.msra.mxu0 0.0
      %695 = vmatprep.subr.mxu0 0.0
      %696 = vmatpush1.msra.mxu0 0.0
      %697 = vmatprep.subr.mxu0 0.0
      %698 = vmatpush1.msra.mxu0 0.0
      %699 = vmatprep.subr.mxu0 0.0
      %700 = vmatpush1.msra.mxu0 0.0
      %701 = vmatprep.subr.mxu0 0.0
      %702 = vmatpush1.msra.mxu0 0.0
      %703 = vmatprep.subr.mxu0 0.0
      %704 = vmatpush1.msra.mxu0 0.0
      %705 = vmatprep.subr.mxu0 0.0
      %706 = vmatpush1.msra.mxu0 0.0
      %707 = vmatprep.subr.mxu0 0.0
      %708 = vmatpush1.msra.mxu0 0.0
      %709 = vmatprep.subr.mxu0 0.0
      %710 = vmatpush1.msra.mxu0 0.0
      %711 = vmatprep.subr.mxu0 0.0
      %712 = vmatpush1.msra.mxu0 0.0
      %713 = vmatprep.subr.mxu0 0.0
      %714 = vmatpush1.msra.mxu0 0.0
      %715 = vmatprep.subr.mxu0 0.0
      %716 = vmatpush1.msra.mxu0 0.0
      %717 = vmatprep.subr.mxu0 0.0
      %718 = vmatpush1.msra.mxu0 0.0
      %719 = vmatprep.subr.mxu0 0.0
      %720 = vmatpush1.msra.mxu0 0.0
      %721 = vmatprep.subr.mxu0 0.0
      %722 = vmatpush1.msra.mxu0 0.0
      %723 = vmatprep.subr.mxu0 0.0
      %724 = vmatpush1.msra.mxu0 0.0
      %725 = vmatprep.mubr.f32.mxu0 0.0
      %726 = vmatmul.mubr.f32.gmra.mrb[0].mxu0 %v659
      %v727 = vpop.f32.mrb[0].mxu0
      %v728 = vadd.f32 %v656, %v727
      %v729 = vpop.f32.mrb[0].mxu0
      %730 = vdwg.mxu0
      %v731 = vld [vmem:[%s8] sm:$0xff]
      %v732 = vld [vmem:[%s8 + $0x8] sm:$0xff]
      %v733 = vld [vmem:[%s8 + $0x10] sm:$0xff]
      %v734 = vld [vmem:[%s8 + $0x18] sm:$0xff]
      %v735 = vld [vmem:[%s9] sm:$0x1]
      %737 = vrot.lane.b32.xlu0 %v728, 96
      %v738 = vpop.permute.xlu0 %737
      %vm739 = vcmask 130048
      %v740 = vsel %vm739, %v728, 0
      %v742 = vsel %vm739, %v738, 0
      %744 = vmatprep.subr.mxu0 0.0
      %745 = vmatpush1.xpose.msra.mxu0 %v742
      %746 = vmatprep.subr.mxu0 0.0
      %747 = vmatpush1.xpose.msra.mxu0 0.0
      %748 = vmatprep.subr.mxu0 0.0
      %749 = vmatpush1.xpose.msra.mxu0 0.0
      %750 = vmatprep.subr.mxu0 0.0
      %751 = vmatpush1.xpose.msra.mxu0 0.0
      %752 = vmatprep.subr.mxu0 0.0
      %753 = vmatpush1.xpose.msra.mxu0 0.0
      %754 = vmatprep.subr.mxu0 0.0
      %755 = vmatpush1.xpose.msra.mxu0 0.0
      %756 = vmatprep.subr.mxu0 0.0
      %757 = vmatpush1.xpose.msra.mxu0 0.0
      %758 = vmatprep.subr.mxu0 0.0
      %759 = vmatpush1.xpose.msra.mxu0 0.0
      %760 = vmatprep.subr.mxu0 0.0
      %761 = vmatpush1.xpose.msra.mxu0 0.0
      %762 = vmatprep.subr.mxu0 0.0
      %763 = vmatpush1.xpose.msra.mxu0 0.0
      %764 = vmatprep.subr.mxu0 0.0
      %765 = vmatpush1.xpose.msra.mxu0 0.0
      %766 = vmatprep.subr.mxu0 0.0
      %767 = vmatpush1.xpose.msra.mxu0 0.0
      %768 = vmatprep.subr.mxu0 0.0
      %769 = vmatpush1.xpose.msra.mxu0 0.0
      %770 = vmatprep.subr.mxu0 0.0
      %771 = vmatpush1.xpose.msra.mxu0 0.0
      %772 = vmatprep.subr.mxu0 0.0
      %773 = vmatpush1.xpose.msra.mxu0 0.0
      %774 = vmatprep.subr.mxu0 0.0
      %775 = vmatpush1.xpose.msra.mxu0 0.0
      %776 = vmatprep.subr.mxu0 0.0
      %777 = vmatpush1.xpose.msra.mxu0 0.0
      %778 = vmatprep.subr.mxu0 0.0
      %779 = vmatpush1.xpose.msra.mxu0 0.0
      %780 = vmatprep.subr.mxu0 0.0
      %781 = vmatpush1.xpose.msra.mxu0 0.0
      %782 = vmatprep.subr.mxu0 0.0
      %783 = vmatpush1.xpose.msra.mxu0 0.0
      %784 = vmatprep.subr.mxu0 0.0
      %785 = vmatpush1.xpose.msra.mxu0 0.0
      %786 = vmatprep.subr.mxu0 0.0
      %787 = vmatpush1.xpose.msra.mxu0 0.0
      %788 = vmatprep.subr.mxu0 0.0
      %789 = vmatpush1.xpose.msra.mxu0 0.0
      %790 = vmatprep.subr.mxu0 0.0
      %791 = vmatpush1.xpose.msra.mxu0 0.0
      %792 = vmatprep.subr.mxu0 0.0
      %793 = vmatpush1.xpose.msra.mxu0 0.0
      %794 = vmatprep.subr.mxu0 0.0
      %795 = vmatpush1.xpose.msra.mxu0 0.0
      %796 = vmatprep.subr.mxu0 0.0
      %797 = vmatpush1.xpose.msra.mxu0 0.0
      %798 = vmatprep.subr.mxu0 0.0
      %799 = vmatpush1.xpose.msra.mxu0 0.0
      %800 = vmatprep.subr.mxu0 0.0
      %801 = vmatpush1.xpose.msra.mxu0 0.0
      %802 = vmatprep.subr.mxu0 0.0
      %803 = vmatpush1.xpose.msra.mxu0 0.0
      %804 = vmatprep.subr.mxu0 0.0
      %805 = vmatpush1.xpose.msra.mxu0 0.0
      %806 = vmatprep.subr.mxu0 0.0
      %807 = vmatpush1.xpose.msra.mxu0 0.0
      %808 = vmatprep.mubr.f32.mxu0 0.0
      %809 = vmatmul.mubr.f32.gmra.mrb[0].mxu0 %v740
      %v810 = vpop.f32.mrb[0].mxu0
      %v811 = vadd.f32 0.0, %v810
      %v812 = vpop.f32.mrb[0].mxu0
      %813 = vdwg.mxu0
      %v814 = vmul.f32 %v811, 0.25
      %v816 = vlaneseq
      %v817 = vshrl.u32 %v816, 7
      %v818 = vsub.s32 0, %v817
      %v819 = vrot.slane %v586, %v818
      %v821 = vadd.f32 %v814, %v819
      %vm822 = vcmask 64512
      %v823 = vsel %vm822, %v821, -inf
      %824 = vmax.xlane.f32.xlu0 %v823
      %v825 = vpop.xlane.xlu0 %824
      %v826 = vsub.f32 %v821, %v825
      %v827 = vmul.f32 %v826, 1.442695
      %v828 = vpow.pop %v827
      %v829 = vsel %vm822, %v828, 0.0
      %830 = vadd.xlane.f32.xlu0 %v829
      %v831 = vpop.xlane.xlu0 %830
      %v832 = vrcp.pop %v831
      %v833 = vmul.f32 %v828, %v832
      %834 = vrot.lane.b32.xlu0 %v728, 64
      %v835 = vpop.permute.xlu0 %834
      %v838 = vsel %vm822, %v833, 0
      %840 = vmatprep.subr.mxu0 0.0
      %841 = vmatpush1.msra.mxu0 %v835
      %842 = vmatprep.subr.mxu0 0.0
      %843 = vmatpush1.msra.mxu0 0.0
      %844 = vmatprep.subr.mxu0 0.0
      %845 = vmatpush1.msra.mxu0 0.0
      %846 = vmatprep.subr.mxu0 0.0
      %847 = vmatpush1.msra.mxu0 0.0
      %848 = vmatprep.subr.mxu0 0.0
      %849 = vmatpush1.msra.mxu0 0.0
      %850 = vmatprep.subr.mxu0 0.0
      %851 = vmatpush1.msra.mxu0 0.0
      %852 = vmatprep.subr.mxu0 0.0
      %853 = vmatpush1.msra.mxu0 0.0
      %854 = vmatprep.subr.mxu0 0.0
      %855 = vmatpush1.msra.mxu0 0.0
      %856 = vmatprep.subr.mxu0 0.0
      %857 = vmatpush1.msra.mxu0 0.0
      %858 = vmatprep.subr.mxu0 0.0
      %859 = vmatpush1.msra.mxu0 0.0
      %860 = vmatprep.subr.mxu0 0.0
      %861 = vmatpush1.msra.mxu0 0.0
      %862 = vmatprep.subr.mxu0 0.0
      %863 = vmatpush1.msra.mxu0 0.0
      %864 = vmatprep.subr.mxu0 0.0
      %865 = vmatpush1.msra.mxu0 0.0
      %866 = vmatprep.subr.mxu0 0.0
      %867 = vmatpush1.msra.mxu0 0.0
      %868 = vmatprep.subr.mxu0 0.0
      %869 = vmatpush1.msra.mxu0 0.0
      %870 = vmatprep.subr.mxu0 0.0
      %871 = vmatpush1.msra.mxu0 0.0
      %872 = vmatprep.subr.mxu0 0.0
      %873 = vmatpush1.msra.mxu0 0.0
      %874 = vmatprep.subr.mxu0 0.0
      %875 = vmatpush1.msra.mxu0 0.0
      %876 = vmatprep.subr.mxu0 0.0
      %877 = vmatpush1.msra.mxu0 0.0
      %878 = vmatprep.subr.mxu0 0.0
      %879 = vmatpush1.msra.mxu0 0.0
      %880 = vmatprep.subr.mxu0 0.0
      %881 = vmatpush1.msra.mxu0 0.0
      %882 = vmatprep.subr.mxu0 0.0
      %883 = vmatpush1.msra.mxu0 0.0
      %884 = vmatprep.subr.mxu0 0.0
      %885 = vmatpush1.msra.mxu0 0.0
      %886 = vmatprep.subr.mxu0 0.0
      %887 = vmatpush1.msra.mxu0 0.0
      %888 = vmatprep.subr.mxu0 0.0
      %889 = vmatpush1.msra.mxu0 0.0
      %890 = vmatprep.subr.mxu0 0.0
      %891 = vmatpush1.msra.mxu0 0.0
      %892 = vmatprep.subr.mxu0 0.0
      %893 = vmatpush1.msra.mxu0 0.0
      %894 = vmatprep.subr.mxu0 0.0
      %895 = vmatpush1.msra.mxu0 0.0
      %896 = vmatprep.subr.mxu0 0.0
      %897 = vmatpush1.msra.mxu0 0.0
      %898 = vmatprep.subr.mxu0 0.0
      %899 = vmatpush1.msra.mxu0 0.0
      %900 = vmatprep.subr.mxu0 0.0
      %901 = vmatpush1.msra.mxu0 0.0
      %902 = vmatprep.subr.mxu0 0.0
      %903 = vmatpush1.msra.mxu0 0.0
      %904 = vmatprep.mubr.f32.mxu0 0.0
      %905 = vmatmul.mubr.f32.gmra.mrb[0].mxu0 %v838
      %v906 = vpop.f32.mrb[0].mxu0
      %v907 = vadd.f32 0.0, %v906
      %v908 = vpop.f32.mrb[0].mxu0
      %909 = vdwg.mxu0
      %v911 = vsel %vm739, %v907, 0
      %913 = vmatprep.subr.mxu0 0.0
      %914 = vmatpush1.msra.mxu0 %v731
      %915 = vmatprep.subr.mxu0 0.0
      %916 = vmatpush1.msra.mxu0 %v732
      %917 = vmatprep.subr.mxu0 0.0
      %918 = vmatpush1.msra.mxu0 0.0
      %919 = vmatprep.subr.mxu0 0.0
      %920 = vmatpush1.msra.mxu0 0.0
      %921 = vmatprep.subr.mxu0 0.0
      %922 = vmatpush1.msra.mxu0 0.0
      %923 = vmatprep.subr.mxu0 0.0
      %924 = vmatpush1.msra.mxu0 0.0
      %925 = vmatprep.subr.mxu0 0.0
      %926 = vmatpush1.msra.mxu0 0.0
      %927 = vmatprep.subr.mxu0 0.0
      %928 = vmatpush1.msra.mxu0 0.0
      %929 = vmatprep.subr.mxu0 0.0
      %930 = vmatpush1.msra.mxu0 0.0
      %931 = vmatprep.subr.mxu0 0.0
      %932 = vmatpush1.msra.mxu0 0.0
      %933 = vmatprep.subr.mxu0 0.0
      %934 = vmatpush1.msra.mxu0 0.0
      %935 = vmatprep.subr.mxu0 0.0
      %936 = vmatpush1.msra.mxu0 0.0
      %937 = vmatprep.subr.mxu0 0.0
      %938 = vmatpush1.msra.mxu0 0.0
      %939 = vmatprep.subr.mxu0 0.0
      %940 = vmatpush1.msra.mxu0 0.0
      %941 = vmatprep.subr.mxu0 0.0
      %942 = vmatpush1.msra.mxu0 0.0
      %943 = vmatprep.subr.mxu0 0.0
      %944 = vmatpush1.msra.mxu0 0.0
      %945 = vmatprep.subr.mxu0 0.0
      %946 = vmatpush1.msra.mxu0 0.0
      %947 = vmatprep.subr.mxu0 0.0
      %948 = vmatpush1.msra.mxu0 0.0
      %949 = vmatprep.subr.mxu0 0.0
      %950 = vmatpush1.msra.mxu0 0.0
      %951 = vmatprep.subr.mxu0 0.0
      %952 = vmatpush1.msra.mxu0 0.0
      %953 = vmatprep.subr.mxu0 0.0
      %954 = vmatpush1.msra.mxu0 0.0
      %955 = vmatprep.subr.mxu0 0.0
      %956 = vmatpush1.msra.mxu0 0.0
      %957 = vmatprep.subr.mxu0 0.0
      %958 = vmatpush1.msra.mxu0 0.0
      %959 = vmatprep.subr.mxu0 0.0
      %960 = vmatpush1.msra.mxu0 0.0
      %961 = vmatprep.subr.mxu0 0.0
      %962 = vmatpush1.msra.mxu0 0.0
      %963 = vmatprep.subr.mxu0 0.0
      %964 = vmatpush1.msra.mxu0 0.0
      %965 = vmatprep.subr.mxu0 0.0
      %966 = vmatpush1.msra.mxu0 0.0
      %967 = vmatprep.subr.mxu0 0.0
      %968 = vmatpush1.msra.mxu0 0.0
      %969 = vmatprep.subr.mxu0 0.0
      %970 = vmatpush1.msra.mxu0 0.0
      %971 = vmatprep.subr.mxu0 0.0
      %972 = vmatpush1.msra.mxu0 0.0
      %973 = vmatprep.subr.mxu0 0.0
      %974 = vmatpush1.msra.mxu0 0.0
      %975 = vmatprep.subr.mxu0 0.0
      %976 = vmatpush1.msra.mxu0 0.0
      %977 = vmatprep.mubr.f32.mxu0 0.0
      %978 = vmatmul.mubr.f32.gmra.mrb[0].mxu0 %v911
      %v979 = vpop.f32.mrb[0].mxu0
      %v980 = vadd.f32 0.0, %v979
      %v981 = vpop.f32.mrb[0].mxu0
      %982 = vdwg.mxu0
      %v984 = vlaneseq
      %v985 = vshrl.u32 %v984, 7
      %v986 = vsub.s32 0, %v985
      %v987 = vrot.slane %v735, %v986
      %v989 = vadd.f32 %v987, %v980
      %990 = vrot.lane.b32.xlu0 %v728, 112
      %v991 = vpop.permute.xlu0 %990
      %992 = vrot.lane.b32.xlu0 %v728, 80
      %v993 = vpop.permute.xlu0 %992
      %v994 = vsel %vm739, %v991, 0
      %v996 = vsel %vm739, %v993, 0
      %998 = vmatprep.subr.mxu0 0.0
      %999 = vmatpush1.xpose.msra.mxu0 %v996
      %1000 = vmatprep.subr.mxu0 0.0
      %1001 = vmatpush1.xpose.msra.mxu0 0.0
      %1002 = vmatprep.subr.mxu0 0.0
      %1003 = vmatpush1.xpose.msra.mxu0 0.0
      %1004 = vmatprep.subr.mxu0 0.0
      %1005 = vmatpush1.xpose.msra.mxu0 0.0
      %1006 = vmatprep.subr.mxu0 0.0
      %1007 = vmatpush1.xpose.msra.mxu0 0.0
      %1008 = vmatprep.subr.mxu0 0.0
      %1009 = vmatpush1.xpose.msra.mxu0 0.0
      %1010 = vmatprep.subr.mxu0 0.0
      %1011 = vmatpush1.xpose.msra.mxu0 0.0
      %1012 = vmatprep.subr.mxu0 0.0
      %1013 = vmatpush1.xpose.msra.mxu0 0.0
      %1014 = vmatprep.subr.mxu0 0.0
      %1015 = vmatpush1.xpose.msra.mxu0 0.0
      %1016 = vmatprep.subr.mxu0 0.0
      %1017 = vmatpush1.xpose.msra.mxu0 0.0
      %1018 = vmatprep.subr.mxu0 0.0
      %1019 = vmatpush1.xpose.msra.mxu0 0.0
      %1020 = vmatprep.subr.mxu0 0.0
      %1021 = vmatpush1.xpose.msra.mxu0 0.0
      %1022 = vmatprep.subr.mxu0 0.0
      %1023 = vmatpush1.xpose.msra.mxu0 0.0
      %1024 = vmatprep.subr.mxu0 0.0
      %1025 = vmatpush1.xpose.msra.mxu0 0.0
      %1026 = vmatprep.subr.mxu0 0.0
      %1027 = vmatpush1.xpose.msra.mxu0 0.0
      %1028 = vmatprep.subr.mxu0 0.0
      %1029 = vmatpush1.xpose.msra.mxu0 0.0
      %1030 = vmatprep.subr.mxu0 0.0
      %1031 = vmatpush1.xpose.msra.mxu0 0.0
      %1032 = vmatprep.subr.mxu0 0.0
      %1033 = vmatpush1.xpose.msra.mxu0 0.0
      %1034 = vmatprep.subr.mxu0 0.0
      %1035 = vmatpush1.xpose.msra.mxu0 0.0
      %1036 = vmatprep.subr.mxu0 0.0
      %1037 = vmatpush1.xpose.msra.mxu0 0.0
      %1038 = vmatprep.subr.mxu0 0.0
      %1039 = vmatpush1.xpose.msra.mxu0 0.0
      %1040 = vmatprep.subr.mxu0 0.0
      %1041 = vmatpush1.xpose.msra.mxu0 0.0
      %1042 = vmatprep.subr.mxu0 0.0
      %1043 = vmatpush1.xpose.msra.mxu0 0.0
      %1044 = vmatprep.subr.mxu0 0.0
      %1045 = vmatpush1.xpose.msra.mxu0 0.0
      %1046 = vmatprep.subr.mxu0 0.0
      %1047 = vmatpush1.xpose.msra.mxu0 0.0
      %1048 = vmatprep.subr.mxu0 0.0
      %1049 = vmatpush1.xpose.msra.mxu0 0.0
      %1050 = vmatprep.subr.mxu0 0.0
      %1051 = vmatpush1.xpose.msra.mxu0 0.0
      %1052 = vmatprep.subr.mxu0 0.0
      %1053 = vmatpush1.xpose.msra.mxu0 0.0
      %1054 = vmatprep.subr.mxu0 0.0
      %1055 = vmatpush1.xpose.msra.mxu0 0.0
      %1056 = vmatprep.subr.mxu0 0.0
      %1057 = vmatpush1.xpose.msra.mxu0 0.0
      %1058 = vmatprep.subr.mxu0 0.0
      %1059 = vmatpush1.xpose.msra.mxu0 0.0
      %1060 = vmatprep.subr.mxu0 0.0
      %1061 = vmatpush1.xpose.msra.mxu0 0.0
      %1062 = vmatprep.mubr.f32.mxu0 0.0
      %1063 = vmatmul.mubr.f32.gmra.mrb[0].mxu0 %v994
      %v1064 = vpop.f32.mrb[0].mxu0
      %v1065 = vadd.f32 0.0, %v1064
      %v1066 = vpop.f32.mrb[0].mxu0
      %1067 = vdwg.mxu0
      %v1068 = vmul.f32 %v1065, 0.25
      %v1069 = vadd.f32 %v1068, %v819
      %v1070 = vsel %vm822, %v1069, -inf
      %1071 = vmax.xlane.f32.xlu0 %v1070
      %v1072 = vpop.xlane.xlu0 %1071
      %v1073 = vsub.f32 %v1069, %v1072
      %v1074 = vmul.f32 %v1073, 1.442695
      %v1075 = vpow.pop %v1074
      %v1076 = vsel %vm822, %v1075, 0.0
      %1077 = vadd.xlane.f32.xlu0 %v1076
      %v1078 = vpop.xlane.xlu0 %1077
      %v1079 = vrcp.pop %v1078
      %v1080 = vmul.f32 %v1075, %v1079
      %1081 = vrot.lane.b32.xlu0 %v728, 48
      %v1082 = vpop.permute.xlu0 %1081
      %v1085 = vsel %vm822, %v1080, 0
      %1087 = vmatprep.subr.mxu0 0.0
      %1088 = vmatpush1.msra.mxu0 %v1082
      %1089 = vmatprep.subr.mxu0 0.0
      %1090 = vmatpush1.msra.mxu0 0.0
      %1091 = vmatprep.subr.mxu0 0.0
      %1092 = vmatpush1.msra.mxu0 0.0
      %1093 = vmatprep.subr.mxu0 0.0
      %1094 = vmatpush1.msra.mxu0 0.0
      %1095 = vmatprep.subr.mxu0 0.0
      %1096 = vmatpush1.msra.mxu0 0.0
      %1097 = vmatprep.subr.mxu0 0.0
      %1098 = vmatpush1.msra.mxu0 0.0
      %1099 = vmatprep.subr.mxu0 0.0
      %1100 = vmatpush1.msra.mxu0 0.0
      %1101 = vmatprep.subr.mxu0 0.0
      %1102 = vmatpush1.msra.mxu0 0.0
      %1103 = vmatprep.subr.mxu0 0.0
      %1104 = vmatpush1.msra.mxu0 0.0
      %1105 = vmatprep.subr.mxu0 0.0
      %1106 = vmatpush1.msra.mxu0 0.0
      %1107 = vmatprep.subr.mxu0 0.0
      %1108 = vmatpush1.msra.mxu0 0.0
      %1109 = vmatprep.subr.mxu0 0.0
      %1110 = vmatpush1.msra.mxu0 0.0
      %1111 = vmatprep.subr.mxu0 0.0
      %1112 = vmatpush1.msra.mxu0 0.0
      %1113 = vmatprep.subr.mxu0 0.0
      %1114 = vmatpush1.msra.mxu0 0.0
      %1115 = vmatprep.subr.mxu0 0.0
      %1116 = vmatpush1.msra.mxu0 0.0
      %1117 = vmatprep.subr.mxu0 0.0
      %1118 = vmatpush1.msra.mxu0 0.0
      %1119 = vmatprep.subr.mxu0 0.0
      %1120 = vmatpush1.msra.mxu0 0.0
      %1121 = vmatprep.subr.mxu0 0.0
      %1122 = vmatpush1.msra.mxu0 0.0
      %1123 = vmatprep.subr.mxu0 0.0
      %1124 = vmatpush1.msra.mxu0 0.0
      %1125 = vmatprep.subr.mxu0 0.0
      %1126 = vmatpush1.msra.mxu0 0.0
      %1127 = vmatprep.subr.mxu0 0.0
      %1128 = vmatpush1.msra.mxu0 0.0
      %1129 = vmatprep.subr.mxu0 0.0
      %1130 = vmatpush1.msra.mxu0 0.0
      %1131 = vmatprep.subr.mxu0 0.0
      %1132 = vmatpush1.msra.mxu0 0.0
      %1133 = vmatprep.subr.mxu0 0.0
      %1134 = vmatpush1.msra.mxu0 0.0
      %1135 = vmatprep.subr.mxu0 0.0
      %1136 = vmatpush1.msra.mxu0 0.0
      %1137 = vmatprep.subr.mxu0 0.0
      %1138 = vmatpush1.msra.mxu0 0.0
      %1139 = vmatprep.subr.mxu0 0.0
      %1140 = vmatpush1.msra.mxu0 0.0
      %1141 = vmatprep.subr.mxu0 0.0
      %1142 = vmatpush1.msra.mxu0 0.0
      %1143 = vmatprep.subr.mxu0 0.0
      %1144 = vmatpush1.msra.mxu0 0.0
      %1145 = vmatprep.subr.mxu0 0.0
      %1146 = vmatpush1.msra.mxu0 0.0
      %1147 = vmatprep.subr.mxu0 0.0
      %1148 = vmatpush1.msra.mxu0 0.0
      %1149 = vmatprep.subr.mxu0 0.0
      %1150 = vmatpush1.msra.mxu0 0.0
      %1151 = vmatprep.mubr.f32.mxu0 0.0
      %1152 = vmatmul.mubr.f32.gmra.mrb[0].mxu0 %v1085
      %v1153 = vpop.f32.mrb[0].mxu0
      %v1154 = vadd.f32 0.0, %v1153
      %v1155 = vpop.f32.mrb[0].mxu0
      %1156 = vdwg.mxu0
      %v1158 = vsel %vm739, %v1154, 0
      %1160 = vmatprep.subr.mxu0 0.0
      %1161 = vmatpush1.msra.mxu0 %v733
      %1162 = vmatprep.subr.mxu0 0.0
      %1163 = vmatpush1.msra.mxu0 %v734
      %1164 = vmatprep.subr.mxu0 0.0
      %1165 = vmatpush1.msra.mxu0 0.0
      %1166 = vmatprep.subr.mxu0 0.0
      %1167 = vmatpush1.msra.mxu0 0.0
      %1168 = vmatprep.subr.mxu0 0.0
      %1169 = vmatpush1.msra.mxu0 0.0
      %1170 = vmatprep.subr.mxu0 0.0
      %1171 = vmatpush1.msra.mxu0 0.0
      %1172 = vmatprep.subr.mxu0 0.0
      %1173 = vmatpush1.msra.mxu0 0.0
      %1174 = vmatprep.subr.mxu0 0.0
      %1175 = vmatpush1.msra.mxu0 0.0
      %1176 = vmatprep.subr.mxu0 0.0
      %1177 = vmatpush1.msra.mxu0 0.0
      %1178 = vmatprep.subr.mxu0 0.0
      %1179 = vmatpush1.msra.mxu0 0.0
      %1180 = vmatprep.subr.mxu0 0.0
      %1181 = vmatpush1.msra.mxu0 0.0
      %1182 = vmatprep.subr.mxu0 0.0
      %1183 = vmatpush1.msra.mxu0 0.0
      %1184 = vmatprep.subr.mxu0 0.0
      %1185 = vmatpush1.msra.mxu0 0.0
      %1186 = vmatprep.subr.mxu0 0.0
      %1187 = vmatpush1.msra.mxu0 0.0
      %1188 = vmatprep.subr.mxu0 0.0
      %1189 = vmatpush1.msra.mxu0 0.0
      %1190 = vmatprep.subr.mxu0 0.0
      %1191 = vmatpush1.msra.mxu0 0.0
      %1192 = vmatprep.subr.mxu0 0.0
      %1193 = vmatpush1.msra.mxu0 0.0
      %1194 = vmatprep.subr.mxu0 0.0
      %1195 = vmatpush1.msra.mxu0 0.0
      %1196 = vmatprep.subr.mxu0 0.0
      %1197 = vmatpush1.msra.mxu0 0.0
      %1198 = vmatprep.subr.mxu0 0.0
      %1199 = vmatpush1.msra.mxu0 0.0
      %1200 = vmatprep.subr.mxu0 0.0
      %1201 = vmatpush1.msra.mxu0 0.0
      %1202 = vmatprep.subr.mxu0 0.0
      %1203 = vmatpush1.msra.mxu0 0.0
      %1204 = vmatprep.subr.mxu0 0.0
      %1205 = vmatpush1.msra.mxu0 0.0
      %1206 = vmatprep.subr.mxu0 0.0
      %1207 = vmatpush1.msra.mxu0 0.0
      %1208 = vmatprep.subr.mxu0 0.0
      %1209 = vmatpush1.msra.mxu0 0.0
      %1210 = vmatprep.subr.mxu0 0.0
      %1211 = vmatpush1.msra.mxu0 0.0
      %1212 = vmatprep.subr.mxu0 0.0
      %1213 = vmatpush1.msra.mxu0 0.0
      %1214 = vmatprep.subr.mxu0 0.0
      %1215 = vmatpush1.msra.mxu0 0.0
      %1216 = vmatprep.subr.mxu0 0.0
      %1217 = vmatpush1.msra.mxu0 0.0
      %1218 = vmatprep.subr.mxu0 0.0
      %1219 = vmatpush1.msra.mxu0 0.0
      %1220 = vmatprep.subr.mxu0 0.0
      %1221 = vmatpush1.msra.mxu0 0.0
      %1222 = vmatprep.subr.mxu0 0.0
      %1223 = vmatpush1.msra.mxu0 0.0
      %1224 = vmatprep.mubr.f32.mxu0 0.0
      %1225 = vmatmul.mubr.f32.gmra.mrb[0].mxu0 %v1158
      %v1226 = vpop.f32.mrb[0].mxu0
      %v1227 = vadd.f32 0.0, %v1226
      %v1228 = vpop.f32.mrb[0].mxu0
      %1229 = vdwg.mxu0
      %v1230 = vadd.f32 %v989, %v1227
      %v1231 = vadd.f32 %v617, %v1230
      %v1232 = vld [vmem:[%s10] sm:$0x1]
      %v1233 = vld [vmem:[%s11] sm:$0x1]
      %v1234 = vsel %vm589, %v1231, 0.0
      %1235 = vadd.xlane.f32.xlu0 %v1234
      %v1236 = vpop.xlane.xlu0 %1235
      %v1237 = vmul.f32 %v1236, %v593
      %v1238 = vsub.f32 %v1231, %v1237
      %v1239 = vmul.f32 %v1238, %v1238
      %v1240 = vsel %vm589, %v1239, 0.0
      %1241 = vadd.xlane.f32.xlu0 %v1240
      %v1242 = vpop.xlane.xlu0 %1241
      %v1243 = vmul.f32 %v1242, %v593
      %v1244 = vadd.f32 %v1243, 1e-05
      %v1245 = vrsqrt.pop %v1244
      %v1246 = vmul.f32 %v1238, %v1245
      %v1248 = vlaneseq
      %v1249 = vshrl.u32 %v1248, 7
      %v1250 = vsub.s32 0, %v1249
      %v1251 = vrot.slane %v1232, %v1250
      %v1253 = vmul.f32 %v1246, %v1251
      %v1255 = vlaneseq
      %v1256 = vshrl.u32 %v1255, 7
      %v1257 = vsub.s32 0, %v1256
      %v1258 = vrot.slane %v1233, %v1257
      %v1260 = vadd.f32 %v1253, %v1258
      %v1261 = vld [vmem:[%s12] sm:$0xff]
      %v1262 = vld [vmem:[%s12 + $0x8] sm:$0xff]
      %v1263 = vld [vmem:[%s12 + $0x10] sm:$0xff]
      %v1264 = vld [vmem:[%s12 + $0x18] sm:$0xff]
      %v1265 = vld [vmem:[%s13] sm:$0x1]
      %v1267 = vlaneseq
      %v1268 = vshrl.u32 %v1267, 7
      %v1269 = vsub.s32 0, %v1268
      %v1270 = vrot.slane %v1265, %v1269
      %v1273 = vsel %vm589, %v1260, 0
      %1275 = vmatprep.subr.mxu0 0.0
      %1276 = vmatpush1.msra.mxu0 %v1261
      %1277 = vmatprep.subr.mxu0 0.0
      %1278 = vmatpush1.msra.mxu0 %v1262
      %1279 = vmatprep.subr.mxu0 0.0
      %1280 = vmatpush1.msra.mxu0 %v1263
      %1281 = vmatprep.subr.mxu0 0.0
      %1282 = vmatpush1.msra.mxu0 %v1264
      %1283 = vmatprep.subr.mxu0 0.0
      %1284 = vmatpush1.msra.mxu0 0.0
      %1285 = vmatprep.subr.mxu0 0.0
      %1286 = vmatpush1.msra.mxu0 0.0
      %1287 = vmatprep.subr.mxu0 0.0
      %1288 = vmatpush1.msra.mxu0 0.0
      %1289 = vmatprep.subr.mxu0 0.0
      %1290 = vmatpush1.msra.mxu0 0.0
      %1291 = vmatprep.subr.mxu0 0.0
      %1292 = vmatpush1.msra.mxu0 0.0
      %1293 = vmatprep.subr.mxu0 0.0
      %1294 = vmatpush1.msra.mxu0 0.0
      %1295 = vmatprep.subr.mxu0 0.0
      %1296 = vmatpush1.msra.mxu0 0.0
      %1297 = vmatprep.subr.mxu0 0.0
      %1298 = vmatpush1.msra.mxu0 0.0
      %1299 = vmatprep.subr.mxu0 0.0
      %1300 = vmatpush1.msra.mxu0 0.0
      %1301 = vmatprep.subr.mxu0 0.0
      %1302 = vmatpush1.msra.mxu0 0.0
      %1303 = vmatprep.subr.mxu0 0.0
      %1304 = vmatpush1.msra.mxu0 0.0
      %1305 = vmatprep.subr.mxu0 0.0
      %1306 = vmatpush1.msra.mxu0 0.0
      %1307 = vmatprep.subr.mxu0 0.0
      %1308 = vmatpush1.msra.mxu0 0.0
      %1309 = vmatprep.subr.mxu0 0.0
      %1310 = vmatpush1.msra.mxu0 0.0
      %1311 = vmatprep.subr.mxu0 0.0
      %1312 = vmatpush1.msra.mxu0 0.0
      %1313 = vmatprep.subr.mxu0 0.0
      %1314 = vmatpush1.msra.mxu0 0.0
      %1315 = vmatprep.subr.mxu0 0.0
      %1316 = vmatpush1.msra.mxu0 0.0
      %1317 = vmatprep.subr.mxu0 0.0
      %1318 = vmatpush1.msra.mxu0 0.0
      %1319 = vmatprep.subr.mxu0 0.0
      %1320 = vmatpush1.msra.mxu0 0.0
      %1321 = vmatprep.subr.mxu0 0.0
      %1322 = vmatpush1.msra.mxu0 0.0
      %1323 = vmatprep.subr.mxu0 0.0
      %1324 = vmatpush1.msra.mxu0 0.0
      %1325 = vmatprep.subr.mxu0 0.0
      %1326 = vmatpush1.msra.mxu0 0.0
      %1327 = vmatprep.subr.mxu0 0.0
      %1328 = vmatpush1.msra.mxu0 0.0
      %1329 = vmatprep.subr.mxu0 0.0
      %1330 = vmatpush1.msra.mxu0 0.0
      %1331 = vmatprep.subr.mxu0 0.0
      %1332 = vmatpush1.msra.mxu0 0.0
      %1333 = vmatprep.subr.mxu0 0.0
      %1334 = vmatpush1.msra.mxu0 0.0
      %1335 = vmatprep.subr.mxu0 0.0
      %1336 = vmatpush1.msra.mxu0 0.0
      %1337 = vmatprep.subr.mxu0 0.0
      %1338 = vmatpush1.msra.mxu0 0.0
      %1339 = vmatprep.mubr.f32.mxu0 0.0
      %1340 = vmatmul.mubr.f32.gmra.mrb[0].mxu0 %v1273
      %v1341 = vpop.f32.mrb[0].mxu0
      %v1342 = vadd.f32 %v1270, %v1341
      %v1343 = vpop.f32.mrb[0].mxu0
      %1344 = vdwg.mxu0
      %v1345 = vmul.f32 %v1342, %v1342
      %v1346 = vmul.f32 %v1342, %v1345
      %v1347 = vmul.f32 %v1346, 0.044715
      %v1348 = vadd.f32 %v1342, %v1347
      %v1349 = vmul.f32 %v1348, 0.7978846
      %v1350 = vtanh.pop %v1349
      %v1351 = vadd.f32 %v1350, 1.0
      %v1352 = vmul.f32 %v1351, 0.5
      %v1353 = vmul.f32 %v1342, %v1352
      %v1354 = vld [vmem:[%s14] sm:$0xff]
      %v1355 = vld [vmem:[%s14 + $0x8] sm:$0xff]
      %v1356 = vld [vmem:[%s14 + $0x10] sm:$0xff]
      %v1357 = vld [vmem:[%s14 + $0x18] sm:$0xff]
      %v1358 = vld [vmem:[%s14 + $0x20] sm:$0xff]
      %v1359 = vld [vmem:[%s14 + $0x28] sm:$0xff]
      %v1360 = vld [vmem:[%s14 + $0x30] sm:$0xff]
      %v1361 = vld [vmem:[%s14 + $0x38] sm:$0xff]
      %v1362 = vld [vmem:[%s14 + $0x40] sm:$0xff]
      %v1363 = vld [vmem:[%s14 + $0x48] sm:$0xff]
      %v1364 = vld [vmem:[%s14 + $0x50] sm:$0xff]
      %v1365 = vld [vmem:[%s14 + $0x58] sm:$0xff]
      %v1366 = vld [vmem:[%s14 + $0x60] sm:$0xff]
      %v1367 = vld [vmem:[%s14 + $0x68] sm:$0xff]
      %v1368 = vld [vmem:[%s14 + $0x70] sm:$0xff]
      %v1369 = vld [vmem:[%s14 + $0x78] sm:$0xff]
      %v1370 = vld [vmem:[%s15] sm:$0x1]
      %v1372 = vlaneseq
      %v1373 = vshrl.u32 %v1372, 7
      %v1374 = vsub.s32 0, %v1373
      %v1375 = vrot.slane %v1370, %v1374
      %1377 = vmatprep.subr.mxu0 0.0
      %1378 = vmatpush1.msra.mxu0 %v1354
      %1379 = vmatprep.subr.mxu0 0.0
      %1380 = vmatpush1.msra.mxu0 %v1355
      %1381 = vmatprep.subr.mxu0 0.0
      %1382 = vmatpush1.msra.mxu0 %v1356
      %1383 = vmatprep.subr.mxu0 0.0
      %1384 = vmatpush1.msra.mxu0 %v1357
      %1385 = vmatprep.subr.mxu0 0.0
      %1386 = vmatpush1.msra.mxu0 %v1358
      %1387 = vmatprep.subr.mxu0 0.0
      %1388 = vmatpush1.msra.mxu0 %v1359
      %1389 = vmatprep.subr.mxu0 0.0
      %1390 = vmatpush1.msra.mxu0 %v1360
      %1391 = vmatprep.subr.mxu0 0.0
      %1392 = vmatpush1.msra.mxu0 %v1361
      %1393 = vmatprep.subr.mxu0 0.0
      %1394 = vmatpush1.msra.mxu0 %v1362
      %1395 = vmatprep.subr.mxu0 0.0
      %1396 = vmatpush1.msra.mxu0 %v1363
      %1397 = vmatprep.subr.mxu0 0.0
      %1398 = vmatpush1.msra.mxu0 %v1364
      %1399 = vmatprep.subr.mxu0 0.0
      %1400 = vmatpush1.msra.mxu0 %v1365
      %1401 = vmatprep.subr.mxu0 0.0
      %1402 = vmatpush1.msra.mxu0 %v1366
      %1403 = vmatprep.subr.mxu0 0.0
      %1404 = vmatpush1.msra.mxu0 %v1367
      %1405 = vmatprep.subr.mxu0 0.0
      %1406 = vmatpush1.msra.mxu0 %v1368
      %1407 = vmatprep.subr.mxu0 0.0
      %1408 = vmatpush1.msra.mxu0 %v1369
      %1409 = vmatprep.subr.mxu0 0.0
      %1410 = vmatpush1.msra.mxu0 0.0
      %1411 = vmatprep.subr.mxu0 0.0
      %1412 = vmatpush1.msra.mxu0 0.0
      %1413 = vmatprep.subr.mxu0 0.0
      %1414 = vmatpush1.msra.mxu0 0.0
      %1415 = vmatprep.subr.mxu0 0.0
      %1416 = vmatpush1.msra.mxu0 0.0
      %1417 = vmatprep.subr.mxu0 0.0
      %1418 = vmatpush1.msra.mxu0 0.0
      %1419 = vmatprep.subr.mxu0 0.0
      %1420 = vmatpush1.msra.mxu0 0.0
      %1421 = vmatprep.subr.mxu0 0.0
      %1422 = vmatpush1.msra.mxu0 0.0
      %1423 = vmatprep.subr.mxu0 0.0
      %1424 = vmatpush1.msra.mxu0 0.0
      %1425 = vmatprep.subr.mxu0 0.0
      %1426 = vmatpush1.msra.mxu0 0.0
      %1427 = vmatprep.subr.mxu0 0.0
      %1428 = vmatpush1.msra.mxu0 0.0
      %1429 = vmatprep.subr.mxu0 0.0
      %1430 = vmatpush1.msra.mxu0 0.0
      %1431 = vmatprep.subr.mxu0 0.0
      %1432 = vmatpush1.msra.mxu0 0.0
      %1433 = vmatprep.subr.mxu0 0.0
      %1434 = vmatpush1.msra.mxu0 0.0
      %1435 = vmatprep.subr.mxu0 0.0
      %1436 = vmatpush1.msra.mxu0 0.0
      %1437 = vmatprep.subr.mxu0 0.0
      %1438 = vmatpush1.msra.mxu0 0.0
      %1439 = vmatprep.subr.mxu0 0.0
      %1440 = vmatpush1.msra.mxu0 0.0
      %1441 = vmatprep.mubr.f32.mxu0 0.0
      %1442 = vmatmul.mubr.f32.gmra.mrb[0].mxu0 %v1353
      %v1443 = vpop.f32.mrb[0].mxu0
      %v1444 = vadd.f32 %v1375, %v1443
      %v1445 = vpop.f32.mrb[0].mxu0
      %1446 = vdwg.mxu0
      %v1447 = vadd.f32 %v1231, %v1444
      %s1448 = scalar_lea.vmem %s4, 1
      %v1449 = vld [vmem:[%s1448] sm:$0x1]
      %s1450 = scalar_lea.vmem %s5, 1
      %v1451 = vld [vmem:[%s1450] sm:$0x1]
      %v1452 = vsel %vm589, %v1447, 0.0
      %1453 = vadd.xlane.f32.xlu0 %v1452
      %v1454 = vpop.xlane.xlu0 %1453
      %v1455 = vmul.f32 %v1454, %v593
      %v1456 = vsub.f32 %v1447, %v1455
      %v1457 = vmul.f32 %v1456, %v1456
      %v1458 = vsel %vm589, %v1457, 0.0
      %1459 = vadd.xlane.f32.xlu0 %v1458
      %v1460 = vpop.xlane.xlu0 %1459
      %v1461 = vmul.f32 %v1460, %v593
      %v1462 = vadd.f32 %v1461, 1e-05
      %v1463 = vrsqrt.pop %v1462
      %v1464 = vmul.f32 %v1456, %v1463
      %v1466 = vlaneseq
      %v1467 = vshrl.u32 %v1466, 7
      %v1468 = vsub.s32 0, %v1467
      %v1469 = vrot.slane %v1449, %v1468
      %v1471 = vmul.f32 %v1464, %v1469
      %v1473 = vlaneseq
      %v1474 = vshrl.u32 %v1473, 7
      %v1475 = vsub.s32 0, %v1474
      %v1476 = vrot.slane %v1451, %v1475
      %v1478 = vadd.f32 %v1471, %v1476
      %s1479 = scalar_lea.vmem %s6, 32
      %v1480 = vld [vmem:[%s1479] sm:$0xff]
      %v1481 = vld [vmem:[%s1479 + $0x8] sm:$0xff]
      %v1482 = vld [vmem:[%s1479 + $0x10] sm:$0xff]
      %v1483 = vld [vmem:[%s1479 + $0x18] sm:$0xff]
      %s1484 = scalar_lea.vmem %s7, 1
      %v1485 = vld [vmem:[%s1484] sm:$0x1]
      %v1487 = vlaneseq
      %v1488 = vshrl.u32 %v1487, 7
      %v1489 = vsub.s32 0, %v1488
      %v1490 = vrot.slane %v1485, %v1489
      %v1493 = vsel %vm589, %v1478, 0
      %1495 = vmatprep.subr.mxu0 0.0
      %1496 = vmatpush1.msra.mxu0 %v1480
      %1497 = vmatprep.subr.mxu0 0.0
      %1498 = vmatpush1.msra.mxu0 %v1481
      %1499 = vmatprep.subr.mxu0 0.0
      %1500 = vmatpush1.msra.mxu0 %v1482
      %1501 = vmatprep.subr.mxu0 0.0
      %1502 = vmatpush1.msra.mxu0 %v1483
      %1503 = vmatprep.subr.mxu0 0.0
      %1504 = vmatpush1.msra.mxu0 0.0
      %1505 = vmatprep.subr.mxu0 0.0
      %1506 = vmatpush1.msra.mxu0 0.0
      %1507 = vmatprep.subr.mxu0 0.0
      %1508 = vmatpush1.msra.mxu0 0.0
      %1509 = vmatprep.subr.mxu0 0.0
      %1510 = vmatpush1.msra.mxu0 0.0
      %1511 = vmatprep.subr.mxu0 0.0
      %1512 = vmatpush1.msra.mxu0 0.0
      %1513 = vmatprep.subr.mxu0 0.0
      %1514 = vmatpush1.msra.mxu0 0.0
      %1515 = vmatprep.subr.mxu0 0.0
      %1516 = vmatpush1.msra.mxu0 0.0
      %1517 = vmatprep.subr.mxu0 0.0
      %1518 = vmatpush1.msra.mxu0 0.0
      %1519 = vmatprep.subr.mxu0 0.0
      %1520 = vmatpush1.msra.mxu0 0.0
      %1521 = vmatprep.subr.mxu0 0.0
      %1522 = vmatpush1.msra.mxu0 0.0
      %1523 = vmatprep.subr.mxu0 0.0
      %1524 = vmatpush1.msra.mxu0 0.0
      %1525 = vmatprep.subr.mxu0 0.0
      %1526 = vmatpush1.msra.mxu0 0.0
      %1527 = vmatprep.subr.mxu0 0.0
      %1528 = vmatpush1.msra.mxu0 0.0
      %1529 = vmatprep.subr.mxu0 0.0
      %1530 = vmatpush1.msra.mxu0 0.0
      %1531 = vmatprep.subr.mxu0 0.0
      %1532 = vmatpush1.msra.mxu0 0.0
      %1533 = vmatprep.subr.mxu0 0.0
      %1534 = vmatpush1.msra.mxu0 0.0
      %1535 = vmatprep.subr.mxu0 0.0
      %1536 = vmatpush1.msra.mxu0 0.0
      %1537 = vmatprep.subr.mxu0 0.0
      %1538 = vmatpush1.msra.mxu0 0.0
      %1539 = vmatprep.subr.mxu0 0.0
      %1540 = vmatpush1.msra.mxu0 0.0
      %1541 = vmatprep.subr.mxu0 0.0
      %1542 = vmatpush1.msra.mxu0 0.0
      %1543 = vmatprep.subr.mxu0 0.0
      %1544 = vmatpush1.msra.mxu0 0.0
      %1545 = vmatprep.subr.mxu0 0.0
      %1546 = vmatpush1.msra.mxu0 0.0
      %1547 = vmatprep.subr.mxu0 0.0
      %1548 = vmatpush1.msra.mxu0 0.0
      %1549 = vmatprep.subr.mxu0 0.0
      %1550 = vmatpush1.msra.mxu0 0.0
      %1551 = vmatprep.subr.mxu0 0.0
      %1552 = vmatpush1.msra.mxu0 0.0
      %1553 = vmatprep.subr.mxu0 0.0
      %1554 = vmatpush1.msra.mxu0 0.0
      %1555 = vmatprep.subr.mxu0 0.0
      %1556 = vmatpush1.msra.mxu0 0.0
      %1557 = vmatprep.subr.mxu0 0.0
      %1558 = vmatpush1.msra.mxu0 0.0
      %1559 = vmatprep.mubr.f32.mxu0 0.0
      %1560 = vmatmul.mubr.f32.gmra.mrb[0].mxu0 %v1493
      %v1561 = vpop.f32.mrb[0].mxu0
      %v1562 = vadd.f32 %v1490, %v1561
      %v1563 = vpop.f32.mrb[0].mxu0
      %1564 = vdwg.mxu0
      %s1565 = scalar_lea.vmem %s8, 32
      %v1566 = vld [vmem:[%s1565] sm:$0xff]
      %v1567 = vld [vmem:[%s1565 + $0x8] sm:$0xff]
      %v1568 = vld [vmem:[%s1565 + $0x10] sm:$0xff]
      %v1569 = vld [vmem:[%s1565 + $0x18] sm:$0xff]
      %s1570 = scalar_lea.vmem %s9, 1
      %v1571 = vld [vmem:[%s1570] sm:$0x1]
      %1573 = vrot.lane.b32.xlu0 %v1562, 96
      %v1574 = vpop.permute.xlu0 %1573
      %v1575 = vsel %vm739, %v1562, 0
      %v1577 = vsel %vm739, %v1574, 0
      %1579 = vmatprep.subr.mxu0 0.0
      %1580 = vmatpush1.xpose.msra.mxu0 %v1577
      %1581 = vmatprep.subr.mxu0 0.0
      %1582 = vmatpush1.xpose.msra.mxu0 0.0
      %1583 = vmatprep.subr.mxu0 0.0
      %1584 = vmatpush1.xpose.msra.mxu0 0.0
      %1585 = vmatprep.subr.mxu0 0.0
      %1586 = vmatpush1.xpose.msra.mxu0 0.0
      %1587 = vmatprep.subr.mxu0 0.0
      %1588 = vmatpush1.xpose.msra.mxu0 0.0
      %1589 = vmatprep.subr.mxu0 0.0
      %1590 = vmatpush1.xpose.msra.mxu0 0.0
      %1591 = vmatprep.subr.mxu0 0.0
      %1592 = vmatpush1.xpose.msra.mxu0 0.0
      %1593 = vmatprep.subr.mxu0 0.0
      %1594 = vmatpush1.xpose.msra.mxu0 0.0
      %1595 = vmatprep.subr.mxu0 0.0
      %1596 = vmatpush1.xpose.msra.mxu0 0.0
      %1597 = vmatprep.subr.mxu0 0.0
      %1598 = vmatpush1.xpose.msra.mxu0 0.0
      %1599 = vmatprep.subr.mxu0 0.0
      %1600 = vmatpush1.xpose.msra.mxu0 0.0
      %1601 = vmatprep.subr.mxu0 0.0
      %1602 = vmatpush1.xpose.msra.mxu0 0.0
      %1603 = vmatprep.subr.mxu0 0.0
      %1604 = vmatpush1.xpose.msra.mxu0 0.0
      %1605 = vmatprep.subr.mxu0 0.0
      %1606 = vmatpush1.xpose.msra.mxu0 0.0
      %1607 = vmatprep.subr.mxu0 0.0
      %1608 = vmatpush1.xpose.msra.mxu0 0.0
      %1609 = vmatprep.subr.mxu0 0.0
      %1610 = vmatpush1.xpose.msra.mxu0 0.0
      %1611 = vmatprep.subr.mxu0 0.0
      %1612 = vmatpush1.xpose.msra.mxu0 0.0
      %1613 = vmatprep.subr.mxu0 0.0
      %1614 = vmatpush1.xpose.msra.mxu0 0.0
      %1615 = vmatprep.subr.mxu0 0.0
      %1616 = vmatpush1.xpose.msra.mxu0 0.0
      %1617 = vmatprep.subr.mxu0 0.0
      %1618 = vmatpush1.xpose.msra.mxu0 0.0
      %1619 = vmatprep.subr.mxu0 0.0
      %1620 = vmatpush1.xpose.msra.mxu0 0.0
      %1621 = vmatprep.subr.mxu0 0.0
      %1622 = vmatpush1.xpose.msra.mxu0 0.0
      %1623 = vmatprep.subr.mxu0 0.0
      %1624 = vmatpush1.xpose.msra.mxu0 0.0
      %1625 = vmatprep.subr.mxu0 0.0
      %1626 = vmatpush1.xpose.msra.mxu0 0.0
      %1627 = vmatprep.subr.mxu0 0.0
      %1628 = vmatpush1.xpose.msra.mxu0 0.0
      %1629 = vmatprep.subr.mxu0 0.0
      %1630 = vmatpush1.xpose.msra.mxu0 0.0
      %1631 = vmatprep.subr.mxu0 0.0
      %1632 = vmatpush1.xpose.msra.mxu0 0.0
      %1633 = vmatprep.subr.mxu0 0.0
      %1634 = vmatpush1.xpose.msra.mxu0 0.0
      %1635 = vmatprep.subr.mxu0 0.0
      %1636 = vmatpush1.xpose.msra.mxu0 0.0
      %1637 = vmatprep.subr.mxu0 0.0
      %1638 = vmatpush1.xpose.msra.mxu0 0.0
      %1639 = vmatprep.subr.mxu0 0.0
      %1640 = vmatpush1.xpose.msra.mxu0 0.0
      %1641 = vmatprep.subr.mxu0 0.0
      %1642 = vmatpush1.xpose.msra.mxu0 0.0
      %1643 = vmatprep.mubr.f32.mxu0 0.0
      %1644 = vmatmul.mubr.f32.gmra.mrb[0].mxu0 %v1575
      %v1645 = vpop.f32.mrb[0].mxu0
      %v1646 = vadd.f32 0.0, %v1645
      %v1647 = vpop.f32.mrb[0].mxu0
      %1648 = vdwg.mxu0
      %v1649 = vmul.f32 %v1646, 0.25
      %v1650 = vadd.f32 %v1649, %v819
      %v1651 = vsel %vm822, %v1650, -inf
      %1652 = vmax.xlane.f32.xlu0 %v1651
      %v1653 = vpop.xlane.xlu0 %1652
      %v1654 = vsub.f32 %v1650, %v1653
      %v1655 = vmul.f32 %v1654, 1.442695
      %v1656 = vpow.pop %v1655
      %v1657 = vsel %vm822, %v1656, 0.0
      %1658 = vadd.xlane.f32.xlu0 %v1657
      %v1659 = vpop.xlane.xlu0 %1658
      %v1660 = vrcp.pop %v1659
      %v1661 = vmul.f32 %v1656, %v1660
      %1662 = vrot.lane.b32.xlu0 %v1562, 64
      %v1663 = vpop.permute.xlu0 %1662
      %v1666 = vsel %vm822, %v1661, 0
      %1668 = vmatprep.subr.mxu0 0.0
      %1669 = vmatpush1.msra.mxu0 %v1663
      %1670 = vmatprep.subr.mxu0 0.0
      %1671 = vmatpush1.msra.mxu0 0.0
      %1672 = vmatprep.subr.mxu0 0.0
      %1673 = vmatpush1.msra.mxu0 0.0
      %1674 = vmatprep.subr.mxu0 0.0
      %1675 = vmatpush1.msra.mxu0 0.0
      %1676 = vmatprep.subr.mxu0 0.0
      %1677 = vmatpush1.msra.mxu0 0.0
      %1678 = vmatprep.subr.mxu0 0.0
      %1679 = vmatpush1.msra.mxu0 0.0
      %1680 = vmatprep.subr.mxu0 0.0
      %1681 = vmatpush1.msra.mxu0 0.0
      %1682 = vmatprep.subr.mxu0 0.0
      %1683 = vmatpush1.msra.mxu0 0.0
      %1684 = vmatprep.subr.mxu0 0.0
      %1685 = vmatpush1.msra.mxu0 0.0
      %1686 = vmatprep.subr.mxu0 0.0
      %1687 = vmatpush1.msra.mxu0 0.0
      %1688 = vmatprep.subr.mxu0 0.0
      %1689 = vmatpush1.msra.mxu0 0.0
      %1690 = vmatprep.subr.mxu0 0.0
      %1691 = vmatpush1.msra.mxu0 0.0
      %1692 = vmatprep.subr.mxu0 0.0
      %1693 = vmatpush1.msra.mxu0 0.0
      %1694 = vmatprep.subr.mxu0 0.0
      %1695 = vmatpush1.msra.mxu0 0.0
      %1696 = vmatprep.subr.mxu0 0.0
      %1697 = vmatpush1.msra.mxu0 0.0
      %1698 = vmatprep.subr.mxu0 0.0
      %1699 = vmatpush1.msra.mxu0 0.0
      %1700 = vmatprep.subr.mxu0 0.0
      %1701 = vmatpush1.msra.mxu0 0.0
      %1702 = vmatprep.subr.mxu0 0.0
      %1703 = vmatpush1.msra.mxu0 0.0
      %1704 = vmatprep.subr.mxu0 0.0
      %1705 = vmatpush1.msra.mxu0 0.0
      %1706 = vmatprep.subr.mxu0 0.0
      %1707 = vmatpush1.msra.mxu0 0.0
      %1708 = vmatprep.subr.mxu0 0.0
      %1709 = vmatpush1.msra.mxu0 0.0
      %1710 = vmatprep.subr.mxu0 0.0
      %1711 = vmatpush1.msra.mxu0 0.0
      %1712 = vmatprep.subr.mxu0 0.0
      %1713 = vmatpush1.msra.mxu0 0.0
      %1714 = vmatprep.subr.mxu0 0.0
      %1715 = vmatpush1.msra.mxu0 0.0
      %1716 = vmatprep.subr.mxu0 0.0
      %1717 = vmatpush1.msra.mxu0 0.0
      %1718 = vmatprep.subr.mxu0 0.0
      %1719 = vmatpush1.msra.mxu0 0.0
      %1720 = vmatprep.subr.mxu0 0.0
      %1721 = vmatpush1.msra.mxu0 0.0
      %1722 = vmatprep.subr.mxu0 0.0
      %1723 = vmatpush1.msra.mxu0 0.0
      %1724 = vmatprep.subr.mxu0 0.0
      %1725 = vmatpush1.msra.mxu0 0.0
      %1726 = vmatprep.subr.mxu0 0.0
      %1727 = vmatpush1.msra.mxu0 0.0
      %1728 = vmatprep.subr.mxu0 0.0
      %1729 = vmatpush1.msra.mxu0 0.0
      %1730 = vmatprep.subr.mxu0 0.0
      %1731 = vmatpush1.msra.mxu0 0.0
      %1732 = vmatprep.mubr.f32.mxu0 0.0
      %1733 = vmatmul.mubr.f32.gmra.mrb[0].mxu0 %v1666
      %v1734 = vpop.f32.mrb[0].mxu0
      %v1735 = vadd.f32 0.0, %v1734
      %v1736 = vpop.f32.mrb[0].mxu0
      %1737 = vdwg.mxu0
      %v1739 = vsel %vm739, %v1735, 0
      %1741 = vmatprep.subr.mxu0 0.0
      %1742 = vmatpush1.msra.mxu0 %v1566
      %1743 = vmatprep.subr.mxu0 0.0
      %1744 = vmatpush1.msra.mxu0 %v1567
      %1745 = vmatprep.subr.mxu0 0.0
      %1746 = vmatpush1.msra.mxu0 0.0
      %1747 = vmatprep.subr.mxu0 0.0
      %1748 = vmatpush1.msra.mxu0 0.0
      %1749 = vmatprep.subr.mxu0 0.0
      %1750 = vmatpush1.msra.mxu0 0.0
      %1751 = vmatprep.subr.mxu0 0.0
      %1752 = vmatpush1.msra.mxu0 0.0
      %1753 = vmatprep.subr.mxu0 0.0
      %1754 = vmatpush1.msra.mxu0 0.0
      %1755 = vmatprep.subr.mxu0 0.0
      %1756 = vmatpush1.msra.mxu0 0.0
      %1757 = vmatprep.subr.mxu0 0.0
      %1758 = vmatpush1.msra.mxu0 0.0
      %1759 = vmatprep.subr.mxu0 0.0
      %1760 = vmatpush1.msra.mxu0 0.0
      %1761 = vmatprep.subr.mxu0 0.0
      %1762 = vmatpush1.msra.mxu0 0.0
      %1763 = vmatprep.subr.mxu0 0.0
      %1764 = vmatpush1.msra.mxu0 0.0
      %1765 = vmatprep.subr.mxu0 0.0
      %1766 = vmatpush1.msra.mxu0 0.0
      %1767 = vmatprep.subr.mxu0 0.0
      %1768 = vmatpush1.msra.mxu0 0.0
      %1769 = vmatprep.subr.mxu0 0.0
      %1770 = vmatpush1.msra.mxu0 0.0
      %1771 = vmatprep.subr.mxu0 0.0
      %1772 = vmatpush1.msra.mxu0 0.0
      %1773 = vmatprep.subr.mxu0 0.0
      %1774 = vmatpush1.msra.mxu0 0.0
      %1775 = vmatprep.subr.mxu0 0.0
      %1776 = vmatpush1.msra.mxu0 0.0
      %1777 = vmatprep.subr.mxu0 0.0
      %1778 = vmatpush1.msra.mxu0 0.0
      %1779 = vmatprep.subr.mxu0 0.0
      %1780 = vmatpush1.msra.mxu0 0.0
      %1781 = vmatprep.subr.mxu0 0.0
      %1782 = vmatpush1.msra.mxu0 0.0
      %1783 = vmatprep.subr.mxu0 0.0
      %1784 = vmatpush1.msra.mxu0 0.0
      %1785 = vmatprep.subr.mxu0 0.0
      %1786 = vmatpush1.msra.mxu0 0.0
      %1787 = vmatprep.subr.mxu0 0.0
      %1788 = vmatpush1.msra.mxu0 0.0
      %1789 = vmatprep.subr.mxu0 0.0
      %1790 = vmatpush1.msra.mxu0 0.0
      %1791 = vmatprep.subr.mxu0 0.0
      %1792 = vmatpush1.msra.mxu0 0.0
      %1793 = vmatprep.subr.mxu0 0.0
      %1794 = vmatpush1.msra.mxu0 0.0
      %1795 = vmatprep.subr.mxu0 0.0
      %1796 = vmatpush1.msra.mxu0 0.0
      %1797 = vmatprep.subr.mxu0 0.0
      %1798 = vmatpush1.msra.mxu0 0.0
      %1799 = vmatprep.subr.mxu0 0.0
      %1800 = vmatpush1.msra.mxu0 0.0
      %1801 = vmatprep.subr.mxu0 0.0
      %1802 = vmatpush1.msra.mxu0 0.0
      %1803 = vmatprep.subr.mxu0 0.0
      %1804 = vmatpush1.msra.mxu0 0.0
      %1805 = vmatprep.mubr.f32.mxu0 0.0
      %1806 = vmatmul.mubr.f32.gmra.mrb[0].mxu0 %v1739
      %v1807 = vpop.f32.mrb[0].mxu0
      %v1808 = vadd.f32 0.0, %v1807
      %v1809 = vpop.f32.mrb[0].mxu0
      %1810 = vdwg.mxu0
      %v1812 = vlaneseq
      %v1813 = vshrl.u32 %v1812, 7
      %v1814 = vsub.s32 0, %v1813
      %v1815 = vrot.slane %v1571, %v1814
      %v1817 = vadd.f32 %v1815, %v1808
      %1818 = vrot.lane.b32.xlu0 %v1562, 112
      %v1819 = vpop.permute.xlu0 %1818
      %1820 = vrot.lane.b32.xlu0 %v1562, 80
      %v1821 = vpop.permute.xlu0 %1820
      %v1822 = vsel %vm739, %v1819, 0
      %v1824 = vsel %vm739, %v1821, 0
      %1826 = vmatprep.subr.mxu0 0.0
      %1827 = vmatpush1.xpose.msra.mxu0 %v1824
      %1828 = vmatprep.subr.mxu0 0.0
      %1829 = vmatpush1.xpose.msra.mxu0 0.0
      %1830 = vmatprep.subr.mxu0 0.0
      %1831 = vmatpush1.xpose.msra.mxu0 0.0
      %1832 = vmatprep.subr.mxu0 0.0
      %1833 = vmatpush1.xpose.msra.mxu0 0.0
      %1834 = vmatprep.subr.mxu0 0.0
      %1835 = vmatpush1.xpose.msra.mxu0 0.0
      %1836 = vmatprep.subr.mxu0 0.0
      %1837 = vmatpush1.xpose.msra.mxu0 0.0
      %1838 = vmatprep.subr.mxu0 0.0
      %1839 = vmatpush1.xpose.msra.mxu0 0.0
      %1840 = vmatprep.subr.mxu0 0.0
      %1841 = vmatpush1.xpose.msra.mxu0 0.0
      %1842 = vmatprep.subr.mxu0 0.0
      %1843 = vmatpush1.xpose.msra.mxu0 0.0
      %1844 = vmatprep.subr.mxu0 0.0
      %1845 = vmatpush1.xpose.msra.mxu0 0.0
      %1846 = vmatprep.subr.mxu0 0.0
      %1847 = vmatpush1.xpose.msra.mxu0 0.0
      %1848 = vmatprep.subr.mxu0 0.0
      %1849 = vmatpush1.xpose.msra.mxu0 0.0
      %1850 = vmatprep.subr.mxu0 0.0
      %1851 = vmatpush1.xpose.msra.mxu0 0.0
      %1852 = vmatprep.subr.mxu0 0.0
      %1853 = vmatpush1.xpose.msra.mxu0 0.0
      %1854 = vmatprep.subr.mxu0 0.0
      %1855 = vmatpush1.xpose.msra.mxu0 0.0
      %1856 = vmatprep.subr.mxu0 0.0
      %1857 = vmatpush1.xpose.msra.mxu0 0.0
      %1858 = vmatprep.subr.mxu0 0.0
      %1859 = vmatpush1.xpose.msra.mxu0 0.0
      %1860 = vmatprep.subr.mxu0 0.0
      %1861 = vmatpush1.xpose.msra.mxu0 0.0
      %1862 = vmatprep.subr.mxu0 0.0
      %1863 = vmatpush1.xpose.msra.mxu0 0.0
      %1864 = vmatprep.subr.mxu0 0.0
      %1865 = vmatpush1.xpose.msra.mxu0 0.0
      %1866 = vmatprep.subr.mxu0 0.0
      %1867 = vmatpush1.xpose.msra.mxu0 0.0
      %1868 = vmatprep.subr.mxu0 0.0
      %1869 = vmatpush1.xpose.msra.mxu0 0.0
      %1870 = vmatprep.subr.mxu0 0.0
      %1871 = vmatpush1.xpose.msra.mxu0 0.0
      %1872 = vmatprep.subr.mxu0 0.0
      %1873 = vmatpush1.xpose.msra.mxu0 0.0
      %1874 = vmatprep.subr.mxu0 0.0
      %1875 = vmatpush1.xpose.msra.mxu0 0.0
      %1876 = vmatprep.subr.mxu0 0.0
      %1877 = vmatpush1.xpose.msra.mxu0 0.0
      %1878 = vmatprep.subr.mxu0 0.0
      %1879 = vmatpush1.xpose.msra.mxu0 0.0
      %1880 = vmatprep.subr.mxu0 0.0
      %1881 = vmatpush1.xpose.msra.mxu0 0.0
      %1882 = vmatprep.subr.mxu0 0.0
      %1883 = vmatpush1.xpose.msra.mxu0 0.0
      %1884 = vmatprep.subr.mxu0 0.0
      %1885 = vmatpush1.xpose.msra.mxu0 0.0
      %1886 = vmatprep.subr.mxu0 0.0
      %1887 = vmatpush1.xpose.msra.mxu0 0.0
      %1888 = vmatprep.subr.mxu0 0.0
      %1889 = vmatpush1.xpose.msra.mxu0 0.0
      %1890 = vmatprep.mubr.f32.mxu0 0.0
      %1891 = vmatmul.mubr.f32.gmra.mrb[0].mxu0 %v1822
      %v1892 = vpop.f32.mrb[0].mxu0
      %v1893 = vadd.f32 0.0, %v1892
      %v1894 = vpop.f32.mrb[0].mxu0
      %1895 = vdwg.mxu0
      %v1896 = vmul.f32 %v1893, 0.25
      %v1897 = vadd.f32 %v1896, %v819
      %v1898 = vsel %vm822, %v1897, -inf
      %1899 = vmax.xlane.f32.xlu0 %v1898
      %v1900 = vpop.xlane.xlu0 %1899
      %v1901 = vsub.f32 %v1897, %v1900
      %v1902 = vmul.f32 %v1901, 1.442695
      %v1903 = vpow.pop %v1902
      %v1904 = vsel %vm822, %v1903, 0.0
      %1905 = vadd.xlane.f32.xlu0 %v1904
      %v1906 = vpop.xlane.xlu0 %1905
      %v1907 = vrcp.pop %v1906
      %v1908 = vmul.f32 %v1903, %v1907
      %1909 = vrot.lane.b32.xlu0 %v1562, 48
      %v1910 = vpop.permute.xlu0 %1909
      %v1913 = vsel %vm822, %v1908, 0
      %1915 = vmatprep.subr.mxu0 0.0
      %1916 = vmatpush1.msra.mxu0 %v1910
      %1917 = vmatprep.subr.mxu0 0.0
      %1918 = vmatpush1.msra.mxu0 0.0
      %1919 = vmatprep.subr.mxu0 0.0
      %1920 = vmatpush1.msra.mxu0 0.0
      %1921 = vmatprep.subr.mxu0 0.0
      %1922 = vmatpush1.msra.mxu0 0.0
      %1923 = vmatprep.subr.mxu0 0.0
      %1924 = vmatpush1.msra.mxu0 0.0
      %1925 = vmatprep.subr.mxu0 0.0
      %1926 = vmatpush1.msra.mxu0 0.0
      %1927 = vmatprep.subr.mxu0 0.0
      %1928 = vmatpush1.msra.mxu0 0.0
      %1929 = vmatprep.subr.mxu0 0.0
      %1930 = vmatpush1.msra.mxu0 0.0
      %1931 = vmatprep.subr.mxu0 0.0
      %1932 = vmatpush1.msra.mxu0 0.0
      %1933 = vmatprep.subr.mxu0 0.0
      %1934 = vmatpush1.msra.mxu0 0.0
      %1935 = vmatprep.subr.mxu0 0.0
      %1936 = vmatpush1.msra.mxu0 0.0
      %1937 = vmatprep.subr.mxu0 0.0
      %1938 = vmatpush1.msra.mxu0 0.0
      %1939 = vmatprep.subr.mxu0 0.0
      %1940 = vmatpush1.msra.mxu0 0.0
      %1941 = vmatprep.subr.mxu0 0.0
      %1942 = vmatpush1.msra.mxu0 0.0
      %1943 = vmatprep.subr.mxu0 0.0
      %1944 = vmatpush1.msra.mxu0 0.0
      %1945 = vmatprep.subr.mxu0 0.0
      %1946 = vmatpush1.msra.mxu0 0.0
      %1947 = vmatprep.subr.mxu0 0.0
      %1948 = vmatpush1.msra.mxu0 0.0
      %1949 = vmatprep.subr.mxu0 0.0
      %1950 = vmatpush1.msra.mxu0 0.0
      %1951 = vmatprep.subr.mxu0 0.0
      %1952 = vmatpush1.msra.mxu0 0.0
      %1953 = vmatprep.subr.mxu0 0.0
      %1954 = vmatpush1.msra.mxu0 0.0
      %1955 = vmatprep.subr.mxu0 0.0
      %1956 = vmatpush1.msra.mxu0 0.0
      %1957 = vmatprep.subr.mxu0 0.0
      %1958 = vmatpush1.msra.mxu0 0.0
      %1959 = vmatprep.subr.mxu0 0.0
      %1960 = vmatpush1.msra.mxu0 0.0
      %1961 = vmatprep.subr.mxu0 0.0
      %1962 = vmatpush1.msra.mxu0 0.0
      %1963 = vmatprep.subr.mxu0 0.0
      %1964 = vmatpush1.msra.mxu0 0.0
      %1965 = vmatprep.subr.mxu0 0.0
      %1966 = vmatpush1.msra.mxu0 0.0
      %1967 = vmatprep.subr.mxu0 0.0
      %1968 = vmatpush1.msra.mxu0 0.0
      %1969 = vmatprep.subr.mxu0 0.0
      %1970 = vmatpush1.msra.mxu0 0.0
      %1971 = vmatprep.subr.mxu0 0.0
      %1972 = vmatpush1.msra.mxu0 0.0
      %1973 = vmatprep.subr.mxu0 0.0
      %1974 = vmatpush1.msra.mxu0 0.0
      %1975 = vmatprep.subr.mxu0 0.0
      %1976 = vmatpush1.msra.mxu0 0.0
      %1977 = vmatprep.subr.mxu0 0.0
      %1978 = vmatpush1.msra.mxu0 0.0
      %1979 = vmatprep.mubr.f32.mxu0 0.0
      %1980 = vmatmul.mubr.f32.gmra.mrb[0].mxu0 %v1913
      %v1981 = vpop.f32.mrb[0].mxu0
      %v1982 = vadd.f32 0.0, %v1981
      %v1983 = vpop.f32.mrb[0].mxu0
      %1984 = vdwg.mxu0
      %v1986 = vsel %vm739, %v1982, 0
      %1988 = vmatprep.subr.mxu0 0.0
      %1989 = vmatpush1.msra.mxu0 %v1568
      %1990 = vmatprep.subr.mxu0 0.0
      %1991 = vmatpush1.msra.mxu0 %v1569
      %1992 = vmatprep.subr.mxu0 0.0
      %1993 = vmatpush1.msra.mxu0 0.0
      %1994 = vmatprep.subr.mxu0 0.0
      %1995 = vmatpush1.msra.mxu0 0.0
      %1996 = vmatprep.subr.mxu0 0.0
      %1997 = vmatpush1.msra.mxu0 0.0
      %1998 = vmatprep.subr.mxu0 0.0
      %1999 = vmatpush1.msra.mxu0 0.0
      %2000 = vmatprep.subr.mxu0 0.0
      %2001 = vmatpush1.msra.mxu0 0.0
      %2002 = vmatprep.subr.mxu0 0.0
      %2003 = vmatpush1.msra.mxu0 0.0
      %2004 = vmatprep.subr.mxu0 0.0
      %2005 = vmatpush1.msra.mxu0 0.0
      %2006 = vmatprep.subr.mxu0 0.0
      %2007 = vmatpush1.msra.mxu0 0.0
      %2008 = vmatprep.subr.mxu0 0.0
      %2009 = vmatpush1.msra.mxu0 0.0
      %2010 = vmatprep.subr.mxu0 0.0
      %2011 = vmatpush1.msra.mxu0 0.0
      %2012 = vmatprep.subr.mxu0 0.0
      %2013 = vmatpush1.msra.mxu0 0.0
      %2014 = vmatprep.subr.mxu0 0.0
      %2015 = vmatpush1.msra.mxu0 0.0
      %2016 = vmatprep.subr.mxu0 0.0
      %2017 = vmatpush1.msra.mxu0 0.0
      %2018 = vmatprep.subr.mxu0 0.0
      %2019 = vmatpush1.msra.mxu0 0.0
      %2020 = vmatprep.subr.mxu0 0.0
      %2021 = vmatpush1.msra.mxu0 0.0
      %2022 = vmatprep.subr.mxu0 0.0
      %2023 = vmatpush1.msra.mxu0 0.0
      %2024 = vmatprep.subr.mxu0 0.0
      %2025 = vmatpush1.msra.mxu0 0.0
      %2026 = vmatprep.subr.mxu0 0.0
      %2027 = vmatpush1.msra.mxu0 0.0
      %2028 = vmatprep.subr.mxu0 0.0
      %2029 = vmatpush1.msra.mxu0 0.0
      %2030 = vmatprep.subr.mxu0 0.0
      %2031 = vmatpush1.msra.mxu0 0.0
      %2032 = vmatprep.subr.mxu0 0.0
      %2033 = vmatpush1.msra.mxu0 0.0
      %2034 = vmatprep.subr.mxu0 0.0
      %2035 = vmatpush1.msra.mxu0 0.0
      %2036 = vmatprep.subr.mxu0 0.0
      %2037 = vmatpush1.msra.mxu0 0.0
      %2038 = vmatprep.subr.mxu0 0.0
      %2039 = vmatpush1.msra.mxu0 0.0
      %2040 = vmatprep.subr.mxu0 0.0
      %2041 = vmatpush1.msra.mxu0 0.0
      %2042 = vmatprep.subr.mxu0 0.0
      %2043 = vmatpush1.msra.mxu0 0.0
      %2044 = vmatprep.subr.mxu0 0.0
      %2045 = vmatpush1.msra.mxu0 0.0
      %2046 = vmatprep.subr.mxu0 0.0
      %2047 = vmatpush1.msra.mxu0 0.0
      %2048 = vmatprep.subr.mxu0 0.0
      %2049 = vmatpush1.msra.mxu0 0.0
      %2050 = vmatprep.subr.mxu0 0.0
      %2051 = vmatpush1.msra.mxu0 0.0
      %2052 = vmatprep.mubr.f32.mxu0 0.0
      %2053 = vmatmul.mubr.f32.gmra.mrb[0].mxu0 %v1986
      %v2054 = vpop.f32.mrb[0].mxu0
      %v2055 = vadd.f32 0.0, %v2054
      %v2056 = vpop.f32.mrb[0].mxu0
      %2057 = vdwg.mxu0
      %v2058 = vadd.f32 %v1817, %v2055
      %v2059 = vadd.f32 %v1447, %v2058
      %s2060 = scalar_lea.vmem %s10, 1
      %v2061 = vld [vmem:[%s2060] sm:$0x1]
      %s2062 = scalar_lea.vmem %s11, 1
      %v2063 = vld [vmem:[%s2062] sm:$0x1]
      %v2064 = vsel %vm589, %v2059, 0.0
      %2065 = vadd.xlane.f32.xlu0 %v2064
      %v2066 = vpop.xlane.xlu0 %2065
      %v2067 = vmul.f32 %v2066, %v593
      %v2068 = vsub.f32 %v2059, %v2067
      %v2069 = vmul.f32 %v2068, %v2068
      %v2070 = vsel %vm589, %v2069, 0.0
      %2071 = vadd.xlane.f32.xlu0 %v2070
      %v2072 = vpop.xlane.xlu0 %2071
      %v2073 = vmul.f32 %v2072, %v593
      %v2074 = vadd.f32 %v2073, 1e-05
      %v2075 = vrsqrt.pop %v2074
      %v2076 = vmul.f32 %v2068, %v2075
      %v2078 = vlaneseq
      %v2079 = vshrl.u32 %v2078, 7
      %v2080 = vsub.s32 0, %v2079
      %v2081 = vrot.slane %v2061, %v2080
      %v2083 = vmul.f32 %v2076, %v2081
      %v2085 = vlaneseq
      %v2086 = vshrl.u32 %v2085, 7
      %v2087 = vsub.s32 0, %v2086
      %v2088 = vrot.slane %v2063, %v2087
      %v2090 = vadd.f32 %v2083, %v2088
      %s2091 = scalar_lea.vmem %s12, 32
      %v2092 = vld [vmem:[%s2091] sm:$0xff]
      %v2093 = vld [vmem:[%s2091 + $0x8] sm:$0xff]
      %v2094 = vld [vmem:[%s2091 + $0x10] sm:$0xff]
      %v2095 = vld [vmem:[%s2091 + $0x18] sm:$0xff]
      %s2096 = scalar_lea.vmem %s13, 1
      %v2097 = vld [vmem:[%s2096] sm:$0x1]
      %v2099 = vlaneseq
      %v2100 = vshrl.u32 %v2099, 7
      %v2101 = vsub.s32 0, %v2100
      %v2102 = vrot.slane %v2097, %v2101
      %v2105 = vsel %vm589, %v2090, 0
      %2107 = vmatprep.subr.mxu0 0.0
      %2108 = vmatpush1.msra.mxu0 %v2092
      %2109 = vmatprep.subr.mxu0 0.0
      %2110 = vmatpush1.msra.mxu0 %v2093
      %2111 = vmatprep.subr.mxu0 0.0
      %2112 = vmatpush1.msra.mxu0 %v2094
      %2113 = vmatprep.subr.mxu0 0.0
      %2114 = vmatpush1.msra.mxu0 %v2095
      %2115 = vmatprep.subr.mxu0 0.0
      %2116 = vmatpush1.msra.mxu0 0.0
      %2117 = vmatprep.subr.mxu0 0.0
      %2118 = vmatpush1.msra.mxu0 0.0
      %2119 = vmatprep.subr.mxu0 0.0
      %2120 = vmatpush1.msra.mxu0 0.0
      %2121 = vmatprep.subr.mxu0 0.0
      %2122 = vmatpush1.msra.mxu0 0.0
      %2123 = vmatprep.subr.mxu0 0.0
      %2124 = vmatpush1.msra.mxu0 0.0
      %2125 = vmatprep.subr.mxu0 0.0
      %2126 = vmatpush1.msra.mxu0 0.0
      %2127 = vmatprep.subr.mxu0 0.0
      %2128 = vmatpush1.msra.mxu0 0.0
      %2129 = vmatprep.subr.mxu0 0.0
      %2130 = vmatpush1.msra.mxu0 0.0
      %2131 = vmatprep.subr.mxu0 0.0
      %2132 = vmatpush1.msra.mxu0 0.0
      %2133 = vmatprep.subr.mxu0 0.0
      %2134 = vmatpush1.msra.mxu0 0.0
      %2135 = vmatprep.subr.mxu0 0.0
      %2136 = vmatpush1.msra.mxu0 0.0
      %2137 = vmatprep.subr.mxu0 0.0
      %2138 = vmatpush1.msra.mxu0 0.0
      %2139 = vmatprep.subr.mxu0 0.0
      %2140 = vmatpush1.msra.mxu0 0.0
      %2141 = vmatprep.subr.mxu0 0.0
      %2142 = vmatpush1.msra.mxu0 0.0
      %2143 = vmatprep.subr.mxu0 0.0
      %2144 = vmatpush1.msra.mxu0 0.0
      %2145 = vmatprep.subr.mxu0 0.0
      %2146 = vmatpush1.msra.mxu0 0.0
      %2147 = vmatprep.subr.mxu0 0.0
      %2148 = vmatpush1.msra.mxu0 0.0
      %2149 = vmatprep.subr.mxu0 0.0
      %2150 = vmatpush1.msra.mxu0 0.0
      %2151 = vmatprep.subr.mxu0 0.0
      %2152 = vmatpush1.msra.mxu0 0.0
      %2153 = vmatprep.subr.mxu0 0.0
      %2154 = vmatpush1.msra.mxu0 0.0
      %2155 = vmatprep.subr.mxu0 0.0
      %2156 = vmatpush1.msra.mxu0 0.0
      %2157 = vmatprep.subr.mxu0 0.0
      %2158 = vmatpush1.msra.mxu0 0.0
      %2159 = vmatprep.subr.mxu0 0.0
      %2160 = vmatpush1.msra.mxu0 0.0
      %2161 = vmatprep.subr.mxu0 0.0
      %2162 = vmatpush1.msra.mxu0 0.0
      %2163 = vmatprep.subr.mxu0 0.0
      %2164 = vmatpush1.msra.mxu0 0.0
      %2165 = vmatprep.subr.mxu0 0.0
      %2166 = vmatpush1.msra.mxu0 0.0
      %2167 = vmatprep.subr.mxu0 0.0
      %2168 = vmatpush1.msra.mxu0 0.0
      %2169 = vmatprep.subr.mxu0 0.0
      %2170 = vmatpush1.msra.mxu0 0.0
      %2171 = vmatprep.mubr.f32.mxu0 0.0
      %2172 = vmatmul.mubr.f32.gmra.mrb[0].mxu0 %v2105
      %v2173 = vpop.f32.mrb[0].mxu0
      %v2174 = vadd.f32 %v2102, %v2173
      %v2175 = vpop.f32.mrb[0].mxu0
      %2176 = vdwg.mxu0
      %v2177 = vmul.f32 %v2174, %v2174
      %v2178 = vmul.f32 %v2174, %v2177
      %v2179 = vmul.f32 %v2178, 0.044715
      %v2180 = vadd.f32 %v2174, %v2179
      %v2181 = vmul.f32 %v2180, 0.7978846
      %v2182 = vtanh.pop %v2181
      %v2183 = vadd.f32 %v2182, 1.0
      %v2184 = vmul.f32 %v2183, 0.5
      %v2185 = vmul.f32 %v2174, %v2184
      %s2186 = scalar_lea.vmem %s14, 128
      %v2187 = vld [vmem:[%s2186] sm:$0xff]
      %v2188 = vld [vmem:[%s2186 + $0x8] sm:$0xff]
      %v2189 = vld [vmem:[%s2186 + $0x10] sm:$0xff]
      %v2190 = vld [vmem:[%s2186 + $0x18] sm:$0xff]
      %v2191 = vld [vmem:[%s2186 + $0x20] sm:$0xff]
      %v2192 = vld [vmem:[%s2186 + $0x28] sm:$0xff]
      %v2193 = vld [vmem:[%s2186 + $0x30] sm:$0xff]
      %v2194 = vld [vmem:[%s2186 + $0x38] sm:$0xff]
      %v2195 = vld [vmem:[%s2186 + $0x40] sm:$0xff]
      %v2196 = vld [vmem:[%s2186 + $0x48] sm:$0xff]
      %v2197 = vld [vmem:[%s2186 + $0x50] sm:$0xff]
      %v2198 = vld [vmem:[%s2186 + $0x58] sm:$0xff]
      %v2199 = vld [vmem:[%s2186 + $0x60] sm:$0xff]
      %v2200 = vld [vmem:[%s2186 + $0x68] sm:$0xff]
      %v2201 = vld [vmem:[%s2186 + $0x70] sm:$0xff]
      %v2202 = vld [vmem:[%s2186 + $0x78] sm:$0xff]
      %s2203 = scalar_lea.vmem %s15, 1
      %v2204 = vld [vmem:[%s2203] sm:$0x1]
      %v2206 = vlaneseq
      %v2207 = vshrl.u32 %v2206, 7
      %v2208 = vsub.s32 0, %v2207
      %v2209 = vrot.slane %v2204, %v2208
      %2211 = vmatprep.subr.mxu0 0.0
      %2212 = vmatpush1.msra.mxu0 %v2187
      %2213 = vmatprep.subr.mxu0 0.0
      %2214 = vmatpush1.msra.mxu0 %v2188
      %2215 = vmatprep.subr.mxu0 0.0
      %2216 = vmatpush1.msra.mxu0 %v2189
      %2217 = vmatprep.subr.mxu0 0.0
      %2218 = vmatpush1.msra.mxu0 %v2190
      %2219 = vmatprep.subr.mxu0 0.0
      %2220 = vmatpush1.msra.mxu0 %v2191
      %2221 = vmatprep.subr.mxu0 0.0
      %2222 = vmatpush1.msra.mxu0 %v2192
      %2223 = vmatprep.subr.mxu0 0.0
      %2224 = vmatpush1.msra.mxu0 %v2193
      %2225 = vmatprep.subr.mxu0 0.0
      %2226 = vmatpush1.msra.mxu0 %v2194
      %2227 = vmatprep.subr.mxu0 0.0
      %2228 = vmatpush1.msra.mxu0 %v2195
      %2229 = vmatprep.subr.mxu0 0.0
      %2230 = vmatpush1.msra.mxu0 %v2196
      %2231 = vmatprep.subr.mxu0 0.0
      %2232 = vmatpush1.msra.mxu0 %v2197
      %2233 = vmatprep.subr.mxu0 0.0
      %2234 = vmatpush1.msra.mxu0 %v2198
      %2235 = vmatprep.subr.mxu0 0.0
      %2236 = vmatpush1.msra.mxu0 %v2199
      %2237 = vmatprep.subr.mxu0 0.0
      %2238 = vmatpush1.msra.mxu0 %v2200
      %2239 = vmatprep.subr.mxu0 0.0
      %2240 = vmatpush1.msra.mxu0 %v2201
      %2241 = vmatprep.subr.mxu0 0.0
      %2242 = vmatpush1.msra.mxu0 %v2202
      %2243 = vmatprep.subr.mxu0 0.0
      %2244 = vmatpush1.msra.mxu0 0.0
      %2245 = vmatprep.subr.mxu0 0.0
      %2246 = vmatpush1.msra.mxu0 0.0
      %2247 = vmatprep.subr.mxu0 0.0
      %2248 = vmatpush1.msra.mxu0 0.0
      %2249 = vmatprep.subr.mxu0 0.0
      %2250 = vmatpush1.msra.mxu0 0.0
      %2251 = vmatprep.subr.mxu0 0.0
      %2252 = vmatpush1.msra.mxu0 0.0
      %2253 = vmatprep.subr.mxu0 0.0
      %2254 = vmatpush1.msra.mxu0 0.0
      %2255 = vmatprep.subr.mxu0 0.0
      %2256 = vmatpush1.msra.mxu0 0.0
      %2257 = vmatprep.subr.mxu0 0.0
      %2258 = vmatpush1.msra.mxu0 0.0
      %2259 = vmatprep.subr.mxu0 0.0
      %2260 = vmatpush1.msra.mxu0 0.0
      %2261 = vmatprep.subr.mxu0 0.0
      %2262 = vmatpush1.msra.mxu0 0.0
      %2263 = vmatprep.subr.mxu0 0.0
      %2264 = vmatpush1.msra.mxu0 0.0
      %2265 = vmatprep.subr.mxu0 0.0
      %2266 = vmatpush1.msra.mxu0 0.0
      %2267 = vmatprep.subr.mxu0 0.0
      %2268 = vmatpush1.msra.mxu0 0.0
      %2269 = vmatprep.subr.mxu0 0.0
      %2270 = vmatpush1.msra.mxu0 0.0
      %2271 = vmatprep.subr.mxu0 0.0
      %2272 = vmatpush1.msra.mxu0 0.0
      %2273 = vmatprep.subr.mxu0 0.0
      %2274 = vmatpush1.msra.mxu0 0.0
      %2275 = vmatprep.mubr.f32.mxu0 0.0
      %2276 = vmatmul.mubr.f32.gmra.mrb[0].mxu0 %v2185
      %v2277 = vpop.f32.mrb[0].mxu0
      %v2278 = vadd.f32 %v2209, %v2277
      %v2279 = vpop.f32.mrb[0].mxu0
      %2280 = vdwg.mxu0
      %v2281 = vadd.f32 %v2059, %v2278
      %v2282 = vld [vmem:[%s16] sm:$0x1]
      %v2283 = vld [vmem:[%s17] sm:$0x1]
      %vm2284 = vcmask 253952
      %v2285 = vsel %vm2284, %v2281, 0.0
      %2286 = vadd.xlane.f32.xlu0 %v2285
      %v2287 = vpop.xlane.xlu0 %2286
      %v2288 = vmul.f32 %v2287, %v593
      %v2289 = vsub.f32 %v2281, %v2288
      %v2290 = vmul.f32 %v2289, %v2289
      %v2291 = vsel %vm2284, %v2290, 0.0
      %2292 = vadd.xlane.f32.xlu0 %v2291
      %v2293 = vpop.xlane.xlu0 %2292
      %v2294 = vmul.f32 %v2293, %v593
      %v2295 = vadd.f32 %v2294, 1e-05
      %v2296 = vrsqrt.pop %v2295
      %v2297 = vmul.f32 %v2289, %v2296
      %v2298 = vmul.f32 %v2297, %v2282
      %v2299 = vadd.f32 %v2298, %v2283
      %2300 = vst.msk [vmem:[%s582] sm:$0x1] %vm2284, %v2299
      %p2301 = scmp.lt.s32.totalorder %s29, 1
      %s2302 = scalar_select %p2301, %s29, 1
      %s2303 = scalar_lea.vmem %s18, %s2302
      // Predicated region
      $region93: #{xray_clip_forward.5} parent=91 // pred_check
        %p2304 = pneg %p435
      $region94: #{xray_clip_forward.5} parent=91 // pred_check_branch
        %2306 = sbr.rel (%p2304) target = $region96
      $region95: #{xray_clip_forward.5} parent=91 // pred_region
        _
      $region96: #{xray_clip_forward.5} parent=91 // pred_fallthru
        _
    $region92: #{xray_clip_forward.5} parent=5 // pred_fallthru
      _
    %p2307 = scmp.le.s32.totalorder 2, %s24
    // Predicated region
    $region97: #{xray_clip_forward.5} parent=5 // pred_check
      %p2308 = pneg %p2307
    $region98: #{xray_clip_forward.5} parent=5 // pred_check_branch
      %2310 = sbr.rel (%p2308) target = $region100
    $region99: #{xray_clip_forward.5} parent=5 // pred_region
      %s2311 = ssub.s32 %s24, 2
      // Predicated region
      $region101: #{xray_clip_forward.5} parent=99 // pred_check
        %p2312 = pneg %p441
      $region102: #{xray_clip_forward.5} parent=99 // pred_check_branch
        %2314 = sbr.rel (%p2312) target = $region104
      $region103: #{xray_clip_forward.5} parent=99 // pred_region
        %p2315 = scmp.lt.s32.totalorder %s30, 1
        %s2316 = scalar_select %p2315, %s30, 1
        %s2317 = scalar_lea.vmem %s18, %s2316
      $region104: #{xray_clip_forward.5} parent=99 // pred_fallthru
        _
    $region100: #{xray_clip_forward.5} parent=5 // pred_fallthru
      _
  $region6: #{xray_clip_forward.5} parent=0 // loop_footer
    %s28 = sadd.s32 1, %s24
  $region7: #{xray_clip_forward.5} parent=0 // loop_footer_branch
    %23 = sbr.rel target = $region3
  $region8: #{xray_clip_forward.5} parent=0 // loop_exit
    _

// kernel: xray_clip_forward.4
$region0: #{xray_clip_forward.4}
  #allocation0 [shape = 'u32[]', space=smem, size = 0x4, offset = 0x4, fixed_abs, tag = 'smem constant byte address 0x4 - core index']
  #allocation1 [shape = 'u32[144,128]{1,0:T(1,128)}', space=vmem, size = 0x12000, scoped, tag = 'internal scratch']
  %s0 = inlined_call_operand.vmem [shape: f32[2,5,32], index: 0, kind: input, shape index: {}]
  %s1 = inlined_call_operand.vmem [shape: f32[1,32], index: 1, kind: input, shape index: {}]
  %s2 = inlined_call_operand.vmem [shape: f32[1,32], index: 2, kind: input, shape index: {}]
  %s3 = inlined_call_operand.vmem [shape: f32[2,1,32], index: 3, kind: input, shape index: {}]
  %s4 = inlined_call_operand.vmem [shape: f32[2,1,32], index: 4, kind: input, shape index: {}]
  %s5 = inlined_call_operand.vmem [shape: f32[2,32,96], index: 5, kind: input, shape index: {}]
  %s6 = inlined_call_operand.vmem [shape: f32[2,1,96], index: 6, kind: input, shape index: {}]
  %s7 = inlined_call_operand.vmem [shape: f32[2,32,32], index: 7, kind: input, shape index: {}]
  %s8 = inlined_call_operand.vmem [shape: f32[2,1,32], index: 8, kind: input, shape index: {}]
  %s9 = inlined_call_operand.vmem [shape: f32[2,1,32], index: 9, kind: input, shape index: {}]
  %s10 = inlined_call_operand.vmem [shape: f32[2,1,32], index: 10, kind: input, shape index: {}]
  %s11 = inlined_call_operand.vmem [shape: f32[2,32,128], index: 11, kind: input, shape index: {}]
  %s12 = inlined_call_operand.vmem [shape: f32[2,1,128], index: 12, kind: input, shape index: {}]
  %s13 = inlined_call_operand.vmem [shape: f32[2,128,32], index: 13, kind: input, shape index: {}]
  %s14 = inlined_call_operand.vmem [shape: f32[2,1,32], index: 14, kind: input, shape index: {}]
  %s15 = inlined_call_operand.vmem [shape: f32[1,32], index: 15, kind: input, shape index: {}]
  %s16 = inlined_call_operand.vmem [shape: f32[1,32], index: 16, kind: input, shape index: {}]
  %s17 = inlined_call_operand.vmem [shape: f32[2,1,32], index: 17, kind: output, shape index: {}]
  %s18 = sld [smem:[#allocation0]]
  $region101: #{xray_clip_forward.4} parent=0
    _
  %s20 = ssub.s32 1, %s18
  %s21 = scalar_select 0, %s20, %s18
  loop: start=0, step=1, limit=4
  $region2: #{xray_clip_forward.4} parent=0 // loop_pre_header
    _
  $region3: #{xray_clip_forward.4} parent=0 // loop_header
    %s23 = sphi 0, %s27
    %p24 = scmp.ge.s32.totalorder %s23, 4
    %s33 = sphi 0, %s35
    %s36 = sphi 0, %s33
    %s37 = sphi 0, %s36
    %s53 = sphi 0, %s37
    %s57 = sphi 0, %s57
    %s59 = sphi 0, %s57
    %s60 = sphi 0, %s59
    %s74 = sphi 0, %s60
    %s78 = sphi 0, %s78
    %s80 = sphi 0, %s78
    %s81 = sphi 0, %s80
    %s95 = sphi 0, %s81
    %s99 = sphi 0, %s99
    %s101 = sphi 0, %s99
    %s102 = sphi 0, %s101
    %s116 = sphi 0, %s102
    %s120 = sphi 0, %s120
    %s122 = sphi 0, %s120
    %s123 = sphi 0, %s122
    %s137 = sphi 0, %s123
    %s141 = sphi 0, %s141
    %s143 = sphi 0, %s141
    %s144 = sphi 0, %s143
    %s158 = sphi 0, %s144
    %s162 = sphi 0, %s162
    %s164 = sphi 0, %s162
    %s165 = sphi 0, %s164
    %s179 = sphi 0, %s165
    %s183 = sphi 0, %s183
    %s185 = sphi 0, %s183
    %s186 = sphi 0, %s185
    %s200 = sphi 0, %s186
    %s204 = sphi 0, %s204
    %s206 = sphi 0, %s204
    %s207 = sphi 0, %s206
    %s221 = sphi 0, %s207
    %s225 = sphi 0, %s225
    %s227 = sphi 0, %s225
    %s228 = sphi 0, %s227
    %s242 = sphi 0, %s228
    %s246 = sphi 0, %s246
    %s248 = sphi 0, %s246
    %s249 = sphi 0, %s248
    %s263 = sphi 0, %s249
    %s267 = sphi 0, %s267
    %s269 = sphi 0, %s267
    %s270 = sphi 0, %s269
    %s284 = sphi 0, %s270
    %s288 = sphi 0, %s288
    %s290 = sphi 0, %s288
    %s291 = sphi 0, %s290
    %s305 = sphi 0, %s291
    %s309 = sphi 0, %s309
    %s311 = sphi 0, %s309
    %s312 = sphi 0, %s311
    %s326 = sphi 0, %s312
    %s330 = sphi 0, %s330
    %s332 = sphi 0, %s330
    %s333 = sphi 0, %s332
    %s347 = sphi 0, %s333
    %s351 = sphi 0, %s351
    %s353 = sphi 0, %s351
    %s354 = sphi 0, %s353
    %s368 = sphi 0, %s354
    %s372 = sphi 0, %s372
    %s374 = sphi 0, %s372
    %s375 = sphi 0, %s374
    %s389 = sphi 0, %s375
    %s395 = sphi 0, %s397
    %s398 = sphi 0, %s395
    %s399 = sphi 0, %s398
    %s415 = sphi 0, %s399
  $region4: #{xray_clip_forward.4} parent=0 // loop_header_branch
    %26 = sbr.rel (%p24) target = $region8
  $region5: #{xray_clip_forward.4} parent=0 // loop_body
    %s28 = ssub.s32 %s23, 1
    %s29 = ssub.s32 %s23, 2
    %s30 = sadd.s32 %s23, 1
    %s31 = ssub.s32 %s23, %s30
    %p32 = scmp.eq.s32.totalorder %s31, 0
    %s34 = sadd.s32 %s33, 1
    %s35 = scalar_select %p32, %s33, %s34
    %p38 = pneg %p32
    %p39 = scmp.eq.s32.totalorder %s23, 1
    %p40 = por %p38, %p39
    %p41 = scmp.ne.s32.totalorder %s33, %s36
    %p42 = scmp.eq.s32.totalorder %s23, 0
    %p43 = por %p41, %p42
    %p44 = scmp.ne.s32.totalorder %s33, %s36
    %p45 = scmp.eq.s32.totalorder %s28, 1
    %p46 = por %p44, %p45
    %p47 = scmp.ne.s32.totalorder %s36, %s37
    %p48 = scmp.eq.s32.totalorder %s28, 0
    %p49 = por %p47, %p48
    %p50 = scmp.ne.s32.totalorder %s36, %s37
    %p51 = scmp.eq.s32.totalorder %s29, 1
    %p52 = por %p50, %p51
    %p54 = scmp.ne.s32.totalorder %s37, %s53
    %p55 = scmp.eq.s32.totalorder %s29, 0
    %p56 = por %p54, %p55
    %s58 = sadd.s32 %s57, 1
    %p61 = scmp.eq.s32.totalorder %s23, 1
    %p62 = scmp.ne.s32.totalorder %s57, %s59
    %p63 = scmp.eq.s32.totalorder %s23, 0
    %p64 = por %p62, %p63
    %p65 = scmp.ne.s32.totalorder %s57, %s59
    %p66 = scmp.eq.s32.totalorder %s28, 1
    %p67 = por %p65, %p66
    %p68 = scmp.ne.s32.totalorder %s59, %s60
    %p69 = scmp.eq.s32.totalorder %s28, 0
    %p70 = por %p68, %p69
    %p71 = scmp.ne.s32.totalorder %s59, %s60
    %p72 = scmp.eq.s32.totalorder %s29, 1
    %p73 = por %p71, %p72
    %p75 = scmp.ne.s32.totalorder %s60, %s74
    %p76 = scmp.eq.s32.totalorder %s29, 0
    %p77 = por %p75, %p76
    %s79 = sadd.s32 %s78, 1
    %p82 = scmp.eq.s32.totalorder %s23, 1
    %p83 = scmp.ne.s32.totalorder %s78, %s80
    %p84 = scmp.eq.s32.totalorder %s23, 0
    %p85 = por %p83, %p84
    %p86 = scmp.ne.s32.totalorder %s78, %s80
    %p87 = scmp.eq.s32.totalorder %s28, 1
    %p88 = por %p86, %p87
    %p89 = scmp.ne.s32.totalorder %s80, %s81
    %p90 = scmp.eq.s32.totalorder %s28, 0
    %p91 = por %p89, %p90
    %p92 = scmp.ne.s32.totalorder %s80, %s81
    %p93 = scmp.eq.s32.totalorder %s29, 1
    %p94 = por %p92, %p93
    %p96 = scmp.ne.s32.totalorder %s81, %s95
    %p97 = scmp.eq.s32.totalorder %s29, 0
    %p98 = por %p96, %p97
    %s100 = sadd.s32 %s99, 1
    %p103 = scmp.eq.s32.totalorder %s23, 1
    %p104 = scmp.ne.s32.totalorder %s99, %s101
    %p105 = scmp.eq.s32.totalorder %s23, 0
    %p106 = por %p104, %p105
    %p107 = scmp.ne.s32.totalorder %s99, %s101
    %p108 = scmp.eq.s32.totalorder %s28, 1
    %p109 = por %p107, %p108
    %p110 = scmp.ne.s32.totalorder %s101, %s102
    %p111 = scmp.eq.s32.totalorder %s28, 0
    %p112 = por %p110, %p111
    %p113 = scmp.ne.s32.totalorder %s101, %s102
    %p114 = scmp.eq.s32.totalorder %s29, 1
    %p115 = por %p113, %p114
    %p117 = scmp.ne.s32.totalorder %s102, %s116
    %p118 = scmp.eq.s32.totalorder %s29, 0
    %p119 = por %p117, %p118
    %s121 = sadd.s32 %s120, 1
    %p124 = scmp.eq.s32.totalorder %s23, 1
    %p125 = scmp.ne.s32.totalorder %s120, %s122
    %p126 = scmp.eq.s32.totalorder %s23, 0
    %p127 = por %p125, %p126
    %p128 = scmp.ne.s32.totalorder %s120, %s122
    %p129 = scmp.eq.s32.totalorder %s28, 1
    %p130 = por %p128, %p129
    %p131 = scmp.ne.s32.totalorder %s122, %s123
    %p132 = scmp.eq.s32.totalorder %s28, 0
    %p133 = por %p131, %p132
    %p134 = scmp.ne.s32.totalorder %s122, %s123
    %p135 = scmp.eq.s32.totalorder %s29, 1
    %p136 = por %p134, %p135
    %p138 = scmp.ne.s32.totalorder %s123, %s137
    %p139 = scmp.eq.s32.totalorder %s29, 0
    %p140 = por %p138, %p139
    %s142 = sadd.s32 %s141, 1
    %p145 = scmp.eq.s32.totalorder %s23, 1
    %p146 = scmp.ne.s32.totalorder %s141, %s143
    %p147 = scmp.eq.s32.totalorder %s23, 0
    %p148 = por %p146, %p147
    %p149 = scmp.ne.s32.totalorder %s141, %s143
    %p150 = scmp.eq.s32.totalorder %s28, 1
    %p151 = por %p149, %p150
    %p152 = scmp.ne.s32.totalorder %s143, %s144
    %p153 = scmp.eq.s32.totalorder %s28, 0
    %p154 = por %p152, %p153
    %p155 = scmp.ne.s32.totalorder %s143, %s144
    %p156 = scmp.eq.s32.totalorder %s29, 1
    %p157 = por %p155, %p156
    %p159 = scmp.ne.s32.totalorder %s144, %s158
    %p160 = scmp.eq.s32.totalorder %s29, 0
    %p161 = por %p159, %p160
    %s163 = sadd.s32 %s162, 1
    %p166 = scmp.eq.s32.totalorder %s23, 1
    %p167 = scmp.ne.s32.totalorder %s162, %s164
    %p168 = scmp.eq.s32.totalorder %s23, 0
    %p169 = por %p167, %p168
    %p170 = scmp.ne.s32.totalorder %s162, %s164
    %p171 = scmp.eq.s32.totalorder %s28, 1
    %p172 = por %p170, %p171
    %p173 = scmp.ne.s32.totalorder %s164, %s165
    %p174 = scmp.eq.s32.totalorder %s28, 0
    %p175 = por %p173, %p174
    %p176 = scmp.ne.s32.totalorder %s164, %s165
    %p177 = scmp.eq.s32.totalorder %s29, 1
    %p178 = por %p176, %p177
    %p180 = scmp.ne.s32.totalorder %s165, %s179
    %p181 = scmp.eq.s32.totalorder %s29, 0
    %p182 = por %p180, %p181
    %s184 = sadd.s32 %s183, 1
    %p187 = scmp.eq.s32.totalorder %s23, 1
    %p188 = scmp.ne.s32.totalorder %s183, %s185
    %p189 = scmp.eq.s32.totalorder %s23, 0
    %p190 = por %p188, %p189
    %p191 = scmp.ne.s32.totalorder %s183, %s185
    %p192 = scmp.eq.s32.totalorder %s28, 1
    %p193 = por %p191, %p192
    %p194 = scmp.ne.s32.totalorder %s185, %s186
    %p195 = scmp.eq.s32.totalorder %s28, 0
    %p196 = por %p194, %p195
    %p197 = scmp.ne.s32.totalorder %s185, %s186
    %p198 = scmp.eq.s32.totalorder %s29, 1
    %p199 = por %p197, %p198
    %p201 = scmp.ne.s32.totalorder %s186, %s200
    %p202 = scmp.eq.s32.totalorder %s29, 0
    %p203 = por %p201, %p202
    %s205 = sadd.s32 %s204, 1
    %p208 = scmp.eq.s32.totalorder %s23, 1
    %p209 = scmp.ne.s32.totalorder %s204, %s206
    %p210 = scmp.eq.s32.totalorder %s23, 0
    %p211 = por %p209, %p210
    %p212 = scmp.ne.s32.totalorder %s204, %s206
    %p213 = scmp.eq.s32.totalorder %s28, 1
    %p214 = por %p212, %p213
    %p215 = scmp.ne.s32.totalorder %s206, %s207
    %p216 = scmp.eq.s32.totalorder %s28, 0
    %p217 = por %p215, %p216
    %p218 = scmp.ne.s32.totalorder %s206, %s207
    %p219 = scmp.eq.s32.totalorder %s29, 1
    %p220 = por %p218, %p219
    %p222 = scmp.ne.s32.totalorder %s207, %s221
    %p223 = scmp.eq.s32.totalorder %s29, 0
    %p224 = por %p222, %p223
    %s226 = sadd.s32 %s225, 1
    %p229 = scmp.eq.s32.totalorder %s23, 1
    %p230 = scmp.ne.s32.totalorder %s225, %s227
    %p231 = scmp.eq.s32.totalorder %s23, 0
    %p232 = por %p230, %p231
    %p233 = scmp.ne.s32.totalorder %s225, %s227
    %p234 = scmp.eq.s32.totalorder %s28, 1
    %p235 = por %p233, %p234
    %p236 = scmp.ne.s32.totalorder %s227, %s228
    %p237 = scmp.eq.s32.totalorder %s28, 0
    %p238 = por %p236, %p237
    %p239 = scmp.ne.s32.totalorder %s227, %s228
    %p240 = scmp.eq.s32.totalorder %s29, 1
    %p241 = por %p239, %p240
    %p243 = scmp.ne.s32.totalorder %s228, %s242
    %p244 = scmp.eq.s32.totalorder %s29, 0
    %p245 = por %p243, %p244
    %s247 = sadd.s32 %s246, 1
    %p250 = scmp.eq.s32.totalorder %s23, 1
    %p251 = scmp.ne.s32.totalorder %s246, %s248
    %p252 = scmp.eq.s32.totalorder %s23, 0
    %p253 = por %p251, %p252
    %p254 = scmp.ne.s32.totalorder %s246, %s248
    %p255 = scmp.eq.s32.totalorder %s28, 1
    %p256 = por %p254, %p255
    %p257 = scmp.ne.s32.totalorder %s248, %s249
    %p258 = scmp.eq.s32.totalorder %s28, 0
    %p259 = por %p257, %p258
    %p260 = scmp.ne.s32.totalorder %s248, %s249
    %p261 = scmp.eq.s32.totalorder %s29, 1
    %p262 = por %p260, %p261
    %p264 = scmp.ne.s32.totalorder %s249, %s263
    %p265 = scmp.eq.s32.totalorder %s29, 0
    %p266 = por %p264, %p265
    %s268 = sadd.s32 %s267, 1
    %p271 = scmp.eq.s32.totalorder %s23, 1
    %p272 = scmp.ne.s32.totalorder %s267, %s269
    %p273 = scmp.eq.s32.totalorder %s23, 0
    %p274 = por %p272, %p273
    %p275 = scmp.ne.s32.totalorder %s267, %s269
    %p276 = scmp.eq.s32.totalorder %s28, 1
    %p277 = por %p275, %p276
    %p278 = scmp.ne.s32.totalorder %s269, %s270
    %p279 = scmp.eq.s32.totalorder %s28, 0
    %p280 = por %p278, %p279
    %p281 = scmp.ne.s32.totalorder %s269, %s270
    %p282 = scmp.eq.s32.totalorder %s29, 1
    %p283 = por %p281, %p282
    %p285 = scmp.ne.s32.totalorder %s270, %s284
    %p286 = scmp.eq.s32.totalorder %s29, 0
    %p287 = por %p285, %p286
    %s289 = sadd.s32 %s288, 1
    %p292 = scmp.eq.s32.totalorder %s23, 1
    %p293 = scmp.ne.s32.totalorder %s288, %s290
    %p294 = scmp.eq.s32.totalorder %s23, 0
    %p295 = por %p293, %p294
    %p296 = scmp.ne.s32.totalorder %s288, %s290
    %p297 = scmp.eq.s32.totalorder %s28, 1
    %p298 = por %p296, %p297
    %p299 = scmp.ne.s32.totalorder %s290, %s291
    %p300 = scmp.eq.s32.totalorder %s28, 0
    %p301 = por %p299, %p300
    %p302 = scmp.ne.s32.totalorder %s290, %s291
    %p303 = scmp.eq.s32.totalorder %s29, 1
    %p304 = por %p302, %p303
    %p306 = scmp.ne.s32.totalorder %s291, %s305
    %p307 = scmp.eq.s32.totalorder %s29, 0
    %p308 = por %p306, %p307
    %s310 = sadd.s32 %s309, 1
    %p313 = scmp.eq.s32.totalorder %s23, 1
    %p314 = scmp.ne.s32.totalorder %s309, %s311
    %p315 = scmp.eq.s32.totalorder %s23, 0
    %p316 = por %p314, %p315
    %p317 = scmp.ne.s32.totalorder %s309, %s311
    %p318 = scmp.eq.s32.totalorder %s28, 1
    %p319 = por %p317, %p318
    %p320 = scmp.ne.s32.totalorder %s311, %s312
    %p321 = scmp.eq.s32.totalorder %s28, 0
    %p322 = por %p320, %p321
    %p323 = scmp.ne.s32.totalorder %s311, %s312
    %p324 = scmp.eq.s32.totalorder %s29, 1
    %p325 = por %p323, %p324
    %p327 = scmp.ne.s32.totalorder %s312, %s326
    %p328 = scmp.eq.s32.totalorder %s29, 0
    %p329 = por %p327, %p328
    %s331 = sadd.s32 %s330, 1
    %p334 = scmp.eq.s32.totalorder %s23, 1
    %p335 = scmp.ne.s32.totalorder %s330, %s332
    %p336 = scmp.eq.s32.totalorder %s23, 0
    %p337 = por %p335, %p336
    %p338 = scmp.ne.s32.totalorder %s330, %s332
    %p339 = scmp.eq.s32.totalorder %s28, 1
    %p340 = por %p338, %p339
    %p341 = scmp.ne.s32.totalorder %s332, %s333
    %p342 = scmp.eq.s32.totalorder %s28, 0
    %p343 = por %p341, %p342
    %p344 = scmp.ne.s32.totalorder %s332, %s333
    %p345 = scmp.eq.s32.totalorder %s29, 1
    %p346 = por %p344, %p345
    %p348 = scmp.ne.s32.totalorder %s333, %s347
    %p349 = scmp.eq.s32.totalorder %s29, 0
    %p350 = por %p348, %p349
    %s352 = sadd.s32 %s351, 1
    %p355 = scmp.eq.s32.totalorder %s23, 1
    %p356 = scmp.ne.s32.totalorder %s351, %s353
    %p357 = scmp.eq.s32.totalorder %s23, 0
    %p358 = por %p356, %p357
    %p359 = scmp.ne.s32.totalorder %s351, %s353
    %p360 = scmp.eq.s32.totalorder %s28, 1
    %p361 = por %p359, %p360
    %p362 = scmp.ne.s32.totalorder %s353, %s354
    %p363 = scmp.eq.s32.totalorder %s28, 0
    %p364 = por %p362, %p363
    %p365 = scmp.ne.s32.totalorder %s353, %s354
    %p366 = scmp.eq.s32.totalorder %s29, 1
    %p367 = por %p365, %p366
    %p369 = scmp.ne.s32.totalorder %s354, %s368
    %p370 = scmp.eq.s32.totalorder %s29, 0
    %p371 = por %p369, %p370
    %s373 = sadd.s32 %s372, 1
    %p376 = scmp.eq.s32.totalorder %s23, 1
    %p377 = scmp.ne.s32.totalorder %s372, %s374
    %p378 = scmp.eq.s32.totalorder %s23, 0
    %p379 = por %p377, %p378
    %p380 = scmp.ne.s32.totalorder %s372, %s374
    %p381 = scmp.eq.s32.totalorder %s28, 1
    %p382 = por %p380, %p381
    %p383 = scmp.ne.s32.totalorder %s374, %s375
    %p384 = scmp.eq.s32.totalorder %s28, 0
    %p385 = por %p383, %p384
    %p386 = scmp.ne.s32.totalorder %s374, %s375
    %p387 = scmp.eq.s32.totalorder %s29, 1
    %p388 = por %p386, %p387
    %p390 = scmp.ne.s32.totalorder %s375, %s389
    %p391 = scmp.eq.s32.totalorder %s29, 0
    %p392 = por %p390, %p391
    %s393 = ssub.s32 %s23, %s30
    %p394 = scmp.eq.s32.totalorder %s393, 0
    %s396 = sadd.s32 %s395, 1
    %s397 = scalar_select %p394, %s395, %s396
    %p400 = pneg %p394
    %p401 = scmp.eq.s32.totalorder %s23, 1
    %p402 = por %p400, %p401
    %p403 = scmp.ne.s32.totalorder %s395, %s398
    %p404 = scmp.eq.s32.totalorder %s23, 0
    %p405 = por %p403, %p404
    %p406 = scmp.ne.s32.totalorder %s395, %s398
    %p407 = scmp.eq.s32.totalorder %s28, 1
    %p408 = por %p406, %p407
    %p409 = scmp.ne.s32.totalorder %s398, %s399
    %p410 = scmp.eq.s32.totalorder %s28, 0
    %p411 = por %p409, %p410
    %p412 = scmp.ne.s32.totalorder %s398, %s399
    %p413 = scmp.eq.s32.totalorder %s29, 1
    %p414 = por %p412, %p413
    %p416 = scmp.ne.s32.totalorder %s399, %s415
    %p417 = scmp.eq.s32.totalorder %s29, 0
    %p418 = por %p416, %p417
    %p419 = scmp.le.s32.totalorder 1, %s23
    %p420 = scmp.lt.s32.totalorder %s23, 3
    %p421 = pnand %p419, %p420
    %p422 = pneg %p421
    // Predicated region
    $region9: #{xray_clip_forward.4} parent=5 // pred_check
      _
    $region10: #{xray_clip_forward.4} parent=5 // pred_check_branch
      %424 = sbr.rel (%p421) target = $region12
    $region11: #{xray_clip_forward.4} parent=5 // pred_region
      %s425 = ssub.s32 %s23, 1
      // Predicated region
      $region13: #{xray_clip_forward.4} parent=11 // pred_check
        %p426 = pneg %p70
      $region14: #{xray_clip_forward.4} parent=11 // pred_check_branch
        %428 = sbr.rel (%p426) target = $region16
      $region15: #{xray_clip_forward.4} parent=11 // pred_region
        _
      $region16: #{xray_clip_forward.4} parent=11 // pred_fallthru
        _
      // Predicated region
      $region17: #{xray_clip_forward.4} parent=11 // pred_check
        %p429 = pneg %p91
      $region18: #{xray_clip_forward.4} parent=11 // pred_check_branch
        %431 = sbr.rel (%p429) target = $region20
      $region19: #{xray_clip_forward.4} parent=11 // pred_region
        _
      $region20: #{xray_clip_forward.4} parent=11 // pred_fallthru
        _
      // Predicated region
      $region21: #{xray_clip_forward.4} parent=11 // pred_check
        %p432 = pneg %p112
      $region22: #{xray_clip_forward.4} parent=11 // pred_check_branch
        %434 = sbr.rel (%p432) target = $region24
      $region23: #{xray_clip_forward.4} parent=11 // pred_region
        _
      $region24: #{xray_clip_forward.4} parent=11 // pred_fallthru
        _
      // Predicated region
      $region25: #{xray_clip_forward.4} parent=11 // pred_check
        %p435 = pneg %p133
      $region26: #{xray_clip_forward.4} parent=11 // pred_check_branch
        %437 = sbr.rel (%p435) target = $region28
      $region27: #{xray_clip_forward.4} parent=11 // pred_region
        _
      $region28: #{xray_clip_forward.4} parent=11 // pred_fallthru
        _
      // Predicated region
      $region29: #{xray_clip_forward.4} parent=11 // pred_check
        %p438 = pneg %p154
      $region30: #{xray_clip_forward.4} parent=11 // pred_check_branch
        %440 = sbr.rel (%p438) target = $region32
      $region31: #{xray_clip_forward.4} parent=11 // pred_region
        _
      $region32: #{xray_clip_forward.4} parent=11 // pred_fallthru
        _
      // Predicated region
      $region33: #{xray_clip_forward.4} parent=11 // pred_check
        %p441 = pneg %p175
      $region34: #{xray_clip_forward.4} parent=11 // pred_check_branch
        %443 = sbr.rel (%p441) target = $region36
      $region35: #{xray_clip_forward.4} parent=11 // pred_region
        _
      $region36: #{xray_clip_forward.4} parent=11 // pred_fallthru
        _
      // Predicated region
      $region37: #{xray_clip_forward.4} parent=11 // pred_check
        %p444 = pneg %p196
      $region38: #{xray_clip_forward.4} parent=11 // pred_check_branch
        %446 = sbr.rel (%p444) target = $region40
      $region39: #{xray_clip_forward.4} parent=11 // pred_region
        _
      $region40: #{xray_clip_forward.4} parent=11 // pred_fallthru
        _
      // Predicated region
      $region41: #{xray_clip_forward.4} parent=11 // pred_check
        %p447 = pneg %p217
      $region42: #{xray_clip_forward.4} parent=11 // pred_check_branch
        %449 = sbr.rel (%p447) target = $region44
      $region43: #{xray_clip_forward.4} parent=11 // pred_region
        _
      $region44: #{xray_clip_forward.4} parent=11 // pred_fallthru
        _
      // Predicated region
      $region45: #{xray_clip_forward.4} parent=11 // pred_check
        %p450 = pneg %p238
      $region46: #{xray_clip_forward.4} parent=11 // pred_check_branch
        %452 = sbr.rel (%p450) target = $region48
      $region47: #{xray_clip_forward.4} parent=11 // pred_region
        _
      $region48: #{xray_clip_forward.4} parent=11 // pred_fallthru
        _
      // Predicated region
      $region49: #{xray_clip_forward.4} parent=11 // pred_check
        %p453 = pneg %p259
      $region50: #{xray_clip_forward.4} parent=11 // pred_check_branch
        %455 = sbr.rel (%p453) target = $region52
      $region51: #{xray_clip_forward.4} parent=11 // pred_region
        _
      $region52: #{xray_clip_forward.4} parent=11 // pred_fallthru
        _
      // Predicated region
      $region53: #{xray_clip_forward.4} parent=11 // pred_check
        %p456 = pneg %p280
      $region54: #{xray_clip_forward.4} parent=11 // pred_check_branch
        %458 = sbr.rel (%p456) target = $region56
      $region55: #{xray_clip_forward.4} parent=11 // pred_region
        _
      $region56: #{xray_clip_forward.4} parent=11 // pred_fallthru
        _
      // Predicated region
      $region57: #{xray_clip_forward.4} parent=11 // pred_check
        %p459 = pneg %p301
      $region58: #{xray_clip_forward.4} parent=11 // pred_check_branch
        %461 = sbr.rel (%p459) target = $region60
      $region59: #{xray_clip_forward.4} parent=11 // pred_region
        _
      $region60: #{xray_clip_forward.4} parent=11 // pred_fallthru
        _
      // Predicated region
      $region61: #{xray_clip_forward.4} parent=11 // pred_check
        %p462 = pneg %p322
      $region62: #{xray_clip_forward.4} parent=11 // pred_check_branch
        %464 = sbr.rel (%p462) target = $region64
      $region63: #{xray_clip_forward.4} parent=11 // pred_region
        _
      $region64: #{xray_clip_forward.4} parent=11 // pred_fallthru
        _
      // Predicated region
      $region65: #{xray_clip_forward.4} parent=11 // pred_check
        %p465 = pneg %p343
      $region66: #{xray_clip_forward.4} parent=11 // pred_check_branch
        %467 = sbr.rel (%p465) target = $region68
      $region67: #{xray_clip_forward.4} parent=11 // pred_region
        _
      $region68: #{xray_clip_forward.4} parent=11 // pred_fallthru
        _
      // Predicated region
      $region69: #{xray_clip_forward.4} parent=11 // pred_check
        %p468 = pneg %p364
      $region70: #{xray_clip_forward.4} parent=11 // pred_check_branch
        %470 = sbr.rel (%p468) target = $region72
      $region71: #{xray_clip_forward.4} parent=11 // pred_region
        _
      $region72: #{xray_clip_forward.4} parent=11 // pred_fallthru
        _
      // Predicated region
      $region73: #{xray_clip_forward.4} parent=11 // pred_check
        %p471 = pneg %p385
      $region74: #{xray_clip_forward.4} parent=11 // pred_check_branch
        %473 = sbr.rel (%p471) target = $region76
      $region75: #{xray_clip_forward.4} parent=11 // pred_region
        _
      $region76: #{xray_clip_forward.4} parent=11 // pred_fallthru
        _
    $region12: #{xray_clip_forward.4} parent=5 // pred_fallthru
      _
    %p474 = scmp.lt.s32.totalorder %s23, 2
    // Predicated region
    $region77: #{xray_clip_forward.4} parent=5 // pred_check
      %p475 = pneg %p474
    $region78: #{xray_clip_forward.4} parent=5 // pred_check_branch
      %477 = sbr.rel (%p475) target = $region80
    $region79: #{xray_clip_forward.4} parent=5 // pred_region
      // Predicated region
      $region81: #{xray_clip_forward.4} parent=79 // pred_check
        %p478 = pneg %p43
      $region82: #{xray_clip_forward.4} parent=79 // pred_check_branch
        %480 = sbr.rel (%p478) target = $region84
      $region83: #{xray_clip_forward.4} parent=79 // pred_region
        %p481 = scmp.lt.s32.totalorder %s23, 1
        %s482 = scalar_select %p481, %s23, 1
        %s483 = smul.addr %s482, 8
        %s484 = scalar_lea.vmem %s0, %s483
      $region84: #{xray_clip_forward.4} parent=79 // pred_fallthru
        _
    $region80: #{xray_clip_forward.4} parent=5 // pred_fallthru
      _
    %p485 = scmp.le.s32.totalorder 1, %s23
    %p486 = scmp.lt.s32.totalorder %s23, 3
    %p487 = pnand %p485, %p486
    %p488 = pneg %p487
    // Predicated region
    $region85: #{xray_clip_forward.4} parent=5 // pred_check
      _
    $region86: #{xray_clip_forward.4} parent=5 // pred_check_branch
      %490 = sbr.rel (%p487) target = $region88
    $region87: #{xray_clip_forward.4} parent=5 // pred_region
      %s491 = ssub.s32 %s23, 1
      %p492 = scmp.lt.s32.totalorder %s28, 1
      %s493 = scalar_select %p492, %s28, 1
      %s494 = smul.addr %s493, 8
      %s495 = scalar_lea.vmem %s0, %s494
      %p496 = pneg %p49
      %p497 = pneg %p46
      %p498 = pneg %p70
      %p499 = pneg %p67
      %p500 = pneg %p91
      %p501 = pneg %p88
      %p502 = pneg %p112
      %p503 = pneg %p109
      %p504 = pneg %p133
      %p505 = pneg %p130
      %p506 = pneg %p154
      %p507 = pneg %p151
      %p508 = pneg %p175
      %p509 = pneg %p172
      %p510 = pneg %p196
      %p511 = pneg %p193
      %p512 = pneg %p217
      %p513 = pneg %p214
      %p514 = pneg %p238
      %p515 = pneg %p235
      %p516 = pneg %p259
      %p517 = pneg %p256
      %p518 = pneg %p280
      %p519 = pneg %p277
      %p520 = pneg %p301
      %p521 = pneg %p298
      %p522 = pneg %p322
      %p523 = pneg %p319
      %p524 = pneg %p343
      %p525 = pneg %p340
      %p526 = pneg %p364
      %p527 = pneg %p361
      %p528 = pneg %p385
      %p529 = pneg %p382
      %p530 = pneg %p411
      %p531 = pneg %p408
      %p532 = scmp.lt.s32.totalorder %s28, 1
      %s533 = scalar_select %p532, %s28, 1
      %s534 = scalar_lea.vmem %s17, %s533
      %p535 = scmp.lt.s32.totalorder %s28, 1
      %s536 = scalar_select %p535, %s28, 1
      %s537 = smul.addr %s536, 8
      %s538 = scalar_lea.vmem %s0, %s537
      %p539 = scmp.lt.s32.totalorder %s28, 1
      %s540 = scalar_select %p539, %s28, 1
      %s541 = scalar_lea.vmem %s17, %s540
      %v542 = vld [vmem:[%s538] sm:$0x1f]
      %v543 = vld [vmem:[%s1] sm:$0x1]
      %v544 = vld [vmem:[%s2] sm:$0x1]
      %vm545 = vcmask 258048
      %v546 = vsel %vm545, %v542, 0.0
      %547 = vadd.xlane.f32.xlu0 %v546
      %v548 = vpop.xlane.xlu0 %547
      %v549 = vrcp.pop 32.0
      %v550 = vmul.f32 %v548, %v549
      %v551 = vsub.f32 %v542, %v550
      %v552 = vmul.f32 %v551, %v551
      %v553 = vsel %vm545, %v552, 0.0
      %554 = vadd.xlane.f32.xlu0 %v553
      %v555 = vpop.xlane.xlu0 %554
      %v556 = vmul.f32 %v555, %v549
      %v557 = vadd.f32 %v556, 1e-05
      %v558 = vrsqrt.pop %v557
      %v559 = vmul.f32 %v551, %v558
      %v561 = vlaneseq
      %v562 = vshrl.u32 %v561, 7
      %v563 = vsub.s32 0, %v562
      %v564 = vrot.slane %v543, %v563
      %v566 = vmul.f32 %v559, %v564
      %v568 = vlaneseq
      %v569 = vshrl.u32 %v568, 7
      %v570 = vsub.s32 0, %v569
      %v571 = vrot.slane %v544, %v570
      %v573 = vadd.f32 %v566, %v571
      %v574 = vld [vmem:[%s3] sm:$0x1]
      %v575 = vld [vmem:[%s4] sm:$0x1]
      %v576 = vsel %vm545, %v573, 0.0
      %577 = vadd.xlane.f32.xlu0 %v576
      %v578 = vpop.xlane.xlu0 %577
      %v579 = vmul.f32 %v578, %v549
      %v580 = vsub.f32 %v573, %v579
      %v581 = vmul.f32 %v580, %v580
      %v582 = vsel %vm545, %v581, 0.0
      %583 = vadd.xlane.f32.xlu0 %v582
      %v584 = vpop.xlane.xlu0 %583
      %v585 = vmul.f32 %v584, %v549
      %v586 = vadd.f32 %v585, 1e-05
      %v587 = vrsqrt.pop %v586
      %v588 = vmul.f32 %v580, %v587
      %v590 = vlaneseq
      %v591 = vshrl.u32 %v590, 7
      %v592 = vsub.s32 0, %v591
      %v593 = vrot.slane %v574, %v592
      %v595 = vmul.f32 %v588, %v593
      %v597 = vlaneseq
      %v598 = vshrl.u32 %v597, 7
      %v599 = vsub.s32 0, %v598
      %v600 = vrot.slane %v575, %v599
      %v602 = vadd.f32 %v595, %v600
      %v603 = vld [vmem:[%s5] sm:$0xff]
      %v604 = vld [vmem:[%s5 + $0x8] sm:$0xff]
      %v605 = vld [vmem:[%s5 + $0x10] sm:$0xff]
      %v606 = vld [vmem:[%s5 + $0x18] sm:$0xff]
      %v607 = vld [vmem:[%s6] sm:$0x1]
      %v609 = vlaneseq
      %v610 = vshrl.u32 %v609, 7
      %v611 = vsub.s32 0, %v610
      %v612 = vrot.slane %v607, %v611
      %vm614 = vcmask 261120
      %v616 = vsel %vm614, %v602, 0
      %618 = vmatprep.subr.mxu0 0.0
      %619 = vmatpush1.msra.mxu0 %v603
      %620 = vmatprep.subr.mxu0 0.0
      %621 = vmatpush1.msra.mxu0 %v604
      %622 = vmatprep.subr.mxu0 0.0
      %623 = vmatpush1.msra.mxu0 %v605
      %624 = vmatprep.subr.mxu0 0.0
      %625 = vmatpush1.msra.mxu0 %v606
      %626 = vmatprep.subr.mxu0 0.0
      %627 = vmatpush1.msra.mxu0 0.0
      %628 = vmatprep.subr.mxu0 0.0
      %629 = vmatpush1.msra.mxu0 0.0
      %630 = vmatprep.subr.mxu0 0.0
      %631 = vmatpush1.msra.mxu0 0.0
      %632 = vmatprep.subr.mxu0 0.0
      %633 = vmatpush1.msra.mxu0 0.0
      %634 = vmatprep.subr.mxu0 0.0
      %635 = vmatpush1.msra.mxu0 0.0
      %636 = vmatprep.subr.mxu0 0.0
      %637 = vmatpush1.msra.mxu0 0.0
      %638 = vmatprep.subr.mxu0 0.0
      %639 = vmatpush1.msra.mxu0 0.0
      %640 = vmatprep.subr.mxu0 0.0
      %641 = vmatpush1.msra.mxu0 0.0
      %642 = vmatprep.subr.mxu0 0.0
      %643 = vmatpush1.msra.mxu0 0.0
      %644 = vmatprep.subr.mxu0 0.0
      %645 = vmatpush1.msra.mxu0 0.0
      %646 = vmatprep.subr.mxu0 0.0
      %647 = vmatpush1.msra.mxu0 0.0
      %648 = vmatprep.subr.mxu0 0.0
      %649 = vmatpush1.msra.mxu0 0.0
      %650 = vmatprep.subr.mxu0 0.0
      %651 = vmatpush1.msra.mxu0 0.0
      %652 = vmatprep.subr.mxu0 0.0
      %653 = vmatpush1.msra.mxu0 0.0
      %654 = vmatprep.subr.mxu0 0.0
      %655 = vmatpush1.msra.mxu0 0.0
      %656 = vmatprep.subr.mxu0 0.0
      %657 = vmatpush1.msra.mxu0 0.0
      %658 = vmatprep.subr.mxu0 0.0
      %659 = vmatpush1.msra.mxu0 0.0
      %660 = vmatprep.subr.mxu0 0.0
      %661 = vmatpush1.msra.mxu0 0.0
      %662 = vmatprep.subr.mxu0 0.0
      %663 = vmatpush1.msra.mxu0 0.0
      %664 = vmatprep.subr.mxu0 0.0
      %665 = vmatpush1.msra.mxu0 0.0
      %666 = vmatprep.subr.mxu0 0.0
      %667 = vmatpush1.msra.mxu0 0.0
      %668 = vmatprep.subr.mxu0 0.0
      %669 = vmatpush1.msra.mxu0 0.0
      %670 = vmatprep.subr.mxu0 0.0
      %671 = vmatpush1.msra.mxu0 0.0
      %672 = vmatprep.subr.mxu0 0.0
      %673 = vmatpush1.msra.mxu0 0.0
      %674 = vmatprep.subr.mxu0 0.0
      %675 = vmatpush1.msra.mxu0 0.0
      %676 = vmatprep.subr.mxu0 0.0
      %677 = vmatpush1.msra.mxu0 0.0
      %678 = vmatprep.subr.mxu0 0.0
      %679 = vmatpush1.msra.mxu0 0.0
      %680 = vmatprep.subr.mxu0 0.0
      %681 = vmatpush1.msra.mxu0 0.0
      %682 = vmatprep.mubr.f32.mxu0 0.0
      %683 = vmatmul.mubr.f32.gmra.mrb[0].mxu0 %v616
      %v684 = vpop.f32.mrb[0].mxu0
      %v685 = vadd.f32 %v612, %v684
      %v686 = vpop.f32.mrb[0].mxu0
      %687 = vdwg.mxu0
      %v688 = vld [vmem:[%s7] sm:$0xff]
      %v689 = vld [vmem:[%s7 + $0x8] sm:$0xff]
      %v690 = vld [vmem:[%s7 + $0x10] sm:$0xff]
      %v691 = vld [vmem:[%s7 + $0x18] sm:$0xff]
      %v692 = vld [vmem:[%s8] sm:$0x1]
      %694 = vrot.lane.b32.xlu0 %v685, 96
      %v695 = vpop.permute.xlu0 %694
      %vm696 = vcmask 130048
      %v697 = vsel %vm696, %v685, 0
      %v699 = vsel %vm696, %v695, 0
      %701 = vmatprep.subr.mxu0 0.0
      %702 = vmatpush1.xpose.msra.mxu0 %v699
      %703 = vmatprep.subr.mxu0 0.0
      %704 = vmatpush1.xpose.msra.mxu0 0.0
      %705 = vmatprep.subr.mxu0 0.0
      %706 = vmatpush1.xpose.msra.mxu0 0.0
      %707 = vmatprep.subr.mxu0 0.0
      %708 = vmatpush1.xpose.msra.mxu0 0.0
      %709 = vmatprep.subr.mxu0 0.0
      %710 = vmatpush1.xpose.msra.mxu0 0.0
      %711 = vmatprep.subr.mxu0 0.0
      %712 = vmatpush1.xpose.msra.mxu0 0.0
      %713 = vmatprep.subr.mxu0 0.0
      %714 = vmatpush1.xpose.msra.mxu0 0.0
      %715 = vmatprep.subr.mxu0 0.0
      %716 = vmatpush1.xpose.msra.mxu0 0.0
      %717 = vmatprep.subr.mxu0 0.0
      %718 = vmatpush1.xpose.msra.mxu0 0.0
      %719 = vmatprep.subr.mxu0 0.0
      %720 = vmatpush1.xpose.msra.mxu0 0.0
      %721 = vmatprep.subr.mxu0 0.0
      %722 = vmatpush1.xpose.msra.mxu0 0.0
      %723 = vmatprep.subr.mxu0 0.0
      %724 = vmatpush1.xpose.msra.mxu0 0.0
      %725 = vmatprep.subr.mxu0 0.0
      %726 = vmatpush1.xpose.msra.mxu0 0.0
      %727 = vmatprep.subr.mxu0 0.0
      %728 = vmatpush1.xpose.msra.mxu0 0.0
      %729 = vmatprep.subr.mxu0 0.0
      %730 = vmatpush1.xpose.msra.mxu0 0.0
      %731 = vmatprep.subr.mxu0 0.0
      %732 = vmatpush1.xpose.msra.mxu0 0.0
      %733 = vmatprep.subr.mxu0 0.0
      %734 = vmatpush1.xpose.msra.mxu0 0.0
      %735 = vmatprep.subr.mxu0 0.0
      %736 = vmatpush1.xpose.msra.mxu0 0.0
      %737 = vmatprep.subr.mxu0 0.0
      %738 = vmatpush1.xpose.msra.mxu0 0.0
      %739 = vmatprep.subr.mxu0 0.0
      %740 = vmatpush1.xpose.msra.mxu0 0.0
      %741 = vmatprep.subr.mxu0 0.0
      %742 = vmatpush1.xpose.msra.mxu0 0.0
      %743 = vmatprep.subr.mxu0 0.0
      %744 = vmatpush1.xpose.msra.mxu0 0.0
      %745 = vmatprep.subr.mxu0 0.0
      %746 = vmatpush1.xpose.msra.mxu0 0.0
      %747 = vmatprep.subr.mxu0 0.0
      %748 = vmatpush1.xpose.msra.mxu0 0.0
      %749 = vmatprep.subr.mxu0 0.0
      %750 = vmatpush1.xpose.msra.mxu0 0.0
      %751 = vmatprep.subr.mxu0 0.0
      %752 = vmatpush1.xpose.msra.mxu0 0.0
      %753 = vmatprep.subr.mxu0 0.0
      %754 = vmatpush1.xpose.msra.mxu0 0.0
      %755 = vmatprep.subr.mxu0 0.0
      %756 = vmatpush1.xpose.msra.mxu0 0.0
      %757 = vmatprep.subr.mxu0 0.0
      %758 = vmatpush1.xpose.msra.mxu0 0.0
      %759 = vmatprep.subr.mxu0 0.0
      %760 = vmatpush1.xpose.msra.mxu0 0.0
      %761 = vmatprep.subr.mxu0 0.0
      %762 = vmatpush1.xpose.msra.mxu0 0.0
      %763 = vmatprep.subr.mxu0 0.0
      %764 = vmatpush1.xpose.msra.mxu0 0.0
      %765 = vmatprep.mubr.f32.mxu0 0.0
      %766 = vmatmul.mubr.f32.gmra.mrb[0].mxu0 %v697
      %v767 = vpop.f32.mrb[0].mxu0
      %v768 = vadd.f32 0.0, %v767
      %v769 = vpop.f32.mrb[0].mxu0
      %770 = vdwg.mxu0
      %v771 = vmul.f32 %v768, 0.25
      %vm772 = vcmask 36864
      %v773 = vsel %vm772, %v771, -inf
      %774 = vmax.xlane.f32.xlu0 %v773
      %v775 = vpop.xlane.xlu0 %774
      %v776 = vsub.f32 %v771, %v775
      %v777 = vmul.f32 %v776, 1.442695
      %v778 = vpow.pop %v777
      %v779 = vsel %vm772, %v778, 0.0
      %780 = vadd.xlane.f32.xlu0 %v779
      %v781 = vpop.xlane.xlu0 %780
      %v782 = vrcp.pop %v781
      %v783 = vmul.f32 %v778, %v782
      %784 = vrot.lane.b32.xlu0 %v685, 64
      %v785 = vpop.permute.xlu0 %784
      %vm786 = vcmask 39936
      %v788 = vsel %vm786, %v783, 0
      %vm790 = vcmask 1044480
      %v791 = vsel %vm790, %v785, 0
      %793 = vmatprep.subr.mxu0 0.0
      %794 = vmatpush1.msra.mxu0 %v791
      %795 = vmatprep.subr.mxu0 0.0
      %796 = vmatpush1.msra.mxu0 0.0
      %797 = vmatprep.subr.mxu0 0.0
      %798 = vmatpush1.msra.mxu0 0.0
      %799 = vmatprep.subr.mxu0 0.0
      %800 = vmatpush1.msra.mxu0 0.0
      %801 = vmatprep.subr.mxu0 0.0
      %802 = vmatpush1.msra.mxu0 0.0
      %803 = vmatprep.subr.mxu0 0.0
      %804 = vmatpush1.msra.mxu0 0.0
      %805 = vmatprep.subr.mxu0 0.0
      %806 = vmatpush1.msra.mxu0 0.0
      %807 = vmatprep.subr.mxu0 0.0
      %808 = vmatpush1.msra.mxu0 0.0
      %809 = vmatprep.subr.mxu0 0.0
      %810 = vmatpush1.msra.mxu0 0.0
      %811 = vmatprep.subr.mxu0 0.0
      %812 = vmatpush1.msra.mxu0 0.0
      %813 = vmatprep.subr.mxu0 0.0
      %814 = vmatpush1.msra.mxu0 0.0
      %815 = vmatprep.subr.mxu0 0.0
      %816 = vmatpush1.msra.mxu0 0.0
      %817 = vmatprep.subr.mxu0 0.0
      %818 = vmatpush1.msra.mxu0 0.0
      %819 = vmatprep.subr.mxu0 0.0
      %820 = vmatpush1.msra.mxu0 0.0
      %821 = vmatprep.subr.mxu0 0.0
      %822 = vmatpush1.msra.mxu0 0.0
      %823 = vmatprep.subr.mxu0 0.0
      %824 = vmatpush1.msra.mxu0 0.0
      %825 = vmatprep.subr.mxu0 0.0
      %826 = vmatpush1.msra.mxu0 0.0
      %827 = vmatprep.subr.mxu0 0.0
      %828 = vmatpush1.msra.mxu0 0.0
      %829 = vmatprep.subr.mxu0 0.0
      %830 = vmatpush1.msra.mxu0 0.0
      %831 = vmatprep.subr.mxu0 0.0
      %832 = vmatpush1.msra.mxu0 0.0
      %833 = vmatprep.subr.mxu0 0.0
      %834 = vmatpush1.msra.mxu0 0.0
      %835 = vmatprep.subr.mxu0 0.0
      %836 = vmatpush1.msra.mxu0 0.0
      %837 = vmatprep.subr.mxu0 0.0
      %838 = vmatpush1.msra.mxu0 0.0
      %839 = vmatprep.subr.mxu0 0.0
      %840 = vmatpush1.msra.mxu0 0.0
      %841 = vmatprep.subr.mxu0 0.0
      %842 = vmatpush1.msra.mxu0 0.0
      %843 = vmatprep.subr.mxu0 0.0
      %844 = vmatpush1.msra.mxu0 0.0
      %845 = vmatprep.subr.mxu0 0.0
      %846 = vmatpush1.msra.mxu0 0.0
      %847 = vmatprep.subr.mxu0 0.0
      %848 = vmatpush1.msra.mxu0 0.0
      %849 = vmatprep.subr.mxu0 0.0
      %850 = vmatpush1.msra.mxu0 0.0
      %851 = vmatprep.subr.mxu0 0.0
      %852 = vmatpush1.msra.mxu0 0.0
      %853 = vmatprep.subr.mxu0 0.0
      %854 = vmatpush1.msra.mxu0 0.0
      %855 = vmatprep.subr.mxu0 0.0
      %856 = vmatpush1.msra.mxu0 0.0
      %857 = vmatprep.mubr.f32.mxu0 0.0
      %858 = vmatmul.mubr.f32.gmra.mrb[0].mxu0 %v788
      %v859 = vpop.f32.mrb[0].mxu0
      %v860 = vadd.f32 0.0, %v859
      %v861 = vpop.f32.mrb[0].mxu0
      %862 = vdwg.mxu0
      %v864 = vsel %vm696, %v860, 0
      %866 = vmatprep.subr.mxu0 0.0
      %867 = vmatpush1.msra.mxu0 %v688
      %868 = vmatprep.subr.mxu0 0.0
      %869 = vmatpush1.msra.mxu0 %v689
      %870 = vmatprep.subr.mxu0 0.0
      %871 = vmatpush1.msra.mxu0 0.0
      %872 = vmatprep.subr.mxu0 0.0
      %873 = vmatpush1.msra.mxu0 0.0
      %874 = vmatprep.subr.mxu0 0.0
      %875 = vmatpush1.msra.mxu0 0.0
      %876 = vmatprep.subr.mxu0 0.0
      %877 = vmatpush1.msra.mxu0 0.0
      %878 = vmatprep.subr.mxu0 0.0
      %879 = vmatpush1.msra.mxu0 0.0
      %880 = vmatprep.subr.mxu0 0.0
      %881 = vmatpush1.msra.mxu0 0.0
      %882 = vmatprep.subr.mxu0 0.0
      %883 = vmatpush1.msra.mxu0 0.0
      %884 = vmatprep.subr.mxu0 0.0
      %885 = vmatpush1.msra.mxu0 0.0
      %886 = vmatprep.subr.mxu0 0.0
      %887 = vmatpush1.msra.mxu0 0.0
      %888 = vmatprep.subr.mxu0 0.0
      %889 = vmatpush1.msra.mxu0 0.0
      %890 = vmatprep.subr.mxu0 0.0
      %891 = vmatpush1.msra.mxu0 0.0
      %892 = vmatprep.subr.mxu0 0.0
      %893 = vmatpush1.msra.mxu0 0.0
      %894 = vmatprep.subr.mxu0 0.0
      %895 = vmatpush1.msra.mxu0 0.0
      %896 = vmatprep.subr.mxu0 0.0
      %897 = vmatpush1.msra.mxu0 0.0
      %898 = vmatprep.subr.mxu0 0.0
      %899 = vmatpush1.msra.mxu0 0.0
      %900 = vmatprep.subr.mxu0 0.0
      %901 = vmatpush1.msra.mxu0 0.0
      %902 = vmatprep.subr.mxu0 0.0
      %903 = vmatpush1.msra.mxu0 0.0
      %904 = vmatprep.subr.mxu0 0.0
      %905 = vmatpush1.msra.mxu0 0.0
      %906 = vmatprep.subr.mxu0 0.0
      %907 = vmatpush1.msra.mxu0 0.0
      %908 = vmatprep.subr.mxu0 0.0
      %909 = vmatpush1.msra.mxu0 0.0
      %910 = vmatprep.subr.mxu0 0.0
      %911 = vmatpush1.msra.mxu0 0.0
      %912 = vmatprep.subr.mxu0 0.0
      %913 = vmatpush1.msra.mxu0 0.0
      %914 = vmatprep.subr.mxu0 0.0
      %915 = vmatpush1.msra.mxu0 0.0
      %916 = vmatprep.subr.mxu0 0.0
      %917 = vmatpush1.msra.mxu0 0.0
      %918 = vmatprep.subr.mxu0 0.0
      %919 = vmatpush1.msra.mxu0 0.0
      %920 = vmatprep.subr.mxu0 0.0
      %921 = vmatpush1.msra.mxu0 0.0
      %922 = vmatprep.subr.mxu0 0.0
      %923 = vmatpush1.msra.mxu0 0.0
      %924 = vmatprep.subr.mxu0 0.0
      %925 = vmatpush1.msra.mxu0 0.0
      %926 = vmatprep.subr.mxu0 0.0
      %927 = vmatpush1.msra.mxu0 0.0
      %928 = vmatprep.subr.mxu0 0.0
      %929 = vmatpush1.msra.mxu0 0.0
      %930 = vmatprep.mubr.f32.mxu0 0.0
      %931 = vmatmul.mubr.f32.gmra.mrb[0].mxu0 %v864
      %v932 = vpop.f32.mrb[0].mxu0
      %v933 = vadd.f32 0.0, %v932
      %v934 = vpop.f32.mrb[0].mxu0
      %935 = vdwg.mxu0
      %v937 = vlaneseq
      %v938 = vshrl.u32 %v937, 7
      %v939 = vsub.s32 0, %v938
      %v940 = vrot.slane %v692, %v939
      %v942 = vadd.f32 %v940, %v933
      %943 = vrot.lane.b32.xlu0 %v685, 112
      %v944 = vpop.permute.xlu0 %943
      %945 = vrot.lane.b32.xlu0 %v685, 80
      %v946 = vpop.permute.xlu0 %945
      %v947 = vsel %vm696, %v944, 0
      %v949 = vsel %vm696, %v946, 0
      %951 = vmatprep.subr.mxu0 0.0
      %952 = vmatpush1.xpose.msra.mxu0 %v949
      %953 = vmatprep.subr.mxu0 0.0
      %954 = vmatpush1.xpose.msra.mxu0 0.0
      %955 = vmatprep.subr.mxu0 0.0
      %956 = vmatpush1.xpose.msra.mxu0 0.0
      %957 = vmatprep.subr.mxu0 0.0
      %958 = vmatpush1.xpose.msra.mxu0 0.0
      %959 = vmatprep.subr.mxu0 0.0
      %960 = vmatpush1.xpose.msra.mxu0 0.0
      %961 = vmatprep.subr.mxu0 0.0
      %962 = vmatpush1.xpose.msra.mxu0 0.0
      %963 = vmatprep.subr.mxu0 0.0
      %964 = vmatpush1.xpose.msra.mxu0 0.0
      %965 = vmatprep.subr.mxu0 0.0
      %966 = vmatpush1.xpose.msra.mxu0 0.0
      %967 = vmatprep.subr.mxu0 0.0
      %968 = vmatpush1.xpose.msra.mxu0 0.0
      %969 = vmatprep.subr.mxu0 0.0
      %970 = vmatpush1.xpose.msra.mxu0 0.0
      %971 = vmatprep.subr.mxu0 0.0
      %972 = vmatpush1.xpose.msra.mxu0 0.0
      %973 = vmatprep.subr.mxu0 0.0
      %974 = vmatpush1.xpose.msra.mxu0 0.0
      %975 = vmatprep.subr.mxu0 0.0
      %976 = vmatpush1.xpose.msra.mxu0 0.0
      %977 = vmatprep.subr.mxu0 0.0
      %978 = vmatpush1.xpose.msra.mxu0 0.0
      %979 = vmatprep.subr.mxu0 0.0
      %980 = vmatpush1.xpose.msra.mxu0 0.0
      %981 = vmatprep.subr.mxu0 0.0
      %982 = vmatpush1.xpose.msra.mxu0 0.0
      %983 = vmatprep.subr.mxu0 0.0
      %984 = vmatpush1.xpose.msra.mxu0 0.0
      %985 = vmatprep.subr.mxu0 0.0
      %986 = vmatpush1.xpose.msra.mxu0 0.0
      %987 = vmatprep.subr.mxu0 0.0
      %988 = vmatpush1.xpose.msra.mxu0 0.0
      %989 = vmatprep.subr.mxu0 0.0
      %990 = vmatpush1.xpose.msra.mxu0 0.0
      %991 = vmatprep.subr.mxu0 0.0
      %992 = vmatpush1.xpose.msra.mxu0 0.0
      %993 = vmatprep.subr.mxu0 0.0
      %994 = vmatpush1.xpose.msra.mxu0 0.0
      %995 = vmatprep.subr.mxu0 0.0
      %996 = vmatpush1.xpose.msra.mxu0 0.0
      %997 = vmatprep.subr.mxu0 0.0
      %998 = vmatpush1.xpose.msra.mxu0 0.0
      %999 = vmatprep.subr.mxu0 0.0
      %1000 = vmatpush1.xpose.msra.mxu0 0.0
      %1001 = vmatprep.subr.mxu0 0.0
      %1002 = vmatpush1.xpose.msra.mxu0 0.0
      %1003 = vmatprep.subr.mxu0 0.0
      %1004 = vmatpush1.xpose.msra.mxu0 0.0
      %1005 = vmatprep.subr.mxu0 0.0
      %1006 = vmatpush1.xpose.msra.mxu0 0.0
      %1007 = vmatprep.subr.mxu0 0.0
      %1008 = vmatpush1.xpose.msra.mxu0 0.0
      %1009 = vmatprep.subr.mxu0 0.0
      %1010 = vmatpush1.xpose.msra.mxu0 0.0
      %1011 = vmatprep.subr.mxu0 0.0
      %1012 = vmatpush1.xpose.msra.mxu0 0.0
      %1013 = vmatprep.subr.mxu0 0.0
      %1014 = vmatpush1.xpose.msra.mxu0 0.0
      %1015 = vmatprep.mubr.f32.mxu0 0.0
      %1016 = vmatmul.mubr.f32.gmra.mrb[0].mxu0 %v947
      %v1017 = vpop.f32.mrb[0].mxu0
      %v1018 = vadd.f32 0.0, %v1017
      %v1019 = vpop.f32.mrb[0].mxu0
      %1020 = vdwg.mxu0
      %v1021 = vmul.f32 %v1018, 0.25
      %v1022 = vsel %vm772, %v1021, -inf
      %1023 = vmax.xlane.f32.xlu0 %v1022
      %v1024 = vpop.xlane.xlu0 %1023
      %v1025 = vsub.f32 %v1021, %v1024
      %v1026 = vmul.f32 %v1025, 1.442695
      %v1027 = vpow.pop %v1026
      %v1028 = vsel %vm772, %v1027, 0.0
      %1029 = vadd.xlane.f32.xlu0 %v1028
      %v1030 = vpop.xlane.xlu0 %1029
      %v1031 = vrcp.pop %v1030
      %v1032 = vmul.f32 %v1027, %v1031
      %1033 = vrot.lane.b32.xlu0 %v685, 48
      %v1034 = vpop.permute.xlu0 %1033
      %v1036 = vsel %vm786, %v1032, 0
      %v1038 = vsel %vm790, %v1034, 0
      %1040 = vmatprep.subr.mxu0 0.0
      %1041 = vmatpush1.msra.mxu0 %v1038
      %1042 = vmatprep.subr.mxu0 0.0
      %1043 = vmatpush1.msra.mxu0 0.0
      %1044 = vmatprep.subr.mxu0 0.0
      %1045 = vmatpush1.msra.mxu0 0.0
      %1046 = vmatprep.subr.mxu0 0.0
      %1047 = vmatpush1.msra.mxu0 0.0
      %1048 = vmatprep.subr.mxu0 0.0
      %1049 = vmatpush1.msra.mxu0 0.0
      %1050 = vmatprep.subr.mxu0 0.0
      %1051 = vmatpush1.msra.mxu0 0.0
      %1052 = vmatprep.subr.mxu0 0.0
      %1053 = vmatpush1.msra.mxu0 0.0
      %1054 = vmatprep.subr.mxu0 0.0
      %1055 = vmatpush1.msra.mxu0 0.0
      %1056 = vmatprep.subr.mxu0 0.0
      %1057 = vmatpush1.msra.mxu0 0.0
      %1058 = vmatprep.subr.mxu0 0.0
      %1059 = vmatpush1.msra.mxu0 0.0
      %1060 = vmatprep.subr.mxu0 0.0
      %1061 = vmatpush1.msra.mxu0 0.0
      %1062 = vmatprep.subr.mxu0 0.0
      %1063 = vmatpush1.msra.mxu0 0.0
      %1064 = vmatprep.subr.mxu0 0.0
      %1065 = vmatpush1.msra.mxu0 0.0
      %1066 = vmatprep.subr.mxu0 0.0
      %1067 = vmatpush1.msra.mxu0 0.0
      %1068 = vmatprep.subr.mxu0 0.0
      %1069 = vmatpush1.msra.mxu0 0.0
      %1070 = vmatprep.subr.mxu0 0.0
      %1071 = vmatpush1.msra.mxu0 0.0
      %1072 = vmatprep.subr.mxu0 0.0
      %1073 = vmatpush1.msra.mxu0 0.0
      %1074 = vmatprep.subr.mxu0 0.0
      %1075 = vmatpush1.msra.mxu0 0.0
      %1076 = vmatprep.subr.mxu0 0.0
      %1077 = vmatpush1.msra.mxu0 0.0
      %1078 = vmatprep.subr.mxu0 0.0
      %1079 = vmatpush1.msra.mxu0 0.0
      %1080 = vmatprep.subr.mxu0 0.0
      %1081 = vmatpush1.msra.mxu0 0.0
      %1082 = vmatprep.subr.mxu0 0.0
      %1083 = vmatpush1.msra.mxu0 0.0
      %1084 = vmatprep.subr.mxu0 0.0
      %1085 = vmatpush1.msra.mxu0 0.0
      %1086 = vmatprep.subr.mxu0 0.0
      %1087 = vmatpush1.msra.mxu0 0.0
      %1088 = vmatprep.subr.mxu0 0.0
      %1089 = vmatpush1.msra.mxu0 0.0
      %1090 = vmatprep.subr.mxu0 0.0
      %1091 = vmatpush1.msra.mxu0 0.0
      %1092 = vmatprep.subr.mxu0 0.0
      %1093 = vmatpush1.msra.mxu0 0.0
      %1094 = vmatprep.subr.mxu0 0.0
      %1095 = vmatpush1.msra.mxu0 0.0
      %1096 = vmatprep.subr.mxu0 0.0
      %1097 = vmatpush1.msra.mxu0 0.0
      %1098 = vmatprep.subr.mxu0 0.0
      %1099 = vmatpush1.msra.mxu0 0.0
      %1100 = vmatprep.subr.mxu0 0.0
      %1101 = vmatpush1.msra.mxu0 0.0
      %1102 = vmatprep.subr.mxu0 0.0
      %1103 = vmatpush1.msra.mxu0 0.0
      %1104 = vmatprep.mubr.f32.mxu0 0.0
      %1105 = vmatmul.mubr.f32.gmra.mrb[0].mxu0 %v1036
      %v1106 = vpop.f32.mrb[0].mxu0
      %v1107 = vadd.f32 0.0, %v1106
      %v1108 = vpop.f32.mrb[0].mxu0
      %1109 = vdwg.mxu0
      %v1111 = vsel %vm696, %v1107, 0
      %1113 = vmatprep.subr.mxu0 0.0
      %1114 = vmatpush1.msra.mxu0 %v690
      %1115 = vmatprep.subr.mxu0 0.0
      %1116 = vmatpush1.msra.mxu0 %v691
      %1117 = vmatprep.subr.mxu0 0.0
      %1118 = vmatpush1.msra.mxu0 0.0
      %1119 = vmatprep.subr.mxu0 0.0
      %1120 = vmatpush1.msra.mxu0 0.0
      %1121 = vmatprep.subr.mxu0 0.0
      %1122 = vmatpush1.msra.mxu0 0.0
      %1123 = vmatprep.subr.mxu0 0.0
      %1124 = vmatpush1.msra.mxu0 0.0
      %1125 = vmatprep.subr.mxu0 0.0
      %1126 = vmatpush1.msra.mxu0 0.0
      %1127 = vmatprep.subr.mxu0 0.0
      %1128 = vmatpush1.msra.mxu0 0.0
      %1129 = vmatprep.subr.mxu0 0.0
      %1130 = vmatpush1.msra.mxu0 0.0
      %1131 = vmatprep.subr.mxu0 0.0
      %1132 = vmatpush1.msra.mxu0 0.0
      %1133 = vmatprep.subr.mxu0 0.0
      %1134 = vmatpush1.msra.mxu0 0.0
      %1135 = vmatprep.subr.mxu0 0.0
      %1136 = vmatpush1.msra.mxu0 0.0
      %1137 = vmatprep.subr.mxu0 0.0
      %1138 = vmatpush1.msra.mxu0 0.0
      %1139 = vmatprep.subr.mxu0 0.0
      %1140 = vmatpush1.msra.mxu0 0.0
      %1141 = vmatprep.subr.mxu0 0.0
      %1142 = vmatpush1.msra.mxu0 0.0
      %1143 = vmatprep.subr.mxu0 0.0
      %1144 = vmatpush1.msra.mxu0 0.0
      %1145 = vmatprep.subr.mxu0 0.0
      %1146 = vmatpush1.msra.mxu0 0.0
      %1147 = vmatprep.subr.mxu0 0.0
      %1148 = vmatpush1.msra.mxu0 0.0
      %1149 = vmatprep.subr.mxu0 0.0
      %1150 = vmatpush1.msra.mxu0 0.0
      %1151 = vmatprep.subr.mxu0 0.0
      %1152 = vmatpush1.msra.mxu0 0.0
      %1153 = vmatprep.subr.mxu0 0.0
      %1154 = vmatpush1.msra.mxu0 0.0
      %1155 = vmatprep.subr.mxu0 0.0
      %1156 = vmatpush1.msra.mxu0 0.0
      %1157 = vmatprep.subr.mxu0 0.0
      %1158 = vmatpush1.msra.mxu0 0.0
      %1159 = vmatprep.subr.mxu0 0.0
      %1160 = vmatpush1.msra.mxu0 0.0
      %1161 = vmatprep.subr.mxu0 0.0
      %1162 = vmatpush1.msra.mxu0 0.0
      %1163 = vmatprep.subr.mxu0 0.0
      %1164 = vmatpush1.msra.mxu0 0.0
      %1165 = vmatprep.subr.mxu0 0.0
      %1166 = vmatpush1.msra.mxu0 0.0
      %1167 = vmatprep.subr.mxu0 0.0
      %1168 = vmatpush1.msra.mxu0 0.0
      %1169 = vmatprep.subr.mxu0 0.0
      %1170 = vmatpush1.msra.mxu0 0.0
      %1171 = vmatprep.subr.mxu0 0.0
      %1172 = vmatpush1.msra.mxu0 0.0
      %1173 = vmatprep.subr.mxu0 0.0
      %1174 = vmatpush1.msra.mxu0 0.0
      %1175 = vmatprep.subr.mxu0 0.0
      %1176 = vmatpush1.msra.mxu0 0.0
      %1177 = vmatprep.mubr.f32.mxu0 0.0
      %1178 = vmatmul.mubr.f32.gmra.mrb[0].mxu0 %v1111
      %v1179 = vpop.f32.mrb[0].mxu0
      %v1180 = vadd.f32 0.0, %v1179
      %v1181 = vpop.f32.mrb[0].mxu0
      %1182 = vdwg.mxu0
      %v1183 = vadd.f32 %v942, %v1180
      %v1184 = vadd.f32 %v573, %v1183
      %v1185 = vld [vmem:[%s9] sm:$0x1]
      %v1186 = vld [vmem:[%s10] sm:$0x1]
      %v1187 = vsel %vm545, %v1184, 0.0
      %1188 = vadd.xlane.f32.xlu0 %v1187
      %v1189 = vpop.xlane.xlu0 %1188
      %v1190 = vmul.f32 %v1189, %v549
      %v1191 = vsub.f32 %v1184, %v1190
      %v1192 = vmul.f32 %v1191, %v1191
      %v1193 = vsel %vm545, %v1192, 0.0
      %1194 = vadd.xlane.f32.xlu0 %v1193
      %v1195 = vpop.xlane.xlu0 %1194
      %v1196 = vmul.f32 %v1195, %v549
      %v1197 = vadd.f32 %v1196, 1e-05
      %v1198 = vrsqrt.pop %v1197
      %v1199 = vmul.f32 %v1191, %v1198
      %v1201 = vlaneseq
      %v1202 = vshrl.u32 %v1201, 7
      %v1203 = vsub.s32 0, %v1202
      %v1204 = vrot.slane %v1185, %v1203
      %v1206 = vmul.f32 %v1199, %v1204
      %v1208 = vlaneseq
      %v1209 = vshrl.u32 %v1208, 7
      %v1210 = vsub.s32 0, %v1209
      %v1211 = vrot.slane %v1186, %v1210
      %v1213 = vadd.f32 %v1206, %v1211
      %v1214 = vld [vmem:[%s11] sm:$0xff]
      %v1215 = vld [vmem:[%s11 + $0x8] sm:$0xff]
      %v1216 = vld [vmem:[%s11 + $0x10] sm:$0xff]
      %v1217 = vld [vmem:[%s11 + $0x18] sm:$0xff]
      %v1218 = vld [vmem:[%s12] sm:$0x1]
      %v1220 = vlaneseq
      %v1221 = vshrl.u32 %v1220, 7
      %v1222 = vsub.s32 0, %v1221
      %v1223 = vrot.slane %v1218, %v1222
      %v1226 = vsel %vm614, %v1213, 0
      %1228 = vmatprep.subr.mxu0 0.0
      %1229 = vmatpush1.msra.mxu0 %v1214
      %1230 = vmatprep.subr.mxu0 0.0
      %1231 = vmatpush1.msra.mxu0 %v1215
      %1232 = vmatprep.subr.mxu0 0.0
      %1233 = vmatpush1.msra.mxu0 %v1216
      %1234 = vmatprep.subr.mxu0 0.0
      %1235 = vmatpush1.msra.mxu0 %v1217
      %1236 = vmatprep.subr.mxu0 0.0
      %1237 = vmatpush1.msra.mxu0 0.0
      %1238 = vmatprep.subr.mxu0 0.0
      %1239 = vmatpush1.msra.mxu0 0.0
      %1240 = vmatprep.subr.mxu0 0.0
      %1241 = vmatpush1.msra.mxu0 0.0
      %1242 = vmatprep.subr.mxu0 0.0
      %1243 = vmatpush1.msra.mxu0 0.0
      %1244 = vmatprep.subr.mxu0 0.0
      %1245 = vmatpush1.msra.mxu0 0.0
      %1246 = vmatprep.subr.mxu0 0.0
      %1247 = vmatpush1.msra.mxu0 0.0
      %1248 = vmatprep.subr.mxu0 0.0
      %1249 = vmatpush1.msra.mxu0 0.0
      %1250 = vmatprep.subr.mxu0 0.0
      %1251 = vmatpush1.msra.mxu0 0.0
      %1252 = vmatprep.subr.mxu0 0.0
      %1253 = vmatpush1.msra.mxu0 0.0
      %1254 = vmatprep.subr.mxu0 0.0
      %1255 = vmatpush1.msra.mxu0 0.0
      %1256 = vmatprep.subr.mxu0 0.0
      %1257 = vmatpush1.msra.mxu0 0.0
      %1258 = vmatprep.subr.mxu0 0.0
      %1259 = vmatpush1.msra.mxu0 0.0
      %1260 = vmatprep.subr.mxu0 0.0
      %1261 = vmatpush1.msra.mxu0 0.0
      %1262 = vmatprep.subr.mxu0 0.0
      %1263 = vmatpush1.msra.mxu0 0.0
      %1264 = vmatprep.subr.mxu0 0.0
      %1265 = vmatpush1.msra.mxu0 0.0
      %1266 = vmatprep.subr.mxu0 0.0
      %1267 = vmatpush1.msra.mxu0 0.0
      %1268 = vmatprep.subr.mxu0 0.0
      %1269 = vmatpush1.msra.mxu0 0.0
      %1270 = vmatprep.subr.mxu0 0.0
      %1271 = vmatpush1.msra.mxu0 0.0
      %1272 = vmatprep.subr.mxu0 0.0
      %1273 = vmatpush1.msra.mxu0 0.0
      %1274 = vmatprep.subr.mxu0 0.0
      %1275 = vmatpush1.msra.mxu0 0.0
      %1276 = vmatprep.subr.mxu0 0.0
      %1277 = vmatpush1.msra.mxu0 0.0
      %1278 = vmatprep.subr.mxu0 0.0
      %1279 = vmatpush1.msra.mxu0 0.0
      %1280 = vmatprep.subr.mxu0 0.0
      %1281 = vmatpush1.msra.mxu0 0.0
      %1282 = vmatprep.subr.mxu0 0.0
      %1283 = vmatpush1.msra.mxu0 0.0
      %1284 = vmatprep.subr.mxu0 0.0
      %1285 = vmatpush1.msra.mxu0 0.0
      %1286 = vmatprep.subr.mxu0 0.0
      %1287 = vmatpush1.msra.mxu0 0.0
      %1288 = vmatprep.subr.mxu0 0.0
      %1289 = vmatpush1.msra.mxu0 0.0
      %1290 = vmatprep.subr.mxu0 0.0
      %1291 = vmatpush1.msra.mxu0 0.0
      %1292 = vmatprep.mubr.f32.mxu0 0.0
      %1293 = vmatmul.mubr.f32.gmra.mrb[0].mxu0 %v1226
      %v1294 = vpop.f32.mrb[0].mxu0
      %v1295 = vadd.f32 %v1223, %v1294
      %v1296 = vpop.f32.mrb[0].mxu0
      %1297 = vdwg.mxu0
      %v1298 = vmul.f32 %v1295, %v1295
      %v1299 = vmul.f32 %v1295, %v1298
      %v1300 = vmul.f32 %v1299, 0.044715
      %v1301 = vadd.f32 %v1295, %v1300
      %v1302 = vmul.f32 %v1301, 0.7978846
      %v1303 = vtanh.pop %v1302
      %v1304 = vadd.f32 %v1303, 1.0
      %v1305 = vmul.f32 %v1304, 0.5
      %v1306 = vmul.f32 %v1295, %v1305
      %v1307 = vld [vmem:[%s13] sm:$0xff]
      %v1308 = vld [vmem:[%s13 + $0x8] sm:$0xff]
      %v1309 = vld [vmem:[%s13 + $0x10] sm:$0xff]
      %v1310 = vld [vmem:[%s13 + $0x18] sm:$0xff]
      %v1311 = vld [vmem:[%s13 + $0x20] sm:$0xff]
      %v1312 = vld [vmem:[%s13 + $0x28] sm:$0xff]
      %v1313 = vld [vmem:[%s13 + $0x30] sm:$0xff]
      %v1314 = vld [vmem:[%s13 + $0x38] sm:$0xff]
      %v1315 = vld [vmem:[%s13 + $0x40] sm:$0xff]
      %v1316 = vld [vmem:[%s13 + $0x48] sm:$0xff]
      %v1317 = vld [vmem:[%s13 + $0x50] sm:$0xff]
      %v1318 = vld [vmem:[%s13 + $0x58] sm:$0xff]
      %v1319 = vld [vmem:[%s13 + $0x60] sm:$0xff]
      %v1320 = vld [vmem:[%s13 + $0x68] sm:$0xff]
      %v1321 = vld [vmem:[%s13 + $0x70] sm:$0xff]
      %v1322 = vld [vmem:[%s13 + $0x78] sm:$0xff]
      %v1323 = vld [vmem:[%s14] sm:$0x1]
      %v1325 = vlaneseq
      %v1326 = vshrl.u32 %v1325, 7
      %v1327 = vsub.s32 0, %v1326
      %v1328 = vrot.slane %v1323, %v1327
      %1330 = vmatprep.subr.mxu0 0.0
      %1331 = vmatpush1.msra.mxu0 %v1307
      %1332 = vmatprep.subr.mxu0 0.0
      %1333 = vmatpush1.msra.mxu0 %v1308
      %1334 = vmatprep.subr.mxu0 0.0
      %1335 = vmatpush1.msra.mxu0 %v1309
      %1336 = vmatprep.subr.mxu0 0.0
      %1337 = vmatpush1.msra.mxu0 %v1310
      %1338 = vmatprep.subr.mxu0 0.0
      %1339 = vmatpush1.msra.mxu0 %v1311
      %1340 = vmatprep.subr.mxu0 0.0
      %1341 = vmatpush1.msra.mxu0 %v1312
      %1342 = vmatprep.subr.mxu0 0.0
      %1343 = vmatpush1.msra.mxu0 %v1313
      %1344 = vmatprep.subr.mxu0 0.0
      %1345 = vmatpush1.msra.mxu0 %v1314
      %1346 = vmatprep.subr.mxu0 0.0
      %1347 = vmatpush1.msra.mxu0 %v1315
      %1348 = vmatprep.subr.mxu0 0.0
      %1349 = vmatpush1.msra.mxu0 %v1316
      %1350 = vmatprep.subr.mxu0 0.0
      %1351 = vmatpush1.msra.mxu0 %v1317
      %1352 = vmatprep.subr.mxu0 0.0
      %1353 = vmatpush1.msra.mxu0 %v1318
      %1354 = vmatprep.subr.mxu0 0.0
      %1355 = vmatpush1.msra.mxu0 %v1319
      %1356 = vmatprep.subr.mxu0 0.0
      %1357 = vmatpush1.msra.mxu0 %v1320
      %1358 = vmatprep.subr.mxu0 0.0
      %1359 = vmatpush1.msra.mxu0 %v1321
      %1360 = vmatprep.subr.mxu0 0.0
      %1361 = vmatpush1.msra.mxu0 %v1322
      %1362 = vmatprep.subr.mxu0 0.0
      %1363 = vmatpush1.msra.mxu0 0.0
      %1364 = vmatprep.subr.mxu0 0.0
      %1365 = vmatpush1.msra.mxu0 0.0
      %1366 = vmatprep.subr.mxu0 0.0
      %1367 = vmatpush1.msra.mxu0 0.0
      %1368 = vmatprep.subr.mxu0 0.0
      %1369 = vmatpush1.msra.mxu0 0.0
      %1370 = vmatprep.subr.mxu0 0.0
      %1371 = vmatpush1.msra.mxu0 0.0
      %1372 = vmatprep.subr.mxu0 0.0
      %1373 = vmatpush1.msra.mxu0 0.0
      %1374 = vmatprep.subr.mxu0 0.0
      %1375 = vmatpush1.msra.mxu0 0.0
      %1376 = vmatprep.subr.mxu0 0.0
      %1377 = vmatpush1.msra.mxu0 0.0
      %1378 = vmatprep.subr.mxu0 0.0
      %1379 = vmatpush1.msra.mxu0 0.0
      %1380 = vmatprep.subr.mxu0 0.0
      %1381 = vmatpush1.msra.mxu0 0.0
      %1382 = vmatprep.subr.mxu0 0.0
      %1383 = vmatpush1.msra.mxu0 0.0
      %1384 = vmatprep.subr.mxu0 0.0
      %1385 = vmatpush1.msra.mxu0 0.0
      %1386 = vmatprep.subr.mxu0 0.0
      %1387 = vmatpush1.msra.mxu0 0.0
      %1388 = vmatprep.subr.mxu0 0.0
      %1389 = vmatpush1.msra.mxu0 0.0
      %1390 = vmatprep.subr.mxu0 0.0
      %1391 = vmatpush1.msra.mxu0 0.0
      %1392 = vmatprep.subr.mxu0 0.0
      %1393 = vmatpush1.msra.mxu0 0.0
      %1394 = vmatprep.mubr.f32.mxu0 0.0
      %1395 = vmatmul.mubr.f32.gmra.mrb[0].mxu0 %v1306
      %v1396 = vpop.f32.mrb[0].mxu0
      %v1397 = vadd.f32 %v1328, %v1396
      %v1398 = vpop.f32.mrb[0].mxu0
      %1399 = vdwg.mxu0
      %v1400 = vadd.f32 %v1184, %v1397
      %s1401 = scalar_lea.vmem %s3, 1
      %v1402 = vld [vmem:[%s1401] sm:$0x1]
      %s1403 = scalar_lea.vmem %s4, 1
      %v1404 = vld [vmem:[%s1403] sm:$0x1]
      %v1405 = vsel %vm545, %v1400, 0.0
      %1406 = vadd.xlane.f32.xlu0 %v1405
      %v1407 = vpop.xlane.xlu0 %1406
      %v1408 = vmul.f32 %v1407, %v549
      %v1409 = vsub.f32 %v1400, %v1408
      %v1410 = vmul.f32 %v1409, %v1409
      %v1411 = vsel %vm545, %v1410, 0.0
      %1412 = vadd.xlane.f32.xlu0 %v1411
      %v1413 = vpop.xlane.xlu0 %1412
      %v1414 = vmul.f32 %v1413, %v549
      %v1415 = vadd.f32 %v1414, 1e-05
      %v1416 = vrsqrt.pop %v1415
      %v1417 = vmul.f32 %v1409, %v1416
      %v1419 = vlaneseq
      %v1420 = vshrl.u32 %v1419, 7
      %v1421 = vsub.s32 0, %v1420
      %v1422 = vrot.slane %v1402, %v1421
      %v1424 = vmul.f32 %v1417, %v1422
      %v1426 = vlaneseq
      %v1427 = vshrl.u32 %v1426, 7
      %v1428 = vsub.s32 0, %v1427
      %v1429 = vrot.slane %v1404, %v1428
      %v1431 = vadd.f32 %v1424, %v1429
      %s1432 = scalar_lea.vmem %s5, 32
      %v1433 = vld [vmem:[%s1432] sm:$0xff]
      %v1434 = vld [vmem:[%s1432 + $0x8] sm:$0xff]
      %v1435 = vld [vmem:[%s1432 + $0x10] sm:$0xff]
      %v1436 = vld [vmem:[%s1432 + $0x18] sm:$0xff]
      %s1437 = scalar_lea.vmem %s6, 1
      %v1438 = vld [vmem:[%s1437] sm:$0x1]
      %v1440 = vlaneseq
      %v1441 = vshrl.u32 %v1440, 7
      %v1442 = vsub.s32 0, %v1441
      %v1443 = vrot.slane %v1438, %v1442
      %v1446 = vsel %vm614, %v1431, 0
      %1448 = vmatprep.subr.mxu0 0.0
      %1449 = vmatpush1.msra.mxu0 %v1433
      %1450 = vmatprep.subr.mxu0 0.0
      %1451 = vmatpush1.msra.mxu0 %v1434
      %1452 = vmatprep.subr.mxu0 0.0
      %1453 = vmatpush1.msra.mxu0 %v1435
      %1454 = vmatprep.subr.mxu0 0.0
      %1455 = vmatpush1.msra.mxu0 %v1436
      %1456 = vmatprep.subr.mxu0 0.0
      %1457 = vmatpush1.msra.mxu0 0.0
      %1458 = vmatprep.subr.mxu0 0.0
      %1459 = vmatpush1.msra.mxu0 0.0
      %1460 = vmatprep.subr.mxu0 0.0
      %1461 = vmatpush1.msra.mxu0 0.0
      %1462 = vmatprep.subr.mxu0 0.0
      %1463 = vmatpush1.msra.mxu0 0.0
      %1464 = vmatprep.subr.mxu0 0.0
      %1465 = vmatpush1.msra.mxu0 0.0
      %1466 = vmatprep.subr.mxu0 0.0
      %1467 = vmatpush1.msra.mxu0 0.0
      %1468 = vmatprep.subr.mxu0 0.0
      %1469 = vmatpush1.msra.mxu0 0.0
      %1470 = vmatprep.subr.mxu0 0.0
      %1471 = vmatpush1.msra.mxu0 0.0
      %1472 = vmatprep.subr.mxu0 0.0
      %1473 = vmatpush1.msra.mxu0 0.0
      %1474 = vmatprep.subr.mxu0 0.0
      %1475 = vmatpush1.msra.mxu0 0.0
      %1476 = vmatprep.subr.mxu0 0.0
      %1477 = vmatpush1.msra.mxu0 0.0
      %1478 = vmatprep.subr.mxu0 0.0
      %1479 = vmatpush1.msra.mxu0 0.0
      %1480 = vmatprep.subr.mxu0 0.0
      %1481 = vmatpush1.msra.mxu0 0.0
      %1482 = vmatprep.subr.mxu0 0.0
      %1483 = vmatpush1.msra.mxu0 0.0
      %1484 = vmatprep.subr.mxu0 0.0
      %1485 = vmatpush1.msra.mxu0 0.0
      %1486 = vmatprep.subr.mxu0 0.0
      %1487 = vmatpush1.msra.mxu0 0.0
      %1488 = vmatprep.subr.mxu0 0.0
      %1489 = vmatpush1.msra.mxu0 0.0
      %1490 = vmatprep.subr.mxu0 0.0
      %1491 = vmatpush1.msra.mxu0 0.0
      %1492 = vmatprep.subr.mxu0 0.0
      %1493 = vmatpush1.msra.mxu0 0.0
      %1494 = vmatprep.subr.mxu0 0.0
      %1495 = vmatpush1.msra.mxu0 0.0
      %1496 = vmatprep.subr.mxu0 0.0
      %1497 = vmatpush1.msra.mxu0 0.0
      %1498 = vmatprep.subr.mxu0 0.0
      %1499 = vmatpush1.msra.mxu0 0.0
      %1500 = vmatprep.subr.mxu0 0.0
      %1501 = vmatpush1.msra.mxu0 0.0
      %1502 = vmatprep.subr.mxu0 0.0
      %1503 = vmatpush1.msra.mxu0 0.0
      %1504 = vmatprep.subr.mxu0 0.0
      %1505 = vmatpush1.msra.mxu0 0.0
      %1506 = vmatprep.subr.mxu0 0.0
      %1507 = vmatpush1.msra.mxu0 0.0
      %1508 = vmatprep.subr.mxu0 0.0
      %1509 = vmatpush1.msra.mxu0 0.0
      %1510 = vmatprep.subr.mxu0 0.0
      %1511 = vmatpush1.msra.mxu0 0.0
      %1512 = vmatprep.mubr.f32.mxu0 0.0
      %1513 = vmatmul.mubr.f32.gmra.mrb[0].mxu0 %v1446
      %v1514 = vpop.f32.mrb[0].mxu0
      %v1515 = vadd.f32 %v1443, %v1514
      %v1516 = vpop.f32.mrb[0].mxu0
      %1517 = vdwg.mxu0
      %s1518 = scalar_lea.vmem %s7, 32
      %v1519 = vld [vmem:[%s1518] sm:$0xff]
      %v1520 = vld [vmem:[%s1518 + $0x8] sm:$0xff]
      %v1521 = vld [vmem:[%s1518 + $0x10] sm:$0xff]
      %v1522 = vld [vmem:[%s1518 + $0x18] sm:$0xff]
      %s1523 = scalar_lea.vmem %s8, 1
      %v1524 = vld [vmem:[%s1523] sm:$0x1]
      %1526 = vrot.lane.b32.xlu0 %v1515, 96
      %v1527 = vpop.permute.xlu0 %1526
      %v1528 = vsel %vm696, %v1515, 0
      %v1530 = vsel %vm696, %v1527, 0
      %1532 = vmatprep.subr.mxu0 0.0
      %1533 = vmatpush1.xpose.msra.mxu0 %v1530
      %1534 = vmatprep.subr.mxu0 0.0
      %1535 = vmatpush1.xpose.msra.mxu0 0.0
      %1536 = vmatprep.subr.mxu0 0.0
      %1537 = vmatpush1.xpose.msra.mxu0 0.0
      %1538 = vmatprep.subr.mxu0 0.0
      %1539 = vmatpush1.xpose.msra.mxu0 0.0
      %1540 = vmatprep.subr.mxu0 0.0
      %1541 = vmatpush1.xpose.msra.mxu0 0.0
      %1542 = vmatprep.subr.mxu0 0.0
      %1543 = vmatpush1.xpose.msra.mxu0 0.0
      %1544 = vmatprep.subr.mxu0 0.0
      %1545 = vmatpush1.xpose.msra.mxu0 0.0
      %1546 = vmatprep.subr.mxu0 0.0
      %1547 = vmatpush1.xpose.msra.mxu0 0.0
      %1548 = vmatprep.subr.mxu0 0.0
      %1549 = vmatpush1.xpose.msra.mxu0 0.0
      %1550 = vmatprep.subr.mxu0 0.0
      %1551 = vmatpush1.xpose.msra.mxu0 0.0
      %1552 = vmatprep.subr.mxu0 0.0
      %1553 = vmatpush1.xpose.msra.mxu0 0.0
      %1554 = vmatprep.subr.mxu0 0.0
      %1555 = vmatpush1.xpose.msra.mxu0 0.0
      %1556 = vmatprep.subr.mxu0 0.0
      %1557 = vmatpush1.xpose.msra.mxu0 0.0
      %1558 = vmatprep.subr.mxu0 0.0
      %1559 = vmatpush1.xpose.msra.mxu0 0.0
      %1560 = vmatprep.subr.mxu0 0.0
      %1561 = vmatpush1.xpose.msra.mxu0 0.0
      %1562 = vmatprep.subr.mxu0 0.0
      %1563 = vmatpush1.xpose.msra.mxu0 0.0
      %1564 = vmatprep.subr.mxu0 0.0
      %1565 = vmatpush1.xpose.msra.mxu0 0.0
      %1566 = vmatprep.subr.mxu0 0.0
      %1567 = vmatpush1.xpose.msra.mxu0 0.0
      %1568 = vmatprep.subr.mxu0 0.0
      %1569 = vmatpush1.xpose.msra.mxu0 0.0
      %1570 = vmatprep.subr.mxu0 0.0
      %1571 = vmatpush1.xpose.msra.mxu0 0.0
      %1572 = vmatprep.subr.mxu0 0.0
      %1573 = vmatpush1.xpose.msra.mxu0 0.0
      %1574 = vmatprep.subr.mxu0 0.0
      %1575 = vmatpush1.xpose.msra.mxu0 0.0
      %1576 = vmatprep.subr.mxu0 0.0
      %1577 = vmatpush1.xpose.msra.mxu0 0.0
      %1578 = vmatprep.subr.mxu0 0.0
      %1579 = vmatpush1.xpose.msra.mxu0 0.0
      %1580 = vmatprep.subr.mxu0 0.0
      %1581 = vmatpush1.xpose.msra.mxu0 0.0
      %1582 = vmatprep.subr.mxu0 0.0
      %1583 = vmatpush1.xpose.msra.mxu0 0.0
      %1584 = vmatprep.subr.mxu0 0.0
      %1585 = vmatpush1.xpose.msra.mxu0 0.0
      %1586 = vmatprep.subr.mxu0 0.0
      %1587 = vmatpush1.xpose.msra.mxu0 0.0
      %1588 = vmatprep.subr.mxu0 0.0
      %1589 = vmatpush1.xpose.msra.mxu0 0.0
      %1590 = vmatprep.subr.mxu0 0.0
      %1591 = vmatpush1.xpose.msra.mxu0 0.0
      %1592 = vmatprep.subr.mxu0 0.0
      %1593 = vmatpush1.xpose.msra.mxu0 0.0
      %1594 = vmatprep.subr.mxu0 0.0
      %1595 = vmatpush1.xpose.msra.mxu0 0.0
      %1596 = vmatprep.mubr.f32.mxu0 0.0
      %1597 = vmatmul.mubr.f32.gmra.mrb[0].mxu0 %v1528
      %v1598 = vpop.f32.mrb[0].mxu0
      %v1599 = vadd.f32 0.0, %v1598
      %v1600 = vpop.f32.mrb[0].mxu0
      %1601 = vdwg.mxu0
      %v1602 = vmul.f32 %v1599, 0.25
      %v1603 = vsel %vm772, %v1602, -inf
      %1604 = vmax.xlane.f32.xlu0 %v1603
      %v1605 = vpop.xlane.xlu0 %1604
      %v1606 = vsub.f32 %v1602, %v1605
      %v1607 = vmul.f32 %v1606, 1.442695
      %v1608 = vpow.pop %v1607
      %v1609 = vsel %vm772, %v1608, 0.0
      %1610 = vadd.xlane.f32.xlu0 %v1609
      %v1611 = vpop.xlane.xlu0 %1610
      %v1612 = vrcp.pop %v1611
      %v1613 = vmul.f32 %v1608, %v1612
      %1614 = vrot.lane.b32.xlu0 %v1515, 64
      %v1615 = vpop.permute.xlu0 %1614
      %v1617 = vsel %vm786, %v1613, 0
      %v1619 = vsel %vm790, %v1615, 0
      %1621 = vmatprep.subr.mxu0 0.0
      %1622 = vmatpush1.msra.mxu0 %v1619
      %1623 = vmatprep.subr.mxu0 0.0
      %1624 = vmatpush1.msra.mxu0 0.0
      %1625 = vmatprep.subr.mxu0 0.0
      %1626 = vmatpush1.msra.mxu0 0.0
      %1627 = vmatprep.subr.mxu0 0.0
      %1628 = vmatpush1.msra.mxu0 0.0
      %1629 = vmatprep.subr.mxu0 0.0
      %1630 = vmatpush1.msra.mxu0 0.0
      %1631 = vmatprep.subr.mxu0 0.0
      %1632 = vmatpush1.msra.mxu0 0.0
      %1633 = vmatprep.subr.mxu0 0.0
      %1634 = vmatpush1.msra.mxu0 0.0
      %1635 = vmatprep.subr.mxu0 0.0
      %1636 = vmatpush1.msra.mxu0 0.0
      %1637 = vmatprep.subr.mxu0 0.0
      %1638 = vmatpush1.msra.mxu0 0.0
      %1639 = vmatprep.subr.mxu0 0.0
      %1640 = vmatpush1.msra.mxu0 0.0
      %1641 = vmatprep.subr.mxu0 0.0
      %1642 = vmatpush1.msra.mxu0 0.0
      %1643 = vmatprep.subr.mxu0 0.0
      %1644 = vmatpush1.msra.mxu0 0.0
      %1645 = vmatprep.subr.mxu0 0.0
      %1646 = vmatpush1.msra.mxu0 0.0
      %1647 = vmatprep.subr.mxu0 0.0
      %1648 = vmatpush1.msra.mxu0 0.0
      %1649 = vmatprep.subr.mxu0 0.0
      %1650 = vmatpush1.msra.mxu0 0.0
      %1651 = vmatprep.subr.mxu0 0.0
      %1652 = vmatpush1.msra.mxu0 0.0
      %1653 = vmatprep.subr.mxu0 0.0
      %1654 = vmatpush1.msra.mxu0 0.0
      %1655 = vmatprep.subr.mxu0 0.0
      %1656 = vmatpush1.msra.mxu0 0.0
      %1657 = vmatprep.subr.mxu0 0.0
      %1658 = vmatpush1.msra.mxu0 0.0
      %1659 = vmatprep.subr.mxu0 0.0
      %1660 = vmatpush1.msra.mxu0 0.0
      %1661 = vmatprep.subr.mxu0 0.0
      %1662 = vmatpush1.msra.mxu0 0.0
      %1663 = vmatprep.subr.mxu0 0.0
      %1664 = vmatpush1.msra.mxu0 0.0
      %1665 = vmatprep.subr.mxu0 0.0
      %1666 = vmatpush1.msra.mxu0 0.0
      %1667 = vmatprep.subr.mxu0 0.0
      %1668 = vmatpush1.msra.mxu0 0.0
      %1669 = vmatprep.subr.mxu0 0.0
      %1670 = vmatpush1.msra.mxu0 0.0
      %1671 = vmatprep.subr.mxu0 0.0
      %1672 = vmatpush1.msra.mxu0 0.0
      %1673 = vmatprep.subr.mxu0 0.0
      %1674 = vmatpush1.msra.mxu0 0.0
      %1675 = vmatprep.subr.mxu0 0.0
      %1676 = vmatpush1.msra.mxu0 0.0
      %1677 = vmatprep.subr.mxu0 0.0
      %1678 = vmatpush1.msra.mxu0 0.0
      %1679 = vmatprep.subr.mxu0 0.0
      %1680 = vmatpush1.msra.mxu0 0.0
      %1681 = vmatprep.subr.mxu0 0.0
      %1682 = vmatpush1.msra.mxu0 0.0
      %1683 = vmatprep.subr.mxu0 0.0
      %1684 = vmatpush1.msra.mxu0 0.0
      %1685 = vmatprep.mubr.f32.mxu0 0.0
      %1686 = vmatmul.mubr.f32.gmra.mrb[0].mxu0 %v1617
      %v1687 = vpop.f32.mrb[0].mxu0
      %v1688 = vadd.f32 0.0, %v1687
      %v1689 = vpop.f32.mrb[0].mxu0
      %1690 = vdwg.mxu0
      %v1692 = vsel %vm696, %v1688, 0
      %1694 = vmatprep.subr.mxu0 0.0
      %1695 = vmatpush1.msra.mxu0 %v1519
      %1696 = vmatprep.subr.mxu0 0.0
      %1697 = vmatpush1.msra.mxu0 %v1520
      %1698 = vmatprep.subr.mxu0 0.0
      %1699 = vmatpush1.msra.mxu0 0.0
      %1700 = vmatprep.subr.mxu0 0.0
      %1701 = vmatpush1.msra.mxu0 0.0
      %1702 = vmatprep.subr.mxu0 0.0
      %1703 = vmatpush1.msra.mxu0 0.0
      %1704 = vmatprep.subr.mxu0 0.0
      %1705 = vmatpush1.msra.mxu0 0.0
      %1706 = vmatprep.subr.mxu0 0.0
      %1707 = vmatpush1.msra.mxu0 0.0
      %1708 = vmatprep.subr.mxu0 0.0
      %1709 = vmatpush1.msra.mxu0 0.0
      %1710 = vmatprep.subr.mxu0 0.0
      %1711 = vmatpush1.msra.mxu0 0.0
      %1712 = vmatprep.subr.mxu0 0.0
      %1713 = vmatpush1.msra.mxu0 0.0
      %1714 = vmatprep.subr.mxu0 0.0
      %1715 = vmatpush1.msra.mxu0 0.0
      %1716 = vmatprep.subr.mxu0 0.0
      %1717 = vmatpush1.msra.mxu0 0.0
      %1718 = vmatprep.subr.mxu0 0.0
      %1719 = vmatpush1.msra.mxu0 0.0
      %1720 = vmatprep.subr.mxu0 0.0
      %1721 = vmatpush1.msra.mxu0 0.0
      %1722 = vmatprep.subr.mxu0 0.0
      %1723 = vmatpush1.msra.mxu0 0.0
      %1724 = vmatprep.subr.mxu0 0.0
      %1725 = vmatpush1.msra.mxu0 0.0
      %1726 = vmatprep.subr.mxu0 0.0
      %1727 = vmatpush1.msra.mxu0 0.0
      %1728 = vmatprep.subr.mxu0 0.0
      %1729 = vmatpush1.msra.mxu0 0.0
      %1730 = vmatprep.subr.mxu0 0.0
      %1731 = vmatpush1.msra.mxu0 0.0
      %1732 = vmatprep.subr.mxu0 0.0
      %1733 = vmatpush1.msra.mxu0 0.0
      %1734 = vmatprep.subr.mxu0 0.0
      %1735 = vmatpush1.msra.mxu0 0.0
      %1736 = vmatprep.subr.mxu0 0.0
      %1737 = vmatpush1.msra.mxu0 0.0
      %1738 = vmatprep.subr.mxu0 0.0
      %1739 = vmatpush1.msra.mxu0 0.0
      %1740 = vmatprep.subr.mxu0 0.0
      %1741 = vmatpush1.msra.mxu0 0.0
      %1742 = vmatprep.subr.mxu0 0.0
      %1743 = vmatpush1.msra.mxu0 0.0
      %1744 = vmatprep.subr.mxu0 0.0
      %1745 = vmatpush1.msra.mxu0 0.0
      %1746 = vmatprep.subr.mxu0 0.0
      %1747 = vmatpush1.msra.mxu0 0.0
      %1748 = vmatprep.subr.mxu0 0.0
      %1749 = vmatpush1.msra.mxu0 0.0
      %1750 = vmatprep.subr.mxu0 0.0
      %1751 = vmatpush1.msra.mxu0 0.0
      %1752 = vmatprep.subr.mxu0 0.0
      %1753 = vmatpush1.msra.mxu0 0.0
      %1754 = vmatprep.subr.mxu0 0.0
      %1755 = vmatpush1.msra.mxu0 0.0
      %1756 = vmatprep.subr.mxu0 0.0
      %1757 = vmatpush1.msra.mxu0 0.0
      %1758 = vmatprep.mubr.f32.mxu0 0.0
      %1759 = vmatmul.mubr.f32.gmra.mrb[0].mxu0 %v1692
      %v1760 = vpop.f32.mrb[0].mxu0
      %v1761 = vadd.f32 0.0, %v1760
      %v1762 = vpop.f32.mrb[0].mxu0
      %1763 = vdwg.mxu0
      %v1765 = vlaneseq
      %v1766 = vshrl.u32 %v1765, 7
      %v1767 = vsub.s32 0, %v1766
      %v1768 = vrot.slane %v1524, %v1767
      %v1770 = vadd.f32 %v1768, %v1761
      %1771 = vrot.lane.b32.xlu0 %v1515, 112
      %v1772 = vpop.permute.xlu0 %1771
      %1773 = vrot.lane.b32.xlu0 %v1515, 80
      %v1774 = vpop.permute.xlu0 %1773
      %v1775 = vsel %vm696, %v1772, 0
      %v1777 = vsel %vm696, %v1774, 0
      %1779 = vmatprep.subr.mxu0 0.0
      %1780 = vmatpush1.xpose.msra.mxu0 %v1777
      %1781 = vmatprep.subr.mxu0 0.0
      %1782 = vmatpush1.xpose.msra.mxu0 0.0
      %1783 = vmatprep.subr.mxu0 0.0
      %1784 = vmatpush1.xpose.msra.mxu0 0.0
      %1785 = vmatprep.subr.mxu0 0.0
      %1786 = vmatpush1.xpose.msra.mxu0 0.0
      %1787 = vmatprep.subr.mxu0 0.0
      %1788 = vmatpush1.xpose.msra.mxu0 0.0
      %1789 = vmatprep.subr.mxu0 0.0
      %1790 = vmatpush1.xpose.msra.mxu0 0.0
      %1791 = vmatprep.subr.mxu0 0.0
      %1792 = vmatpush1.xpose.msra.mxu0 0.0
      %1793 = vmatprep.subr.mxu0 0.0
      %1794 = vmatpush1.xpose.msra.mxu0 0.0
      %1795 = vmatprep.subr.mxu0 0.0
      %1796 = vmatpush1.xpose.msra.mxu0 0.0
      %1797 = vmatprep.subr.mxu0 0.0
      %1798 = vmatpush1.xpose.msra.mxu0 0.0
      %1799 = vmatprep.subr.mxu0 0.0
      %1800 = vmatpush1.xpose.msra.mxu0 0.0
      %1801 = vmatprep.subr.mxu0 0.0
      %1802 = vmatpush1.xpose.msra.mxu0 0.0
      %1803 = vmatprep.subr.mxu0 0.0
      %1804 = vmatpush1.xpose.msra.mxu0 0.0
      %1805 = vmatprep.subr.mxu0 0.0
      %1806 = vmatpush1.xpose.msra.mxu0 0.0
      %1807 = vmatprep.subr.mxu0 0.0
      %1808 = vmatpush1.xpose.msra.mxu0 0.0
      %1809 = vmatprep.subr.mxu0 0.0
      %1810 = vmatpush1.xpose.msra.mxu0 0.0
      %1811 = vmatprep.subr.mxu0 0.0
      %1812 = vmatpush1.xpose.msra.mxu0 0.0
      %1813 = vmatprep.subr.mxu0 0.0
      %1814 = vmatpush1.xpose.msra.mxu0 0.0
      %1815 = vmatprep.subr.mxu0 0.0
      %1816 = vmatpush1.xpose.msra.mxu0 0.0
      %1817 = vmatprep.subr.mxu0 0.0
      %1818 = vmatpush1.xpose.msra.mxu0 0.0
      %1819 = vmatprep.subr.mxu0 0.0
      %1820 = vmatpush1.xpose.msra.mxu0 0.0
      %1821 = vmatprep.subr.mxu0 0.0
      %1822 = vmatpush1.xpose.msra.mxu0 0.0
      %1823 = vmatprep.subr.mxu0 0.0
      %1824 = vmatpush1.xpose.msra.mxu0 0.0
      %1825 = vmatprep.subr.mxu0 0.0
      %1826 = vmatpush1.xpose.msra.mxu0 0.0
      %1827 = vmatprep.subr.mxu0 0.0
      %1828 = vmatpush1.xpose.msra.mxu0 0.0
      %1829 = vmatprep.subr.mxu0 0.0
      %1830 = vmatpush1.xpose.msra.mxu0 0.0
      %1831 = vmatprep.subr.mxu0 0.0
      %1832 = vmatpush1.xpose.msra.mxu0 0.0
      %1833 = vmatprep.subr.mxu0 0.0
      %1834 = vmatpush1.xpose.msra.mxu0 0.0
      %1835 = vmatprep.subr.mxu0 0.0
      %1836 = vmatpush1.xpose.msra.mxu0 0.0
      %1837 = vmatprep.subr.mxu0 0.0
      %1838 = vmatpush1.xpose.msra.mxu0 0.0
      %1839 = vmatprep.subr.mxu0 0.0
      %1840 = vmatpush1.xpose.msra.mxu0 0.0
      %1841 = vmatprep.subr.mxu0 0.0
      %1842 = vmatpush1.xpose.msra.mxu0 0.0
      %1843 = vmatprep.mubr.f32.mxu0 0.0
      %1844 = vmatmul.mubr.f32.gmra.mrb[0].mxu0 %v1775
      %v1845 = vpop.f32.mrb[0].mxu0
      %v1846 = vadd.f32 0.0, %v1845
      %v1847 = vpop.f32.mrb[0].mxu0
      %1848 = vdwg.mxu0
      %v1849 = vmul.f32 %v1846, 0.25
      %v1850 = vsel %vm772, %v1849, -inf
      %1851 = vmax.xlane.f32.xlu0 %v1850
      %v1852 = vpop.xlane.xlu0 %1851
      %v1853 = vsub.f32 %v1849, %v1852
      %v1854 = vmul.f32 %v1853, 1.442695
      %v1855 = vpow.pop %v1854
      %v1856 = vsel %vm772, %v1855, 0.0
      %1857 = vadd.xlane.f32.xlu0 %v1856
      %v1858 = vpop.xlane.xlu0 %1857
      %v1859 = vrcp.pop %v1858
      %v1860 = vmul.f32 %v1855, %v1859
      %1861 = vrot.lane.b32.xlu0 %v1515, 48
      %v1862 = vpop.permute.xlu0 %1861
      %v1864 = vsel %vm786, %v1860, 0
      %v1866 = vsel %vm790, %v1862, 0
      %1868 = vmatprep.subr.mxu0 0.0
      %1869 = vmatpush1.msra.mxu0 %v1866
      %1870 = vmatprep.subr.mxu0 0.0
      %1871 = vmatpush1.msra.mxu0 0.0
      %1872 = vmatprep.subr.mxu0 0.0
      %1873 = vmatpush1.msra.mxu0 0.0
      %1874 = vmatprep.subr.mxu0 0.0
      %1875 = vmatpush1.msra.mxu0 0.0
      %1876 = vmatprep.subr.mxu0 0.0
      %1877 = vmatpush1.msra.mxu0 0.0
      %1878 = vmatprep.subr.mxu0 0.0
      %1879 = vmatpush1.msra.mxu0 0.0
      %1880 = vmatprep.subr.mxu0 0.0
      %1881 = vmatpush1.msra.mxu0 0.0
      %1882 = vmatprep.subr.mxu0 0.0
      %1883 = vmatpush1.msra.mxu0 0.0
      %1884 = vmatprep.subr.mxu0 0.0
      %1885 = vmatpush1.msra.mxu0 0.0
      %1886 = vmatprep.subr.mxu0 0.0
      %1887 = vmatpush1.msra.mxu0 0.0
      %1888 = vmatprep.subr.mxu0 0.0
      %1889 = vmatpush1.msra.mxu0 0.0
      %1890 = vmatprep.subr.mxu0 0.0
      %1891 = vmatpush1.msra.mxu0 0.0
      %1892 = vmatprep.subr.mxu0 0.0
      %1893 = vmatpush1.msra.mxu0 0.0
      %1894 = vmatprep.subr.mxu0 0.0
      %1895 = vmatpush1.msra.mxu0 0.0
      %1896 = vmatprep.subr.mxu0 0.0
      %1897 = vmatpush1.msra.mxu0 0.0
      %1898 = vmatprep.subr.mxu0 0.0
      %1899 = vmatpush1.msra.mxu0 0.0
      %1900 = vmatprep.subr.mxu0 0.0
      %1901 = vmatpush1.msra.mxu0 0.0
      %1902 = vmatprep.subr.mxu0 0.0
      %1903 = vmatpush1.msra.mxu0 0.0
      %1904 = vmatprep.subr.mxu0 0.0
      %1905 = vmatpush1.msra.mxu0 0.0
      %1906 = vmatprep.subr.mxu0 0.0
      %1907 = vmatpush1.msra.mxu0 0.0
      %1908 = vmatprep.subr.mxu0 0.0
      %1909 = vmatpush1.msra.mxu0 0.0
      %1910 = vmatprep.subr.mxu0 0.0
      %1911 = vmatpush1.msra.mxu0 0.0
      %1912 = vmatprep.subr.mxu0 0.0
      %1913 = vmatpush1.msra.mxu0 0.0
      %1914 = vmatprep.subr.mxu0 0.0
      %1915 = vmatpush1.msra.mxu0 0.0
      %1916 = vmatprep.subr.mxu0 0.0
      %1917 = vmatpush1.msra.mxu0 0.0
      %1918 = vmatprep.subr.mxu0 0.0
      %1919 = vmatpush1.msra.mxu0 0.0
      %1920 = vmatprep.subr.mxu0 0.0
      %1921 = vmatpush1.msra.mxu0 0.0
      %1922 = vmatprep.subr.mxu0 0.0
      %1923 = vmatpush1.msra.mxu0 0.0
      %1924 = vmatprep.subr.mxu0 0.0
      %1925 = vmatpush1.msra.mxu0 0.0
      %1926 = vmatprep.subr.mxu0 0.0
      %1927 = vmatpush1.msra.mxu0 0.0
      %1928 = vmatprep.subr.mxu0 0.0
      %1929 = vmatpush1.msra.mxu0 0.0
      %1930 = vmatprep.subr.mxu0 0.0
      %1931 = vmatpush1.msra.mxu0 0.0
      %1932 = vmatprep.mubr.f32.mxu0 0.0
      %1933 = vmatmul.mubr.f32.gmra.mrb[0].mxu0 %v1864
      %v1934 = vpop.f32.mrb[0].mxu0
      %v1935 = vadd.f32 0.0, %v1934
      %v1936 = vpop.f32.mrb[0].mxu0
      %1937 = vdwg.mxu0
      %v1939 = vsel %vm696, %v1935, 0
      %1941 = vmatprep.subr.mxu0 0.0
      %1942 = vmatpush1.msra.mxu0 %v1521
      %1943 = vmatprep.subr.mxu0 0.0
      %1944 = vmatpush1.msra.mxu0 %v1522
      %1945 = vmatprep.subr.mxu0 0.0
      %1946 = vmatpush1.msra.mxu0 0.0
      %1947 = vmatprep.subr.mxu0 0.0
      %1948 = vmatpush1.msra.mxu0 0.0
      %1949 = vmatprep.subr.mxu0 0.0
      %1950 = vmatpush1.msra.mxu0 0.0
      %1951 = vmatprep.subr.mxu0 0.0
      %1952 = vmatpush1.msra.mxu0 0.0
      %1953 = vmatprep.subr.mxu0 0.0
      %1954 = vmatpush1.msra.mxu0 0.0
      %1955 = vmatprep.subr.mxu0 0.0
      %1956 = vmatpush1.msra.mxu0 0.0
      %1957 = vmatprep.subr.mxu0 0.0
      %1958 = vmatpush1.msra.mxu0 0.0
      %1959 = vmatprep.subr.mxu0 0.0
      %1960 = vmatpush1.msra.mxu0 0.0
      %1961 = vmatprep.subr.mxu0 0.0
      %1962 = vmatpush1.msra.mxu0 0.0
      %1963 = vmatprep.subr.mxu0 0.0
      %1964 = vmatpush1.msra.mxu0 0.0
      %1965 = vmatprep.subr.mxu0 0.0
      %1966 = vmatpush1.msra.mxu0 0.0
      %1967 = vmatprep.subr.mxu0 0.0
      %1968 = vmatpush1.msra.mxu0 0.0
      %1969 = vmatprep.subr.mxu0 0.0
      %1970 = vmatpush1.msra.mxu0 0.0
      %1971 = vmatprep.subr.mxu0 0.0
      %1972 = vmatpush1.msra.mxu0 0.0
      %1973 = vmatprep.subr.mxu0 0.0
      %1974 = vmatpush1.msra.mxu0 0.0
      %1975 = vmatprep.subr.mxu0 0.0
      %1976 = vmatpush1.msra.mxu0 0.0
      %1977 = vmatprep.subr.mxu0 0.0
      %1978 = vmatpush1.msra.mxu0 0.0
      %1979 = vmatprep.subr.mxu0 0.0
      %1980 = vmatpush1.msra.mxu0 0.0
      %1981 = vmatprep.subr.mxu0 0.0
      %1982 = vmatpush1.msra.mxu0 0.0
      %1983 = vmatprep.subr.mxu0 0.0
      %1984 = vmatpush1.msra.mxu0 0.0
      %1985 = vmatprep.subr.mxu0 0.0
      %1986 = vmatpush1.msra.mxu0 0.0
      %1987 = vmatprep.subr.mxu0 0.0
      %1988 = vmatpush1.msra.mxu0 0.0
      %1989 = vmatprep.subr.mxu0 0.0
      %1990 = vmatpush1.msra.mxu0 0.0
      %1991 = vmatprep.subr.mxu0 0.0
      %1992 = vmatpush1.msra.mxu0 0.0
      %1993 = vmatprep.subr.mxu0 0.0
      %1994 = vmatpush1.msra.mxu0 0.0
      %1995 = vmatprep.subr.mxu0 0.0
      %1996 = vmatpush1.msra.mxu0 0.0
      %1997 = vmatprep.subr.mxu0 0.0
      %1998 = vmatpush1.msra.mxu0 0.0
      %1999 = vmatprep.subr.mxu0 0.0
      %2000 = vmatpush1.msra.mxu0 0.0
      %2001 = vmatprep.subr.mxu0 0.0
      %2002 = vmatpush1.msra.mxu0 0.0
      %2003 = vmatprep.subr.mxu0 0.0
      %2004 = vmatpush1.msra.mxu0 0.0
      %2005 = vmatprep.mubr.f32.mxu0 0.0
      %2006 = vmatmul.mubr.f32.gmra.mrb[0].mxu0 %v1939
      %v2007 = vpop.f32.mrb[0].mxu0
      %v2008 = vadd.f32 0.0, %v2007
      %v2009 = vpop.f32.mrb[0].mxu0
      %2010 = vdwg.mxu0
      %v2011 = vadd.f32 %v1770, %v2008
      %v2012 = vadd.f32 %v1400, %v2011
      %s2013 = scalar_lea.vmem %s9, 1
      %v2014 = vld [vmem:[%s2013] sm:$0x1]
      %s2015 = scalar_lea.vmem %s10, 1
      %v2016 = vld [vmem:[%s2015] sm:$0x1]
      %v2017 = vsel %vm545, %v2012, 0.0
      %2018 = vadd.xlane.f32.xlu0 %v2017
      %v2019 = vpop.xlane.xlu0 %2018
      %v2020 = vmul.f32 %v2019, %v549
      %v2021 = vsub.f32 %v2012, %v2020
      %v2022 = vmul.f32 %v2021, %v2021
      %v2023 = vsel %vm545, %v2022, 0.0
      %2024 = vadd.xlane.f32.xlu0 %v2023
      %v2025 = vpop.xlane.xlu0 %2024
      %v2026 = vmul.f32 %v2025, %v549
      %v2027 = vadd.f32 %v2026, 1e-05
      %v2028 = vrsqrt.pop %v2027
      %v2029 = vmul.f32 %v2021, %v2028
      %v2031 = vlaneseq
      %v2032 = vshrl.u32 %v2031, 7
      %v2033 = vsub.s32 0, %v2032
      %v2034 = vrot.slane %v2014, %v2033
      %v2036 = vmul.f32 %v2029, %v2034
      %v2038 = vlaneseq
      %v2039 = vshrl.u32 %v2038, 7
      %v2040 = vsub.s32 0, %v2039
      %v2041 = vrot.slane %v2016, %v2040
      %v2043 = vadd.f32 %v2036, %v2041
      %s2044 = scalar_lea.vmem %s11, 32
      %v2045 = vld [vmem:[%s2044] sm:$0xff]
      %v2046 = vld [vmem:[%s2044 + $0x8] sm:$0xff]
      %v2047 = vld [vmem:[%s2044 + $0x10] sm:$0xff]
      %v2048 = vld [vmem:[%s2044 + $0x18] sm:$0xff]
      %s2049 = scalar_lea.vmem %s12, 1
      %v2050 = vld [vmem:[%s2049] sm:$0x1]
      %v2052 = vlaneseq
      %v2053 = vshrl.u32 %v2052, 7
      %v2054 = vsub.s32 0, %v2053
      %v2055 = vrot.slane %v2050, %v2054
      %v2058 = vsel %vm614, %v2043, 0
      %2060 = vmatprep.subr.mxu0 0.0
      %2061 = vmatpush1.msra.mxu0 %v2045
      %2062 = vmatprep.subr.mxu0 0.0
      %2063 = vmatpush1.msra.mxu0 %v2046
      %2064 = vmatprep.subr.mxu0 0.0
      %2065 = vmatpush1.msra.mxu0 %v2047
      %2066 = vmatprep.subr.mxu0 0.0
      %2067 = vmatpush1.msra.mxu0 %v2048
      %2068 = vmatprep.subr.mxu0 0.0
      %2069 = vmatpush1.msra.mxu0 0.0
      %2070 = vmatprep.subr.mxu0 0.0
      %2071 = vmatpush1.msra.mxu0 0.0
      %2072 = vmatprep.subr.mxu0 0.0
      %2073 = vmatpush1.msra.mxu0 0.0
      %2074 = vmatprep.subr.mxu0 0.0
      %2075 = vmatpush1.msra.mxu0 0.0
      %2076 = vmatprep.subr.mxu0 0.0
      %2077 = vmatpush1.msra.mxu0 0.0
      %2078 = vmatprep.subr.mxu0 0.0
      %2079 = vmatpush1.msra.mxu0 0.0
      %2080 = vmatprep.subr.mxu0 0.0
      %2081 = vmatpush1.msra.mxu0 0.0
      %2082 = vmatprep.subr.mxu0 0.0
      %2083 = vmatpush1.msra.mxu0 0.0
      %2084 = vmatprep.subr.mxu0 0.0
      %2085 = vmatpush1.msra.mxu0 0.0
      %2086 = vmatprep.subr.mxu0 0.0
      %2087 = vmatpush1.msra.mxu0 0.0
      %2088 = vmatprep.subr.mxu0 0.0
      %2089 = vmatpush1.msra.mxu0 0.0
      %2090 = vmatprep.subr.mxu0 0.0
      %2091 = vmatpush1.msra.mxu0 0.0
      %2092 = vmatprep.subr.mxu0 0.0
      %2093 = vmatpush1.msra.mxu0 0.0
      %2094 = vmatprep.subr.mxu0 0.0
      %2095 = vmatpush1.msra.mxu0 0.0
      %2096 = vmatprep.subr.mxu0 0.0
      %2097 = vmatpush1.msra.mxu0 0.0
      %2098 = vmatprep.subr.mxu0 0.0
      %2099 = vmatpush1.msra.mxu0 0.0
      %2100 = vmatprep.subr.mxu0 0.0
      %2101 = vmatpush1.msra.mxu0 0.0
      %2102 = vmatprep.subr.mxu0 0.0
      %2103 = vmatpush1.msra.mxu0 0.0
      %2104 = vmatprep.subr.mxu0 0.0
      %2105 = vmatpush1.msra.mxu0 0.0
      %2106 = vmatprep.subr.mxu0 0.0
      %2107 = vmatpush1.msra.mxu0 0.0
      %2108 = vmatprep.subr.mxu0 0.0
      %2109 = vmatpush1.msra.mxu0 0.0
      %2110 = vmatprep.subr.mxu0 0.0
      %2111 = vmatpush1.msra.mxu0 0.0
      %2112 = vmatprep.subr.mxu0 0.0
      %2113 = vmatpush1.msra.mxu0 0.0
      %2114 = vmatprep.subr.mxu0 0.0
      %2115 = vmatpush1.msra.mxu0 0.0
      %2116 = vmatprep.subr.mxu0 0.0
      %2117 = vmatpush1.msra.mxu0 0.0
      %2118 = vmatprep.subr.mxu0 0.0
      %2119 = vmatpush1.msra.mxu0 0.0
      %2120 = vmatprep.subr.mxu0 0.0
      %2121 = vmatpush1.msra.mxu0 0.0
      %2122 = vmatprep.subr.mxu0 0.0
      %2123 = vmatpush1.msra.mxu0 0.0
      %2124 = vmatprep.mubr.f32.mxu0 0.0
      %2125 = vmatmul.mubr.f32.gmra.mrb[0].mxu0 %v2058
      %v2126 = vpop.f32.mrb[0].mxu0
      %v2127 = vadd.f32 %v2055, %v2126
      %v2128 = vpop.f32.mrb[0].mxu0
      %2129 = vdwg.mxu0
      %v2130 = vmul.f32 %v2127, %v2127
      %v2131 = vmul.f32 %v2127, %v2130
      %v2132 = vmul.f32 %v2131, 0.044715
      %v2133 = vadd.f32 %v2127, %v2132
      %v2134 = vmul.f32 %v2133, 0.7978846
      %v2135 = vtanh.pop %v2134
      %v2136 = vadd.f32 %v2135, 1.0
      %v2137 = vmul.f32 %v2136, 0.5
      %v2138 = vmul.f32 %v2127, %v2137
      %s2139 = scalar_lea.vmem %s13, 128
      %v2140 = vld [vmem:[%s2139] sm:$0xff]
      %v2141 = vld [vmem:[%s2139 + $0x8] sm:$0xff]
      %v2142 = vld [vmem:[%s2139 + $0x10] sm:$0xff]
      %v2143 = vld [vmem:[%s2139 + $0x18] sm:$0xff]
      %v2144 = vld [vmem:[%s2139 + $0x20] sm:$0xff]
      %v2145 = vld [vmem:[%s2139 + $0x28] sm:$0xff]
      %v2146 = vld [vmem:[%s2139 + $0x30] sm:$0xff]
      %v2147 = vld [vmem:[%s2139 + $0x38] sm:$0xff]
      %v2148 = vld [vmem:[%s2139 + $0x40] sm:$0xff]
      %v2149 = vld [vmem:[%s2139 + $0x48] sm:$0xff]
      %v2150 = vld [vmem:[%s2139 + $0x50] sm:$0xff]
      %v2151 = vld [vmem:[%s2139 + $0x58] sm:$0xff]
      %v2152 = vld [vmem:[%s2139 + $0x60] sm:$0xff]
      %v2153 = vld [vmem:[%s2139 + $0x68] sm:$0xff]
      %v2154 = vld [vmem:[%s2139 + $0x70] sm:$0xff]
      %v2155 = vld [vmem:[%s2139 + $0x78] sm:$0xff]
      %s2156 = scalar_lea.vmem %s14, 1
      %v2157 = vld [vmem:[%s2156] sm:$0x1]
      %v2159 = vlaneseq
      %v2160 = vshrl.u32 %v2159, 7
      %v2161 = vsub.s32 0, %v2160
      %v2162 = vrot.slane %v2157, %v2161
      %2164 = vmatprep.subr.mxu0 0.0
      %2165 = vmatpush1.msra.mxu0 %v2140
      %2166 = vmatprep.subr.mxu0 0.0
      %2167 = vmatpush1.msra.mxu0 %v2141
      %2168 = vmatprep.subr.mxu0 0.0
      %2169 = vmatpush1.msra.mxu0 %v2142
      %2170 = vmatprep.subr.mxu0 0.0
      %2171 = vmatpush1.msra.mxu0 %v2143
      %2172 = vmatprep.subr.mxu0 0.0
      %2173 = vmatpush1.msra.mxu0 %v2144
      %2174 = vmatprep.subr.mxu0 0.0
      %2175 = vmatpush1.msra.mxu0 %v2145
      %2176 = vmatprep.subr.mxu0 0.0
      %2177 = vmatpush1.msra.mxu0 %v2146
      %2178 = vmatprep.subr.mxu0 0.0
      %2179 = vmatpush1.msra.mxu0 %v2147
      %2180 = vmatprep.subr.mxu0 0.0
      %2181 = vmatpush1.msra.mxu0 %v2148
      %2182 = vmatprep.subr.mxu0 0.0
      %2183 = vmatpush1.msra.mxu0 %v2149
      %2184 = vmatprep.subr.mxu0 0.0
      %2185 = vmatpush1.msra.mxu0 %v2150
      %2186 = vmatprep.subr.mxu0 0.0
      %2187 = vmatpush1.msra.mxu0 %v2151
      %2188 = vmatprep.subr.mxu0 0.0
      %2189 = vmatpush1.msra.mxu0 %v2152
      %2190 = vmatprep.subr.mxu0 0.0
      %2191 = vmatpush1.msra.mxu0 %v2153
      %2192 = vmatprep.subr.mxu0 0.0
      %2193 = vmatpush1.msra.mxu0 %v2154
      %2194 = vmatprep.subr.mxu0 0.0
      %2195 = vmatpush1.msra.mxu0 %v2155
      %2196 = vmatprep.subr.mxu0 0.0
      %2197 = vmatpush1.msra.mxu0 0.0
      %2198 = vmatprep.subr.mxu0 0.0
      %2199 = vmatpush1.msra.mxu0 0.0
      %2200 = vmatprep.subr.mxu0 0.0
      %2201 = vmatpush1.msra.mxu0 0.0
      %2202 = vmatprep.subr.mxu0 0.0
      %2203 = vmatpush1.msra.mxu0 0.0
      %2204 = vmatprep.subr.mxu0 0.0
      %2205 = vmatpush1.msra.mxu0 0.0
      %2206 = vmatprep.subr.mxu0 0.0
      %2207 = vmatpush1.msra.mxu0 0.0
      %2208 = vmatprep.subr.mxu0 0.0
      %2209 = vmatpush1.msra.mxu0 0.0
      %2210 = vmatprep.subr.mxu0 0.0
      %2211 = vmatpush1.msra.mxu0 0.0
      %2212 = vmatprep.subr.mxu0 0.0
      %2213 = vmatpush1.msra.mxu0 0.0
      %2214 = vmatprep.subr.mxu0 0.0
      %2215 = vmatpush1.msra.mxu0 0.0
      %2216 = vmatprep.subr.mxu0 0.0
      %2217 = vmatpush1.msra.mxu0 0.0
      %2218 = vmatprep.subr.mxu0 0.0
      %2219 = vmatpush1.msra.mxu0 0.0
      %2220 = vmatprep.subr.mxu0 0.0
      %2221 = vmatpush1.msra.mxu0 0.0
      %2222 = vmatprep.subr.mxu0 0.0
      %2223 = vmatpush1.msra.mxu0 0.0
      %2224 = vmatprep.subr.mxu0 0.0
      %2225 = vmatpush1.msra.mxu0 0.0
      %2226 = vmatprep.subr.mxu0 0.0
      %2227 = vmatpush1.msra.mxu0 0.0
      %2228 = vmatprep.mubr.f32.mxu0 0.0
      %2229 = vmatmul.mubr.f32.gmra.mrb[0].mxu0 %v2138
      %v2230 = vpop.f32.mrb[0].mxu0
      %v2231 = vadd.f32 %v2162, %v2230
      %v2232 = vpop.f32.mrb[0].mxu0
      %2233 = vdwg.mxu0
      %v2234 = vadd.f32 %v2012, %v2231
      %v2235 = vld [vmem:[%s15] sm:$0x1]
      %v2236 = vld [vmem:[%s16] sm:$0x1]
      %vm2237 = vcmask 253952
      %v2238 = vsel %vm2237, %v2234, 0.0
      %2239 = vadd.xlane.f32.xlu0 %v2238
      %v2240 = vpop.xlane.xlu0 %2239
      %v2241 = vmul.f32 %v2240, %v549
      %v2242 = vsub.f32 %v2234, %v2241
      %v2243 = vmul.f32 %v2242, %v2242
      %v2244 = vsel %vm2237, %v2243, 0.0
      %2245 = vadd.xlane.f32.xlu0 %v2244
      %v2246 = vpop.xlane.xlu0 %2245
      %v2247 = vmul.f32 %v2246, %v549
      %v2248 = vadd.f32 %v2247, 1e-05
      %v2249 = vrsqrt.pop %v2248
      %v2250 = vmul.f32 %v2242, %v2249
      %v2251 = vmul.f32 %v2250, %v2235
      %v2252 = vadd.f32 %v2251, %v2236
      %2253 = vst.msk [vmem:[%s541] sm:$0x1] %vm2237, %v2252
      %p2254 = scmp.lt.s32.totalorder %s28, 1
      %s2255 = scalar_select %p2254, %s28, 1
      %s2256 = scalar_lea.vmem %s17, %s2255
      // Predicated region
      $region89: #{xray_clip_forward.4} parent=87 // pred_check
        %p2257 = pneg %p408
      $region90: #{xray_clip_forward.4} parent=87 // pred_check_branch
        %2259 = sbr.rel (%p2257) target = $region92
      $region91: #{xray_clip_forward.4} parent=87 // pred_region
        _
      $region92: #{xray_clip_forward.4} parent=87 // pred_fallthru
        _
    $region88: #{xray_clip_forward.4} parent=5 // pred_fallthru
      _
    %p2260 = scmp.le.s32.totalorder 2, %s23
    // Predicated region
    $region93: #{xray_clip_forward.4} parent=5 // pred_check
      %p2261 = pneg %p2260
    $region94: #{xray_clip_forward.4} parent=5 // pred_check_branch
      %2263 = sbr.rel (%p2261) target = $region96
    $region95: #{xray_clip_forward.4} parent=5 // pred_region
      %s2264 = ssub.s32 %s23, 2
      // Predicated region
      $region97: #{xray_clip_forward.4} parent=95 // pred_check
        %p2265 = pneg %p414
      $region98: #{xray_clip_forward.4} parent=95 // pred_check_branch
        %2267 = sbr.rel (%p2265) target = $region100
      $region99: #{xray_clip_forward.4} parent=95 // pred_region
        %p2268 = scmp.lt.s32.totalorder %s29, 1
        %s2269 = scalar_select %p2268, %s29, 1
        %s2270 = scalar_lea.vmem %s17, %s2269
      $region100: #{xray_clip_forward.4} parent=95 // pred_fallthru
        _
    $region96: #{xray_clip_forward.4} parent=5 // pred_fallthru
      _
  $region6: #{xray_clip_forward.4} parent=0 // loop_footer
    %s27 = sadd.s32 1, %s23
  $region7: #{xray_clip_forward.4} parent=0 // loop_footer_branch
    %22 = sbr.rel target = $region3
  $region8: #{xray_clip_forward.4} parent=0 // loop_exit
    _

</llo_original>
